<compile_context>
chip_gen: v5e
topology: v5e:2x2
jax: 0.10.0
libtpu: 0.0.40
codegen_flags: <defaults>
</compile_context>

<pallas_src>
import jax
import jax.numpy as jnp
from jax.experimental import pallas as pl
from jax.experimental.pallas import tpu as pltpu

D_MODEL = 128   # embedding / model width
H_LSTM = 64     # LSTM hidden size (bidirectional -> 128 out)
SEQ = 100       # bytes per packet (fixed by the module's reshape(-1, 100, 128))
N_HEADS = 2
KMAX = 5        # largest conv kernel size (sizes are 3, 4, 5)
VMEM_LIMIT = 56 * 1024 * 1024   # fits v7x 64 MiB physical; ample on v5e/v6e


def _round_up(x, m):
    return -(-x // m) * m


def _pick_batch_tile(N, max_tile=128, align=16):
    """LSTM batch tile: multiple of 16 (bf16 sublane pack), capped at 128,
    split so the parallel grid has >= 2 steps (megacore) once batch allows."""
    Na = _round_up(N, align)
    if Na >= 2 * max_tile:
        return max_tile
    if Na >= 2 * align:
        return min(max_tile, _round_up(Na // 2, align))
    return Na


def _pick_conv_tile(N, max_tile=8):
    if N >= 2 * max_tile:
        return max_tile
    if N >= 4:
        return -(-N // 2)      # ~2 grid steps for small batches
    return max(N, 1)


def _pick_mha_tile(B, P):
    NBb = max(1, min(B, 256 // max(P, 1)))   # ~256 projection rows per step
    if B > 1 and -(-B // NBb) < 2:
        NBb = -(-B // 2)                     # keep >= 2 grid steps (megacore)
    return NBb


# ----------------------------------------------------------------------------
# Bidirectional LSTM kernel (PyTorch semantics: gates i,f,g,o ; zero init).
# xw_ref : (T, NB, 8H) bf16 hoisted input projections (+bias); fwd at time t in
#          the even 64-col sub-blocks, rev (already time-flipped) in the odd
#          ones, grouped gate-major: [i_f,i_r | f_f,f_r | o_f,o_r | g_f,g_r].
# wh_ref : (2H, 8H) bf16 block-diagonal recurrent weight in the same layout.
# out_ref: (T, NB, 2H) f32; [:, :, :H]=forward h_t, [:, :, H:]=reverse-dir h
#          still in *flipped* time order (un-flipped in XLA by the wrapper).
# ----------------------------------------------------------------------------
def bilstm_kernel(xw_ref, wh_ref, out_ref, h_sc, c_sc):
    T = xw_ref.shape[0]
    Hd = out_ref.shape[2] // 2

    # per-grid-step init (output block differs per step -> not an accumulator)
    h_sc[...] = jnp.zeros_like(h_sc)
    c_sc[...] = jnp.zeros_like(c_sc)

    @pl.loop(0, T)
    def _(t):
        rec = jnp.dot(h_sc[...].astype(jnp.bfloat16), wh_ref[...],
                      preferred_element_type=jnp.float32)           # (NB, 8H)
        gates = xw_ref[t].astype(jnp.float32) + rec                 # (NB, 8H)
        sig = jax.nn.sigmoid(gates[:, 0:6 * Hd])                    # i|f|o, both dirs
        g_t = jnp.tanh(gates[:, 6 * Hd:8 * Hd])                     # g, both dirs
        i_g = sig[:, 0:2 * Hd]
        f_g = sig[:, 2 * Hd:4 * Hd]
        o_g = sig[:, 4 * Hd:6 * Hd]
        c_new = f_g * c_sc[...] + i_g * g_t
        h_new = o_g * jnp.tanh(c_new)
        h_sc[...] = h_new
        c_sc[...] = c_new
        # single full-width 128-lane (unmasked) store per step; the reverse
        # half is re-ordered in time by a cheap XLA flip after the kernel.
        out_ref[t] = h_new


def bilstm(x, params):
    """x: (N, T, D) f32 -> (N, T, 2*H) f32 (PyTorch bidirectional LSTM)."""
    wif, whf, bf, wir, whr, br = params      # PyTorch layout (in,out), gates i,f,g,o
    N, T, D = x.shape
    H = whf.shape[0]

    def split(w):
        return (w[..., 0:H], w[..., H:2 * H], w[..., 2 * H:3 * H], w[..., 3 * H:4 * H])

    wi_i_f, wi_f_f, wi_g_f, wi_o_f = split(wif)
    wi_i_r, wi_f_r, wi_g_r, wi_o_r = split(wir)
    b_i_f, b_f_f, b_g_f, b_o_f = split(bf)
    b_i_r, b_f_r, b_g_r, b_o_r = split(br)
    wh_i_f, wh_f_f, wh_g_f, wh_o_f = split(whf)
    wh_i_r, wh_f_r, wh_g_r, wh_o_r = split(whr)

    # --- hoisted input projection (one big bf16 MXU matmul per direction) ---
    wi_fwd = jnp.concatenate([wi_i_f, wi_f_f, wi_o_f, wi_g_f], axis=1)   # (D,4H) i,f,o,g
    wi_rev = jnp.concatenate([wi_i_r, wi_f_r, wi_o_r, wi_g_r], axis=1)
    b_fwd = jnp.concatenate([b_i_f, b_f_f, b_o_f, b_g_f], axis=1)
    b_rev = jnp.concatenate([b_i_r, b_f_r, b_o_r, b_g_r], axis=1)

    xt = jnp.transpose(x, (1, 0, 2)).astype(jnp.bfloat16)                # (T, N, D)
    xw_f = jnp.dot(xt.reshape(T * N, D), wi_fwd.astype(jnp.bfloat16),
                   preferred_element_type=jnp.float32) + b_fwd
    xw_r = jnp.dot(xt[::-1].reshape(T * N, D), wi_rev.astype(jnp.bfloat16),
                   preferred_element_type=jnp.float32) + b_rev           # time-flipped
    # interleave directions inside each gate block -> [i_f,i_r,f_f,f_r,o_f,o_r,g_f,g_r]
    # and stream into the kernel as bf16 (it is only an MXU/VPU operand there).
    xw = jnp.concatenate(
        [xw_f.reshape(T, N, 4, 1, H), xw_r.reshape(T, N, 4, 1, H)], axis=3
    ).reshape(T, N, 8 * H).astype(jnp.bfloat16)

    # --- fused (block-diagonal) recurrent weight, same column layout ---
    Z = jnp.zeros((H, H), jnp.float32)

    def gate_cols(wf, wr):
        return jnp.concatenate(
            [jnp.concatenate([wf, Z], axis=0), jnp.concatenate([Z, wr], axis=0)],
            axis=1)                                                      # (2H, 2H)

    wh_comb = jnp.concatenate(
        [gate_cols(wh_i_f, wh_i_r), gate_cols(wh_f_f, wh_f_r),
         gate_cols(wh_o_f, wh_o_r), gate_cols(wh_g_f, wh_g_r)], axis=1)  # (2H, 8H)

    # --- big batch tile over a parallel grid axis (MXU M fill + megacore) ---
    NB = _pick_batch_tile(N)
    Ng = pl.cdiv(N, NB)
    Np = Ng * NB
    if Np != N:
        xw = jnp.pad(xw, ((0, 0), (0, Np - N), (0, 0)))

    out = pl.pallas_call(
        bilstm_kernel,
        out_shape=jax.ShapeDtypeStruct((T, Np, 2 * H), jnp.float32),
        grid=(Ng,),
        in_specs=[pl.BlockSpec((T, NB, 8 * H), lambda n: (0, n, 0)),
                  pl.BlockSpec((2 * H, 8 * H), lambda n: (0, 0))],
        out_specs=pl.BlockSpec((T, NB, 2 * H), lambda n: (0, n, 0)),
        scratch_shapes=[pltpu.VMEM((NB, 2 * H), jnp.float32),
                        pltpu.VMEM((NB, 2 * H), jnp.float32)],
        compiler_params=pltpu.CompilerParams(
            dimension_semantics=("parallel",),
            vmem_limit_bytes=VMEM_LIMIT),
    )(xw, wh_comb.astype(jnp.bfloat16))

    # forward half is time-aligned; reverse half was produced on the flipped
    # time stream -> flip it back along time in XLA (cheap HBM-BW copy).
    res = jnp.concatenate([out[:, :, :H], out[::-1, :, H:]], axis=-1)    # (T, Np, 2H)
    return jnp.transpose(res, (1, 0, 2))[:N]


# ----------------------------------------------------------------------------
# TextCNN-style conv block: Conv2d(1,128,(k,128)) + ReLU + max over length for
# k = 3,4,5, fused into ONE im2col matmul per grid step.
# x_ref  : (1, NC*L + 8, D) f32 slab (NC samples of length L, 8 zero pad rows;
#          rows belonging to the next sample / padding only feed positions that
#          get masked before the max)
# w_ref  : (KMAX*D, 3D) bf16 im2col weight (tap-major rows, per-k column blocks)
# b_ref  : (1, 3D) f32 ; out_ref: (1, NC, 3D) f32
# ----------------------------------------------------------------------------
def conv_text_kernel(x_ref, w_ref, b_ref, out_ref):
    NC, C = out_ref.shape[1], out_ref.shape[2]
    D = x_ref.shape[2]
    R = x_ref.shape[1] - 8
    L = R // NC

    # im2col from ref slices (views into the input block; no full-slab value):
    # 5 shifted (R, D) slices concatenated along lanes -> single K=5*D matmul.
    xcols = jnp.concatenate(
        [x_ref[0, pl.ds(dk, R), :].astype(jnp.bfloat16) for dk in range(KMAX)],
        axis=-1)                                                     # (R, 5D) bf16
    acc = jnp.dot(xcols, w_ref[...], preferred_element_type=jnp.float32)   # (R, C)
    acc = jnp.maximum(acc + b_ref[...], 0.0)                         # bias + ReLU
    acc = acc.reshape(NC, L, C)                                      # L % 8 == 0

    # per-kernel-size valid-length mask: each k owns one 128-lane channel block,
    # so a single position iota + scalar compare per block suffices.
    pos = jax.lax.broadcasted_iota(jnp.int32, (1, L, 1), 1)
    pooled = []
    for idx, k in enumerate((3, 4, 5)):
        blk = jnp.where(pos <= L - k, acc[:, :, idx * D:(idx + 1) * D], 0.0)
        pooled.append(jnp.max(blk, axis=1))                          # (NC, D); ReLU>=0 -> exact
    out_ref[0] = jnp.concatenate(pooled, axis=-1)                    # (NC, 3D)


def text_conv_pool(x, w_all, b_all):
    """x: (N, L, D) f32 -> (N, 3*D) f32 (per-kernel-size max-pooled features)."""
    N, L, D = x.shape
    C = b_all.shape[1]
    NC = _pick_conv_tile(N)
    Ng = pl.cdiv(N, NC)
    Np = Ng * NC
    if Np != N:
        x = jnp.pad(x, ((0, Np - N), (0, 0), (0, 0)))
    xc = x.reshape(Ng, NC * L, D)
    xc = jnp.concatenate([xc, jnp.zeros((Ng, 8, D), x.dtype)], axis=1)

    out = pl.pallas_call(
        conv_text_kernel,
        out_shape=jax.ShapeDtypeStruct((Ng, NC, C), jnp.float32),
        grid=(Ng,),
        in_specs=[pl.BlockSpec((1, NC * L + 8, D), lambda n: (n, 0, 0)),
                  pl.BlockSpec(w_all.shape, lambda n: (0, 0)),
                  pl.BlockSpec((1, C), lambda n: (0, 0))],
        out_specs=pl.BlockSpec((1, NC, C), lambda n: (n, 0, 0)),
        compiler_params=pltpu.CompilerParams(
            dimension_semantics=("parallel",),
            vmem_limit_bytes=VMEM_LIMIT),
    )(xc, w_all, b_all)
    return out.reshape(Np, C)[:N]


# ----------------------------------------------------------------------------
# Multi-head self attention (d_model=128, 2 heads), fused QKV / O projections.
# Multiple batch rows per grid step: projections run on (NBb*P, D) folded rows,
# attention is heads-batched over the NBb samples.
# ----------------------------------------------------------------------------
def mha_kernel(x_ref, wqkv_ref, bqkv_ref, wo_ref, bo_ref, out_ref):
    NBb, P, D = x_ref.shape
    dh = D // N_HEADS
    scale = 1.0 / (dh ** 0.5)

    x2 = x_ref[...].reshape(NBb * P, D)                                # bf16
    qkv = jnp.dot(x2, wqkv_ref[...],
                  preferred_element_type=jnp.float32) + bqkv_ref[...]  # (NBb*P, 3D)
    q = qkv[:, 0:D].reshape(NBb, P, D)
    k = qkv[:, D:2 * D].reshape(NBb, P, D)
    v = qkv[:, 2 * D:3 * D].reshape(NBb, P, D)

    ctx_heads = []
    for h in range(N_HEADS):
        qh = q[..., h * dh:(h + 1) * dh].astype(jnp.bfloat16)
        kh = k[..., h * dh:(h + 1) * dh].astype(jnp.bfloat16)
        vh = v[..., h * dh:(h + 1) * dh].astype(jnp.bfloat16)
        s = jnp.einsum('bqd,bkd->bqk', qh, kh,
                       preferred_element_type=jnp.float32) * scale
        s = s - jnp.max(s, axis=-1, keepdims=True)
        e = jnp.exp(s)
        att = e * pl.reciprocal(jnp.sum(e, axis=-1, keepdims=True), approx=True)
        ctx_heads.append(jnp.einsum('bqk,bkd->bqd', att.astype(jnp.bfloat16), vh,
                                    preferred_element_type=jnp.float32))
    ctx = jnp.concatenate(ctx_heads, axis=-1).reshape(NBb * P, D)
    out = jnp.dot(ctx.astype(jnp.bfloat16), wo_ref[...],
                  preferred_element_type=jnp.float32) + bo_ref[...]
    out_ref[...] = out.reshape(NBb, P, D)


def multihead_attention(x, wq, bq, wk, bk, wv, bv, wo, bo):
    """x: (B, P, D) f32 -> context (B, P, D) f32."""
    B, P, D = x.shape
    wqkv = jnp.concatenate([wq, wk, wv], axis=1).astype(jnp.bfloat16)    # (D, 3D)
    bqkv = jnp.concatenate([bq, bk, bv], axis=1)                         # (1, 3D)

    NBb = _pick_mha_tile(B, P)
    Ng = pl.cdiv(B, NBb)
    Bp = Ng * NBb
    xb = x.astype(jnp.bfloat16)                                          # MXU-only stream
    if Bp != B:
        xb = jnp.pad(xb, ((0, Bp - B), (0, 0), (0, 0)))

    out = pl.pallas_call(
        mha_kernel,
        out_shape=jax.ShapeDtypeStruct((Bp, P, D), jnp.float32),
        grid=(Ng,),
        in_specs=[pl.BlockSpec((NBb, P, D), lambda b: (b, 0, 0)),
                  pl.BlockSpec((D, 3 * D), lambda b: (0, 0)),
                  pl.BlockSpec((1, 3 * D), lambda b: (0, 0)),
                  pl.BlockSpec((D, D), lambda b: (0, 0)),
                  pl.BlockSpec((1, D), lambda b: (0, 0))],
        out_specs=pl.BlockSpec((NBb, P, D), lambda b: (b, 0, 0)),
        compiler_params=pltpu.CompilerParams(
            dimension_semantics=("parallel",),
            vmem_limit_bytes=VMEM_LIMIT),
    )(xb, wqkv, bqkv, wo.astype(jnp.bfloat16), bo)
    return out[:B]


# ----------------------------------------------------------------------------
# Parameter initialization (deterministic, synthetic; PyTorch-style layouts)
# ----------------------------------------------------------------------------
def init_params(key):
    keys = jax.random.split(key, 32)
    ki = iter(keys)

    def nrm(shape, std):
        return jax.random.normal(next(ki), shape, jnp.float32) * std

    def lstm_params():
        # W_ih:(D,4H)  W_hh:(H,4H)  bias:(1,4H)  (b_ih + b_hh merged), gates i,f,g,o
        return (nrm((D_MODEL, 4 * H_LSTM), 0.05),
                nrm((H_LSTM, 4 * H_LSTM), 0.05),
                nrm((1, 4 * H_LSTM), 0.05),
                nrm((D_MODEL, 4 * H_LSTM), 0.05),
                nrm((H_LSTM, 4 * H_LSTM), 0.05),
                nrm((1, 4 * H_LSTM), 0.05))

    params = {
        "embedding": nrm((257, D_MODEL), 0.1),
        "rnn1": lstm_params(),
        "rnn2": lstm_params(),
        # conv weight layout: (k, in_feature=128, out_channel=128)
        "convs": (nrm((3, D_MODEL, D_MODEL), 0.02), nrm((1, D_MODEL), 0.02),
                  nrm((4, D_MODEL, D_MODEL), 0.02), nrm((1, D_MODEL), 0.02),
                  nrm((5, D_MODEL, D_MODEL), 0.02), nrm((1, D_MODEL), 0.02)),
        "mha": (nrm((D_MODEL, D_MODEL), 0.05), nrm((1, D_MODEL), 0.05),
                nrm((D_MODEL, D_MODEL), 0.05), nrm((1, D_MODEL), 0.05),
                nrm((D_MODEL, D_MODEL), 0.05), nrm((1, D_MODEL), 0.05),
                nrm((D_MODEL, D_MODEL), 0.05), nrm((1, D_MODEL), 0.05)),
    }
    return params


# ----------------------------------------------------------------------------
# Full forward pass (mirrors HST_MHSA.forward)
# ----------------------------------------------------------------------------
@jax.jit
def hst_mhsa_forward(tokens, params):
    B, P, S = tokens.shape  # S must be 100 (module reshapes to (-1, 100, 128))

    # embedding lookup (glue: gather)
    emb = params["embedding"][tokens]                        # (B,P,S,128)
    emb_flat = emb.reshape(B * P, S, D_MODEL)

    # rnn_1 : bidirectional LSTM over each packet's 100 bytes
    emb_lstm = bilstm(emb_flat, params["rnn1"])              # (B*P, S, 128)

    # cat((lstm, embedding), dim=2) -> (B*P, 200, 128)
    emb_cat = jnp.concatenate(
        [emb_lstm.reshape(B, P, S, D_MODEL), emb], axis=2
    ).reshape(B * P, 2 * S, D_MODEL)

    # Conv2d(1,128,(k,128)) + ReLU + max-over-length for k=3,4,5 -> (B*P, 384)
    # im2col weight: rows tap-major (dk*D + feature), per-k 128-lane col blocks.
    w3, b3, w4, b4, w5, b5 = params["convs"]

    def pad_taps(w, k):
        pad = jnp.zeros((KMAX - k, D_MODEL, D_MODEL), w.dtype)
        return jnp.concatenate([w, pad], axis=0).reshape(KMAX * D_MODEL, D_MODEL)

    w_all = jnp.concatenate([pad_taps(w3, 3), pad_taps(w4, 4), pad_taps(w5, 5)],
                            axis=1)                          # (640, 384)
    b_all = jnp.concatenate([b3, b4, b5], axis=1)            # (1, 384)
    packet_text = text_conv_pool(emb_cat, w_all.astype(jnp.bfloat16), b_all)

    # AdaptiveMaxPool2d((128,1)) on (B*P, 384, 1): max over consecutive triples
    text = packet_text.reshape(B * P, D_MODEL, 3).max(axis=-1)
    text = text.reshape(B, P, D_MODEL)

    # rnn_2 : bidirectional LSTM over packets
    text_rnn = bilstm(text, params["rnn2"])                  # (B, P, 128)

    # multi-head self attention
    context = multihead_attention(text_rnn, *params["mha"])  # (B, P, 128)

    # AdaptiveAvgPool2d((2,1)) over (P, 128) then squeeze -> (B, 2)   (glue)
    e0 = -(-P // 2)   # ceil(P/2)
    s1 = P // 2
    out0 = context[:, :e0, :].mean(axis=(1, 2))
    out1 = context[:, s1:, :].mean(axis=(1, 2))
    return jnp.stack([out0, out1], axis=1)


if __name__ == "__main__":
    key = jax.random.PRNGKey(0)
    pkey, tkey = jax.random.split(key)

    params = init_params(pkey)

    B, P = 2, 4
    tokens = jax.random.randint(tkey, (B, P, SEQ), 0, 257, dtype=jnp.int32)

    out = hst_mhsa_forward(tokens, params)
    out = jax.block_until_ready(out)

    assert out.shape == (B, 2), out.shape
    assert jnp.all(jnp.isfinite(out))
    print("KERNEL_OK")
</pallas_src>

<mosaic_0001>
module attributes {stable_mosaic.version = 11 : i64} {
  func.func @bilstm_kernel(%arg0: i32, %arg1: memref<100x16x512xbf16, #tpu.memory_space<vmem>>, %arg2: memref<128x512xbf16, #tpu.memory_space<vmem>>, %arg3: memref<100x16x128xf32, #tpu.memory_space<vmem>>, %arg4: memref<16x128xf32, #tpu.memory_space<vmem>>, %arg5: memref<16x128xf32, #tpu.memory_space<vmem>>) attributes {dimension_semantics = [#tpu.dimension_semantics<parallel>], iteration_bounds = array<i64: 1>, scalar_prefetch = 0 : i64, scratch_operands = 2 : i64, tpu.core_type = #tpu.core_type<tc>, window_params = [{transform_indices = @transform_0, window_bounds = array<i64: 100, 16, 512>}, {pipeline_mode = #tpu.pipeline_mode<synchronous>, transform_indices = @transform_1, window_bounds = array<i64: 128, 512>}, {transform_indices = @transform_2, window_bounds = array<i64: 100, 16, 128>}]} {
    %cst = arith.constant 0.000000e+00 : f32
    %0 = vector.broadcast %cst : f32 to vector<16x128xf32>
    %c0 = arith.constant 0 : index
    %c0_0 = arith.constant 0 : index
    %1 = vector.load %arg4[%c0, %c0_0] : memref<16x128xf32, #tpu.memory_space<vmem>>, vector<16x128xf32>
    tpu.vector_store %arg4[%c0, %c0_0], %0 {strides = array<i32>} : memref<16x128xf32, #tpu.memory_space<vmem>>, vector<16x128xf32>,
    %cst_1 = arith.constant 0.000000e+00 : f32
    %2 = vector.broadcast %cst_1 : f32 to vector<16x128xf32>
    %c0_2 = arith.constant 0 : index
    %c0_3 = arith.constant 0 : index
    %3 = vector.load %arg5[%c0_2, %c0_3] : memref<16x128xf32, #tpu.memory_space<vmem>>, vector<16x128xf32>
    tpu.vector_store %arg5[%c0_2, %c0_3], %2 {strides = array<i32>} : memref<16x128xf32, #tpu.memory_space<vmem>>, vector<16x128xf32>,
    %c0_i32 = arith.constant 0 : i32
    %c100_i32 = arith.constant 100 : i32
    %4 = arith.addi %c0_i32, %c100_i32 : i32
    %c1_i32 = arith.constant 1 : i32
    scf.for %arg6 = %c0_i32 to %4 step %c1_i32  : i32 {
      %c1_i32_5 = arith.constant 1 : i32
      %5 = arith.muli %arg6, %c1_i32_5 : i32
      %c0_i32_6 = arith.constant 0 : i32
      %6 = arith.addi %c0_i32_6, %5 : i32
      %c0_7 = arith.constant 0 : index
      %c0_8 = arith.constant 0 : index
      %7 = vector.load %arg4[%c0_7, %c0_8] : memref<16x128xf32, #tpu.memory_space<vmem>>, vector<16x128xf32>
      %8 = arith.truncf %7 : vector<16x128xf32> to vector<16x128xbf16>
      %c0_9 = arith.constant 0 : index
      %c0_10 = arith.constant 0 : index
      %9 = vector.load %arg2[%c0_9, %c0_10] : memref<128x512xbf16, #tpu.memory_space<vmem>>, vector<128x512xbf16>
      %cst_11 = arith.constant dense<0.000000e+00> : vector<16x512xf32>
      %10 = tpu.matmul %8, %9, %cst_11 {dimension_numbers = #tpu.dot_dimension_numbers<[1], [0], [0], [1], [0, 0, 1, 1], [], []>} : vector<16x128xbf16>, vector<128x512xbf16>, vector<16x512xf32> -> vector<16x512xf32>
      %11 = arith.index_cast %6 : i32 to index
      %c0_12 = arith.constant 0 : index
      %c0_13 = arith.constant 0 : index
      %12 = vector.load %arg1[%11, %c0_12, %c0_13] : memref<100x16x512xbf16, #tpu.memory_space<vmem>>, vector<1x16x512xbf16>
      %13 = vector.shape_cast %12 : vector<1x16x512xbf16> to vector<16x512xbf16>
      %14 = arith.extf %13 : vector<16x512xbf16> to vector<16x512xf32>
      %15 = arith.addf %14, %10 : vector<16x512xf32>
      %16 = vector.extract_strided_slice %15 {offsets = [0, 0], sizes = [16, 384], strides = [1, 1]} : vector<16x512xf32> to vector<16x384xf32>
      %17 = arith.negf %16 : vector<16x384xf32>
      %18 = math.exp %17 : vector<16x384xf32>
      %cst_14 = arith.constant 1.000000e+00 : f32
      %19 = vector.broadcast %cst_14 : f32 to vector<16x384xf32>
      %20 = arith.addf %19, %18 : vector<16x384xf32>
      %21 = arith.divf %19, %20 : vector<16x384xf32>
      %22 = vector.extract_strided_slice %15 {offsets = [0, 384], sizes = [16, 128], strides = [1, 1]} : vector<16x512xf32> to vector<16x128xf32>
      %23 = math.tanh %22 : vector<16x128xf32>
      %24 = vector.extract_strided_slice %21 {offsets = [0, 0], sizes = [16, 128], strides = [1, 1]} : vector<16x384xf32> to vector<16x128xf32>
      %25 = vector.extract_strided_slice %21 {offsets = [0, 128], sizes = [16, 128], strides = [1, 1]} : vector<16x384xf32> to vector<16x128xf32>
      %26 = vector.extract_strided_slice %21 {offsets = [0, 256], sizes = [16, 128], strides = [1, 1]} : vector<16x384xf32> to vector<16x128xf32>
      %c0_15 = arith.constant 0 : index
      %c0_16 = arith.constant 0 : index
      %27 = vector.load %arg5[%c0_15, %c0_16] : memref<16x128xf32, #tpu.memory_space<vmem>>, vector<16x128xf32>
      %28 = arith.mulf %25, %27 : vector<16x128xf32>
      %29 = arith.mulf %24, %23 : vector<16x128xf32>
      %30 = arith.addf %28, %29 : vector<16x128xf32>
      %31 = math.tanh %30 : vector<16x128xf32>
      %32 = arith.mulf %26, %31 : vector<16x128xf32>
      %c0_17 = arith.constant 0 : index
      %c0_18 = arith.constant 0 : index
      %33 = vector.load %arg4[%c0_17, %c0_18] : memref<16x128xf32, #tpu.memory_space<vmem>>, vector<16x128xf32>
      tpu.vector_store %arg4[%c0_17, %c0_18], %32 {strides = array<i32>} : memref<16x128xf32, #tpu.memory_space<vmem>>, vector<16x128xf32>,
      %c0_19 = arith.constant 0 : index
      %c0_20 = arith.constant 0 : index
      %34 = vector.load %arg5[%c0_19, %c0_20] : memref<16x128xf32, #tpu.memory_space<vmem>>, vector<16x128xf32>
      tpu.vector_store %arg5[%c0_19, %c0_20], %30 {strides = array<i32>} : memref<16x128xf32, #tpu.memory_space<vmem>>, vector<16x128xf32>,
      %35 = arith.index_cast %6 : i32 to index
      %c0_21 = arith.constant 0 : index
      %c0_22 = arith.constant 0 : index
      %36 = vector.load %arg3[%35, %c0_21, %c0_22] : memref<100x16x128xf32, #tpu.memory_space<vmem>>, vector<1x16x128xf32>
      %37 = vector.shape_cast %36 : vector<1x16x128xf32> to vector<16x128xf32>
      %38 = vector.shape_cast %32 : vector<16x128xf32> to vector<1x16x128xf32>
      tpu.vector_store %arg3[%35, %c0_21, %c0_22], %38 {strides = array<i32>} : memref<100x16x128xf32, #tpu.memory_space<vmem>>, vector<1x16x128xf32>,
    }
    %c100_i32_4 = arith.constant 100 : i32
    return
  }
  func.func @transform_0(%arg0: i32) -> (i32, i32, i32) {
    %c0_i32 = arith.constant 0 : i32
    %c0_i32_0 = arith.constant 0 : i32
    %c0_i32_1 = arith.constant 0 : i32
    return %c0_i32, %arg0, %c0_i32_0 : i32, i32, i32
  }
  func.func @transform_1(%arg0: i32) -> (i32, i32) {
    %c0_i32 = arith.constant 0 : i32
    %c0_i32_0 = arith.constant 0 : i32
    %c0_i32_1 = arith.constant 0 : i32
    return %c0_i32, %c0_i32_0 : i32, i32
  }
  func.func @transform_2(%arg0: i32) -> (i32, i32, i32) {
    %c0_i32 = arith.constant 0 : i32
    %c0_i32_0 = arith.constant 0 : i32
    %c0_i32_1 = arith.constant 0 : i32
    return %c0_i32, %arg0, %c0_i32_0 : i32, i32, i32
  }
}

module attributes {stable_mosaic.version = 11 : i64} {
  func.func @conv_text_kernel(%arg0: i32, %arg1: memref<1x808x128xf32, #tpu.memory_space<vmem>>, %arg2: memref<640x384xbf16, #tpu.memory_space<vmem>>, %arg3: memref<1x384xf32, #tpu.memory_space<vmem>>, %arg4: memref<1x4x384xf32, #tpu.memory_space<vmem>>) attributes {dimension_semantics = [#tpu.dimension_semantics<parallel>], iteration_bounds = array<i64: 2>, scalar_prefetch = 0 : i64, scratch_operands = 0 : i64, tpu.core_type = #tpu.core_type<tc>, window_params = [{transform_indices = @transform_0, window_bounds = array<i64: 1, 808, 128>}, {pipeline_mode = #tpu.pipeline_mode<synchronous>, transform_indices = @transform_1, window_bounds = array<i64: 640, 384>}, {pipeline_mode = #tpu.pipeline_mode<synchronous>, transform_indices = @transform_2, window_bounds = array<i64: 1, 384>}, {transform_indices = @transform_3, window_bounds = array<i64: 1, 4, 384>}]} {
    %c0 = arith.constant 0 : index
    %c0_0 = arith.constant 0 : index
    %c0_1 = arith.constant 0 : index
    %0 = vector.load %arg1[%c0, %c0_0, %c0_1] : memref<1x808x128xf32, #tpu.memory_space<vmem>>, vector<1x800x128xf32>
    %1 = vector.shape_cast %0 : vector<1x800x128xf32> to vector<800x128xf32>
    %2 = arith.truncf %1 : vector<800x128xf32> to vector<800x128xbf16>
    %c0_2 = arith.constant 0 : index
    %c1 = arith.constant 1 : index
    %c0_3 = arith.constant 0 : index
    %3 = vector.load %arg1[%c0_2, %c1, %c0_3] : memref<1x808x128xf32, #tpu.memory_space<vmem>>, vector<1x800x128xf32>
    %4 = vector.shape_cast %3 : vector<1x800x128xf32> to vector<800x128xf32>
    %5 = arith.truncf %4 : vector<800x128xf32> to vector<800x128xbf16>
    %c0_4 = arith.constant 0 : index
    %c2 = arith.constant 2 : index
    %c0_5 = arith.constant 0 : index
    %6 = vector.load %arg1[%c0_4, %c2, %c0_5] : memref<1x808x128xf32, #tpu.memory_space<vmem>>, vector<1x800x128xf32>
    %7 = vector.shape_cast %6 : vector<1x800x128xf32> to vector<800x128xf32>
    %8 = arith.truncf %7 : vector<800x128xf32> to vector<800x128xbf16>
    %c0_6 = arith.constant 0 : index
    %c3 = arith.constant 3 : index
    %c0_7 = arith.constant 0 : index
    %9 = vector.load %arg1[%c0_6, %c3, %c0_7] : memref<1x808x128xf32, #tpu.memory_space<vmem>>, vector<1x800x128xf32>
    %10 = vector.shape_cast %9 : vector<1x800x128xf32> to vector<800x128xf32>
    %11 = arith.truncf %10 : vector<800x128xf32> to vector<800x128xbf16>
    %c0_8 = arith.constant 0 : index
    %c4 = arith.constant 4 : index
    %c0_9 = arith.constant 0 : index
    %12 = vector.load %arg1[%c0_8, %c4, %c0_9] : memref<1x808x128xf32, #tpu.memory_space<vmem>>, vector<1x800x128xf32>
    %13 = vector.shape_cast %12 : vector<1x800x128xf32> to vector<800x128xf32>
    %14 = arith.truncf %13 : vector<800x128xf32> to vector<800x128xbf16>
    %15 = tpu.concatenate %2, %5, %8, %11, %14 in 1 : vector<800x128xbf16>, vector<800x128xbf16>, vector<800x128xbf16>, vector<800x128xbf16>, vector<800x128xbf16> -> vector<800x640xbf16>
    %c0_10 = arith.constant 0 : index
    %c0_11 = arith.constant 0 : index
    %16 = vector.load %arg2[%c0_10, %c0_11] : memref<640x384xbf16, #tpu.memory_space<vmem>>, vector<640x384xbf16>
    %cst = arith.constant dense<0.000000e+00> : vector<800x384xf32>
    %17 = tpu.matmul %15, %16, %cst {dimension_numbers = #tpu.dot_dimension_numbers<[1], [0], [0], [1], [0, 0, 1, 1], [], []>} : vector<800x640xbf16>, vector<640x384xbf16>, vector<800x384xf32> -> vector<800x384xf32>
    %c0_12 = arith.constant 0 : index
    %c0_13 = arith.constant 0 : index
    %18 = vector.load %arg3[%c0_12, %c0_13] : memref<1x384xf32, #tpu.memory_space<vmem>>, vector<1x384xf32>
    %19 = vector.broadcast %18 : vector<1x384xf32> to vector<800x384xf32>
    %20 = arith.addf %17, %19 : vector<800x384xf32>
    %cst_14 = arith.constant 0.000000e+00 : f32
    %21 = vector.broadcast %cst_14 : f32 to vector<800x384xf32>
    %22 = arith.maximumf %20, %21 : vector<800x384xf32>
    %23 = vector.shape_cast %22 : vector<800x384xf32> to vector<4x200x384xf32>
    %24 = tpu.iota {dimensions = array<i32: 1>} : vector<1x200x1xi32>
    %c197_i32 = arith.constant 197 : i32
    %25 = vector.broadcast %c197_i32 : i32 to vector<1x200x1xi32>
    %26 = arith.cmpi sle, %24, %25 : vector<1x200x1xi32>
    %27 = vector.extract_strided_slice %23 {offsets = [0, 0, 0], sizes = [4, 200, 128], strides = [1, 1, 1]} : vector<4x200x384xf32> to vector<4x200x128xf32>
    %cst_15 = arith.constant 0.000000e+00 : f32
    %28 = vector.shape_cast %26 : vector<1x200x1xi1> to vector<1x200x1xi1>
    %29 = vector.broadcast %28 : vector<1x200x1xi1> to vector<4x200x128xi1>
    %30 = vector.broadcast %cst_15 : f32 to vector<4x200x128xf32>
    %31 = arith.select %29, %27, %30 : vector<4x200x128xi1>, vector<4x200x128xf32>
    %cst_16 = arith.constant dense<0xFF800000> : vector<4x128xf32>
    %32 = vector.multi_reduction <maximumf>, %31, %cst_16 [1] : vector<4x200x128xf32> to vector<4x128xf32>
    %c196_i32 = arith.constant 196 : i32
    %33 = vector.broadcast %c196_i32 : i32 to vector<1x200x1xi32>
    %34 = arith.cmpi sle, %24, %33 : vector<1x200x1xi32>
    %35 = vector.extract_strided_slice %23 {offsets = [0, 0, 128], sizes = [4, 200, 128], strides = [1, 1, 1]} : vector<4x200x384xf32> to vector<4x200x128xf32>
    %cst_17 = arith.constant 0.000000e+00 : f32
    %36 = vector.shape_cast %34 : vector<1x200x1xi1> to vector<1x200x1xi1>
    %37 = vector.broadcast %36 : vector<1x200x1xi1> to vector<4x200x128xi1>
    %38 = vector.broadcast %cst_17 : f32 to vector<4x200x128xf32>
    %39 = arith.select %37, %35, %38 : vector<4x200x128xi1>, vector<4x200x128xf32>
    %cst_18 = arith.constant dense<0xFF800000> : vector<4x128xf32>
    %40 = vector.multi_reduction <maximumf>, %39, %cst_18 [1] : vector<4x200x128xf32> to vector<4x128xf32>
    %c195_i32 = arith.constant 195 : i32
    %41 = vector.broadcast %c195_i32 : i32 to vector<1x200x1xi32>
    %42 = arith.cmpi sle, %24, %41 : vector<1x200x1xi32>
    %43 = vector.extract_strided_slice %23 {offsets = [0, 0, 256], sizes = [4, 200, 128], strides = [1, 1, 1]} : vector<4x200x384xf32> to vector<4x200x128xf32>
    %cst_19 = arith.constant 0.000000e+00 : f32
    %44 = vector.shape_cast %42 : vector<1x200x1xi1> to vector<1x200x1xi1>
    %45 = vector.broadcast %44 : vector<1x200x1xi1> to vector<4x200x128xi1>
    %46 = vector.broadcast %cst_19 : f32 to vector<4x200x128xf32>
    %47 = arith.select %45, %43, %46 : vector<4x200x128xi1>, vector<4x200x128xf32>
    %cst_20 = arith.constant dense<0xFF800000> : vector<4x128xf32>
    %48 = vector.multi_reduction <maximumf>, %47, %cst_20 [1] : vector<4x200x128xf32> to vector<4x128xf32>
    %49 = tpu.concatenate %32, %40, %48 in 1 : vector<4x128xf32>, vector<4x128xf32>, vector<4x128xf32> -> vector<4x384xf32>
    %c0_21 = arith.constant 0 : index
    %c0_22 = arith.constant 0 : index
    %c0_23 = arith.constant 0 : index
    %50 = vector.load %arg4[%c0_21, %c0_22, %c0_23] : memref<1x4x384xf32, #tpu.memory_space<vmem>>, vector<1x4x384xf32>
    %51 = vector.shape_cast %50 : vector<1x4x384xf32> to vector<4x384xf32>
    %52 = vector.shape_cast %49 : vector<4x384xf32> to vector<1x4x384xf32>
    tpu.vector_store %arg4[%c0_21, %c0_22, %c0_23], %52 {strides = array<i32>} : memref<1x4x384xf32, #tpu.memory_space<vmem>>, vector<1x4x384xf32>,
    return
  }
  func.func @transform_0(%arg0: i32) -> (i32, i32, i32) {
    %c0_i32 = arith.constant 0 : i32
    %c0_i32_0 = arith.constant 0 : i32
    %c0_i32_1 = arith.constant 0 : i32
    return %arg0, %c0_i32, %c0_i32_0 : i32, i32, i32
  }
  func.func @transform_1(%arg0: i32) -> (i32, i32) {
    %c0_i32 = arith.constant 0 : i32
    %c0_i32_0 = arith.constant 0 : i32
    %c0_i32_1 = arith.constant 0 : i32
    return %c0_i32, %c0_i32_0 : i32, i32
  }
  func.func @transform_2(%arg0: i32) -> (i32, i32) {
    %c0_i32 = arith.constant 0 : i32
    %c0_i32_0 = arith.constant 0 : i32
    %c0_i32_1 = arith.constant 0 : i32
    return %c0_i32, %c0_i32_0 : i32, i32
  }
  func.func @transform_3(%arg0: i32) -> (i32, i32, i32) {
    %c0_i32 = arith.constant 0 : i32
    %c0_i32_0 = arith.constant 0 : i32
    %c0_i32_1 = arith.constant 0 : i32
    return %arg0, %c0_i32, %c0_i32_0 : i32, i32, i32
  }
}

module attributes {stable_mosaic.version = 11 : i64} {
  func.func @bilstm_kernel(%arg0: i32, %arg1: memref<4x16x512xbf16, #tpu.memory_space<vmem>>, %arg2: memref<128x512xbf16, #tpu.memory_space<vmem>>, %arg3: memref<4x16x128xf32, #tpu.memory_space<vmem>>, %arg4: memref<16x128xf32, #tpu.memory_space<vmem>>, %arg5: memref<16x128xf32, #tpu.memory_space<vmem>>) attributes {dimension_semantics = [#tpu.dimension_semantics<parallel>], iteration_bounds = array<i64: 1>, scalar_prefetch = 0 : i64, scratch_operands = 2 : i64, tpu.core_type = #tpu.core_type<tc>, window_params = [{transform_indices = @transform_0, window_bounds = array<i64: 4, 16, 512>}, {pipeline_mode = #tpu.pipeline_mode<synchronous>, transform_indices = @transform_1, window_bounds = array<i64: 128, 512>}, {transform_indices = @transform_2, window_bounds = array<i64: 4, 16, 128>}]} {
    %cst = arith.constant 0.000000e+00 : f32
    %0 = vector.broadcast %cst : f32 to vector<16x128xf32>
    %c0 = arith.constant 0 : index
    %c0_0 = arith.constant 0 : index
    %1 = vector.load %arg4[%c0, %c0_0] : memref<16x128xf32, #tpu.memory_space<vmem>>, vector<16x128xf32>
    tpu.vector_store %arg4[%c0, %c0_0], %0 {strides = array<i32>} : memref<16x128xf32, #tpu.memory_space<vmem>>, vector<16x128xf32>,
    %cst_1 = arith.constant 0.000000e+00 : f32
    %2 = vector.broadcast %cst_1 : f32 to vector<16x128xf32>
    %c0_2 = arith.constant 0 : index
    %c0_3 = arith.constant 0 : index
    %3 = vector.load %arg5[%c0_2, %c0_3] : memref<16x128xf32, #tpu.memory_space<vmem>>, vector<16x128xf32>
    tpu.vector_store %arg5[%c0_2, %c0_3], %2 {strides = array<i32>} : memref<16x128xf32, #tpu.memory_space<vmem>>, vector<16x128xf32>,
    %c0_i32 = arith.constant 0 : i32
    %c4_i32 = arith.constant 4 : i32
    %4 = arith.addi %c0_i32, %c4_i32 : i32
    %c1_i32 = arith.constant 1 : i32
    scf.for %arg6 = %c0_i32 to %4 step %c1_i32  : i32 {
      %c1_i32_5 = arith.constant 1 : i32
      %5 = arith.muli %arg6, %c1_i32_5 : i32
      %c0_i32_6 = arith.constant 0 : i32
      %6 = arith.addi %c0_i32_6, %5 : i32
      %c0_7 = arith.constant 0 : index
      %c0_8 = arith.constant 0 : index
      %7 = vector.load %arg4[%c0_7, %c0_8] : memref<16x128xf32, #tpu.memory_space<vmem>>, vector<16x128xf32>
      %8 = arith.truncf %7 : vector<16x128xf32> to vector<16x128xbf16>
      %c0_9 = arith.constant 0 : index
      %c0_10 = arith.constant 0 : index
      %9 = vector.load %arg2[%c0_9, %c0_10] : memref<128x512xbf16, #tpu.memory_space<vmem>>, vector<128x512xbf16>
      %cst_11 = arith.constant dense<0.000000e+00> : vector<16x512xf32>
      %10 = tpu.matmul %8, %9, %cst_11 {dimension_numbers = #tpu.dot_dimension_numbers<[1], [0], [0], [1], [0, 0, 1, 1], [], []>} : vector<16x128xbf16>, vector<128x512xbf16>, vector<16x512xf32> -> vector<16x512xf32>
      %11 = arith.index_cast %6 : i32 to index
      %c0_12 = arith.constant 0 : index
      %c0_13 = arith.constant 0 : index
      %12 = vector.load %arg1[%11, %c0_12, %c0_13] : memref<4x16x512xbf16, #tpu.memory_space<vmem>>, vector<1x16x512xbf16>
      %13 = vector.shape_cast %12 : vector<1x16x512xbf16> to vector<16x512xbf16>
      %14 = arith.extf %13 : vector<16x512xbf16> to vector<16x512xf32>
      %15 = arith.addf %14, %10 : vector<16x512xf32>
      %16 = vector.extract_strided_slice %15 {offsets = [0, 0], sizes = [16, 384], strides = [1, 1]} : vector<16x512xf32> to vector<16x384xf32>
      %17 = arith.negf %16 : vector<16x384xf32>
      %18 = math.exp %17 : vector<16x384xf32>
      %cst_14 = arith.constant 1.000000e+00 : f32
      %19 = vector.broadcast %cst_14 : f32 to vector<16x384xf32>
      %20 = arith.addf %19, %18 : vector<16x384xf32>
      %21 = arith.divf %19, %20 : vector<16x384xf32>
      %22 = vector.extract_strided_slice %15 {offsets = [0, 384], sizes = [16, 128], strides = [1, 1]} : vector<16x512xf32> to vector<16x128xf32>
      %23 = math.tanh %22 : vector<16x128xf32>
      %24 = vector.extract_strided_slice %21 {offsets = [0, 0], sizes = [16, 128], strides = [1, 1]} : vector<16x384xf32> to vector<16x128xf32>
      %25 = vector.extract_strided_slice %21 {offsets = [0, 128], sizes = [16, 128], strides = [1, 1]} : vector<16x384xf32> to vector<16x128xf32>
      %26 = vector.extract_strided_slice %21 {offsets = [0, 256], sizes = [16, 128], strides = [1, 1]} : vector<16x384xf32> to vector<16x128xf32>
      %c0_15 = arith.constant 0 : index
      %c0_16 = arith.constant 0 : index
      %27 = vector.load %arg5[%c0_15, %c0_16] : memref<16x128xf32, #tpu.memory_space<vmem>>, vector<16x128xf32>
      %28 = arith.mulf %25, %27 : vector<16x128xf32>
      %29 = arith.mulf %24, %23 : vector<16x128xf32>
      %30 = arith.addf %28, %29 : vector<16x128xf32>
      %31 = math.tanh %30 : vector<16x128xf32>
      %32 = arith.mulf %26, %31 : vector<16x128xf32>
      %c0_17 = arith.constant 0 : index
      %c0_18 = arith.constant 0 : index
      %33 = vector.load %arg4[%c0_17, %c0_18] : memref<16x128xf32, #tpu.memory_space<vmem>>, vector<16x128xf32>
      tpu.vector_store %arg4[%c0_17, %c0_18], %32 {strides = array<i32>} : memref<16x128xf32, #tpu.memory_space<vmem>>, vector<16x128xf32>,
      %c0_19 = arith.constant 0 : index
      %c0_20 = arith.constant 0 : index
      %34 = vector.load %arg5[%c0_19, %c0_20] : memref<16x128xf32, #tpu.memory_space<vmem>>, vector<16x128xf32>
      tpu.vector_store %arg5[%c0_19, %c0_20], %30 {strides = array<i32>} : memref<16x128xf32, #tpu.memory_space<vmem>>, vector<16x128xf32>,
      %35 = arith.index_cast %6 : i32 to index
      %c0_21 = arith.constant 0 : index
      %c0_22 = arith.constant 0 : index
      %36 = vector.load %arg3[%35, %c0_21, %c0_22] : memref<4x16x128xf32, #tpu.memory_space<vmem>>, vector<1x16x128xf32>
      %37 = vector.shape_cast %36 : vector<1x16x128xf32> to vector<16x128xf32>
      %38 = vector.shape_cast %32 : vector<16x128xf32> to vector<1x16x128xf32>
      tpu.vector_store %arg3[%35, %c0_21, %c0_22], %38 {strides = array<i32>} : memref<4x16x128xf32, #tpu.memory_space<vmem>>, vector<1x16x128xf32>,
    }
    %c4_i32_4 = arith.constant 4 : i32
    return
  }
  func.func @transform_0(%arg0: i32) -> (i32, i32, i32) {
    %c0_i32 = arith.constant 0 : i32
    %c0_i32_0 = arith.constant 0 : i32
    %c0_i32_1 = arith.constant 0 : i32
    return %c0_i32, %arg0, %c0_i32_0 : i32, i32, i32
  }
  func.func @transform_1(%arg0: i32) -> (i32, i32) {
    %c0_i32 = arith.constant 0 : i32
    %c0_i32_0 = arith.constant 0 : i32
    %c0_i32_1 = arith.constant 0 : i32
    return %c0_i32, %c0_i32_0 : i32, i32
  }
  func.func @transform_2(%arg0: i32) -> (i32, i32, i32) {
    %c0_i32 = arith.constant 0 : i32
    %c0_i32_0 = arith.constant 0 : i32
    %c0_i32_1 = arith.constant 0 : i32
    return %c0_i32, %arg0, %c0_i32_0 : i32, i32, i32
  }
}

module attributes {stable_mosaic.version = 11 : i64} {
  func.func @mha_kernel(%arg0: i32, %arg1: memref<1x4x128xbf16, #tpu.memory_space<vmem>>, %arg2: memref<128x384xbf16, #tpu.memory_space<vmem>>, %arg3: memref<1x384xf32, #tpu.memory_space<vmem>>, %arg4: memref<128x128xbf16, #tpu.memory_space<vmem>>, %arg5: memref<1x128xf32, #tpu.memory_space<vmem>>, %arg6: memref<1x4x128xf32, #tpu.memory_space<vmem>>) attributes {dimension_semantics = [#tpu.dimension_semantics<parallel>], iteration_bounds = array<i64: 2>, scalar_prefetch = 0 : i64, scratch_operands = 0 : i64, tpu.core_type = #tpu.core_type<tc>, window_params = [{transform_indices = @transform_0, window_bounds = array<i64: 1, 4, 128>}, {pipeline_mode = #tpu.pipeline_mode<synchronous>, transform_indices = @transform_1, window_bounds = array<i64: 128, 384>}, {pipeline_mode = #tpu.pipeline_mode<synchronous>, transform_indices = @transform_2, window_bounds = array<i64: 1, 384>}, {pipeline_mode = #tpu.pipeline_mode<synchronous>, transform_indices = @transform_3, window_bounds = array<i64: 128, 128>}, {pipeline_mode = #tpu.pipeline_mode<synchronous>, transform_indices = @transform_4, window_bounds = array<i64: 1, 128>}, {transform_indices = @transform_5, window_bounds = array<i64: 1, 4, 128>}]} {
    %c0 = arith.constant 0 : index
    %c0_0 = arith.constant 0 : index
    %c0_1 = arith.constant 0 : index
    %0 = vector.load %arg1[%c0, %c0_0, %c0_1] : memref<1x4x128xbf16, #tpu.memory_space<vmem>>, vector<1x4x128xbf16>
    %1 = vector.shape_cast %0 : vector<1x4x128xbf16> to vector<4x128xbf16>
    %c0_2 = arith.constant 0 : index
    %c0_3 = arith.constant 0 : index
    %2 = vector.load %arg2[%c0_2, %c0_3] : memref<128x384xbf16, #tpu.memory_space<vmem>>, vector<128x384xbf16>
    %cst = arith.constant dense<0.000000e+00> : vector<4x384xf32>
    %3 = tpu.matmul %1, %2, %cst {dimension_numbers = #tpu.dot_dimension_numbers<[1], [0], [0], [1], [0, 0, 1, 1], [], []>} : vector<4x128xbf16>, vector<128x384xbf16>, vector<4x384xf32> -> vector<4x384xf32>
    %c0_4 = arith.constant 0 : index
    %c0_5 = arith.constant 0 : index
    %4 = vector.load %arg3[%c0_4, %c0_5] : memref<1x384xf32, #tpu.memory_space<vmem>>, vector<1x384xf32>
    %5 = vector.broadcast %4 : vector<1x384xf32> to vector<4x384xf32>
    %6 = arith.addf %3, %5 : vector<4x384xf32>
    %7 = vector.extract_strided_slice %6 {offsets = [0, 0], sizes = [4, 128], strides = [1, 1]} : vector<4x384xf32> to vector<4x128xf32>
    %8 = vector.shape_cast %7 : vector<4x128xf32> to vector<1x4x128xf32>
    %9 = vector.extract_strided_slice %6 {offsets = [0, 128], sizes = [4, 128], strides = [1, 1]} : vector<4x384xf32> to vector<4x128xf32>
    %10 = vector.shape_cast %9 : vector<4x128xf32> to vector<1x4x128xf32>
    %11 = vector.extract_strided_slice %6 {offsets = [0, 256], sizes = [4, 128], strides = [1, 1]} : vector<4x384xf32> to vector<4x128xf32>
    %12 = vector.shape_cast %11 : vector<4x128xf32> to vector<1x4x128xf32>
    %13 = vector.extract_strided_slice %8 {offsets = [0, 0, 0], sizes = [1, 4, 64], strides = [1, 1, 1]} : vector<1x4x128xf32> to vector<1x4x64xf32>
    %14 = arith.truncf %13 : vector<1x4x64xf32> to vector<1x4x64xbf16>
    %15 = vector.extract_strided_slice %10 {offsets = [0, 0, 0], sizes = [1, 4, 64], strides = [1, 1, 1]} : vector<1x4x128xf32> to vector<1x4x64xf32>
    %16 = arith.truncf %15 : vector<1x4x64xf32> to vector<1x4x64xbf16>
    %17 = vector.extract_strided_slice %12 {offsets = [0, 0, 0], sizes = [1, 4, 64], strides = [1, 1, 1]} : vector<1x4x128xf32> to vector<1x4x64xf32>
    %18 = arith.truncf %17 : vector<1x4x64xf32> to vector<1x4x64xbf16>
    "tpu.trace_start"() <{level = 10 : i32, message = "bqd,bkd->bqk"}> : () -> ()
    %cst_6 = arith.constant dense<0.000000e+00> : vector<1x4x4xf32>
    %19 = tpu.matmul %14, %16, %cst_6 {dimension_numbers = #tpu.dot_dimension_numbers<[2], [2], [1], [1], [0, 0, 0, 1, 1, 1], [0], [0]>} : vector<1x4x64xbf16>, vector<1x4x64xbf16>, vector<1x4x4xf32> -> vector<1x4x4xf32>
    "tpu.trace_stop"() : () -> ()
    %cst_7 = arith.constant 1.250000e-01 : f32
    %20 = vector.broadcast %cst_7 : f32 to vector<1x4x4xf32>
    %21 = arith.mulf %19, %20 : vector<1x4x4xf32>
    %cst_8 = arith.constant dense<0xFF800000> : vector<1x4xf32>
    %22 = vector.multi_reduction <maximumf>, %21, %cst_8 [2] : vector<1x4x4xf32> to vector<1x4xf32>
    %23 = vector.shape_cast %22 : vector<1x4xf32> to vector<1x4x1xf32>
    %24 = vector.broadcast %23 : vector<1x4x1xf32> to vector<1x4x4xf32>
    %25 = arith.subf %21, %24 : vector<1x4x4xf32>
    %26 = math.exp %25 : vector<1x4x4xf32>
    %cst_9 = arith.constant dense<0.000000e+00> : vector<1x4xf32>
    %27 = vector.multi_reduction <add>, %26, %cst_9 [2] : vector<1x4x4xf32> to vector<1x4xf32>
    %28 = vector.shape_cast %27 : vector<1x4xf32> to vector<1x4x1xf32>
    %29 = tpu.reciprocal %28 {approx = true} : vector<1x4x1xf32> -> vector<1x4x1xf32>
    %30 = vector.broadcast %29 : vector<1x4x1xf32> to vector<1x4x4xf32>
    %31 = arith.mulf %26, %30 : vector<1x4x4xf32>
    %32 = arith.truncf %31 : vector<1x4x4xf32> to vector<1x4x4xbf16>
    "tpu.trace_start"() <{level = 10 : i32, message = "bqk,bkd->bqd"}> : () -> ()
    %cst_10 = arith.constant dense<0.000000e+00> : vector<1x4x64xf32>
    %33 = tpu.matmul %32, %18, %cst_10 {dimension_numbers = #tpu.dot_dimension_numbers<[2], [1], [1], [2], [0, 0, 0, 1, 1, 2], [0], [0]>} : vector<1x4x4xbf16>, vector<1x4x64xbf16>, vector<1x4x64xf32> -> vector<1x4x64xf32>
    "tpu.trace_stop"() : () -> ()
    %34 = vector.extract_strided_slice %8 {offsets = [0, 0, 64], sizes = [1, 4, 64], strides = [1, 1, 1]} : vector<1x4x128xf32> to vector<1x4x64xf32>
    %35 = arith.truncf %34 : vector<1x4x64xf32> to vector<1x4x64xbf16>
    %36 = vector.extract_strided_slice %10 {offsets = [0, 0, 64], sizes = [1, 4, 64], strides = [1, 1, 1]} : vector<1x4x128xf32> to vector<1x4x64xf32>
    %37 = arith.truncf %36 : vector<1x4x64xf32> to vector<1x4x64xbf16>
    %38 = vector.extract_strided_slice %12 {offsets = [0, 0, 64], sizes = [1, 4, 64], strides = [1, 1, 1]} : vector<1x4x128xf32> to vector<1x4x64xf32>
    %39 = arith.truncf %38 : vector<1x4x64xf32> to vector<1x4x64xbf16>
    "tpu.trace_start"() <{level = 10 : i32, message = "bqd,bkd->bqk"}> : () -> ()
    %cst_11 = arith.constant dense<0.000000e+00> : vector<1x4x4xf32>
    %40 = tpu.matmul %35, %37, %cst_11 {dimension_numbers = #tpu.dot_dimension_numbers<[2], [2], [1], [1], [0, 0, 0, 1, 1, 1], [0], [0]>} : vector<1x4x64xbf16>, vector<1x4x64xbf16>, vector<1x4x4xf32> -> vector<1x4x4xf32>
    "tpu.trace_stop"() : () -> ()
    %cst_12 = arith.constant 1.250000e-01 : f32
    %41 = vector.broadcast %cst_12 : f32 to vector<1x4x4xf32>
    %42 = arith.mulf %40, %41 : vector<1x4x4xf32>
    %cst_13 = arith.constant dense<0xFF800000> : vector<1x4xf32>
    %43 = vector.multi_reduction <maximumf>, %42, %cst_13 [2] : vector<1x4x4xf32> to vector<1x4xf32>
    %44 = vector.shape_cast %43 : vector<1x4xf32> to vector<1x4x1xf32>
    %45 = vector.broadcast %44 : vector<1x4x1xf32> to vector<1x4x4xf32>
    %46 = arith.subf %42, %45 : vector<1x4x4xf32>
    %47 = math.exp %46 : vector<1x4x4xf32>
    %cst_14 = arith.constant dense<0.000000e+00> : vector<1x4xf32>
    %48 = vector.multi_reduction <add>, %47, %cst_14 [2] : vector<1x4x4xf32> to vector<1x4xf32>
    %49 = vector.shape_cast %48 : vector<1x4xf32> to vector<1x4x1xf32>
    %50 = tpu.reciprocal %49 {approx = true} : vector<1x4x1xf32> -> vector<1x4x1xf32>
    %51 = vector.broadcast %50 : vector<1x4x1xf32> to vector<1x4x4xf32>
    %52 = arith.mulf %47, %51 : vector<1x4x4xf32>
    %53 = arith.truncf %52 : vector<1x4x4xf32> to vector<1x4x4xbf16>
    "tpu.trace_start"() <{level = 10 : i32, message = "bqk,bkd->bqd"}> : () -> ()
    %cst_15 = arith.constant dense<0.000000e+00> : vector<1x4x64xf32>
    %54 = tpu.matmul %53, %39, %cst_15 {dimension_numbers = #tpu.dot_dimension_numbers<[2], [1], [1], [2], [0, 0, 0, 1, 1, 2], [0], [0]>} : vector<1x4x4xbf16>, vector<1x4x64xbf16>, vector<1x4x64xf32> -> vector<1x4x64xf32>
    "tpu.trace_stop"() : () -> ()
    %55 = tpu.concatenate %33, %54 in 2 : vector<1x4x64xf32>, vector<1x4x64xf32> -> vector<1x4x128xf32>
    %56 = vector.shape_cast %55 : vector<1x4x128xf32> to vector<4x128xf32>
    %57 = arith.truncf %56 : vector<4x128xf32> to vector<4x128xbf16>
    %c0_16 = arith.constant 0 : index
    %c0_17 = arith.constant 0 : index
    %58 = vector.load %arg4[%c0_16, %c0_17] : memref<128x128xbf16, #tpu.memory_space<vmem>>, vector<128x128xbf16>
    %cst_18 = arith.constant dense<0.000000e+00> : vector<4x128xf32>
    %59 = tpu.matmul %57, %58, %cst_18 {dimension_numbers = #tpu.dot_dimension_numbers<[1], [0], [0], [1], [0, 0, 1, 1], [], []>} : vector<4x128xbf16>, vector<128x128xbf16>, vector<4x128xf32> -> vector<4x128xf32>
    %c0_19 = arith.constant 0 : index
    %c0_20 = arith.constant 0 : index
    %60 = vector.load %arg5[%c0_19, %c0_20] : memref<1x128xf32, #tpu.memory_space<vmem>>, vector<1x128xf32>
    %61 = vector.broadcast %60 : vector<1x128xf32> to vector<4x128xf32>
    %62 = arith.addf %59, %61 : vector<4x128xf32>
    %63 = vector.shape_cast %62 : vector<4x128xf32> to vector<1x4x128xf32>
    %c0_21 = arith.constant 0 : index
    %c0_22 = arith.constant 0 : index
    %c0_23 = arith.constant 0 : index
    %64 = vector.load %arg6[%c0_21, %c0_22, %c0_23] : memref<1x4x128xf32, #tpu.memory_space<vmem>>, vector<1x4x128xf32>
    tpu.vector_store %arg6[%c0_21, %c0_22, %c0_23], %63 {strides = array<i32>} : memref<1x4x128xf32, #tpu.memory_space<vmem>>, vector<1x4x128xf32>,
    return
  }
  func.func @transform_0(%arg0: i32) -> (i32, i32, i32) {
    %c0_i32 = arith.constant 0 : i32
    %c0_i32_0 = arith.constant 0 : i32
    %c0_i32_1 = arith.constant 0 : i32
    return %arg0, %c0_i32, %c0_i32_0 : i32, i32, i32
  }
  func.func @transform_1(%arg0: i32) -> (i32, i32) {
    %c0_i32 = arith.constant 0 : i32
    %c0_i32_0 = arith.constant 0 : i32
    %c0_i32_1 = arith.constant 0 : i32
    return %c0_i32, %c0_i32_0 : i32, i32
  }
  func.func @transform_2(%arg0: i32) -> (i32, i32) {
    %c0_i32 = arith.constant 0 : i32
    %c0_i32_0 = arith.constant 0 : i32
    %c0_i32_1 = arith.constant 0 : i32
    return %c0_i32, %c0_i32_0 : i32, i32
  }
  func.func @transform_3(%arg0: i32) -> (i32, i32) {
    %c0_i32 = arith.constant 0 : i32
    %c0_i32_0 = arith.constant 0 : i32
    %c0_i32_1 = arith.constant 0 : i32
    return %c0_i32, %c0_i32_0 : i32, i32
  }
  func.func @transform_4(%arg0: i32) -> (i32, i32) {
    %c0_i32 = arith.constant 0 : i32
    %c0_i32_0 = arith.constant 0 : i32
    %c0_i32_1 = arith.constant 0 : i32
    return %c0_i32, %c0_i32_0 : i32, i32
  }
  func.func @transform_5(%arg0: i32) -> (i32, i32, i32) {
    %c0_i32 = arith.constant 0 : i32
    %c0_i32_0 = arith.constant 0 : i32
    %c0_i32_1 = arith.constant 0 : i32
    return %arg0, %c0_i32, %c0_i32_0 : i32, i32, i32
  }
}

</mosaic_0001>

<llo_original>
// kernel: hst_mhsa_forward.4
$region0: #{hst_mhsa_forward.4}
  #allocation0 [shape = 'u32[]', space=smem, size = 0x4, offset = 0x4, fixed_abs, tag = 'smem constant byte address 0x4 - core index']
  #allocation1 [shape = 'u32[72,128]{1,0:T(1,128)}', space=vmem, size = 0x9000, scoped, tag = 'internal scratch']
  #allocation2 [shape = 'f32[16,128]{1,0:T(8,128)}', space=vmem, size = 0x2000, scoped, tag = 'scratch operand']
  #allocation3 [shape = 'f32[16,128]{1,0:T(8,128)}', space=vmem, size = 0x2000, scoped, tag = 'scratch operand']
  %s0 = inlined_call_operand.vmem [shape: bf16[100,16,512], index: 0, kind: input, shape index: {}]
  %s1 = inlined_call_operand.vmem [shape: bf16[128,512], index: 1, kind: input, shape index: {}]
  %s2 = inlined_call_operand.vmem [shape: f32[100,16,128], index: 2, kind: output, shape index: {}]
  %s3 = sld [smem:[#allocation0]]
  $region25: #{hst_mhsa_forward.4} parent=0
    _
  %s5 = ssub.s32 1, %s3
  %s6 = scalar_select 0, %s5, %s3
  // Predicated region
  $region2: #{hst_mhsa_forward.4} parent=0 // pred_check
    _
  $region3: #{hst_mhsa_forward.4} parent=0 // pred_check_branch
    %8 = sbr.rel (0) target = $region5
  $region4: #{hst_mhsa_forward.4} parent=0 // pred_region
    _
  $region5: #{hst_mhsa_forward.4} parent=0 // pred_fallthru
    _
  // Predicated region
  $region6: #{hst_mhsa_forward.4} parent=0 // pred_check
    _
  $region7: #{hst_mhsa_forward.4} parent=0 // pred_check_branch
    %10 = sbr.rel (0) target = $region9
  $region8: #{hst_mhsa_forward.4} parent=0 // pred_region
    _
  $region9: #{hst_mhsa_forward.4} parent=0 // pred_fallthru
    _
  %11 = vst [vmem:[#allocation2] sm:$0xff] 0.0
  %12 = vst [vmem:[#allocation2 + $0x8] sm:$0xff] 0.0
  %13 = vst [vmem:[#allocation3] sm:$0xff] 0.0
  %14 = vst [vmem:[#allocation3 + $0x8] sm:$0xff] 0.0
  loop: start=0, step=1, limit=100
  $region10: #{hst_mhsa_forward.4} parent=0 // loop_pre_header
    _
  $region11: #{hst_mhsa_forward.4} parent=0 // loop_header
    %s16 = sphi 0, %s20
    %p17 = scmp.ge.s32.totalorder %s16, 100
  $region12: #{hst_mhsa_forward.4} parent=0 // loop_header_branch
    %19 = sbr.rel (%p17) target = $region16
  $region13: #{hst_mhsa_forward.4} parent=0 // loop_body
    %v21 = vld [vmem:[#allocation2] sm:$0xff]
    %v22 = vld [vmem:[#allocation2 + $0x8] sm:$0xff]
    %v23 = vpack.c.bf16 %v22, %v21
    %v24 = vld [vmem:[%s1] sm:$0xff]
    %v25 = vld [vmem:[%s1 + $0x8] sm:$0xff]
    %v26 = vld [vmem:[%s1 + $0x10] sm:$0xff]
    %v27 = vld [vmem:[%s1 + $0x18] sm:$0xff]
    %v28 = vld [vmem:[%s1 + $0x20] sm:$0xff]
    %v29 = vld [vmem:[%s1 + $0x28] sm:$0xff]
    %v30 = vld [vmem:[%s1 + $0x30] sm:$0xff]
    %v31 = vld [vmem:[%s1 + $0x38] sm:$0xff]
    %v32 = vld [vmem:[%s1 + $0x40] sm:$0xff]
    %v33 = vld [vmem:[%s1 + $0x48] sm:$0xff]
    %v34 = vld [vmem:[%s1 + $0x50] sm:$0xff]
    %v35 = vld [vmem:[%s1 + $0x58] sm:$0xff]
    %v36 = vld [vmem:[%s1 + $0x60] sm:$0xff]
    %v37 = vld [vmem:[%s1 + $0x68] sm:$0xff]
    %v38 = vld [vmem:[%s1 + $0x70] sm:$0xff]
    %v39 = vld [vmem:[%s1 + $0x78] sm:$0xff]
    %v40 = vld [vmem:[%s1 + $0x80] sm:$0xff]
    %v41 = vld [vmem:[%s1 + $0x88] sm:$0xff]
    %v42 = vld [vmem:[%s1 + $0x90] sm:$0xff]
    %v43 = vld [vmem:[%s1 + $0x98] sm:$0xff]
    %v44 = vld [vmem:[%s1 + $0xa0] sm:$0xff]
    %v45 = vld [vmem:[%s1 + $0xa8] sm:$0xff]
    %v46 = vld [vmem:[%s1 + $0xb0] sm:$0xff]
    %v47 = vld [vmem:[%s1 + $0xb8] sm:$0xff]
    %v48 = vld [vmem:[%s1 + $0xc0] sm:$0xff]
    %v49 = vld [vmem:[%s1 + $0xc8] sm:$0xff]
    %v50 = vld [vmem:[%s1 + $0xd0] sm:$0xff]
    %v51 = vld [vmem:[%s1 + $0xd8] sm:$0xff]
    %v52 = vld [vmem:[%s1 + $0xe0] sm:$0xff]
    %v53 = vld [vmem:[%s1 + $0xe8] sm:$0xff]
    %v54 = vld [vmem:[%s1 + $0xf0] sm:$0xff]
    %v55 = vld [vmem:[%s1 + $0xf8] sm:$0xff]
    %v88 = vunpack.c.l.b16 %v24
    %v89 = vunpack.c.h.b16 %v24
    %v90 = vunpack.c.l.b16 %v25
    %v91 = vunpack.c.h.b16 %v25
    %v92 = vunpack.c.l.b16 %v26
    %v93 = vunpack.c.h.b16 %v26
    %v94 = vunpack.c.l.b16 %v27
    %v95 = vunpack.c.h.b16 %v27
    %v96 = vunpack.c.l.b16 %v28
    %v97 = vunpack.c.h.b16 %v28
    %v98 = vunpack.c.l.b16 %v29
    %v99 = vunpack.c.h.b16 %v29
    %v100 = vunpack.c.l.b16 %v30
    %v101 = vunpack.c.h.b16 %v30
    %v102 = vunpack.c.l.b16 %v31
    %v103 = vunpack.c.h.b16 %v31
    %v104 = vunpack.c.l.b16 %v32
    %v105 = vunpack.c.h.b16 %v32
    %v106 = vunpack.c.l.b16 %v33
    %v107 = vunpack.c.h.b16 %v33
    %v108 = vunpack.c.l.b16 %v34
    %v109 = vunpack.c.h.b16 %v34
    %v110 = vunpack.c.l.b16 %v35
    %v111 = vunpack.c.h.b16 %v35
    %v112 = vunpack.c.l.b16 %v36
    %v113 = vunpack.c.h.b16 %v36
    %v114 = vunpack.c.l.b16 %v37
    %v115 = vunpack.c.h.b16 %v37
    %v116 = vunpack.c.l.b16 %v38
    %v117 = vunpack.c.h.b16 %v38
    %v118 = vunpack.c.l.b16 %v39
    %v119 = vunpack.c.h.b16 %v39
    %v120 = vunpack.c.l.b16 %v40
    %v121 = vunpack.c.h.b16 %v40
    %v122 = vunpack.c.l.b16 %v41
    %v123 = vunpack.c.h.b16 %v41
    %v124 = vunpack.c.l.b16 %v42
    %v125 = vunpack.c.h.b16 %v42
    %v126 = vunpack.c.l.b16 %v43
    %v127 = vunpack.c.h.b16 %v43
    %v128 = vunpack.c.l.b16 %v44
    %v129 = vunpack.c.h.b16 %v44
    %v130 = vunpack.c.l.b16 %v45
    %v131 = vunpack.c.h.b16 %v45
    %v132 = vunpack.c.l.b16 %v46
    %v133 = vunpack.c.h.b16 %v46
    %v134 = vunpack.c.l.b16 %v47
    %v135 = vunpack.c.h.b16 %v47
    %v136 = vunpack.c.l.b16 %v48
    %v137 = vunpack.c.h.b16 %v48
    %v138 = vunpack.c.l.b16 %v49
    %v139 = vunpack.c.h.b16 %v49
    %v140 = vunpack.c.l.b16 %v50
    %v141 = vunpack.c.h.b16 %v50
    %v142 = vunpack.c.l.b16 %v51
    %v143 = vunpack.c.h.b16 %v51
    %v144 = vunpack.c.l.b16 %v52
    %v145 = vunpack.c.h.b16 %v52
    %v146 = vunpack.c.l.b16 %v53
    %v147 = vunpack.c.h.b16 %v53
    %v148 = vunpack.c.l.b16 %v54
    %v149 = vunpack.c.h.b16 %v54
    %v150 = vunpack.c.l.b16 %v55
    %v151 = vunpack.c.h.b16 %v55
    %v152 = vpack.c.b16 %v92, %v88
    %v153 = vpack.c.b16 %v93, %v89
    %v154 = vpack.c.b16 %v94, %v90
    %v155 = vpack.c.b16 %v95, %v91
    %v156 = vpack.c.b16 %v100, %v96
    %v157 = vpack.c.b16 %v101, %v97
    %v158 = vpack.c.b16 %v102, %v98
    %v159 = vpack.c.b16 %v103, %v99
    %v160 = vpack.c.b16 %v108, %v104
    %v161 = vpack.c.b16 %v109, %v105
    %v162 = vpack.c.b16 %v110, %v106
    %v163 = vpack.c.b16 %v111, %v107
    %v164 = vpack.c.b16 %v116, %v112
    %v165 = vpack.c.b16 %v117, %v113
    %v166 = vpack.c.b16 %v118, %v114
    %v167 = vpack.c.b16 %v119, %v115
    %v168 = vpack.c.b16 %v124, %v120
    %v169 = vpack.c.b16 %v125, %v121
    %v170 = vpack.c.b16 %v126, %v122
    %v171 = vpack.c.b16 %v127, %v123
    %v172 = vpack.c.b16 %v132, %v128
    %v173 = vpack.c.b16 %v133, %v129
    %v174 = vpack.c.b16 %v134, %v130
    %v175 = vpack.c.b16 %v135, %v131
    %v176 = vpack.c.b16 %v140, %v136
    %v177 = vpack.c.b16 %v141, %v137
    %v178 = vpack.c.b16 %v142, %v138
    %v179 = vpack.c.b16 %v143, %v139
    %v180 = vpack.c.b16 %v148, %v144
    %v181 = vpack.c.b16 %v149, %v145
    %v182 = vpack.c.b16 %v150, %v146
    %v183 = vpack.c.b16 %v151, %v147
    %216 = vmatpush.bf16.msra.mxu0 %v180
    %217 = vmatpush.bf16.msra.mxu0 %v176
    %218 = vmatpush.bf16.msra.mxu0 %v172
    %219 = vmatpush.bf16.msra.mxu0 %v168
    %220 = vmatpush.bf16.msra.mxu0 %v164
    %221 = vmatpush.bf16.msra.mxu0 %v160
    %222 = vmatpush.bf16.msra.mxu0 %v156
    %223 = vmatpush.bf16.msra.mxu0 %v152
    %224 = vmatmul.bf16.gmra.mxu0 %v23
    %v225 = vpop.f32.mrf.mxu0
    %v226 = vadd.f32 0.0, %v225
    %v227 = vpop.f32.mrf.mxu0
    %v228 = vadd.f32 0.0, %v227
    %229 = vdwg.mxu0
    %230 = vmatpush.bf16.msra.mxu0 %v181
    %231 = vmatpush.bf16.msra.mxu0 %v177
    %232 = vmatpush.bf16.msra.mxu0 %v173
    %233 = vmatpush.bf16.msra.mxu0 %v169
    %234 = vmatpush.bf16.msra.mxu0 %v165
    %235 = vmatpush.bf16.msra.mxu0 %v161
    %236 = vmatpush.bf16.msra.mxu0 %v157
    %237 = vmatpush.bf16.msra.mxu0 %v153
    %238 = vmatmul.bf16.gmra.mxu0 %v23
    %v239 = vpop.f32.mrf.mxu0
    %v240 = vadd.f32 0.0, %v239
    %v241 = vpop.f32.mrf.mxu0
    %v242 = vadd.f32 0.0, %v241
    %243 = vdwg.mxu0
    %244 = vmatpush.bf16.msra.mxu0 %v182
    %245 = vmatpush.bf16.msra.mxu0 %v178
    %246 = vmatpush.bf16.msra.mxu0 %v174
    %247 = vmatpush.bf16.msra.mxu0 %v170
    %248 = vmatpush.bf16.msra.mxu0 %v166
    %249 = vmatpush.bf16.msra.mxu0 %v162
    %250 = vmatpush.bf16.msra.mxu0 %v158
    %251 = vmatpush.bf16.msra.mxu0 %v154
    %252 = vmatmul.bf16.gmra.mxu0 %v23
    %v253 = vpop.f32.mrf.mxu0
    %v254 = vadd.f32 0.0, %v253
    %v255 = vpop.f32.mrf.mxu0
    %v256 = vadd.f32 0.0, %v255
    %257 = vdwg.mxu0
    %258 = vmatpush.bf16.msra.mxu0 %v183
    %259 = vmatpush.bf16.msra.mxu0 %v179
    %260 = vmatpush.bf16.msra.mxu0 %v175
    %261 = vmatpush.bf16.msra.mxu0 %v171
    %262 = vmatpush.bf16.msra.mxu0 %v167
    %263 = vmatpush.bf16.msra.mxu0 %v163
    %264 = vmatpush.bf16.msra.mxu0 %v159
    %265 = vmatpush.bf16.msra.mxu0 %v155
    %266 = vmatmul.bf16.gmra.mxu0 %v23
    %v267 = vpop.f32.mrf.mxu0
    %v268 = vadd.f32 0.0, %v267
    %v269 = vpop.f32.mrf.mxu0
    %v270 = vadd.f32 0.0, %v269
    %271 = vdwg.mxu0
    %s272 = smul.u32 %s16, 8
    %s273 = smul.addr %s272, 4
    %s274 = scalar_lea.vmem %s0, %s273
    %v275 = vld [vmem:[%s274] sm:$0xff]
    %v276 = vld [vmem:[%s274 + $0x8] sm:$0xff]
    %v277 = vld [vmem:[%s274 + $0x10] sm:$0xff]
    %v278 = vld [vmem:[%s274 + $0x18] sm:$0xff]
    %v279 = vunpack.c.l.bf16 %v275
    %v280 = vunpack.c.h.bf16 %v275
    %v281 = vunpack.c.l.bf16 %v276
    %v282 = vunpack.c.h.bf16 %v276
    %v283 = vunpack.c.l.bf16 %v277
    %v284 = vunpack.c.h.bf16 %v277
    %v285 = vunpack.c.l.bf16 %v278
    %v286 = vunpack.c.h.bf16 %v278
    %v287 = vadd.f32 %v279, %v226
    %v288 = vadd.f32 %v280, %v240
    %v289 = vadd.f32 %v281, %v254
    %v290 = vadd.f32 %v282, %v268
    %v291 = vadd.f32 %v283, %v228
    %v292 = vadd.f32 %v284, %v242
    %v293 = vadd.f32 %v285, %v256
    %v294 = vadd.f32 %v286, %v270
    %v295 = vxor.u32 %v287, 2147483648
    %v296 = vxor.u32 %v288, 2147483648
    %v297 = vxor.u32 %v289, 2147483648
    %v298 = vxor.u32 %v291, 2147483648
    %v299 = vxor.u32 %v292, 2147483648
    %v300 = vxor.u32 %v293, 2147483648
    %v301 = vmul.f32 %v295, 1.442695
    %v302 = vpow.pop %v301
    %v303 = vmul.f32 %v296, 1.442695
    %v304 = vpow.pop %v303
    %v305 = vmul.f32 %v297, 1.442695
    %v306 = vpow.pop %v305
    %v307 = vmul.f32 %v298, 1.442695
    %v308 = vpow.pop %v307
    %v309 = vmul.f32 %v299, 1.442695
    %v310 = vpow.pop %v309
    %v311 = vmul.f32 %v300, 1.442695
    %v312 = vpow.pop %v311
    %v313 = vadd.f32 %v302, 1.0
    %v314 = vadd.f32 %v304, 1.0
    %v315 = vadd.f32 %v306, 1.0
    %v316 = vadd.f32 %v308, 1.0
    %v317 = vadd.f32 %v310, 1.0
    %v318 = vadd.f32 %v312, 1.0
    %v319 = vrcp.pop %v313
    %v320 = vmul.f32 %v313, %v319
    %v321 = vsub.f32 1.0, %v320
    %v322 = vmul.f32 %v319, %v321
    %v323 = vadd.f32 %v319, %v322
    %vm324 = vweird.f32 %v313
    %vm325 = vweird.f32 %v319
    %vm326 = vmor %vm324, %vm325
    %v327 = vsel %vm326, %v319, %v323
    %v328 = vand.u32 2147483647, %v313
    %vm329 = vcmp.eq.f32.partialorder %v328, 8.507059e+37
    %v330 = vand.u32 %v313, 2147483648
    %v331 = vor.u32 1.1754944e-38, %v330
    %v332 = vsel %vm329, %v331, %v327
    %v333 = vmul.f32 1.0, %v332
    %v334 = vrcp.pop %v314
    %v335 = vmul.f32 %v314, %v334
    %v336 = vsub.f32 1.0, %v335
    %v337 = vmul.f32 %v334, %v336
    %v338 = vadd.f32 %v334, %v337
    %vm339 = vweird.f32 %v314
    %vm340 = vweird.f32 %v334
    %vm341 = vmor %vm339, %vm340
    %v342 = vsel %vm341, %v334, %v338
    %v343 = vand.u32 2147483647, %v314
    %vm344 = vcmp.eq.f32.partialorder %v343, 8.507059e+37
    %v345 = vand.u32 %v314, 2147483648
    %v346 = vor.u32 1.1754944e-38, %v345
    %v347 = vsel %vm344, %v346, %v342
    %v348 = vmul.f32 1.0, %v347
    %v349 = vrcp.pop %v315
    %v350 = vmul.f32 %v315, %v349
    %v351 = vsub.f32 1.0, %v350
    %v352 = vmul.f32 %v349, %v351
    %v353 = vadd.f32 %v349, %v352
    %vm354 = vweird.f32 %v315
    %vm355 = vweird.f32 %v349
    %vm356 = vmor %vm354, %vm355
    %v357 = vsel %vm356, %v349, %v353
    %v358 = vand.u32 2147483647, %v315
    %vm359 = vcmp.eq.f32.partialorder %v358, 8.507059e+37
    %v360 = vand.u32 %v315, 2147483648
    %v361 = vor.u32 1.1754944e-38, %v360
    %v362 = vsel %vm359, %v361, %v357
    %v363 = vmul.f32 1.0, %v362
    %v364 = vrcp.pop %v316
    %v365 = vmul.f32 %v316, %v364
    %v366 = vsub.f32 1.0, %v365
    %v367 = vmul.f32 %v364, %v366
    %v368 = vadd.f32 %v364, %v367
    %vm369 = vweird.f32 %v316
    %vm370 = vweird.f32 %v364
    %vm371 = vmor %vm369, %vm370
    %v372 = vsel %vm371, %v364, %v368
    %v373 = vand.u32 2147483647, %v316
    %vm374 = vcmp.eq.f32.partialorder %v373, 8.507059e+37
    %v375 = vand.u32 %v316, 2147483648
    %v376 = vor.u32 1.1754944e-38, %v375
    %v377 = vsel %vm374, %v376, %v372
    %v378 = vmul.f32 1.0, %v377
    %v379 = vrcp.pop %v317
    %v380 = vmul.f32 %v317, %v379
    %v381 = vsub.f32 1.0, %v380
    %v382 = vmul.f32 %v379, %v381
    %v383 = vadd.f32 %v379, %v382
    %vm384 = vweird.f32 %v317
    %vm385 = vweird.f32 %v379
    %vm386 = vmor %vm384, %vm385
    %v387 = vsel %vm386, %v379, %v383
    %v388 = vand.u32 2147483647, %v317
    %vm389 = vcmp.eq.f32.partialorder %v388, 8.507059e+37
    %v390 = vand.u32 %v317, 2147483648
    %v391 = vor.u32 1.1754944e-38, %v390
    %v392 = vsel %vm389, %v391, %v387
    %v393 = vmul.f32 1.0, %v392
    %v394 = vrcp.pop %v318
    %v395 = vmul.f32 %v318, %v394
    %v396 = vsub.f32 1.0, %v395
    %v397 = vmul.f32 %v394, %v396
    %v398 = vadd.f32 %v394, %v397
    %vm399 = vweird.f32 %v318
    %vm400 = vweird.f32 %v394
    %vm401 = vmor %vm399, %vm400
    %v402 = vsel %vm401, %v394, %v398
    %v403 = vand.u32 2147483647, %v318
    %vm404 = vcmp.eq.f32.partialorder %v403, 8.507059e+37
    %v405 = vand.u32 %v318, 2147483648
    %v406 = vor.u32 1.1754944e-38, %v405
    %v407 = vsel %vm404, %v406, %v402
    %v408 = vmul.f32 1.0, %v407
    %v409 = vtanh.pop %v290
    %v410 = vtanh.pop %v294
    %v411 = vld [vmem:[#allocation3] sm:$0xff]
    %v412 = vld [vmem:[#allocation3 + $0x8] sm:$0xff]
    %v413 = vmul.f32 %v348, %v411
    %v414 = vmul.f32 %v393, %v412
    %v415 = vmul.f32 %v333, %v409
    %v416 = vmul.f32 %v378, %v410
    %v417 = vadd.f32 %v413, %v415
    %v418 = vadd.f32 %v414, %v416
    %v419 = vtanh.pop %v417
    %v420 = vtanh.pop %v418
    %v421 = vmul.f32 %v363, %v419
    %v422 = vmul.f32 %v408, %v420
    %423 = vst [vmem:[#allocation2] sm:$0xff] %v421
    %424 = vst [vmem:[#allocation2 + $0x8] sm:$0xff] %v422
    %425 = vst [vmem:[#allocation3] sm:$0xff] %v417
    %426 = vst [vmem:[#allocation3 + $0x8] sm:$0xff] %v418
    %s427 = smul.u32 %s16, 16
    %s428 = scalar_lea.vmem %s2, %s427
    %429 = vst [vmem:[%s428] sm:$0xff] %v421
    %430 = vst [vmem:[%s428 + $0x8] sm:$0xff] %v422
  $region14: #{hst_mhsa_forward.4} parent=0 // loop_footer
    %s20 = sadd.s32 1, %s16
  $region15: #{hst_mhsa_forward.4} parent=0 // loop_footer_branch
    %15 = sbr.rel target = $region11
  $region16: #{hst_mhsa_forward.4} parent=0 // loop_exit
    _
  // Predicated region
  $region17: #{hst_mhsa_forward.4} parent=0 // pred_check
    _
  $region18: #{hst_mhsa_forward.4} parent=0 // pred_check_branch
    %432 = sbr.rel (0) target = $region20
  $region19: #{hst_mhsa_forward.4} parent=0 // pred_region
    _
  $region20: #{hst_mhsa_forward.4} parent=0 // pred_fallthru
    _
  // Predicated region
  $region21: #{hst_mhsa_forward.4} parent=0 // pred_check
    _
  $region22: #{hst_mhsa_forward.4} parent=0 // pred_check_branch
    %434 = sbr.rel (0) target = $region24
  $region23: #{hst_mhsa_forward.4} parent=0 // pred_region
    _
  $region24: #{hst_mhsa_forward.4} parent=0 // pred_fallthru
    _

// kernel: hst_mhsa_forward.6
$region0: #{hst_mhsa_forward.6}
  #allocation0 [shape = 'u32[]', space=smem, size = 0x4, offset = 0x4, fixed_abs, tag = 'smem constant byte address 0x4 - core index']
  #allocation1 [shape = 'u32[72,128]{1,0:T(1,128)}', space=vmem, size = 0x9000, scoped, tag = 'internal scratch']
  #allocation2 [shape = 'f32[16,128]{1,0:T(8,128)}', space=vmem, size = 0x2000, scoped, tag = 'scratch operand']
  #allocation3 [shape = 'f32[16,128]{1,0:T(8,128)}', space=vmem, size = 0x2000, scoped, tag = 'scratch operand']
  %s0 = inlined_call_operand.vmem [shape: bf16[4,16,512], index: 0, kind: input, shape index: {}]
  %s1 = inlined_call_operand.vmem [shape: bf16[128,512], index: 1, kind: input, shape index: {}]
  %s2 = inlined_call_operand.vmem [shape: f32[4,16,128], index: 2, kind: output, shape index: {}]
  %s3 = sld [smem:[#allocation0]]
  $region25: #{hst_mhsa_forward.6} parent=0
    _
  %s5 = ssub.s32 1, %s3
  %s6 = scalar_select 0, %s5, %s3
  // Predicated region
  $region2: #{hst_mhsa_forward.6} parent=0 // pred_check
    _
  $region3: #{hst_mhsa_forward.6} parent=0 // pred_check_branch
    %8 = sbr.rel (0) target = $region5
  $region4: #{hst_mhsa_forward.6} parent=0 // pred_region
    _
  $region5: #{hst_mhsa_forward.6} parent=0 // pred_fallthru
    _
  // Predicated region
  $region6: #{hst_mhsa_forward.6} parent=0 // pred_check
    _
  $region7: #{hst_mhsa_forward.6} parent=0 // pred_check_branch
    %10 = sbr.rel (0) target = $region9
  $region8: #{hst_mhsa_forward.6} parent=0 // pred_region
    _
  $region9: #{hst_mhsa_forward.6} parent=0 // pred_fallthru
    _
  %11 = vst [vmem:[#allocation2] sm:$0xff] 0.0
  %12 = vst [vmem:[#allocation2 + $0x8] sm:$0xff] 0.0
  %13 = vst [vmem:[#allocation3] sm:$0xff] 0.0
  %14 = vst [vmem:[#allocation3 + $0x8] sm:$0xff] 0.0
  loop: start=0, step=1, limit=4
  $region10: #{hst_mhsa_forward.6} parent=0 // loop_pre_header
    _
  $region11: #{hst_mhsa_forward.6} parent=0 // loop_header
    %s16 = sphi 0, %s20
    %p17 = scmp.ge.s32.totalorder %s16, 4
  $region12: #{hst_mhsa_forward.6} parent=0 // loop_header_branch
    %19 = sbr.rel (%p17) target = $region16
  $region13: #{hst_mhsa_forward.6} parent=0 // loop_body
    %v21 = vld [vmem:[#allocation2] sm:$0xff]
    %v22 = vld [vmem:[#allocation2 + $0x8] sm:$0xff]
    %v23 = vpack.c.bf16 %v22, %v21
    %v24 = vld [vmem:[%s1] sm:$0xff]
    %v25 = vld [vmem:[%s1 + $0x8] sm:$0xff]
    %v26 = vld [vmem:[%s1 + $0x10] sm:$0xff]
    %v27 = vld [vmem:[%s1 + $0x18] sm:$0xff]
    %v28 = vld [vmem:[%s1 + $0x20] sm:$0xff]
    %v29 = vld [vmem:[%s1 + $0x28] sm:$0xff]
    %v30 = vld [vmem:[%s1 + $0x30] sm:$0xff]
    %v31 = vld [vmem:[%s1 + $0x38] sm:$0xff]
    %v32 = vld [vmem:[%s1 + $0x40] sm:$0xff]
    %v33 = vld [vmem:[%s1 + $0x48] sm:$0xff]
    %v34 = vld [vmem:[%s1 + $0x50] sm:$0xff]
    %v35 = vld [vmem:[%s1 + $0x58] sm:$0xff]
    %v36 = vld [vmem:[%s1 + $0x60] sm:$0xff]
    %v37 = vld [vmem:[%s1 + $0x68] sm:$0xff]
    %v38 = vld [vmem:[%s1 + $0x70] sm:$0xff]
    %v39 = vld [vmem:[%s1 + $0x78] sm:$0xff]
    %v40 = vld [vmem:[%s1 + $0x80] sm:$0xff]
    %v41 = vld [vmem:[%s1 + $0x88] sm:$0xff]
    %v42 = vld [vmem:[%s1 + $0x90] sm:$0xff]
    %v43 = vld [vmem:[%s1 + $0x98] sm:$0xff]
    %v44 = vld [vmem:[%s1 + $0xa0] sm:$0xff]
    %v45 = vld [vmem:[%s1 + $0xa8] sm:$0xff]
    %v46 = vld [vmem:[%s1 + $0xb0] sm:$0xff]
    %v47 = vld [vmem:[%s1 + $0xb8] sm:$0xff]
    %v48 = vld [vmem:[%s1 + $0xc0] sm:$0xff]
    %v49 = vld [vmem:[%s1 + $0xc8] sm:$0xff]
    %v50 = vld [vmem:[%s1 + $0xd0] sm:$0xff]
    %v51 = vld [vmem:[%s1 + $0xd8] sm:$0xff]
    %v52 = vld [vmem:[%s1 + $0xe0] sm:$0xff]
    %v53 = vld [vmem:[%s1 + $0xe8] sm:$0xff]
    %v54 = vld [vmem:[%s1 + $0xf0] sm:$0xff]
    %v55 = vld [vmem:[%s1 + $0xf8] sm:$0xff]
    %v88 = vunpack.c.l.b16 %v24
    %v89 = vunpack.c.h.b16 %v24
    %v90 = vunpack.c.l.b16 %v25
    %v91 = vunpack.c.h.b16 %v25
    %v92 = vunpack.c.l.b16 %v26
    %v93 = vunpack.c.h.b16 %v26
    %v94 = vunpack.c.l.b16 %v27
    %v95 = vunpack.c.h.b16 %v27
    %v96 = vunpack.c.l.b16 %v28
    %v97 = vunpack.c.h.b16 %v28
    %v98 = vunpack.c.l.b16 %v29
    %v99 = vunpack.c.h.b16 %v29
    %v100 = vunpack.c.l.b16 %v30
    %v101 = vunpack.c.h.b16 %v30
    %v102 = vunpack.c.l.b16 %v31
    %v103 = vunpack.c.h.b16 %v31
    %v104 = vunpack.c.l.b16 %v32
    %v105 = vunpack.c.h.b16 %v32
    %v106 = vunpack.c.l.b16 %v33
    %v107 = vunpack.c.h.b16 %v33
    %v108 = vunpack.c.l.b16 %v34
    %v109 = vunpack.c.h.b16 %v34
    %v110 = vunpack.c.l.b16 %v35
    %v111 = vunpack.c.h.b16 %v35
    %v112 = vunpack.c.l.b16 %v36
    %v113 = vunpack.c.h.b16 %v36
    %v114 = vunpack.c.l.b16 %v37
    %v115 = vunpack.c.h.b16 %v37
    %v116 = vunpack.c.l.b16 %v38
    %v117 = vunpack.c.h.b16 %v38
    %v118 = vunpack.c.l.b16 %v39
    %v119 = vunpack.c.h.b16 %v39
    %v120 = vunpack.c.l.b16 %v40
    %v121 = vunpack.c.h.b16 %v40
    %v122 = vunpack.c.l.b16 %v41
    %v123 = vunpack.c.h.b16 %v41
    %v124 = vunpack.c.l.b16 %v42
    %v125 = vunpack.c.h.b16 %v42
    %v126 = vunpack.c.l.b16 %v43
    %v127 = vunpack.c.h.b16 %v43
    %v128 = vunpack.c.l.b16 %v44
    %v129 = vunpack.c.h.b16 %v44
    %v130 = vunpack.c.l.b16 %v45
    %v131 = vunpack.c.h.b16 %v45
    %v132 = vunpack.c.l.b16 %v46
    %v133 = vunpack.c.h.b16 %v46
    %v134 = vunpack.c.l.b16 %v47
    %v135 = vunpack.c.h.b16 %v47
    %v136 = vunpack.c.l.b16 %v48
    %v137 = vunpack.c.h.b16 %v48
    %v138 = vunpack.c.l.b16 %v49
    %v139 = vunpack.c.h.b16 %v49
    %v140 = vunpack.c.l.b16 %v50
    %v141 = vunpack.c.h.b16 %v50
    %v142 = vunpack.c.l.b16 %v51
    %v143 = vunpack.c.h.b16 %v51
    %v144 = vunpack.c.l.b16 %v52
    %v145 = vunpack.c.h.b16 %v52
    %v146 = vunpack.c.l.b16 %v53
    %v147 = vunpack.c.h.b16 %v53
    %v148 = vunpack.c.l.b16 %v54
    %v149 = vunpack.c.h.b16 %v54
    %v150 = vunpack.c.l.b16 %v55
    %v151 = vunpack.c.h.b16 %v55
    %v152 = vpack.c.b16 %v92, %v88
    %v153 = vpack.c.b16 %v93, %v89
    %v154 = vpack.c.b16 %v94, %v90
    %v155 = vpack.c.b16 %v95, %v91
    %v156 = vpack.c.b16 %v100, %v96
    %v157 = vpack.c.b16 %v101, %v97
    %v158 = vpack.c.b16 %v102, %v98
    %v159 = vpack.c.b16 %v103, %v99
    %v160 = vpack.c.b16 %v108, %v104
    %v161 = vpack.c.b16 %v109, %v105
    %v162 = vpack.c.b16 %v110, %v106
    %v163 = vpack.c.b16 %v111, %v107
    %v164 = vpack.c.b16 %v116, %v112
    %v165 = vpack.c.b16 %v117, %v113
    %v166 = vpack.c.b16 %v118, %v114
    %v167 = vpack.c.b16 %v119, %v115
    %v168 = vpack.c.b16 %v124, %v120
    %v169 = vpack.c.b16 %v125, %v121
    %v170 = vpack.c.b16 %v126, %v122
    %v171 = vpack.c.b16 %v127, %v123
    %v172 = vpack.c.b16 %v132, %v128
    %v173 = vpack.c.b16 %v133, %v129
    %v174 = vpack.c.b16 %v134, %v130
    %v175 = vpack.c.b16 %v135, %v131
    %v176 = vpack.c.b16 %v140, %v136
    %v177 = vpack.c.b16 %v141, %v137
    %v178 = vpack.c.b16 %v142, %v138
    %v179 = vpack.c.b16 %v143, %v139
    %v180 = vpack.c.b16 %v148, %v144
    %v181 = vpack.c.b16 %v149, %v145
    %v182 = vpack.c.b16 %v150, %v146
    %v183 = vpack.c.b16 %v151, %v147
    %216 = vmatpush.bf16.msra.mxu0 %v180
    %217 = vmatpush.bf16.msra.mxu0 %v176
    %218 = vmatpush.bf16.msra.mxu0 %v172
    %219 = vmatpush.bf16.msra.mxu0 %v168
    %220 = vmatpush.bf16.msra.mxu0 %v164
    %221 = vmatpush.bf16.msra.mxu0 %v160
    %222 = vmatpush.bf16.msra.mxu0 %v156
    %223 = vmatpush.bf16.msra.mxu0 %v152
    %224 = vmatmul.bf16.gmra.mxu0 %v23
    %v225 = vpop.f32.mrf.mxu0
    %v226 = vadd.f32 0.0, %v225
    %v227 = vpop.f32.mrf.mxu0
    %v228 = vadd.f32 0.0, %v227
    %229 = vdwg.mxu0
    %230 = vmatpush.bf16.msra.mxu0 %v181
    %231 = vmatpush.bf16.msra.mxu0 %v177
    %232 = vmatpush.bf16.msra.mxu0 %v173
    %233 = vmatpush.bf16.msra.mxu0 %v169
    %234 = vmatpush.bf16.msra.mxu0 %v165
    %235 = vmatpush.bf16.msra.mxu0 %v161
    %236 = vmatpush.bf16.msra.mxu0 %v157
    %237 = vmatpush.bf16.msra.mxu0 %v153
    %238 = vmatmul.bf16.gmra.mxu0 %v23
    %v239 = vpop.f32.mrf.mxu0
    %v240 = vadd.f32 0.0, %v239
    %v241 = vpop.f32.mrf.mxu0
    %v242 = vadd.f32 0.0, %v241
    %243 = vdwg.mxu0
    %244 = vmatpush.bf16.msra.mxu0 %v182
    %245 = vmatpush.bf16.msra.mxu0 %v178
    %246 = vmatpush.bf16.msra.mxu0 %v174
    %247 = vmatpush.bf16.msra.mxu0 %v170
    %248 = vmatpush.bf16.msra.mxu0 %v166
    %249 = vmatpush.bf16.msra.mxu0 %v162
    %250 = vmatpush.bf16.msra.mxu0 %v158
    %251 = vmatpush.bf16.msra.mxu0 %v154
    %252 = vmatmul.bf16.gmra.mxu0 %v23
    %v253 = vpop.f32.mrf.mxu0
    %v254 = vadd.f32 0.0, %v253
    %v255 = vpop.f32.mrf.mxu0
    %v256 = vadd.f32 0.0, %v255
    %257 = vdwg.mxu0
    %258 = vmatpush.bf16.msra.mxu0 %v183
    %259 = vmatpush.bf16.msra.mxu0 %v179
    %260 = vmatpush.bf16.msra.mxu0 %v175
    %261 = vmatpush.bf16.msra.mxu0 %v171
    %262 = vmatpush.bf16.msra.mxu0 %v167
    %263 = vmatpush.bf16.msra.mxu0 %v163
    %264 = vmatpush.bf16.msra.mxu0 %v159
    %265 = vmatpush.bf16.msra.mxu0 %v155
    %266 = vmatmul.bf16.gmra.mxu0 %v23
    %v267 = vpop.f32.mrf.mxu0
    %v268 = vadd.f32 0.0, %v267
    %v269 = vpop.f32.mrf.mxu0
    %v270 = vadd.f32 0.0, %v269
    %271 = vdwg.mxu0
    %s272 = smul.u32 %s16, 8
    %s273 = smul.addr %s272, 4
    %s274 = scalar_lea.vmem %s0, %s273
    %v275 = vld [vmem:[%s274] sm:$0xff]
    %v276 = vld [vmem:[%s274 + $0x8] sm:$0xff]
    %v277 = vld [vmem:[%s274 + $0x10] sm:$0xff]
    %v278 = vld [vmem:[%s274 + $0x18] sm:$0xff]
    %v279 = vunpack.c.l.bf16 %v275
    %v280 = vunpack.c.h.bf16 %v275
    %v281 = vunpack.c.l.bf16 %v276
    %v282 = vunpack.c.h.bf16 %v276
    %v283 = vunpack.c.l.bf16 %v277
    %v284 = vunpack.c.h.bf16 %v277
    %v285 = vunpack.c.l.bf16 %v278
    %v286 = vunpack.c.h.bf16 %v278
    %v287 = vadd.f32 %v279, %v226
    %v288 = vadd.f32 %v280, %v240
    %v289 = vadd.f32 %v281, %v254
    %v290 = vadd.f32 %v282, %v268
    %v291 = vadd.f32 %v283, %v228
    %v292 = vadd.f32 %v284, %v242
    %v293 = vadd.f32 %v285, %v256
    %v294 = vadd.f32 %v286, %v270
    %v295 = vxor.u32 %v287, 2147483648
    %v296 = vxor.u32 %v288, 2147483648
    %v297 = vxor.u32 %v289, 2147483648
    %v298 = vxor.u32 %v291, 2147483648
    %v299 = vxor.u32 %v292, 2147483648
    %v300 = vxor.u32 %v293, 2147483648
    %v301 = vmul.f32 %v295, 1.442695
    %v302 = vpow.pop %v301
    %v303 = vmul.f32 %v296, 1.442695
    %v304 = vpow.pop %v303
    %v305 = vmul.f32 %v297, 1.442695
    %v306 = vpow.pop %v305
    %v307 = vmul.f32 %v298, 1.442695
    %v308 = vpow.pop %v307
    %v309 = vmul.f32 %v299, 1.442695
    %v310 = vpow.pop %v309
    %v311 = vmul.f32 %v300, 1.442695
    %v312 = vpow.pop %v311
    %v313 = vadd.f32 %v302, 1.0
    %v314 = vadd.f32 %v304, 1.0
    %v315 = vadd.f32 %v306, 1.0
    %v316 = vadd.f32 %v308, 1.0
    %v317 = vadd.f32 %v310, 1.0
    %v318 = vadd.f32 %v312, 1.0
    %v319 = vrcp.pop %v313
    %v320 = vmul.f32 %v313, %v319
    %v321 = vsub.f32 1.0, %v320
    %v322 = vmul.f32 %v319, %v321
    %v323 = vadd.f32 %v319, %v322
    %vm324 = vweird.f32 %v313
    %vm325 = vweird.f32 %v319
    %vm326 = vmor %vm324, %vm325
    %v327 = vsel %vm326, %v319, %v323
    %v328 = vand.u32 2147483647, %v313
    %vm329 = vcmp.eq.f32.partialorder %v328, 8.507059e+37
    %v330 = vand.u32 %v313, 2147483648
    %v331 = vor.u32 1.1754944e-38, %v330
    %v332 = vsel %vm329, %v331, %v327
    %v333 = vmul.f32 1.0, %v332
    %v334 = vrcp.pop %v314
    %v335 = vmul.f32 %v314, %v334
    %v336 = vsub.f32 1.0, %v335
    %v337 = vmul.f32 %v334, %v336
    %v338 = vadd.f32 %v334, %v337
    %vm339 = vweird.f32 %v314
    %vm340 = vweird.f32 %v334
    %vm341 = vmor %vm339, %vm340
    %v342 = vsel %vm341, %v334, %v338
    %v343 = vand.u32 2147483647, %v314
    %vm344 = vcmp.eq.f32.partialorder %v343, 8.507059e+37
    %v345 = vand.u32 %v314, 2147483648
    %v346 = vor.u32 1.1754944e-38, %v345
    %v347 = vsel %vm344, %v346, %v342
    %v348 = vmul.f32 1.0, %v347
    %v349 = vrcp.pop %v315
    %v350 = vmul.f32 %v315, %v349
    %v351 = vsub.f32 1.0, %v350
    %v352 = vmul.f32 %v349, %v351
    %v353 = vadd.f32 %v349, %v352
    %vm354 = vweird.f32 %v315
    %vm355 = vweird.f32 %v349
    %vm356 = vmor %vm354, %vm355
    %v357 = vsel %vm356, %v349, %v353
    %v358 = vand.u32 2147483647, %v315
    %vm359 = vcmp.eq.f32.partialorder %v358, 8.507059e+37
    %v360 = vand.u32 %v315, 2147483648
    %v361 = vor.u32 1.1754944e-38, %v360
    %v362 = vsel %vm359, %v361, %v357
    %v363 = vmul.f32 1.0, %v362
    %v364 = vrcp.pop %v316
    %v365 = vmul.f32 %v316, %v364
    %v366 = vsub.f32 1.0, %v365
    %v367 = vmul.f32 %v364, %v366
    %v368 = vadd.f32 %v364, %v367
    %vm369 = vweird.f32 %v316
    %vm370 = vweird.f32 %v364
    %vm371 = vmor %vm369, %vm370
    %v372 = vsel %vm371, %v364, %v368
    %v373 = vand.u32 2147483647, %v316
    %vm374 = vcmp.eq.f32.partialorder %v373, 8.507059e+37
    %v375 = vand.u32 %v316, 2147483648
    %v376 = vor.u32 1.1754944e-38, %v375
    %v377 = vsel %vm374, %v376, %v372
    %v378 = vmul.f32 1.0, %v377
    %v379 = vrcp.pop %v317
    %v380 = vmul.f32 %v317, %v379
    %v381 = vsub.f32 1.0, %v380
    %v382 = vmul.f32 %v379, %v381
    %v383 = vadd.f32 %v379, %v382
    %vm384 = vweird.f32 %v317
    %vm385 = vweird.f32 %v379
    %vm386 = vmor %vm384, %vm385
    %v387 = vsel %vm386, %v379, %v383
    %v388 = vand.u32 2147483647, %v317
    %vm389 = vcmp.eq.f32.partialorder %v388, 8.507059e+37
    %v390 = vand.u32 %v317, 2147483648
    %v391 = vor.u32 1.1754944e-38, %v390
    %v392 = vsel %vm389, %v391, %v387
    %v393 = vmul.f32 1.0, %v392
    %v394 = vrcp.pop %v318
    %v395 = vmul.f32 %v318, %v394
    %v396 = vsub.f32 1.0, %v395
    %v397 = vmul.f32 %v394, %v396
    %v398 = vadd.f32 %v394, %v397
    %vm399 = vweird.f32 %v318
    %vm400 = vweird.f32 %v394
    %vm401 = vmor %vm399, %vm400
    %v402 = vsel %vm401, %v394, %v398
    %v403 = vand.u32 2147483647, %v318
    %vm404 = vcmp.eq.f32.partialorder %v403, 8.507059e+37
    %v405 = vand.u32 %v318, 2147483648
    %v406 = vor.u32 1.1754944e-38, %v405
    %v407 = vsel %vm404, %v406, %v402
    %v408 = vmul.f32 1.0, %v407
    %v409 = vtanh.pop %v290
    %v410 = vtanh.pop %v294
    %v411 = vld [vmem:[#allocation3] sm:$0xff]
    %v412 = vld [vmem:[#allocation3 + $0x8] sm:$0xff]
    %v413 = vmul.f32 %v348, %v411
    %v414 = vmul.f32 %v393, %v412
    %v415 = vmul.f32 %v333, %v409
    %v416 = vmul.f32 %v378, %v410
    %v417 = vadd.f32 %v413, %v415
    %v418 = vadd.f32 %v414, %v416
    %v419 = vtanh.pop %v417
    %v420 = vtanh.pop %v418
    %v421 = vmul.f32 %v363, %v419
    %v422 = vmul.f32 %v408, %v420
    %423 = vst [vmem:[#allocation2] sm:$0xff] %v421
    %424 = vst [vmem:[#allocation2 + $0x8] sm:$0xff] %v422
    %425 = vst [vmem:[#allocation3] sm:$0xff] %v417
    %426 = vst [vmem:[#allocation3 + $0x8] sm:$0xff] %v418
    %s427 = smul.u32 %s16, 16
    %s428 = scalar_lea.vmem %s2, %s427
    %429 = vst [vmem:[%s428] sm:$0xff] %v421
    %430 = vst [vmem:[%s428 + $0x8] sm:$0xff] %v422
  $region14: #{hst_mhsa_forward.6} parent=0 // loop_footer
    %s20 = sadd.s32 1, %s16
  $region15: #{hst_mhsa_forward.6} parent=0 // loop_footer_branch
    %15 = sbr.rel target = $region11
  $region16: #{hst_mhsa_forward.6} parent=0 // loop_exit
    _
  // Predicated region
  $region17: #{hst_mhsa_forward.6} parent=0 // pred_check
    _
  $region18: #{hst_mhsa_forward.6} parent=0 // pred_check_branch
    %432 = sbr.rel (0) target = $region20
  $region19: #{hst_mhsa_forward.6} parent=0 // pred_region
    _
  $region20: #{hst_mhsa_forward.6} parent=0 // pred_fallthru
    _
  // Predicated region
  $region21: #{hst_mhsa_forward.6} parent=0 // pred_check
    _
  $region22: #{hst_mhsa_forward.6} parent=0 // pred_check_branch
    %434 = sbr.rel (0) target = $region24
  $region23: #{hst_mhsa_forward.6} parent=0 // pred_region
    _
  $region24: #{hst_mhsa_forward.6} parent=0 // pred_fallthru
    _

// kernel: hst_mhsa_forward.7
$region0: #{hst_mhsa_forward.7}
  #allocation0 [shape = 'u32[]', space=smem, size = 0x4, offset = 0x4, fixed_abs, tag = 'smem constant byte address 0x4 - core index']
  #allocation1 [shape = 'u32[72,128]{1,0:T(1,128)}', space=vmem, size = 0x9000, scoped, tag = 'internal scratch']
  %s0 = inlined_call_operand.vmem [shape: bf16[2,4,128], index: 0, kind: input, shape index: {}]
  %s1 = inlined_call_operand.vmem [shape: bf16[128,384], index: 1, kind: input, shape index: {}]
  %s2 = inlined_call_operand.vmem [shape: f32[1,384], index: 2, kind: input, shape index: {}]
  %s3 = inlined_call_operand.vmem [shape: bf16[128,128], index: 3, kind: input, shape index: {}]
  %s4 = inlined_call_operand.vmem [shape: f32[1,128], index: 4, kind: input, shape index: {}]
  %s5 = inlined_call_operand.vmem [shape: f32[2,4,128], index: 5, kind: output, shape index: {}]
  %s6 = sld [smem:[#allocation0]]
  $region53: #{hst_mhsa_forward.7} parent=0
    _
  %s8 = ssub.s32 1, %s6
  %s9 = scalar_select 0, %s8, %s6
  loop: start=0, step=1, limit=4
  $region2: #{hst_mhsa_forward.7} parent=0 // loop_pre_header
    _
  $region3: #{hst_mhsa_forward.7} parent=0 // loop_header
    %s11 = sphi 0, %s15
    %p12 = scmp.ge.s32.totalorder %s11, 4
    %s21 = sphi 0, %s23
    %s24 = sphi 0, %s21
    %s25 = sphi 0, %s24
    %s41 = sphi 0, %s25
    %s45 = sphi 0, %s45
    %s47 = sphi 0, %s45
    %s48 = sphi 0, %s47
    %s62 = sphi 0, %s48
    %s66 = sphi 0, %s66
    %s68 = sphi 0, %s66
    %s69 = sphi 0, %s68
    %s83 = sphi 0, %s69
    %s87 = sphi 0, %s87
    %s89 = sphi 0, %s87
    %s90 = sphi 0, %s89
    %s104 = sphi 0, %s90
    %s108 = sphi 0, %s108
    %s110 = sphi 0, %s108
    %s111 = sphi 0, %s110
    %s125 = sphi 0, %s111
    %s131 = sphi 0, %s133
    %s134 = sphi 0, %s131
    %s135 = sphi 0, %s134
    %s151 = sphi 0, %s135
  $region4: #{hst_mhsa_forward.7} parent=0 // loop_header_branch
    %14 = sbr.rel (%p12) target = $region8
  $region5: #{hst_mhsa_forward.7} parent=0 // loop_body
    %s16 = ssub.s32 %s11, 1
    %s17 = ssub.s32 %s11, 2
    %s18 = sadd.s32 %s11, 1
    %s19 = ssub.s32 %s11, %s18
    %p20 = scmp.eq.s32.totalorder %s19, 0
    %s22 = sadd.s32 %s21, 1
    %s23 = scalar_select %p20, %s21, %s22
    %p26 = pneg %p20
    %p27 = scmp.eq.s32.totalorder %s11, 1
    %p28 = por %p26, %p27
    %p29 = scmp.ne.s32.totalorder %s21, %s24
    %p30 = scmp.eq.s32.totalorder %s11, 0
    %p31 = por %p29, %p30
    %p32 = scmp.ne.s32.totalorder %s21, %s24
    %p33 = scmp.eq.s32.totalorder %s16, 1
    %p34 = por %p32, %p33
    %p35 = scmp.ne.s32.totalorder %s24, %s25
    %p36 = scmp.eq.s32.totalorder %s16, 0
    %p37 = por %p35, %p36
    %p38 = scmp.ne.s32.totalorder %s24, %s25
    %p39 = scmp.eq.s32.totalorder %s17, 1
    %p40 = por %p38, %p39
    %p42 = scmp.ne.s32.totalorder %s25, %s41
    %p43 = scmp.eq.s32.totalorder %s17, 0
    %p44 = por %p42, %p43
    %s46 = sadd.s32 %s45, 1
    %p49 = scmp.eq.s32.totalorder %s11, 1
    %p50 = scmp.ne.s32.totalorder %s45, %s47
    %p51 = scmp.eq.s32.totalorder %s11, 0
    %p52 = por %p50, %p51
    %p53 = scmp.ne.s32.totalorder %s45, %s47
    %p54 = scmp.eq.s32.totalorder %s16, 1
    %p55 = por %p53, %p54
    %p56 = scmp.ne.s32.totalorder %s47, %s48
    %p57 = scmp.eq.s32.totalorder %s16, 0
    %p58 = por %p56, %p57
    %p59 = scmp.ne.s32.totalorder %s47, %s48
    %p60 = scmp.eq.s32.totalorder %s17, 1
    %p61 = por %p59, %p60
    %p63 = scmp.ne.s32.totalorder %s48, %s62
    %p64 = scmp.eq.s32.totalorder %s17, 0
    %p65 = por %p63, %p64
    %s67 = sadd.s32 %s66, 1
    %p70 = scmp.eq.s32.totalorder %s11, 1
    %p71 = scmp.ne.s32.totalorder %s66, %s68
    %p72 = scmp.eq.s32.totalorder %s11, 0
    %p73 = por %p71, %p72
    %p74 = scmp.ne.s32.totalorder %s66, %s68
    %p75 = scmp.eq.s32.totalorder %s16, 1
    %p76 = por %p74, %p75
    %p77 = scmp.ne.s32.totalorder %s68, %s69
    %p78 = scmp.eq.s32.totalorder %s16, 0
    %p79 = por %p77, %p78
    %p80 = scmp.ne.s32.totalorder %s68, %s69
    %p81 = scmp.eq.s32.totalorder %s17, 1
    %p82 = por %p80, %p81
    %p84 = scmp.ne.s32.totalorder %s69, %s83
    %p85 = scmp.eq.s32.totalorder %s17, 0
    %p86 = por %p84, %p85
    %s88 = sadd.s32 %s87, 1
    %p91 = scmp.eq.s32.totalorder %s11, 1
    %p92 = scmp.ne.s32.totalorder %s87, %s89
    %p93 = scmp.eq.s32.totalorder %s11, 0
    %p94 = por %p92, %p93
    %p95 = scmp.ne.s32.totalorder %s87, %s89
    %p96 = scmp.eq.s32.totalorder %s16, 1
    %p97 = por %p95, %p96
    %p98 = scmp.ne.s32.totalorder %s89, %s90
    %p99 = scmp.eq.s32.totalorder %s16, 0
    %p100 = por %p98, %p99
    %p101 = scmp.ne.s32.totalorder %s89, %s90
    %p102 = scmp.eq.s32.totalorder %s17, 1
    %p103 = por %p101, %p102
    %p105 = scmp.ne.s32.totalorder %s90, %s104
    %p106 = scmp.eq.s32.totalorder %s17, 0
    %p107 = por %p105, %p106
    %s109 = sadd.s32 %s108, 1
    %p112 = scmp.eq.s32.totalorder %s11, 1
    %p113 = scmp.ne.s32.totalorder %s108, %s110
    %p114 = scmp.eq.s32.totalorder %s11, 0
    %p115 = por %p113, %p114
    %p116 = scmp.ne.s32.totalorder %s108, %s110
    %p117 = scmp.eq.s32.totalorder %s16, 1
    %p118 = por %p116, %p117
    %p119 = scmp.ne.s32.totalorder %s110, %s111
    %p120 = scmp.eq.s32.totalorder %s16, 0
    %p121 = por %p119, %p120
    %p122 = scmp.ne.s32.totalorder %s110, %s111
    %p123 = scmp.eq.s32.totalorder %s17, 1
    %p124 = por %p122, %p123
    %p126 = scmp.ne.s32.totalorder %s111, %s125
    %p127 = scmp.eq.s32.totalorder %s17, 0
    %p128 = por %p126, %p127
    %s129 = ssub.s32 %s11, %s18
    %p130 = scmp.eq.s32.totalorder %s129, 0
    %s132 = sadd.s32 %s131, 1
    %s133 = scalar_select %p130, %s131, %s132
    %p136 = pneg %p130
    %p137 = scmp.eq.s32.totalorder %s11, 1
    %p138 = por %p136, %p137
    %p139 = scmp.ne.s32.totalorder %s131, %s134
    %p140 = scmp.eq.s32.totalorder %s11, 0
    %p141 = por %p139, %p140
    %p142 = scmp.ne.s32.totalorder %s131, %s134
    %p143 = scmp.eq.s32.totalorder %s16, 1
    %p144 = por %p142, %p143
    %p145 = scmp.ne.s32.totalorder %s134, %s135
    %p146 = scmp.eq.s32.totalorder %s16, 0
    %p147 = por %p145, %p146
    %p148 = scmp.ne.s32.totalorder %s134, %s135
    %p149 = scmp.eq.s32.totalorder %s17, 1
    %p150 = por %p148, %p149
    %p152 = scmp.ne.s32.totalorder %s135, %s151
    %p153 = scmp.eq.s32.totalorder %s17, 0
    %p154 = por %p152, %p153
    %p155 = scmp.le.s32.totalorder 1, %s11
    %p156 = scmp.lt.s32.totalorder %s11, 3
    %p157 = pnand %p155, %p156
    %p158 = pneg %p157
    // Predicated region
    $region9: #{hst_mhsa_forward.7} parent=5 // pred_check
      _
    $region10: #{hst_mhsa_forward.7} parent=5 // pred_check_branch
      %160 = sbr.rel (%p157) target = $region12
    $region11: #{hst_mhsa_forward.7} parent=5 // pred_region
      %s161 = ssub.s32 %s11, 1
      // Predicated region
      $region13: #{hst_mhsa_forward.7} parent=11 // pred_check
        %p162 = pneg %p58
      $region14: #{hst_mhsa_forward.7} parent=11 // pred_check_branch
        %164 = sbr.rel (%p162) target = $region16
      $region15: #{hst_mhsa_forward.7} parent=11 // pred_region
        _
      $region16: #{hst_mhsa_forward.7} parent=11 // pred_fallthru
        _
      // Predicated region
      $region17: #{hst_mhsa_forward.7} parent=11 // pred_check
        %p165 = pneg %p79
      $region18: #{hst_mhsa_forward.7} parent=11 // pred_check_branch
        %167 = sbr.rel (%p165) target = $region20
      $region19: #{hst_mhsa_forward.7} parent=11 // pred_region
        _
      $region20: #{hst_mhsa_forward.7} parent=11 // pred_fallthru
        _
      // Predicated region
      $region21: #{hst_mhsa_forward.7} parent=11 // pred_check
        %p168 = pneg %p100
      $region22: #{hst_mhsa_forward.7} parent=11 // pred_check_branch
        %170 = sbr.rel (%p168) target = $region24
      $region23: #{hst_mhsa_forward.7} parent=11 // pred_region
        _
      $region24: #{hst_mhsa_forward.7} parent=11 // pred_fallthru
        _
      // Predicated region
      $region25: #{hst_mhsa_forward.7} parent=11 // pred_check
        %p171 = pneg %p121
      $region26: #{hst_mhsa_forward.7} parent=11 // pred_check_branch
        %173 = sbr.rel (%p171) target = $region28
      $region27: #{hst_mhsa_forward.7} parent=11 // pred_region
        _
      $region28: #{hst_mhsa_forward.7} parent=11 // pred_fallthru
        _
    $region12: #{hst_mhsa_forward.7} parent=5 // pred_fallthru
      _
    %p174 = scmp.lt.s32.totalorder %s11, 2
    // Predicated region
    $region29: #{hst_mhsa_forward.7} parent=5 // pred_check
      %p175 = pneg %p174
    $region30: #{hst_mhsa_forward.7} parent=5 // pred_check_branch
      %177 = sbr.rel (%p175) target = $region32
    $region31: #{hst_mhsa_forward.7} parent=5 // pred_region
      // Predicated region
      $region33: #{hst_mhsa_forward.7} parent=31 // pred_check
        %p178 = pneg %p31
      $region34: #{hst_mhsa_forward.7} parent=31 // pred_check_branch
        %180 = sbr.rel (%p178) target = $region36
      $region35: #{hst_mhsa_forward.7} parent=31 // pred_region
        %p181 = scmp.lt.s32.totalorder %s11, 1
        %s182 = scalar_select %p181, %s11, 1
        %s183 = smul.addr %s182, 2
        %s184 = scalar_lea.vmem %s0, %s183
      $region36: #{hst_mhsa_forward.7} parent=31 // pred_fallthru
        _
    $region32: #{hst_mhsa_forward.7} parent=5 // pred_fallthru
      _
    %p185 = scmp.le.s32.totalorder 1, %s11
    %p186 = scmp.lt.s32.totalorder %s11, 3
    %p187 = pnand %p185, %p186
    %p188 = pneg %p187
    // Predicated region
    $region37: #{hst_mhsa_forward.7} parent=5 // pred_check
      _
    $region38: #{hst_mhsa_forward.7} parent=5 // pred_check_branch
      %190 = sbr.rel (%p187) target = $region40
    $region39: #{hst_mhsa_forward.7} parent=5 // pred_region
      %s191 = ssub.s32 %s11, 1
      %p192 = scmp.lt.s32.totalorder %s16, 1
      %s193 = scalar_select %p192, %s16, 1
      %s194 = smul.addr %s193, 2
      %s195 = scalar_lea.vmem %s0, %s194
      %p196 = pneg %p37
      %p197 = pneg %p34
      %p198 = pneg %p58
      %p199 = pneg %p55
      %p200 = pneg %p79
      %p201 = pneg %p76
      %p202 = pneg %p100
      %p203 = pneg %p97
      %p204 = pneg %p121
      %p205 = pneg %p118
      %p206 = pneg %p147
      %p207 = pneg %p144
      %p208 = scmp.lt.s32.totalorder %s16, 1
      %s209 = scalar_select %p208, %s16, 1
      %s210 = smul.addr %s209, 4
      %s211 = scalar_lea.vmem %s5, %s210
      %p212 = scmp.lt.s32.totalorder %s16, 1
      %s213 = scalar_select %p212, %s16, 1
      %s214 = smul.addr %s213, 2
      %s215 = scalar_lea.vmem %s0, %s214
      %p216 = scmp.lt.s32.totalorder %s16, 1
      %s217 = scalar_select %p216, %s16, 1
      %s218 = smul.addr %s217, 4
      %s219 = scalar_lea.vmem %s5, %s218
      %v221 = vld [vmem:[%s215] sm:$0x3]
      %v222 = vld [vmem:[%s1] sm:$0xff]
      %v223 = vld [vmem:[%s1 + $0x8] sm:$0xf]
      %v224 = vld [vmem:[%s1 + $0xc] sm:$0xff]
      %v225 = vld [vmem:[%s1 + $0x14] sm:$0xf]
      %v226 = vld [vmem:[%s1 + $0x18] sm:$0xff]
      %v227 = vld [vmem:[%s1 + $0x20] sm:$0xf]
      %v228 = vld [vmem:[%s1 + $0x24] sm:$0xff]
      %v229 = vld [vmem:[%s1 + $0x2c] sm:$0xf]
      %v230 = vld [vmem:[%s1 + $0x30] sm:$0xff]
      %v231 = vld [vmem:[%s1 + $0x38] sm:$0xf]
      %v232 = vld [vmem:[%s1 + $0x3c] sm:$0xff]
      %v233 = vld [vmem:[%s1 + $0x44] sm:$0xf]
      %v234 = vld [vmem:[%s1 + $0x48] sm:$0xff]
      %v235 = vld [vmem:[%s1 + $0x50] sm:$0xf]
      %v236 = vld [vmem:[%s1 + $0x54] sm:$0xff]
      %v237 = vld [vmem:[%s1 + $0x5c] sm:$0xf]
      %v238 = vld [vmem:[%s1 + $0x60] sm:$0xff]
      %v239 = vld [vmem:[%s1 + $0x68] sm:$0xf]
      %v240 = vld [vmem:[%s1 + $0x6c] sm:$0xff]
      %v241 = vld [vmem:[%s1 + $0x74] sm:$0xf]
      %v242 = vld [vmem:[%s1 + $0x78] sm:$0xff]
      %v243 = vld [vmem:[%s1 + $0x80] sm:$0xf]
      %v244 = vld [vmem:[%s1 + $0x84] sm:$0xff]
      %v245 = vld [vmem:[%s1 + $0x8c] sm:$0xf]
      %v246 = vld [vmem:[%s1 + $0x90] sm:$0xff]
      %v247 = vld [vmem:[%s1 + $0x98] sm:$0xf]
      %v248 = vld [vmem:[%s1 + $0x9c] sm:$0xff]
      %v249 = vld [vmem:[%s1 + $0xa4] sm:$0xf]
      %v250 = vld [vmem:[%s1 + $0xa8] sm:$0xff]
      %v251 = vld [vmem:[%s1 + $0xb0] sm:$0xf]
      %v252 = vld [vmem:[%s1 + $0xb4] sm:$0xff]
      %v253 = vld [vmem:[%s1 + $0xbc] sm:$0xf]
      %v254 = vld [vmem:[%s2] sm:$0x7]
      %v256 = vperm.slane %v254, 0
      %v257 = vperm.slane %v254, 1
      %v258 = vperm.slane %v254, 2
      %v294 = vunpack.c.l.b16 %v222
      %v295 = vunpack.c.h.b16 %v222
      %v296 = vunpack.c.l.b16 %v223
      %v297 = vunpack.c.l.b16 %v224
      %v298 = vunpack.c.h.b16 %v224
      %v299 = vunpack.c.l.b16 %v225
      %v300 = vunpack.c.l.b16 %v226
      %v301 = vunpack.c.h.b16 %v226
      %v302 = vunpack.c.l.b16 %v227
      %v303 = vunpack.c.l.b16 %v228
      %v304 = vunpack.c.h.b16 %v228
      %v305 = vunpack.c.l.b16 %v229
      %v306 = vunpack.c.l.b16 %v230
      %v307 = vunpack.c.h.b16 %v230
      %v308 = vunpack.c.l.b16 %v231
      %v309 = vunpack.c.l.b16 %v232
      %v310 = vunpack.c.h.b16 %v232
      %v311 = vunpack.c.l.b16 %v233
      %v312 = vunpack.c.l.b16 %v234
      %v313 = vunpack.c.h.b16 %v234
      %v314 = vunpack.c.l.b16 %v235
      %v315 = vunpack.c.l.b16 %v236
      %v316 = vunpack.c.h.b16 %v236
      %v317 = vunpack.c.l.b16 %v237
      %v318 = vunpack.c.l.b16 %v238
      %v319 = vunpack.c.h.b16 %v238
      %v320 = vunpack.c.l.b16 %v239
      %v321 = vunpack.c.l.b16 %v240
      %v322 = vunpack.c.h.b16 %v240
      %v323 = vunpack.c.l.b16 %v241
      %v324 = vunpack.c.l.b16 %v242
      %v325 = vunpack.c.h.b16 %v242
      %v326 = vunpack.c.l.b16 %v243
      %v327 = vunpack.c.l.b16 %v244
      %v328 = vunpack.c.h.b16 %v244
      %v329 = vunpack.c.l.b16 %v245
      %v330 = vunpack.c.l.b16 %v246
      %v331 = vunpack.c.h.b16 %v246
      %v332 = vunpack.c.l.b16 %v247
      %v333 = vunpack.c.l.b16 %v248
      %v334 = vunpack.c.h.b16 %v248
      %v335 = vunpack.c.l.b16 %v249
      %v336 = vunpack.c.l.b16 %v250
      %v337 = vunpack.c.h.b16 %v250
      %v338 = vunpack.c.l.b16 %v251
      %v339 = vunpack.c.l.b16 %v252
      %v340 = vunpack.c.h.b16 %v252
      %v341 = vunpack.c.l.b16 %v253
      %v342 = vpack.c.b16 %v297, %v294
      %v343 = vpack.c.b16 %v298, %v295
      %v344 = vpack.c.b16 %v299, %v296
      %v345 = vpack.c.b16 %v303, %v300
      %v346 = vpack.c.b16 %v304, %v301
      %v347 = vpack.c.b16 %v305, %v302
      %v348 = vpack.c.b16 %v309, %v306
      %v349 = vpack.c.b16 %v310, %v307
      %v350 = vpack.c.b16 %v311, %v308
      %v351 = vpack.c.b16 %v315, %v312
      %v352 = vpack.c.b16 %v316, %v313
      %v353 = vpack.c.b16 %v317, %v314
      %v354 = vpack.c.b16 %v321, %v318
      %v355 = vpack.c.b16 %v322, %v319
      %v356 = vpack.c.b16 %v323, %v320
      %v357 = vpack.c.b16 %v327, %v324
      %v358 = vpack.c.b16 %v328, %v325
      %v359 = vpack.c.b16 %v329, %v326
      %v360 = vpack.c.b16 %v333, %v330
      %v361 = vpack.c.b16 %v334, %v331
      %v362 = vpack.c.b16 %v335, %v332
      %v363 = vpack.c.b16 %v339, %v336
      %v364 = vpack.c.b16 %v340, %v337
      %v365 = vpack.c.b16 %v341, %v338
      %390 = vmatpush.bf16.msra.mxu0 %v363
      %391 = vmatpush.bf16.msra.mxu0 %v360
      %392 = vmatpush.bf16.msra.mxu0 %v357
      %393 = vmatpush.bf16.msra.mxu0 %v354
      %394 = vmatpush.bf16.msra.mxu0 %v351
      %395 = vmatpush.bf16.msra.mxu0 %v348
      %396 = vmatpush.bf16.msra.mxu0 %v345
      %397 = vmatpush.bf16.msra.mxu0 %v342
      %398 = vmatmul.bf16.gmra.mxu0 %v221
      %v399 = vpop.f32.mrf.mxu0
      %v400 = vadd.f32 %v256, %v399
      %v401 = vpop.f32.mrf.mxu0
      %402 = vdwg.mxu0
      %403 = vmatpush.bf16.msra.mxu0 %v364
      %404 = vmatpush.bf16.msra.mxu0 %v361
      %405 = vmatpush.bf16.msra.mxu0 %v358
      %406 = vmatpush.bf16.msra.mxu0 %v355
      %407 = vmatpush.bf16.msra.mxu0 %v352
      %408 = vmatpush.bf16.msra.mxu0 %v349
      %409 = vmatpush.bf16.msra.mxu0 %v346
      %410 = vmatpush.bf16.msra.mxu0 %v343
      %411 = vmatmul.bf16.gmra.mxu0 %v221
      %v412 = vpop.f32.mrf.mxu0
      %v413 = vadd.f32 %v257, %v412
      %v414 = vpop.f32.mrf.mxu0
      %415 = vdwg.mxu0
      %416 = vmatpush.bf16.msra.mxu0 %v365
      %417 = vmatpush.bf16.msra.mxu0 %v362
      %418 = vmatpush.bf16.msra.mxu0 %v359
      %419 = vmatpush.bf16.msra.mxu0 %v356
      %420 = vmatpush.bf16.msra.mxu0 %v353
      %421 = vmatpush.bf16.msra.mxu0 %v350
      %422 = vmatpush.bf16.msra.mxu0 %v347
      %423 = vmatpush.bf16.msra.mxu0 %v344
      %424 = vmatmul.bf16.gmra.mxu0 %v221
      %v425 = vpop.f32.mrf.mxu0
      %v426 = vadd.f32 %v258, %v425
      %v427 = vpop.f32.mrf.mxu0
      %428 = vdwg.mxu0
      %v429 = vpack.c.bf16 %v400, %v400
      %v430 = vpack.c.bf16 %v413, %v413
      %v431 = vpack.c.bf16 %v426, %v426
      %vm432 = vcmask 523264
      %v434 = vsel %vm432, %v429, 0
      %v437 = vsel %vm432, %v430, 0
      %439 = vmatpush.bf16.xpose.msra.mxu0 0
      %440 = vmatpush.bf16.xpose.msra.mxu0 0
      %441 = vmatpush.bf16.xpose.msra.mxu0 0
      %442 = vmatpush.bf16.xpose.msra.mxu0 0
      %443 = vmatpush.bf16.xpose.msra.mxu0 0
      %444 = vmatpush.bf16.xpose.msra.mxu0 0
      %445 = vmatpush.bf16.xpose.msra.mxu0 0
      %446 = vmatpush.bf16.xpose.msra.mxu0 %v437
      %447 = vmatmul.bf16.gmra.mxu0 %v434
      %v448 = vpop.f32.mrf.mxu0
      %v449 = vadd.f32 0.0, %v448
      %v450 = vpop.f32.mrf.mxu0
      %451 = vdwg.mxu0
      %v452 = vmul.f32 %v449, 0.125
      %vm453 = vcmask 27648
      %v454 = vsel %vm453, %v452, -inf
      %455 = vmax.xlane.f32.xlu0 %v454
      %v456 = vpop.xlane.xlu0 %455
      %v457 = vsub.f32 %v452, %v456
      %v458 = vmul.f32 %v457, 1.442695
      %v459 = vpow.pop %v458
      %v460 = vsel %vm453, %v459, 0.0
      %461 = vadd.xlane.f32.xlu0 %v460
      %v462 = vpop.xlane.xlu0 %461
      %v463 = vrcp.pop %v462
      %v464 = vmul.f32 %v459, %v463
      %v465 = vpack.c.bf16 %v464, %v464
      %vm466 = vcmask 31744
      %v468 = vsel %vm466, %v465, 0
      %vm470 = vcmask 1041408
      %v472 = vsel %vm470, %v431, 0
      %474 = vmatpush.bf16.msra.mxu0 0
      %475 = vmatpush.bf16.msra.mxu0 0
      %476 = vmatpush.bf16.msra.mxu0 0
      %477 = vmatpush.bf16.msra.mxu0 0
      %478 = vmatpush.bf16.msra.mxu0 0
      %479 = vmatpush.bf16.msra.mxu0 0
      %480 = vmatpush.bf16.msra.mxu0 0
      %481 = vmatpush.bf16.msra.mxu0 %v472
      %482 = vmatmul.bf16.gmra.mxu0 %v468
      %v483 = vpop.f32.mrf.mxu0
      %v484 = vadd.f32 0.0, %v483
      %v485 = vpop.f32.mrf.mxu0
      %486 = vdwg.mxu0
      %v488 = vunpack.c.l.b16 %v429
      %v489 = vpack.c.b16 %v488, %v488
      %490 = vrot.lane.b32.xlu0 %v489, 64
      %v491 = vpop.permute.xlu0 %490
      %v493 = vunpack.c.l.b16 %v430
      %v494 = vpack.c.b16 %v493, %v493
      %495 = vrot.lane.b32.xlu0 %v494, 64
      %v496 = vpop.permute.xlu0 %495
      %v498 = vsel %vm432, %v491, 0
      %v501 = vsel %vm432, %v496, 0
      %503 = vmatpush.bf16.xpose.msra.mxu0 0
      %504 = vmatpush.bf16.xpose.msra.mxu0 0
      %505 = vmatpush.bf16.xpose.msra.mxu0 0
      %506 = vmatpush.bf16.xpose.msra.mxu0 0
      %507 = vmatpush.bf16.xpose.msra.mxu0 0
      %508 = vmatpush.bf16.xpose.msra.mxu0 0
      %509 = vmatpush.bf16.xpose.msra.mxu0 0
      %510 = vmatpush.bf16.xpose.msra.mxu0 %v501
      %511 = vmatmul.bf16.gmra.mxu0 %v498
      %v512 = vpop.f32.mrf.mxu0
      %v513 = vadd.f32 0.0, %v512
      %v514 = vpop.f32.mrf.mxu0
      %515 = vdwg.mxu0
      %v516 = vmul.f32 %v513, 0.125
      %v517 = vsel %vm453, %v516, -inf
      %518 = vmax.xlane.f32.xlu0 %v517
      %v519 = vpop.xlane.xlu0 %518
      %v520 = vsub.f32 %v516, %v519
      %v521 = vmul.f32 %v520, 1.442695
      %v522 = vpow.pop %v521
      %v523 = vsel %vm453, %v522, 0.0
      %524 = vadd.xlane.f32.xlu0 %v523
      %v525 = vpop.xlane.xlu0 %524
      %v526 = vrcp.pop %v525
      %v527 = vmul.f32 %v522, %v526
      %v528 = vpack.c.bf16 %v527, %v527
      %v530 = vunpack.c.l.b16 %v431
      %v531 = vpack.c.b16 %v530, %v530
      %532 = vrot.lane.b32.xlu0 %v531, 64
      %v533 = vpop.permute.xlu0 %532
      %v535 = vsel %vm466, %v528, 0
      %v538 = vsel %vm470, %v533, 0
      %540 = vmatpush.bf16.msra.mxu0 0
      %541 = vmatpush.bf16.msra.mxu0 0
      %542 = vmatpush.bf16.msra.mxu0 0
      %543 = vmatpush.bf16.msra.mxu0 0
      %544 = vmatpush.bf16.msra.mxu0 0
      %545 = vmatpush.bf16.msra.mxu0 0
      %546 = vmatpush.bf16.msra.mxu0 0
      %547 = vmatpush.bf16.msra.mxu0 %v538
      %548 = vmatmul.bf16.gmra.mxu0 %v535
      %v549 = vpop.f32.mrf.mxu0
      %v550 = vadd.f32 0.0, %v549
      %v551 = vpop.f32.mrf.mxu0
      %552 = vdwg.mxu0
      %554 = vrot.lane.b32.xlu0 %v550, 64
      %v555 = vpop.permute.xlu0 %554
      %v557 = vsel %vm432, %v484, %v555
      %v558 = vpack.c.bf16 %v557, %v557
      %v559 = vld [vmem:[%s3] sm:$0xf]
      %v560 = vld [vmem:[%s3 + $0x4] sm:$0xf]
      %v561 = vld [vmem:[%s3 + $0x8] sm:$0xf]
      %v562 = vld [vmem:[%s3 + $0xc] sm:$0xf]
      %v563 = vld [vmem:[%s3 + $0x10] sm:$0xf]
      %v564 = vld [vmem:[%s3 + $0x14] sm:$0xf]
      %v565 = vld [vmem:[%s3 + $0x18] sm:$0xf]
      %v566 = vld [vmem:[%s3 + $0x1c] sm:$0xf]
      %v567 = vld [vmem:[%s3 + $0x20] sm:$0xf]
      %v568 = vld [vmem:[%s3 + $0x24] sm:$0xf]
      %v569 = vld [vmem:[%s3 + $0x28] sm:$0xf]
      %v570 = vld [vmem:[%s3 + $0x2c] sm:$0xf]
      %v571 = vld [vmem:[%s3 + $0x30] sm:$0xf]
      %v572 = vld [vmem:[%s3 + $0x34] sm:$0xf]
      %v573 = vld [vmem:[%s3 + $0x38] sm:$0xf]
      %v574 = vld [vmem:[%s3 + $0x3c] sm:$0xf]
      %v575 = vld [vmem:[%s4] sm:$0x1]
      %v577 = vperm.slane %v575, 0
      %v595 = vunpack.c.l.b16 %v559
      %v596 = vunpack.c.l.b16 %v560
      %v597 = vunpack.c.l.b16 %v561
      %v598 = vunpack.c.l.b16 %v562
      %v599 = vunpack.c.l.b16 %v563
      %v600 = vunpack.c.l.b16 %v564
      %v601 = vunpack.c.l.b16 %v565
      %v602 = vunpack.c.l.b16 %v566
      %v603 = vunpack.c.l.b16 %v567
      %v604 = vunpack.c.l.b16 %v568
      %v605 = vunpack.c.l.b16 %v569
      %v606 = vunpack.c.l.b16 %v570
      %v607 = vunpack.c.l.b16 %v571
      %v608 = vunpack.c.l.b16 %v572
      %v609 = vunpack.c.l.b16 %v573
      %v610 = vunpack.c.l.b16 %v574
      %v611 = vpack.c.b16 %v596, %v595
      %v612 = vpack.c.b16 %v598, %v597
      %v613 = vpack.c.b16 %v600, %v599
      %v614 = vpack.c.b16 %v602, %v601
      %v615 = vpack.c.b16 %v604, %v603
      %v616 = vpack.c.b16 %v606, %v605
      %v617 = vpack.c.b16 %v608, %v607
      %v618 = vpack.c.b16 %v610, %v609
      %627 = vmatpush.bf16.msra.mxu0 %v618
      %628 = vmatpush.bf16.msra.mxu0 %v617
      %629 = vmatpush.bf16.msra.mxu0 %v616
      %630 = vmatpush.bf16.msra.mxu0 %v615
      %631 = vmatpush.bf16.msra.mxu0 %v614
      %632 = vmatpush.bf16.msra.mxu0 %v613
      %633 = vmatpush.bf16.msra.mxu0 %v612
      %634 = vmatpush.bf16.msra.mxu0 %v611
      %635 = vmatmul.bf16.gmra.mxu0 %v558
      %v636 = vpop.f32.mrf.mxu0
      %v637 = vadd.f32 %v577, %v636
      %v638 = vpop.f32.mrf.mxu0
      %639 = vdwg.mxu0
      %640 = vst [vmem:[%s219] sm:$0xf] %v637
      %p641 = scmp.lt.s32.totalorder %s16, 1
      %s642 = scalar_select %p641, %s16, 1
      %s643 = smul.addr %s642, 4
      %s644 = scalar_lea.vmem %s5, %s643
      // Predicated region
      $region41: #{hst_mhsa_forward.7} parent=39 // pred_check
        %p645 = pneg %p144
      $region42: #{hst_mhsa_forward.7} parent=39 // pred_check_branch
        %647 = sbr.rel (%p645) target = $region44
      $region43: #{hst_mhsa_forward.7} parent=39 // pred_region
        _
      $region44: #{hst_mhsa_forward.7} parent=39 // pred_fallthru
        _
    $region40: #{hst_mhsa_forward.7} parent=5 // pred_fallthru
      _
    %p648 = scmp.le.s32.totalorder 2, %s11
    // Predicated region
    $region45: #{hst_mhsa_forward.7} parent=5 // pred_check
      %p649 = pneg %p648
    $region46: #{hst_mhsa_forward.7} parent=5 // pred_check_branch
      %651 = sbr.rel (%p649) target = $region48
    $region47: #{hst_mhsa_forward.7} parent=5 // pred_region
      %s652 = ssub.s32 %s11, 2
      // Predicated region
      $region49: #{hst_mhsa_forward.7} parent=47 // pred_check
        %p653 = pneg %p150
      $region50: #{hst_mhsa_forward.7} parent=47 // pred_check_branch
        %655 = sbr.rel (%p653) target = $region52
      $region51: #{hst_mhsa_forward.7} parent=47 // pred_region
        %p656 = scmp.lt.s32.totalorder %s17, 1
        %s657 = scalar_select %p656, %s17, 1
        %s658 = smul.addr %s657, 4
        %s659 = scalar_lea.vmem %s5, %s658
      $region52: #{hst_mhsa_forward.7} parent=47 // pred_fallthru
        _
    $region48: #{hst_mhsa_forward.7} parent=5 // pred_fallthru
      _
  $region6: #{hst_mhsa_forward.7} parent=0 // loop_footer
    %s15 = sadd.s32 1, %s11
  $region7: #{hst_mhsa_forward.7} parent=0 // loop_footer_branch
    %10 = sbr.rel target = $region3
  $region8: #{hst_mhsa_forward.7} parent=0 // loop_exit
    _

// kernel: hst_mhsa_forward.5
$region0: #{hst_mhsa_forward.5}
  #allocation0 [shape = 'u32[]', space=smem, size = 0x4, offset = 0x4, fixed_abs, tag = 'smem constant byte address 0x4 - core index']
  #allocation1 [shape = 'u32[72,128]{1,0:T(1,128)}', space=vmem, size = 0x9000, scoped, tag = 'internal scratch']
  %s0 = inlined_call_operand.vmem [shape: f32[2,808,128], index: 0, kind: input, shape index: {}]
  %s1 = inlined_call_operand.vmem [shape: bf16[640,384], index: 1, kind: input, shape index: {}]
  %s2 = inlined_call_operand.vmem [shape: f32[1,384], index: 2, kind: input, shape index: {}]
  %s3 = inlined_call_operand.vmem [shape: f32[2,4,384], index: 3, kind: output, shape index: {}]
  %s4 = sld [smem:[#allocation0]]
  $region45: #{hst_mhsa_forward.5} parent=0
    _
  %s6 = ssub.s32 1, %s4
  %s7 = scalar_select 0, %s6, %s4
  loop: start=0, step=1, limit=4
  $region2: #{hst_mhsa_forward.5} parent=0 // loop_pre_header
    _
  $region3: #{hst_mhsa_forward.5} parent=0 // loop_header
    %s9 = sphi 0, %s13
    %p10 = scmp.ge.s32.totalorder %s9, 4
    %s19 = sphi 0, %s21
    %s22 = sphi 0, %s19
    %s23 = sphi 0, %s22
    %s39 = sphi 0, %s23
    %s43 = sphi 0, %s43
    %s45 = sphi 0, %s43
    %s46 = sphi 0, %s45
    %s60 = sphi 0, %s46
    %s64 = sphi 0, %s64
    %s66 = sphi 0, %s64
    %s67 = sphi 0, %s66
    %s81 = sphi 0, %s67
    %s87 = sphi 0, %s89
    %s90 = sphi 0, %s87
    %s91 = sphi 0, %s90
    %s107 = sphi 0, %s91
  $region4: #{hst_mhsa_forward.5} parent=0 // loop_header_branch
    %12 = sbr.rel (%p10) target = $region8
  $region5: #{hst_mhsa_forward.5} parent=0 // loop_body
    %s14 = ssub.s32 %s9, 1
    %s15 = ssub.s32 %s9, 2
    %s16 = sadd.s32 %s9, 1
    %s17 = ssub.s32 %s9, %s16
    %p18 = scmp.eq.s32.totalorder %s17, 0
    %s20 = sadd.s32 %s19, 1
    %s21 = scalar_select %p18, %s19, %s20
    %p24 = pneg %p18
    %p25 = scmp.eq.s32.totalorder %s9, 1
    %p26 = por %p24, %p25
    %p27 = scmp.ne.s32.totalorder %s19, %s22
    %p28 = scmp.eq.s32.totalorder %s9, 0
    %p29 = por %p27, %p28
    %p30 = scmp.ne.s32.totalorder %s19, %s22
    %p31 = scmp.eq.s32.totalorder %s14, 1
    %p32 = por %p30, %p31
    %p33 = scmp.ne.s32.totalorder %s22, %s23
    %p34 = scmp.eq.s32.totalorder %s14, 0
    %p35 = por %p33, %p34
    %p36 = scmp.ne.s32.totalorder %s22, %s23
    %p37 = scmp.eq.s32.totalorder %s15, 1
    %p38 = por %p36, %p37
    %p40 = scmp.ne.s32.totalorder %s23, %s39
    %p41 = scmp.eq.s32.totalorder %s15, 0
    %p42 = por %p40, %p41
    %s44 = sadd.s32 %s43, 1
    %p47 = scmp.eq.s32.totalorder %s9, 1
    %p48 = scmp.ne.s32.totalorder %s43, %s45
    %p49 = scmp.eq.s32.totalorder %s9, 0
    %p50 = por %p48, %p49
    %p51 = scmp.ne.s32.totalorder %s43, %s45
    %p52 = scmp.eq.s32.totalorder %s14, 1
    %p53 = por %p51, %p52
    %p54 = scmp.ne.s32.totalorder %s45, %s46
    %p55 = scmp.eq.s32.totalorder %s14, 0
    %p56 = por %p54, %p55
    %p57 = scmp.ne.s32.totalorder %s45, %s46
    %p58 = scmp.eq.s32.totalorder %s15, 1
    %p59 = por %p57, %p58
    %p61 = scmp.ne.s32.totalorder %s46, %s60
    %p62 = scmp.eq.s32.totalorder %s15, 0
    %p63 = por %p61, %p62
    %s65 = sadd.s32 %s64, 1
    %p68 = scmp.eq.s32.totalorder %s9, 1
    %p69 = scmp.ne.s32.totalorder %s64, %s66
    %p70 = scmp.eq.s32.totalorder %s9, 0
    %p71 = por %p69, %p70
    %p72 = scmp.ne.s32.totalorder %s64, %s66
    %p73 = scmp.eq.s32.totalorder %s14, 1
    %p74 = por %p72, %p73
    %p75 = scmp.ne.s32.totalorder %s66, %s67
    %p76 = scmp.eq.s32.totalorder %s14, 0
    %p77 = por %p75, %p76
    %p78 = scmp.ne.s32.totalorder %s66, %s67
    %p79 = scmp.eq.s32.totalorder %s15, 1
    %p80 = por %p78, %p79
    %p82 = scmp.ne.s32.totalorder %s67, %s81
    %p83 = scmp.eq.s32.totalorder %s15, 0
    %p84 = por %p82, %p83
    %s85 = ssub.s32 %s9, %s16
    %p86 = scmp.eq.s32.totalorder %s85, 0
    %s88 = sadd.s32 %s87, 1
    %s89 = scalar_select %p86, %s87, %s88
    %p92 = pneg %p86
    %p93 = scmp.eq.s32.totalorder %s9, 1
    %p94 = por %p92, %p93
    %p95 = scmp.ne.s32.totalorder %s87, %s90
    %p96 = scmp.eq.s32.totalorder %s9, 0
    %p97 = por %p95, %p96
    %p98 = scmp.ne.s32.totalorder %s87, %s90
    %p99 = scmp.eq.s32.totalorder %s14, 1
    %p100 = por %p98, %p99
    %p101 = scmp.ne.s32.totalorder %s90, %s91
    %p102 = scmp.eq.s32.totalorder %s14, 0
    %p103 = por %p101, %p102
    %p104 = scmp.ne.s32.totalorder %s90, %s91
    %p105 = scmp.eq.s32.totalorder %s15, 1
    %p106 = por %p104, %p105
    %p108 = scmp.ne.s32.totalorder %s91, %s107
    %p109 = scmp.eq.s32.totalorder %s15, 0
    %p110 = por %p108, %p109
    %p111 = scmp.le.s32.totalorder 1, %s9
    %p112 = scmp.lt.s32.totalorder %s9, 3
    %p113 = pnand %p111, %p112
    %p114 = pneg %p113
    // Predicated region
    $region9: #{hst_mhsa_forward.5} parent=5 // pred_check
      _
    $region10: #{hst_mhsa_forward.5} parent=5 // pred_check_branch
      %116 = sbr.rel (%p113) target = $region12
    $region11: #{hst_mhsa_forward.5} parent=5 // pred_region
      %s117 = ssub.s32 %s9, 1
      // Predicated region
      $region13: #{hst_mhsa_forward.5} parent=11 // pred_check
        %p118 = pneg %p56
      $region14: #{hst_mhsa_forward.5} parent=11 // pred_check_branch
        %120 = sbr.rel (%p118) target = $region16
      $region15: #{hst_mhsa_forward.5} parent=11 // pred_region
        _
      $region16: #{hst_mhsa_forward.5} parent=11 // pred_fallthru
        _
      // Predicated region
      $region17: #{hst_mhsa_forward.5} parent=11 // pred_check
        %p121 = pneg %p77
      $region18: #{hst_mhsa_forward.5} parent=11 // pred_check_branch
        %123 = sbr.rel (%p121) target = $region20
      $region19: #{hst_mhsa_forward.5} parent=11 // pred_region
        _
      $region20: #{hst_mhsa_forward.5} parent=11 // pred_fallthru
        _
    $region12: #{hst_mhsa_forward.5} parent=5 // pred_fallthru
      _
    %p124 = scmp.lt.s32.totalorder %s9, 2
    // Predicated region
    $region21: #{hst_mhsa_forward.5} parent=5 // pred_check
      %p125 = pneg %p124
    $region22: #{hst_mhsa_forward.5} parent=5 // pred_check_branch
      %127 = sbr.rel (%p125) target = $region24
    $region23: #{hst_mhsa_forward.5} parent=5 // pred_region
      // Predicated region
      $region25: #{hst_mhsa_forward.5} parent=23 // pred_check
        %p128 = pneg %p29
      $region26: #{hst_mhsa_forward.5} parent=23 // pred_check_branch
        %130 = sbr.rel (%p128) target = $region28
      $region27: #{hst_mhsa_forward.5} parent=23 // pred_region
        %p131 = scmp.lt.s32.totalorder %s9, 1
        %s132 = scalar_select %p131, %s9, 1
        %s133 = smul.addr %s132, 101
        %s134 = smul.addr %s133, 8
        %s135 = scalar_lea.vmem %s0, %s134
      $region28: #{hst_mhsa_forward.5} parent=23 // pred_fallthru
        _
    $region24: #{hst_mhsa_forward.5} parent=5 // pred_fallthru
      _
    %p136 = scmp.le.s32.totalorder 1, %s9
    %p137 = scmp.lt.s32.totalorder %s9, 3
    %p138 = pnand %p136, %p137
    %p139 = pneg %p138
    // Predicated region
    $region29: #{hst_mhsa_forward.5} parent=5 // pred_check
      _
    $region30: #{hst_mhsa_forward.5} parent=5 // pred_check_branch
      %141 = sbr.rel (%p138) target = $region32
    $region31: #{hst_mhsa_forward.5} parent=5 // pred_region
      %s142 = ssub.s32 %s9, 1
      %p143 = scmp.lt.s32.totalorder %s14, 1
      %s144 = scalar_select %p143, %s14, 1
      %s145 = smul.addr %s144, 101
      %s146 = smul.addr %s145, 8
      %s147 = scalar_lea.vmem %s0, %s146
      %p148 = pneg %p35
      %p149 = pneg %p32
      %p150 = pneg %p56
      %p151 = pneg %p53
      %p152 = pneg %p77
      %p153 = pneg %p74
      %p154 = pneg %p103
      %p155 = pneg %p100
      %p156 = scmp.lt.s32.totalorder %s14, 1
      %s157 = scalar_select %p156, %s14, 1
      %s158 = smul.addr %s157, 3
      %s159 = smul.addr %s158, 4
      %s160 = scalar_lea.vmem %s3, %s159
      %p161 = scmp.lt.s32.totalorder %s14, 1
      %s162 = scalar_select %p161, %s14, 1
      %s163 = smul.addr %s162, 101
      %s164 = smul.addr %s163, 8
      %s165 = scalar_lea.vmem %s0, %s164
      %p166 = scmp.lt.s32.totalorder %s14, 1
      %s167 = scalar_select %p166, %s14, 1
      %s168 = smul.addr %s167, 3
      %s169 = smul.addr %s168, 4
      %s170 = scalar_lea.vmem %s3, %s169
      %v171 = vld [vmem:[%s165] sm:$0xff]
      %v172 = vld [vmem:[%s165 + $0x8] sm:$0xff]
      %v173 = vld [vmem:[%s165 + $0x10] sm:$0xff]
      %v174 = vld [vmem:[%s165 + $0x18] sm:$0xff]
      %v175 = vld [vmem:[%s165 + $0x20] sm:$0xff]
      %v176 = vld [vmem:[%s165 + $0x28] sm:$0xff]
      %v177 = vld [vmem:[%s165 + $0x30] sm:$0xff]
      %v178 = vld [vmem:[%s165 + $0x38] sm:$0xff]
      %v179 = vld [vmem:[%s165 + $0x40] sm:$0xff]
      %v180 = vld [vmem:[%s165 + $0x48] sm:$0xff]
      %v181 = vld [vmem:[%s165 + $0x50] sm:$0xff]
      %v182 = vld [vmem:[%s165 + $0x58] sm:$0xff]
      %v183 = vld [vmem:[%s165 + $0x60] sm:$0xff]
      %v184 = vld [vmem:[%s165 + $0x68] sm:$0xff]
      %v185 = vld [vmem:[%s165 + $0x70] sm:$0xff]
      %v186 = vld [vmem:[%s165 + $0x78] sm:$0xff]
      %v187 = vld [vmem:[%s165 + $0x80] sm:$0xff]
      %v188 = vld [vmem:[%s165 + $0x88] sm:$0xff]
      %v189 = vld [vmem:[%s165 + $0x90] sm:$0xff]
      %v190 = vld [vmem:[%s165 + $0x98] sm:$0xff]
      %v191 = vld [vmem:[%s165 + $0xa0] sm:$0xff]
      %v192 = vld [vmem:[%s165 + $0xa8] sm:$0xff]
      %v193 = vld [vmem:[%s165 + $0xb0] sm:$0xff]
      %v194 = vld [vmem:[%s165 + $0xb8] sm:$0xff]
      %v195 = vld [vmem:[%s165 + $0xc0] sm:$0xff]
      %v196 = vld [vmem:[%s165 + $0xc8] sm:$0xff]
      %v197 = vld [vmem:[%s165 + $0xd0] sm:$0xff]
      %v198 = vld [vmem:[%s165 + $0xd8] sm:$0xff]
      %v199 = vld [vmem:[%s165 + $0xe0] sm:$0xff]
      %v200 = vld [vmem:[%s165 + $0xe8] sm:$0xff]
      %v201 = vld [vmem:[%s165 + $0xf0] sm:$0xff]
      %v202 = vld [vmem:[%s165 + $0xf8] sm:$0xff]
      %v203 = vld [vmem:[%s165 + $0x100] sm:$0xff]
      %v204 = vld [vmem:[%s165 + $0x108] sm:$0xff]
      %v205 = vld [vmem:[%s165 + $0x110] sm:$0xff]
      %v206 = vld [vmem:[%s165 + $0x118] sm:$0xff]
      %v207 = vld [vmem:[%s165 + $0x120] sm:$0xff]
      %v208 = vld [vmem:[%s165 + $0x128] sm:$0xff]
      %v209 = vld [vmem:[%s165 + $0x130] sm:$0xff]
      %v210 = vld [vmem:[%s165 + $0x138] sm:$0xff]
      %v211 = vld [vmem:[%s165 + $0x140] sm:$0xff]
      %v212 = vld [vmem:[%s165 + $0x148] sm:$0xff]
      %v213 = vld [vmem:[%s165 + $0x150] sm:$0xff]
      %v214 = vld [vmem:[%s165 + $0x158] sm:$0xff]
      %v215 = vld [vmem:[%s165 + $0x160] sm:$0xff]
      %v216 = vld [vmem:[%s165 + $0x168] sm:$0xff]
      %v217 = vld [vmem:[%s165 + $0x170] sm:$0xff]
      %v218 = vld [vmem:[%s165 + $0x178] sm:$0xff]
      %v219 = vld [vmem:[%s165 + $0x180] sm:$0xff]
      %v220 = vld [vmem:[%s165 + $0x188] sm:$0xff]
      %v221 = vld [vmem:[%s165 + $0x190] sm:$0xff]
      %v222 = vld [vmem:[%s165 + $0x198] sm:$0xff]
      %v223 = vld [vmem:[%s165 + $0x1a0] sm:$0xff]
      %v224 = vld [vmem:[%s165 + $0x1a8] sm:$0xff]
      %v225 = vld [vmem:[%s165 + $0x1b0] sm:$0xff]
      %v226 = vld [vmem:[%s165 + $0x1b8] sm:$0xff]
      %v227 = vld [vmem:[%s165 + $0x1c0] sm:$0xff]
      %v228 = vld [vmem:[%s165 + $0x1c8] sm:$0xff]
      %v229 = vld [vmem:[%s165 + $0x1d0] sm:$0xff]
      %v230 = vld [vmem:[%s165 + $0x1d8] sm:$0xff]
      %v231 = vld [vmem:[%s165 + $0x1e0] sm:$0xff]
      %v232 = vld [vmem:[%s165 + $0x1e8] sm:$0xff]
      %v233 = vld [vmem:[%s165 + $0x1f0] sm:$0xff]
      %v234 = vld [vmem:[%s165 + $0x1f8] sm:$0xff]
      %v235 = vld [vmem:[%s165 + $0x200] sm:$0xff]
      %v236 = vld [vmem:[%s165 + $0x208] sm:$0xff]
      %v237 = vld [vmem:[%s165 + $0x210] sm:$0xff]
      %v238 = vld [vmem:[%s165 + $0x218] sm:$0xff]
      %v239 = vld [vmem:[%s165 + $0x220] sm:$0xff]
      %v240 = vld [vmem:[%s165 + $0x228] sm:$0xff]
      %v241 = vld [vmem:[%s165 + $0x230] sm:$0xff]
      %v242 = vld [vmem:[%s165 + $0x238] sm:$0xff]
      %v243 = vld [vmem:[%s165 + $0x240] sm:$0xff]
      %v244 = vld [vmem:[%s165 + $0x248] sm:$0xff]
      %v245 = vld [vmem:[%s165 + $0x250] sm:$0xff]
      %v246 = vld [vmem:[%s165 + $0x258] sm:$0xff]
      %v247 = vld [vmem:[%s165 + $0x260] sm:$0xff]
      %v248 = vld [vmem:[%s165 + $0x268] sm:$0xff]
      %v249 = vld [vmem:[%s165 + $0x270] sm:$0xff]
      %v250 = vld [vmem:[%s165 + $0x278] sm:$0xff]
      %v251 = vld [vmem:[%s165 + $0x280] sm:$0xff]
      %v252 = vld [vmem:[%s165 + $0x288] sm:$0xff]
      %v253 = vld [vmem:[%s165 + $0x290] sm:$0xff]
      %v254 = vld [vmem:[%s165 + $0x298] sm:$0xff]
      %v255 = vld [vmem:[%s165 + $0x2a0] sm:$0xff]
      %v256 = vld [vmem:[%s165 + $0x2a8] sm:$0xff]
      %v257 = vld [vmem:[%s165 + $0x2b0] sm:$0xff]
      %v258 = vld [vmem:[%s165 + $0x2b8] sm:$0xff]
      %v259 = vld [vmem:[%s165 + $0x2c0] sm:$0xff]
      %v260 = vld [vmem:[%s165 + $0x2c8] sm:$0xff]
      %v261 = vld [vmem:[%s165 + $0x2d0] sm:$0xff]
      %v262 = vld [vmem:[%s165 + $0x2d8] sm:$0xff]
      %v263 = vld [vmem:[%s165 + $0x2e0] sm:$0xff]
      %v264 = vld [vmem:[%s165 + $0x2e8] sm:$0xff]
      %v265 = vld [vmem:[%s165 + $0x2f0] sm:$0xff]
      %v266 = vld [vmem:[%s165 + $0x2f8] sm:$0xff]
      %v267 = vld [vmem:[%s165 + $0x300] sm:$0xff]
      %v268 = vld [vmem:[%s165 + $0x308] sm:$0xff]
      %v269 = vld [vmem:[%s165 + $0x310] sm:$0xff]
      %v270 = vld [vmem:[%s165 + $0x318] sm:$0xff]
      %v271 = vpack.c.bf16 %v171, %v171
      %v272 = vpack.c.bf16 %v172, %v172
      %v273 = vpack.c.bf16 %v173, %v173
      %v274 = vpack.c.bf16 %v174, %v174
      %v275 = vpack.c.bf16 %v175, %v175
      %v276 = vpack.c.bf16 %v176, %v176
      %v277 = vpack.c.bf16 %v177, %v177
      %v278 = vpack.c.bf16 %v178, %v178
      %v279 = vpack.c.bf16 %v179, %v179
      %v280 = vpack.c.bf16 %v180, %v180
      %v281 = vpack.c.bf16 %v181, %v181
      %v282 = vpack.c.bf16 %v182, %v182
      %v283 = vpack.c.bf16 %v183, %v183
      %v284 = vpack.c.bf16 %v184, %v184
      %v285 = vpack.c.bf16 %v185, %v185
      %v286 = vpack.c.bf16 %v186, %v186
      %v287 = vpack.c.bf16 %v187, %v187
      %v288 = vpack.c.bf16 %v188, %v188
      %v289 = vpack.c.bf16 %v189, %v189
      %v290 = vpack.c.bf16 %v190, %v190
      %v291 = vpack.c.bf16 %v191, %v191
      %v292 = vpack.c.bf16 %v192, %v192
      %v293 = vpack.c.bf16 %v193, %v193
      %v294 = vpack.c.bf16 %v194, %v194
      %v295 = vpack.c.bf16 %v195, %v195
      %v296 = vpack.c.bf16 %v196, %v196
      %v297 = vpack.c.bf16 %v197, %v197
      %v298 = vpack.c.bf16 %v198, %v198
      %v299 = vpack.c.bf16 %v199, %v199
      %v300 = vpack.c.bf16 %v200, %v200
      %v301 = vpack.c.bf16 %v201, %v201
      %v302 = vpack.c.bf16 %v202, %v202
      %v303 = vpack.c.bf16 %v203, %v203
      %v304 = vpack.c.bf16 %v204, %v204
      %v305 = vpack.c.bf16 %v205, %v205
      %v306 = vpack.c.bf16 %v206, %v206
      %v307 = vpack.c.bf16 %v207, %v207
      %v308 = vpack.c.bf16 %v208, %v208
      %v309 = vpack.c.bf16 %v209, %v209
      %v310 = vpack.c.bf16 %v210, %v210
      %v311 = vpack.c.bf16 %v211, %v211
      %v312 = vpack.c.bf16 %v212, %v212
      %v313 = vpack.c.bf16 %v213, %v213
      %v314 = vpack.c.bf16 %v214, %v214
      %v315 = vpack.c.bf16 %v215, %v215
      %v316 = vpack.c.bf16 %v216, %v216
      %v317 = vpack.c.bf16 %v217, %v217
      %v318 = vpack.c.bf16 %v218, %v218
      %v319 = vpack.c.bf16 %v219, %v219
      %v320 = vpack.c.bf16 %v220, %v220
      %v321 = vpack.c.bf16 %v221, %v221
      %v322 = vpack.c.bf16 %v222, %v222
      %v323 = vpack.c.bf16 %v223, %v223
      %v324 = vpack.c.bf16 %v224, %v224
      %v325 = vpack.c.bf16 %v225, %v225
      %v326 = vpack.c.bf16 %v226, %v226
      %v327 = vpack.c.bf16 %v227, %v227
      %v328 = vpack.c.bf16 %v228, %v228
      %v329 = vpack.c.bf16 %v229, %v229
      %v330 = vpack.c.bf16 %v230, %v230
      %v331 = vpack.c.bf16 %v231, %v231
      %v332 = vpack.c.bf16 %v232, %v232
      %v333 = vpack.c.bf16 %v233, %v233
      %v334 = vpack.c.bf16 %v234, %v234
      %v335 = vpack.c.bf16 %v235, %v235
      %v336 = vpack.c.bf16 %v236, %v236
      %v337 = vpack.c.bf16 %v237, %v237
      %v338 = vpack.c.bf16 %v238, %v238
      %v339 = vpack.c.bf16 %v239, %v239
      %v340 = vpack.c.bf16 %v240, %v240
      %v341 = vpack.c.bf16 %v241, %v241
      %v342 = vpack.c.bf16 %v242, %v242
      %v343 = vpack.c.bf16 %v243, %v243
      %v344 = vpack.c.bf16 %v244, %v244
      %v345 = vpack.c.bf16 %v245, %v245
      %v346 = vpack.c.bf16 %v246, %v246
      %v347 = vpack.c.bf16 %v247, %v247
      %v348 = vpack.c.bf16 %v248, %v248
      %v349 = vpack.c.bf16 %v249, %v249
      %v350 = vpack.c.bf16 %v250, %v250
      %v351 = vpack.c.bf16 %v251, %v251
      %v352 = vpack.c.bf16 %v252, %v252
      %v353 = vpack.c.bf16 %v253, %v253
      %v354 = vpack.c.bf16 %v254, %v254
      %v355 = vpack.c.bf16 %v255, %v255
      %v356 = vpack.c.bf16 %v256, %v256
      %v357 = vpack.c.bf16 %v257, %v257
      %v358 = vpack.c.bf16 %v258, %v258
      %v359 = vpack.c.bf16 %v259, %v259
      %v360 = vpack.c.bf16 %v260, %v260
      %v361 = vpack.c.bf16 %v261, %v261
      %v362 = vpack.c.bf16 %v262, %v262
      %v363 = vpack.c.bf16 %v263, %v263
      %v364 = vpack.c.bf16 %v264, %v264
      %v365 = vpack.c.bf16 %v265, %v265
      %v366 = vpack.c.bf16 %v266, %v266
      %v367 = vpack.c.bf16 %v267, %v267
      %v368 = vpack.c.bf16 %v268, %v268
      %v369 = vpack.c.bf16 %v269, %v269
      %v370 = vpack.c.bf16 %v270, %v270
      %v371 = vld [vmem:[%s165 + $0x1] sm:$0xff]
      %v372 = vld [vmem:[%s165 + $0x9] sm:$0xff]
      %v373 = vld [vmem:[%s165 + $0x11] sm:$0xff]
      %v374 = vld [vmem:[%s165 + $0x19] sm:$0xff]
      %v375 = vld [vmem:[%s165 + $0x21] sm:$0xff]
      %v376 = vld [vmem:[%s165 + $0x29] sm:$0xff]
      %v377 = vld [vmem:[%s165 + $0x31] sm:$0xff]
      %v378 = vld [vmem:[%s165 + $0x39] sm:$0xff]
      %v379 = vld [vmem:[%s165 + $0x41] sm:$0xff]
      %v380 = vld [vmem:[%s165 + $0x49] sm:$0xff]
      %v381 = vld [vmem:[%s165 + $0x51] sm:$0xff]
      %v382 = vld [vmem:[%s165 + $0x59] sm:$0xff]
      %v383 = vld [vmem:[%s165 + $0x61] sm:$0xff]
      %v384 = vld [vmem:[%s165 + $0x69] sm:$0xff]
      %v385 = vld [vmem:[%s165 + $0x71] sm:$0xff]
      %v386 = vld [vmem:[%s165 + $0x79] sm:$0xff]
      %v387 = vld [vmem:[%s165 + $0x81] sm:$0xff]
      %v388 = vld [vmem:[%s165 + $0x89] sm:$0xff]
      %v389 = vld [vmem:[%s165 + $0x91] sm:$0xff]
      %v390 = vld [vmem:[%s165 + $0x99] sm:$0xff]
      %v391 = vld [vmem:[%s165 + $0xa1] sm:$0xff]
      %v392 = vld [vmem:[%s165 + $0xa9] sm:$0xff]
      %v393 = vld [vmem:[%s165 + $0xb1] sm:$0xff]
      %v394 = vld [vmem:[%s165 + $0xb9] sm:$0xff]
      %v395 = vld [vmem:[%s165 + $0xc1] sm:$0xff]
      %v396 = vld [vmem:[%s165 + $0xc9] sm:$0xff]
      %v397 = vld [vmem:[%s165 + $0xd1] sm:$0xff]
      %v398 = vld [vmem:[%s165 + $0xd9] sm:$0xff]
      %v399 = vld [vmem:[%s165 + $0xe1] sm:$0xff]
      %v400 = vld [vmem:[%s165 + $0xe9] sm:$0xff]
      %v401 = vld [vmem:[%s165 + $0xf1] sm:$0xff]
      %v402 = vld [vmem:[%s165 + $0xf9] sm:$0xff]
      %v403 = vld [vmem:[%s165 + $0x101] sm:$0xff]
      %v404 = vld [vmem:[%s165 + $0x109] sm:$0xff]
      %v405 = vld [vmem:[%s165 + $0x111] sm:$0xff]
      %v406 = vld [vmem:[%s165 + $0x119] sm:$0xff]
      %v407 = vld [vmem:[%s165 + $0x121] sm:$0xff]
      %v408 = vld [vmem:[%s165 + $0x129] sm:$0xff]
      %v409 = vld [vmem:[%s165 + $0x131] sm:$0xff]
      %v410 = vld [vmem:[%s165 + $0x139] sm:$0xff]
      %v411 = vld [vmem:[%s165 + $0x141] sm:$0xff]
      %v412 = vld [vmem:[%s165 + $0x149] sm:$0xff]
      %v413 = vld [vmem:[%s165 + $0x151] sm:$0xff]
      %v414 = vld [vmem:[%s165 + $0x159] sm:$0xff]
      %v415 = vld [vmem:[%s165 + $0x161] sm:$0xff]
      %v416 = vld [vmem:[%s165 + $0x169] sm:$0xff]
      %v417 = vld [vmem:[%s165 + $0x171] sm:$0xff]
      %v418 = vld [vmem:[%s165 + $0x179] sm:$0xff]
      %v419 = vld [vmem:[%s165 + $0x181] sm:$0xff]
      %v420 = vld [vmem:[%s165 + $0x189] sm:$0xff]
      %v421 = vld [vmem:[%s165 + $0x191] sm:$0xff]
      %v422 = vld [vmem:[%s165 + $0x199] sm:$0xff]
      %v423 = vld [vmem:[%s165 + $0x1a1] sm:$0xff]
      %v424 = vld [vmem:[%s165 + $0x1a9] sm:$0xff]
      %v425 = vld [vmem:[%s165 + $0x1b1] sm:$0xff]
      %v426 = vld [vmem:[%s165 + $0x1b9] sm:$0xff]
      %v427 = vld [vmem:[%s165 + $0x1c1] sm:$0xff]
      %v428 = vld [vmem:[%s165 + $0x1c9] sm:$0xff]
      %v429 = vld [vmem:[%s165 + $0x1d1] sm:$0xff]
      %v430 = vld [vmem:[%s165 + $0x1d9] sm:$0xff]
      %v431 = vld [vmem:[%s165 + $0x1e1] sm:$0xff]
      %v432 = vld [vmem:[%s165 + $0x1e9] sm:$0xff]
      %v433 = vld [vmem:[%s165 + $0x1f1] sm:$0xff]
      %v434 = vld [vmem:[%s165 + $0x1f9] sm:$0xff]
      %v435 = vld [vmem:[%s165 + $0x201] sm:$0xff]
      %v436 = vld [vmem:[%s165 + $0x209] sm:$0xff]
      %v437 = vld [vmem:[%s165 + $0x211] sm:$0xff]
      %v438 = vld [vmem:[%s165 + $0x219] sm:$0xff]
      %v439 = vld [vmem:[%s165 + $0x221] sm:$0xff]
      %v440 = vld [vmem:[%s165 + $0x229] sm:$0xff]
      %v441 = vld [vmem:[%s165 + $0x231] sm:$0xff]
      %v442 = vld [vmem:[%s165 + $0x239] sm:$0xff]
      %v443 = vld [vmem:[%s165 + $0x241] sm:$0xff]
      %v444 = vld [vmem:[%s165 + $0x249] sm:$0xff]
      %v445 = vld [vmem:[%s165 + $0x251] sm:$0xff]
      %v446 = vld [vmem:[%s165 + $0x259] sm:$0xff]
      %v447 = vld [vmem:[%s165 + $0x261] sm:$0xff]
      %v448 = vld [vmem:[%s165 + $0x269] sm:$0xff]
      %v449 = vld [vmem:[%s165 + $0x271] sm:$0xff]
      %v450 = vld [vmem:[%s165 + $0x279] sm:$0xff]
      %v451 = vld [vmem:[%s165 + $0x281] sm:$0xff]
      %v452 = vld [vmem:[%s165 + $0x289] sm:$0xff]
      %v453 = vld [vmem:[%s165 + $0x291] sm:$0xff]
      %v454 = vld [vmem:[%s165 + $0x299] sm:$0xff]
      %v455 = vld [vmem:[%s165 + $0x2a1] sm:$0xff]
      %v456 = vld [vmem:[%s165 + $0x2a9] sm:$0xff]
      %v457 = vld [vmem:[%s165 + $0x2b1] sm:$0xff]
      %v458 = vld [vmem:[%s165 + $0x2b9] sm:$0xff]
      %v459 = vld [vmem:[%s165 + $0x2c1] sm:$0xff]
      %v460 = vld [vmem:[%s165 + $0x2c9] sm:$0xff]
      %v461 = vld [vmem:[%s165 + $0x2d1] sm:$0xff]
      %v462 = vld [vmem:[%s165 + $0x2d9] sm:$0xff]
      %v463 = vld [vmem:[%s165 + $0x2e1] sm:$0xff]
      %v464 = vld [vmem:[%s165 + $0x2e9] sm:$0xff]
      %v465 = vld [vmem:[%s165 + $0x2f1] sm:$0xff]
      %v466 = vld [vmem:[%s165 + $0x2f9] sm:$0xff]
      %v467 = vld [vmem:[%s165 + $0x301] sm:$0xff]
      %v468 = vld [vmem:[%s165 + $0x309] sm:$0xff]
      %v469 = vld [vmem:[%s165 + $0x311] sm:$0xff]
      %v470 = vld [vmem:[%s165 + $0x319] sm:$0xff]
      %v471 = vpack.c.bf16 %v371, %v371
      %v472 = vpack.c.bf16 %v372, %v372
      %v473 = vpack.c.bf16 %v373, %v373
      %v474 = vpack.c.bf16 %v374, %v374
      %v475 = vpack.c.bf16 %v375, %v375
      %v476 = vpack.c.bf16 %v376, %v376
      %v477 = vpack.c.bf16 %v377, %v377
      %v478 = vpack.c.bf16 %v378, %v378
      %v479 = vpack.c.bf16 %v379, %v379
      %v480 = vpack.c.bf16 %v380, %v380
      %v481 = vpack.c.bf16 %v381, %v381
      %v482 = vpack.c.bf16 %v382, %v382
      %v483 = vpack.c.bf16 %v383, %v383
      %v484 = vpack.c.bf16 %v384, %v384
      %v485 = vpack.c.bf16 %v385, %v385
      %v486 = vpack.c.bf16 %v386, %v386
      %v487 = vpack.c.bf16 %v387, %v387
      %v488 = vpack.c.bf16 %v388, %v388
      %v489 = vpack.c.bf16 %v389, %v389
      %v490 = vpack.c.bf16 %v390, %v390
      %v491 = vpack.c.bf16 %v391, %v391
      %v492 = vpack.c.bf16 %v392, %v392
      %v493 = vpack.c.bf16 %v393, %v393
      %v494 = vpack.c.bf16 %v394, %v394
      %v495 = vpack.c.bf16 %v395, %v395
      %v496 = vpack.c.bf16 %v396, %v396
      %v497 = vpack.c.bf16 %v397, %v397
      %v498 = vpack.c.bf16 %v398, %v398
      %v499 = vpack.c.bf16 %v399, %v399
      %v500 = vpack.c.bf16 %v400, %v400
      %v501 = vpack.c.bf16 %v401, %v401
      %v502 = vpack.c.bf16 %v402, %v402
      %v503 = vpack.c.bf16 %v403, %v403
      %v504 = vpack.c.bf16 %v404, %v404
      %v505 = vpack.c.bf16 %v405, %v405
      %v506 = vpack.c.bf16 %v406, %v406
      %v507 = vpack.c.bf16 %v407, %v407
      %v508 = vpack.c.bf16 %v408, %v408
      %v509 = vpack.c.bf16 %v409, %v409
      %v510 = vpack.c.bf16 %v410, %v410
      %v511 = vpack.c.bf16 %v411, %v411
      %v512 = vpack.c.bf16 %v412, %v412
      %v513 = vpack.c.bf16 %v413, %v413
      %v514 = vpack.c.bf16 %v414, %v414
      %v515 = vpack.c.bf16 %v415, %v415
      %v516 = vpack.c.bf16 %v416, %v416
      %v517 = vpack.c.bf16 %v417, %v417
      %v518 = vpack.c.bf16 %v418, %v418
      %v519 = vpack.c.bf16 %v419, %v419
      %v520 = vpack.c.bf16 %v420, %v420
      %v521 = vpack.c.bf16 %v421, %v421
      %v522 = vpack.c.bf16 %v422, %v422
      %v523 = vpack.c.bf16 %v423, %v423
      %v524 = vpack.c.bf16 %v424, %v424
      %v525 = vpack.c.bf16 %v425, %v425
      %v526 = vpack.c.bf16 %v426, %v426
      %v527 = vpack.c.bf16 %v427, %v427
      %v528 = vpack.c.bf16 %v428, %v428
      %v529 = vpack.c.bf16 %v429, %v429
      %v530 = vpack.c.bf16 %v430, %v430
      %v531 = vpack.c.bf16 %v431, %v431
      %v532 = vpack.c.bf16 %v432, %v432
      %v533 = vpack.c.bf16 %v433, %v433
      %v534 = vpack.c.bf16 %v434, %v434
      %v535 = vpack.c.bf16 %v435, %v435
      %v536 = vpack.c.bf16 %v436, %v436
      %v537 = vpack.c.bf16 %v437, %v437
      %v538 = vpack.c.bf16 %v438, %v438
      %v539 = vpack.c.bf16 %v439, %v439
      %v540 = vpack.c.bf16 %v440, %v440
      %v541 = vpack.c.bf16 %v441, %v441
      %v542 = vpack.c.bf16 %v442, %v442
      %v543 = vpack.c.bf16 %v443, %v443
      %v544 = vpack.c.bf16 %v444, %v444
      %v545 = vpack.c.bf16 %v445, %v445
      %v546 = vpack.c.bf16 %v446, %v446
      %v547 = vpack.c.bf16 %v447, %v447
      %v548 = vpack.c.bf16 %v448, %v448
      %v549 = vpack.c.bf16 %v449, %v449
      %v550 = vpack.c.bf16 %v450, %v450
      %v551 = vpack.c.bf16 %v451, %v451
      %v552 = vpack.c.bf16 %v452, %v452
      %v553 = vpack.c.bf16 %v453, %v453
      %v554 = vpack.c.bf16 %v454, %v454
      %v555 = vpack.c.bf16 %v455, %v455
      %v556 = vpack.c.bf16 %v456, %v456
      %v557 = vpack.c.bf16 %v457, %v457
      %v558 = vpack.c.bf16 %v458, %v458
      %v559 = vpack.c.bf16 %v459, %v459
      %v560 = vpack.c.bf16 %v460, %v460
      %v561 = vpack.c.bf16 %v461, %v461
      %v562 = vpack.c.bf16 %v462, %v462
      %v563 = vpack.c.bf16 %v463, %v463
      %v564 = vpack.c.bf16 %v464, %v464
      %v565 = vpack.c.bf16 %v465, %v465
      %v566 = vpack.c.bf16 %v466, %v466
      %v567 = vpack.c.bf16 %v467, %v467
      %v568 = vpack.c.bf16 %v468, %v468
      %v569 = vpack.c.bf16 %v469, %v469
      %v570 = vpack.c.bf16 %v470, %v470
      %v571 = vld [vmem:[%s165 + $0x2] sm:$0xff]
      %v572 = vld [vmem:[%s165 + $0xa] sm:$0xff]
      %v573 = vld [vmem:[%s165 + $0x12] sm:$0xff]
      %v574 = vld [vmem:[%s165 + $0x1a] sm:$0xff]
      %v575 = vld [vmem:[%s165 + $0x22] sm:$0xff]
      %v576 = vld [vmem:[%s165 + $0x2a] sm:$0xff]
      %v577 = vld [vmem:[%s165 + $0x32] sm:$0xff]
      %v578 = vld [vmem:[%s165 + $0x3a] sm:$0xff]
      %v579 = vld [vmem:[%s165 + $0x42] sm:$0xff]
      %v580 = vld [vmem:[%s165 + $0x4a] sm:$0xff]
      %v581 = vld [vmem:[%s165 + $0x52] sm:$0xff]
      %v582 = vld [vmem:[%s165 + $0x5a] sm:$0xff]
      %v583 = vld [vmem:[%s165 + $0x62] sm:$0xff]
      %v584 = vld [vmem:[%s165 + $0x6a] sm:$0xff]
      %v585 = vld [vmem:[%s165 + $0x72] sm:$0xff]
      %v586 = vld [vmem:[%s165 + $0x7a] sm:$0xff]
      %v587 = vld [vmem:[%s165 + $0x82] sm:$0xff]
      %v588 = vld [vmem:[%s165 + $0x8a] sm:$0xff]
      %v589 = vld [vmem:[%s165 + $0x92] sm:$0xff]
      %v590 = vld [vmem:[%s165 + $0x9a] sm:$0xff]
      %v591 = vld [vmem:[%s165 + $0xa2] sm:$0xff]
      %v592 = vld [vmem:[%s165 + $0xaa] sm:$0xff]
      %v593 = vld [vmem:[%s165 + $0xb2] sm:$0xff]
      %v594 = vld [vmem:[%s165 + $0xba] sm:$0xff]
      %v595 = vld [vmem:[%s165 + $0xc2] sm:$0xff]
      %v596 = vld [vmem:[%s165 + $0xca] sm:$0xff]
      %v597 = vld [vmem:[%s165 + $0xd2] sm:$0xff]
      %v598 = vld [vmem:[%s165 + $0xda] sm:$0xff]
      %v599 = vld [vmem:[%s165 + $0xe2] sm:$0xff]
      %v600 = vld [vmem:[%s165 + $0xea] sm:$0xff]
      %v601 = vld [vmem:[%s165 + $0xf2] sm:$0xff]
      %v602 = vld [vmem:[%s165 + $0xfa] sm:$0xff]
      %v603 = vld [vmem:[%s165 + $0x102] sm:$0xff]
      %v604 = vld [vmem:[%s165 + $0x10a] sm:$0xff]
      %v605 = vld [vmem:[%s165 + $0x112] sm:$0xff]
      %v606 = vld [vmem:[%s165 + $0x11a] sm:$0xff]
      %v607 = vld [vmem:[%s165 + $0x122] sm:$0xff]
      %v608 = vld [vmem:[%s165 + $0x12a] sm:$0xff]
      %v609 = vld [vmem:[%s165 + $0x132] sm:$0xff]
      %v610 = vld [vmem:[%s165 + $0x13a] sm:$0xff]
      %v611 = vld [vmem:[%s165 + $0x142] sm:$0xff]
      %v612 = vld [vmem:[%s165 + $0x14a] sm:$0xff]
      %v613 = vld [vmem:[%s165 + $0x152] sm:$0xff]
      %v614 = vld [vmem:[%s165 + $0x15a] sm:$0xff]
      %v615 = vld [vmem:[%s165 + $0x162] sm:$0xff]
      %v616 = vld [vmem:[%s165 + $0x16a] sm:$0xff]
      %v617 = vld [vmem:[%s165 + $0x172] sm:$0xff]
      %v618 = vld [vmem:[%s165 + $0x17a] sm:$0xff]
      %v619 = vld [vmem:[%s165 + $0x182] sm:$0xff]
      %v620 = vld [vmem:[%s165 + $0x18a] sm:$0xff]
      %v621 = vld [vmem:[%s165 + $0x192] sm:$0xff]
      %v622 = vld [vmem:[%s165 + $0x19a] sm:$0xff]
      %v623 = vld [vmem:[%s165 + $0x1a2] sm:$0xff]
      %v624 = vld [vmem:[%s165 + $0x1aa] sm:$0xff]
      %v625 = vld [vmem:[%s165 + $0x1b2] sm:$0xff]
      %v626 = vld [vmem:[%s165 + $0x1ba] sm:$0xff]
      %v627 = vld [vmem:[%s165 + $0x1c2] sm:$0xff]
      %v628 = vld [vmem:[%s165 + $0x1ca] sm:$0xff]
      %v629 = vld [vmem:[%s165 + $0x1d2] sm:$0xff]
      %v630 = vld [vmem:[%s165 + $0x1da] sm:$0xff]
      %v631 = vld [vmem:[%s165 + $0x1e2] sm:$0xff]
      %v632 = vld [vmem:[%s165 + $0x1ea] sm:$0xff]
      %v633 = vld [vmem:[%s165 + $0x1f2] sm:$0xff]
      %v634 = vld [vmem:[%s165 + $0x1fa] sm:$0xff]
      %v635 = vld [vmem:[%s165 + $0x202] sm:$0xff]
      %v636 = vld [vmem:[%s165 + $0x20a] sm:$0xff]
      %v637 = vld [vmem:[%s165 + $0x212] sm:$0xff]
      %v638 = vld [vmem:[%s165 + $0x21a] sm:$0xff]
      %v639 = vld [vmem:[%s165 + $0x222] sm:$0xff]
      %v640 = vld [vmem:[%s165 + $0x22a] sm:$0xff]
      %v641 = vld [vmem:[%s165 + $0x232] sm:$0xff]
      %v642 = vld [vmem:[%s165 + $0x23a] sm:$0xff]
      %v643 = vld [vmem:[%s165 + $0x242] sm:$0xff]
      %v644 = vld [vmem:[%s165 + $0x24a] sm:$0xff]
      %v645 = vld [vmem:[%s165 + $0x252] sm:$0xff]
      %v646 = vld [vmem:[%s165 + $0x25a] sm:$0xff]
      %v647 = vld [vmem:[%s165 + $0x262] sm:$0xff]
      %v648 = vld [vmem:[%s165 + $0x26a] sm:$0xff]
      %v649 = vld [vmem:[%s165 + $0x272] sm:$0xff]
      %v650 = vld [vmem:[%s165 + $0x27a] sm:$0xff]
      %v651 = vld [vmem:[%s165 + $0x282] sm:$0xff]
      %v652 = vld [vmem:[%s165 + $0x28a] sm:$0xff]
      %v653 = vld [vmem:[%s165 + $0x292] sm:$0xff]
      %v654 = vld [vmem:[%s165 + $0x29a] sm:$0xff]
      %v655 = vld [vmem:[%s165 + $0x2a2] sm:$0xff]
      %v656 = vld [vmem:[%s165 + $0x2aa] sm:$0xff]
      %v657 = vld [vmem:[%s165 + $0x2b2] sm:$0xff]
      %v658 = vld [vmem:[%s165 + $0x2ba] sm:$0xff]
      %v659 = vld [vmem:[%s165 + $0x2c2] sm:$0xff]
      %v660 = vld [vmem:[%s165 + $0x2ca] sm:$0xff]
      %v661 = vld [vmem:[%s165 + $0x2d2] sm:$0xff]
      %v662 = vld [vmem:[%s165 + $0x2da] sm:$0xff]
      %v663 = vld [vmem:[%s165 + $0x2e2] sm:$0xff]
      %v664 = vld [vmem:[%s165 + $0x2ea] sm:$0xff]
      %v665 = vld [vmem:[%s165 + $0x2f2] sm:$0xff]
      %v666 = vld [vmem:[%s165 + $0x2fa] sm:$0xff]
      %v667 = vld [vmem:[%s165 + $0x302] sm:$0xff]
      %v668 = vld [vmem:[%s165 + $0x30a] sm:$0xff]
      %v669 = vld [vmem:[%s165 + $0x312] sm:$0xff]
      %v670 = vld [vmem:[%s165 + $0x31a] sm:$0xff]
      %v671 = vpack.c.bf16 %v571, %v571
      %v672 = vpack.c.bf16 %v572, %v572
      %v673 = vpack.c.bf16 %v573, %v573
      %v674 = vpack.c.bf16 %v574, %v574
      %v675 = vpack.c.bf16 %v575, %v575
      %v676 = vpack.c.bf16 %v576, %v576
      %v677 = vpack.c.bf16 %v577, %v577
      %v678 = vpack.c.bf16 %v578, %v578
      %v679 = vpack.c.bf16 %v579, %v579
      %v680 = vpack.c.bf16 %v580, %v580
      %v681 = vpack.c.bf16 %v581, %v581
      %v682 = vpack.c.bf16 %v582, %v582
      %v683 = vpack.c.bf16 %v583, %v583
      %v684 = vpack.c.bf16 %v584, %v584
      %v685 = vpack.c.bf16 %v585, %v585
      %v686 = vpack.c.bf16 %v586, %v586
      %v687 = vpack.c.bf16 %v587, %v587
      %v688 = vpack.c.bf16 %v588, %v588
      %v689 = vpack.c.bf16 %v589, %v589
      %v690 = vpack.c.bf16 %v590, %v590
      %v691 = vpack.c.bf16 %v591, %v591
      %v692 = vpack.c.bf16 %v592, %v592
      %v693 = vpack.c.bf16 %v593, %v593
      %v694 = vpack.c.bf16 %v594, %v594
      %v695 = vpack.c.bf16 %v595, %v595
      %v696 = vpack.c.bf16 %v596, %v596
      %v697 = vpack.c.bf16 %v597, %v597
      %v698 = vpack.c.bf16 %v598, %v598
      %v699 = vpack.c.bf16 %v599, %v599
      %v700 = vpack.c.bf16 %v600, %v600
      %v701 = vpack.c.bf16 %v601, %v601
      %v702 = vpack.c.bf16 %v602, %v602
      %v703 = vpack.c.bf16 %v603, %v603
      %v704 = vpack.c.bf16 %v604, %v604
      %v705 = vpack.c.bf16 %v605, %v605
      %v706 = vpack.c.bf16 %v606, %v606
      %v707 = vpack.c.bf16 %v607, %v607
      %v708 = vpack.c.bf16 %v608, %v608
      %v709 = vpack.c.bf16 %v609, %v609
      %v710 = vpack.c.bf16 %v610, %v610
      %v711 = vpack.c.bf16 %v611, %v611
      %v712 = vpack.c.bf16 %v612, %v612
      %v713 = vpack.c.bf16 %v613, %v613
      %v714 = vpack.c.bf16 %v614, %v614
      %v715 = vpack.c.bf16 %v615, %v615
      %v716 = vpack.c.bf16 %v616, %v616
      %v717 = vpack.c.bf16 %v617, %v617
      %v718 = vpack.c.bf16 %v618, %v618
      %v719 = vpack.c.bf16 %v619, %v619
      %v720 = vpack.c.bf16 %v620, %v620
      %v721 = vpack.c.bf16 %v621, %v621
      %v722 = vpack.c.bf16 %v622, %v622
      %v723 = vpack.c.bf16 %v623, %v623
      %v724 = vpack.c.bf16 %v624, %v624
      %v725 = vpack.c.bf16 %v625, %v625
      %v726 = vpack.c.bf16 %v626, %v626
      %v727 = vpack.c.bf16 %v627, %v627
      %v728 = vpack.c.bf16 %v628, %v628
      %v729 = vpack.c.bf16 %v629, %v629
      %v730 = vpack.c.bf16 %v630, %v630
      %v731 = vpack.c.bf16 %v631, %v631
      %v732 = vpack.c.bf16 %v632, %v632
      %v733 = vpack.c.bf16 %v633, %v633
      %v734 = vpack.c.bf16 %v634, %v634
      %v735 = vpack.c.bf16 %v635, %v635
      %v736 = vpack.c.bf16 %v636, %v636
      %v737 = vpack.c.bf16 %v637, %v637
      %v738 = vpack.c.bf16 %v638, %v638
      %v739 = vpack.c.bf16 %v639, %v639
      %v740 = vpack.c.bf16 %v640, %v640
      %v741 = vpack.c.bf16 %v641, %v641
      %v742 = vpack.c.bf16 %v642, %v642
      %v743 = vpack.c.bf16 %v643, %v643
      %v744 = vpack.c.bf16 %v644, %v644
      %v745 = vpack.c.bf16 %v645, %v645
      %v746 = vpack.c.bf16 %v646, %v646
      %v747 = vpack.c.bf16 %v647, %v647
      %v748 = vpack.c.bf16 %v648, %v648
      %v749 = vpack.c.bf16 %v649, %v649
      %v750 = vpack.c.bf16 %v650, %v650
      %v751 = vpack.c.bf16 %v651, %v651
      %v752 = vpack.c.bf16 %v652, %v652
      %v753 = vpack.c.bf16 %v653, %v653
      %v754 = vpack.c.bf16 %v654, %v654
      %v755 = vpack.c.bf16 %v655, %v655
      %v756 = vpack.c.bf16 %v656, %v656
      %v757 = vpack.c.bf16 %v657, %v657
      %v758 = vpack.c.bf16 %v658, %v658
      %v759 = vpack.c.bf16 %v659, %v659
      %v760 = vpack.c.bf16 %v660, %v660
      %v761 = vpack.c.bf16 %v661, %v661
      %v762 = vpack.c.bf16 %v662, %v662
      %v763 = vpack.c.bf16 %v663, %v663
      %v764 = vpack.c.bf16 %v664, %v664
      %v765 = vpack.c.bf16 %v665, %v665
      %v766 = vpack.c.bf16 %v666, %v666
      %v767 = vpack.c.bf16 %v667, %v667
      %v768 = vpack.c.bf16 %v668, %v668
      %v769 = vpack.c.bf16 %v669, %v669
      %v770 = vpack.c.bf16 %v670, %v670
      %v771 = vld [vmem:[%s165 + $0x3] sm:$0xff]
      %v772 = vld [vmem:[%s165 + $0xb] sm:$0xff]
      %v773 = vld [vmem:[%s165 + $0x13] sm:$0xff]
      %v774 = vld [vmem:[%s165 + $0x1b] sm:$0xff]
      %v775 = vld [vmem:[%s165 + $0x23] sm:$0xff]
      %v776 = vld [vmem:[%s165 + $0x2b] sm:$0xff]
      %v777 = vld [vmem:[%s165 + $0x33] sm:$0xff]
      %v778 = vld [vmem:[%s165 + $0x3b] sm:$0xff]
      %v779 = vld [vmem:[%s165 + $0x43] sm:$0xff]
      %v780 = vld [vmem:[%s165 + $0x4b] sm:$0xff]
      %v781 = vld [vmem:[%s165 + $0x53] sm:$0xff]
      %v782 = vld [vmem:[%s165 + $0x5b] sm:$0xff]
      %v783 = vld [vmem:[%s165 + $0x63] sm:$0xff]
      %v784 = vld [vmem:[%s165 + $0x6b] sm:$0xff]
      %v785 = vld [vmem:[%s165 + $0x73] sm:$0xff]
      %v786 = vld [vmem:[%s165 + $0x7b] sm:$0xff]
      %v787 = vld [vmem:[%s165 + $0x83] sm:$0xff]
      %v788 = vld [vmem:[%s165 + $0x8b] sm:$0xff]
      %v789 = vld [vmem:[%s165 + $0x93] sm:$0xff]
      %v790 = vld [vmem:[%s165 + $0x9b] sm:$0xff]
      %v791 = vld [vmem:[%s165 + $0xa3] sm:$0xff]
      %v792 = vld [vmem:[%s165 + $0xab] sm:$0xff]
      %v793 = vld [vmem:[%s165 + $0xb3] sm:$0xff]
      %v794 = vld [vmem:[%s165 + $0xbb] sm:$0xff]
      %v795 = vld [vmem:[%s165 + $0xc3] sm:$0xff]
      %v796 = vld [vmem:[%s165 + $0xcb] sm:$0xff]
      %v797 = vld [vmem:[%s165 + $0xd3] sm:$0xff]
      %v798 = vld [vmem:[%s165 + $0xdb] sm:$0xff]
      %v799 = vld [vmem:[%s165 + $0xe3] sm:$0xff]
      %v800 = vld [vmem:[%s165 + $0xeb] sm:$0xff]
      %v801 = vld [vmem:[%s165 + $0xf3] sm:$0xff]
      %v802 = vld [vmem:[%s165 + $0xfb] sm:$0xff]
      %v803 = vld [vmem:[%s165 + $0x103] sm:$0xff]
      %v804 = vld [vmem:[%s165 + $0x10b] sm:$0xff]
      %v805 = vld [vmem:[%s165 + $0x113] sm:$0xff]
      %v806 = vld [vmem:[%s165 + $0x11b] sm:$0xff]
      %v807 = vld [vmem:[%s165 + $0x123] sm:$0xff]
      %v808 = vld [vmem:[%s165 + $0x12b] sm:$0xff]
      %v809 = vld [vmem:[%s165 + $0x133] sm:$0xff]
      %v810 = vld [vmem:[%s165 + $0x13b] sm:$0xff]
      %v811 = vld [vmem:[%s165 + $0x143] sm:$0xff]
      %v812 = vld [vmem:[%s165 + $0x14b] sm:$0xff]
      %v813 = vld [vmem:[%s165 + $0x153] sm:$0xff]
      %v814 = vld [vmem:[%s165 + $0x15b] sm:$0xff]
      %v815 = vld [vmem:[%s165 + $0x163] sm:$0xff]
      %v816 = vld [vmem:[%s165 + $0x16b] sm:$0xff]
      %v817 = vld [vmem:[%s165 + $0x173] sm:$0xff]
      %v818 = vld [vmem:[%s165 + $0x17b] sm:$0xff]
      %v819 = vld [vmem:[%s165 + $0x183] sm:$0xff]
      %v820 = vld [vmem:[%s165 + $0x18b] sm:$0xff]
      %v821 = vld [vmem:[%s165 + $0x193] sm:$0xff]
      %v822 = vld [vmem:[%s165 + $0x19b] sm:$0xff]
      %v823 = vld [vmem:[%s165 + $0x1a3] sm:$0xff]
      %v824 = vld [vmem:[%s165 + $0x1ab] sm:$0xff]
      %v825 = vld [vmem:[%s165 + $0x1b3] sm:$0xff]
      %v826 = vld [vmem:[%s165 + $0x1bb] sm:$0xff]
      %v827 = vld [vmem:[%s165 + $0x1c3] sm:$0xff]
      %v828 = vld [vmem:[%s165 + $0x1cb] sm:$0xff]
      %v829 = vld [vmem:[%s165 + $0x1d3] sm:$0xff]
      %v830 = vld [vmem:[%s165 + $0x1db] sm:$0xff]
      %v831 = vld [vmem:[%s165 + $0x1e3] sm:$0xff]
      %v832 = vld [vmem:[%s165 + $0x1eb] sm:$0xff]
      %v833 = vld [vmem:[%s165 + $0x1f3] sm:$0xff]
      %v834 = vld [vmem:[%s165 + $0x1fb] sm:$0xff]
      %v835 = vld [vmem:[%s165 + $0x203] sm:$0xff]
      %v836 = vld [vmem:[%s165 + $0x20b] sm:$0xff]
      %v837 = vld [vmem:[%s165 + $0x213] sm:$0xff]
      %v838 = vld [vmem:[%s165 + $0x21b] sm:$0xff]
      %v839 = vld [vmem:[%s165 + $0x223] sm:$0xff]
      %v840 = vld [vmem:[%s165 + $0x22b] sm:$0xff]
      %v841 = vld [vmem:[%s165 + $0x233] sm:$0xff]
      %v842 = vld [vmem:[%s165 + $0x23b] sm:$0xff]
      %v843 = vld [vmem:[%s165 + $0x243] sm:$0xff]
      %v844 = vld [vmem:[%s165 + $0x24b] sm:$0xff]
      %v845 = vld [vmem:[%s165 + $0x253] sm:$0xff]
      %v846 = vld [vmem:[%s165 + $0x25b] sm:$0xff]
      %v847 = vld [vmem:[%s165 + $0x263] sm:$0xff]
      %v848 = vld [vmem:[%s165 + $0x26b] sm:$0xff]
      %v849 = vld [vmem:[%s165 + $0x273] sm:$0xff]
      %v850 = vld [vmem:[%s165 + $0x27b] sm:$0xff]
      %v851 = vld [vmem:[%s165 + $0x283] sm:$0xff]
      %v852 = vld [vmem:[%s165 + $0x28b] sm:$0xff]
      %v853 = vld [vmem:[%s165 + $0x293] sm:$0xff]
      %v854 = vld [vmem:[%s165 + $0x29b] sm:$0xff]
      %v855 = vld [vmem:[%s165 + $0x2a3] sm:$0xff]
      %v856 = vld [vmem:[%s165 + $0x2ab] sm:$0xff]
      %v857 = vld [vmem:[%s165 + $0x2b3] sm:$0xff]
      %v858 = vld [vmem:[%s165 + $0x2bb] sm:$0xff]
      %v859 = vld [vmem:[%s165 + $0x2c3] sm:$0xff]
      %v860 = vld [vmem:[%s165 + $0x2cb] sm:$0xff]
      %v861 = vld [vmem:[%s165 + $0x2d3] sm:$0xff]
      %v862 = vld [vmem:[%s165 + $0x2db] sm:$0xff]
      %v863 = vld [vmem:[%s165 + $0x2e3] sm:$0xff]
      %v864 = vld [vmem:[%s165 + $0x2eb] sm:$0xff]
      %v865 = vld [vmem:[%s165 + $0x2f3] sm:$0xff]
      %v866 = vld [vmem:[%s165 + $0x2fb] sm:$0xff]
      %v867 = vld [vmem:[%s165 + $0x303] sm:$0xff]
      %v868 = vld [vmem:[%s165 + $0x30b] sm:$0xff]
      %v869 = vld [vmem:[%s165 + $0x313] sm:$0xff]
      %v870 = vld [vmem:[%s165 + $0x31b] sm:$0xff]
      %v871 = vpack.c.bf16 %v771, %v771
      %v872 = vpack.c.bf16 %v772, %v772
      %v873 = vpack.c.bf16 %v773, %v773
      %v874 = vpack.c.bf16 %v774, %v774
      %v875 = vpack.c.bf16 %v775, %v775
      %v876 = vpack.c.bf16 %v776, %v776
      %v877 = vpack.c.bf16 %v777, %v777
      %v878 = vpack.c.bf16 %v778, %v778
      %v879 = vpack.c.bf16 %v779, %v779
      %v880 = vpack.c.bf16 %v780, %v780
      %v881 = vpack.c.bf16 %v781, %v781
      %v882 = vpack.c.bf16 %v782, %v782
      %v883 = vpack.c.bf16 %v783, %v783
      %v884 = vpack.c.bf16 %v784, %v784
      %v885 = vpack.c.bf16 %v785, %v785
      %v886 = vpack.c.bf16 %v786, %v786
      %v887 = vpack.c.bf16 %v787, %v787
      %v888 = vpack.c.bf16 %v788, %v788
      %v889 = vpack.c.bf16 %v789, %v789
      %v890 = vpack.c.bf16 %v790, %v790
      %v891 = vpack.c.bf16 %v791, %v791
      %v892 = vpack.c.bf16 %v792, %v792
      %v893 = vpack.c.bf16 %v793, %v793
      %v894 = vpack.c.bf16 %v794, %v794
      %v895 = vpack.c.bf16 %v795, %v795
      %v896 = vpack.c.bf16 %v796, %v796
      %v897 = vpack.c.bf16 %v797, %v797
      %v898 = vpack.c.bf16 %v798, %v798
      %v899 = vpack.c.bf16 %v799, %v799
      %v900 = vpack.c.bf16 %v800, %v800
      %v901 = vpack.c.bf16 %v801, %v801
      %v902 = vpack.c.bf16 %v802, %v802
      %v903 = vpack.c.bf16 %v803, %v803
      %v904 = vpack.c.bf16 %v804, %v804
      %v905 = vpack.c.bf16 %v805, %v805
      %v906 = vpack.c.bf16 %v806, %v806
      %v907 = vpack.c.bf16 %v807, %v807
      %v908 = vpack.c.bf16 %v808, %v808
      %v909 = vpack.c.bf16 %v809, %v809
      %v910 = vpack.c.bf16 %v810, %v810
      %v911 = vpack.c.bf16 %v811, %v811
      %v912 = vpack.c.bf16 %v812, %v812
      %v913 = vpack.c.bf16 %v813, %v813
      %v914 = vpack.c.bf16 %v814, %v814
      %v915 = vpack.c.bf16 %v815, %v815
      %v916 = vpack.c.bf16 %v816, %v816
      %v917 = vpack.c.bf16 %v817, %v817
      %v918 = vpack.c.bf16 %v818, %v818
      %v919 = vpack.c.bf16 %v819, %v819
      %v920 = vpack.c.bf16 %v820, %v820
      %v921 = vpack.c.bf16 %v821, %v821
      %v922 = vpack.c.bf16 %v822, %v822
      %v923 = vpack.c.bf16 %v823, %v823
      %v924 = vpack.c.bf16 %v824, %v824
      %v925 = vpack.c.bf16 %v825, %v825
      %v926 = vpack.c.bf16 %v826, %v826
      %v927 = vpack.c.bf16 %v827, %v827
      %v928 = vpack.c.bf16 %v828, %v828
      %v929 = vpack.c.bf16 %v829, %v829
      %v930 = vpack.c.bf16 %v830, %v830
      %v931 = vpack.c.bf16 %v831, %v831
      %v932 = vpack.c.bf16 %v832, %v832
      %v933 = vpack.c.bf16 %v833, %v833
      %v934 = vpack.c.bf16 %v834, %v834
      %v935 = vpack.c.bf16 %v835, %v835
      %v936 = vpack.c.bf16 %v836, %v836
      %v937 = vpack.c.bf16 %v837, %v837
      %v938 = vpack.c.bf16 %v838, %v838
      %v939 = vpack.c.bf16 %v839, %v839
      %v940 = vpack.c.bf16 %v840, %v840
      %v941 = vpack.c.bf16 %v841, %v841
      %v942 = vpack.c.bf16 %v842, %v842
      %v943 = vpack.c.bf16 %v843, %v843
      %v944 = vpack.c.bf16 %v844, %v844
      %v945 = vpack.c.bf16 %v845, %v845
      %v946 = vpack.c.bf16 %v846, %v846
      %v947 = vpack.c.bf16 %v847, %v847
      %v948 = vpack.c.bf16 %v848, %v848
      %v949 = vpack.c.bf16 %v849, %v849
      %v950 = vpack.c.bf16 %v850, %v850
      %v951 = vpack.c.bf16 %v851, %v851
      %v952 = vpack.c.bf16 %v852, %v852
      %v953 = vpack.c.bf16 %v853, %v853
      %v954 = vpack.c.bf16 %v854, %v854
      %v955 = vpack.c.bf16 %v855, %v855
      %v956 = vpack.c.bf16 %v856, %v856
      %v957 = vpack.c.bf16 %v857, %v857
      %v958 = vpack.c.bf16 %v858, %v858
      %v959 = vpack.c.bf16 %v859, %v859
      %v960 = vpack.c.bf16 %v860, %v860
      %v961 = vpack.c.bf16 %v861, %v861
      %v962 = vpack.c.bf16 %v862, %v862
      %v963 = vpack.c.bf16 %v863, %v863
      %v964 = vpack.c.bf16 %v864, %v864
      %v965 = vpack.c.bf16 %v865, %v865
      %v966 = vpack.c.bf16 %v866, %v866
      %v967 = vpack.c.bf16 %v867, %v867
      %v968 = vpack.c.bf16 %v868, %v868
      %v969 = vpack.c.bf16 %v869, %v869
      %v970 = vpack.c.bf16 %v870, %v870
      %v971 = vld [vmem:[%s165 + $0x4] sm:$0xff]
      %v972 = vld [vmem:[%s165 + $0xc] sm:$0xff]
      %v973 = vld [vmem:[%s165 + $0x14] sm:$0xff]
      %v974 = vld [vmem:[%s165 + $0x1c] sm:$0xff]
      %v975 = vld [vmem:[%s165 + $0x24] sm:$0xff]
      %v976 = vld [vmem:[%s165 + $0x2c] sm:$0xff]
      %v977 = vld [vmem:[%s165 + $0x34] sm:$0xff]
      %v978 = vld [vmem:[%s165 + $0x3c] sm:$0xff]
      %v979 = vld [vmem:[%s165 + $0x44] sm:$0xff]
      %v980 = vld [vmem:[%s165 + $0x4c] sm:$0xff]
      %v981 = vld [vmem:[%s165 + $0x54] sm:$0xff]
      %v982 = vld [vmem:[%s165 + $0x5c] sm:$0xff]
      %v983 = vld [vmem:[%s165 + $0x64] sm:$0xff]
      %v984 = vld [vmem:[%s165 + $0x6c] sm:$0xff]
      %v985 = vld [vmem:[%s165 + $0x74] sm:$0xff]
      %v986 = vld [vmem:[%s165 + $0x7c] sm:$0xff]
      %v987 = vld [vmem:[%s165 + $0x84] sm:$0xff]
      %v988 = vld [vmem:[%s165 + $0x8c] sm:$0xff]
      %v989 = vld [vmem:[%s165 + $0x94] sm:$0xff]
      %v990 = vld [vmem:[%s165 + $0x9c] sm:$0xff]
      %v991 = vld [vmem:[%s165 + $0xa4] sm:$0xff]
      %v992 = vld [vmem:[%s165 + $0xac] sm:$0xff]
      %v993 = vld [vmem:[%s165 + $0xb4] sm:$0xff]
      %v994 = vld [vmem:[%s165 + $0xbc] sm:$0xff]
      %v995 = vld [vmem:[%s165 + $0xc4] sm:$0xff]
      %v996 = vld [vmem:[%s165 + $0xcc] sm:$0xff]
      %v997 = vld [vmem:[%s165 + $0xd4] sm:$0xff]
      %v998 = vld [vmem:[%s165 + $0xdc] sm:$0xff]
      %v999 = vld [vmem:[%s165 + $0xe4] sm:$0xff]
      %v1000 = vld [vmem:[%s165 + $0xec] sm:$0xff]
      %v1001 = vld [vmem:[%s165 + $0xf4] sm:$0xff]
      %v1002 = vld [vmem:[%s165 + $0xfc] sm:$0xff]
      %v1003 = vld [vmem:[%s165 + $0x104] sm:$0xff]
      %v1004 = vld [vmem:[%s165 + $0x10c] sm:$0xff]
      %v1005 = vld [vmem:[%s165 + $0x114] sm:$0xff]
      %v1006 = vld [vmem:[%s165 + $0x11c] sm:$0xff]
      %v1007 = vld [vmem:[%s165 + $0x124] sm:$0xff]
      %v1008 = vld [vmem:[%s165 + $0x12c] sm:$0xff]
      %v1009 = vld [vmem:[%s165 + $0x134] sm:$0xff]
      %v1010 = vld [vmem:[%s165 + $0x13c] sm:$0xff]
      %v1011 = vld [vmem:[%s165 + $0x144] sm:$0xff]
      %v1012 = vld [vmem:[%s165 + $0x14c] sm:$0xff]
      %v1013 = vld [vmem:[%s165 + $0x154] sm:$0xff]
      %v1014 = vld [vmem:[%s165 + $0x15c] sm:$0xff]
      %v1015 = vld [vmem:[%s165 + $0x164] sm:$0xff]
      %v1016 = vld [vmem:[%s165 + $0x16c] sm:$0xff]
      %v1017 = vld [vmem:[%s165 + $0x174] sm:$0xff]
      %v1018 = vld [vmem:[%s165 + $0x17c] sm:$0xff]
      %v1019 = vld [vmem:[%s165 + $0x184] sm:$0xff]
      %v1020 = vld [vmem:[%s165 + $0x18c] sm:$0xff]
      %v1021 = vld [vmem:[%s165 + $0x194] sm:$0xff]
      %v1022 = vld [vmem:[%s165 + $0x19c] sm:$0xff]
      %v1023 = vld [vmem:[%s165 + $0x1a4] sm:$0xff]
      %v1024 = vld [vmem:[%s165 + $0x1ac] sm:$0xff]
      %v1025 = vld [vmem:[%s165 + $0x1b4] sm:$0xff]
      %v1026 = vld [vmem:[%s165 + $0x1bc] sm:$0xff]
      %v1027 = vld [vmem:[%s165 + $0x1c4] sm:$0xff]
      %v1028 = vld [vmem:[%s165 + $0x1cc] sm:$0xff]
      %v1029 = vld [vmem:[%s165 + $0x1d4] sm:$0xff]
      %v1030 = vld [vmem:[%s165 + $0x1dc] sm:$0xff]
      %v1031 = vld [vmem:[%s165 + $0x1e4] sm:$0xff]
      %v1032 = vld [vmem:[%s165 + $0x1ec] sm:$0xff]
      %v1033 = vld [vmem:[%s165 + $0x1f4] sm:$0xff]
      %v1034 = vld [vmem:[%s165 + $0x1fc] sm:$0xff]
      %v1035 = vld [vmem:[%s165 + $0x204] sm:$0xff]
      %v1036 = vld [vmem:[%s165 + $0x20c] sm:$0xff]
      %v1037 = vld [vmem:[%s165 + $0x214] sm:$0xff]
      %v1038 = vld [vmem:[%s165 + $0x21c] sm:$0xff]
      %v1039 = vld [vmem:[%s165 + $0x224] sm:$0xff]
      %v1040 = vld [vmem:[%s165 + $0x22c] sm:$0xff]
      %v1041 = vld [vmem:[%s165 + $0x234] sm:$0xff]
      %v1042 = vld [vmem:[%s165 + $0x23c] sm:$0xff]
      %v1043 = vld [vmem:[%s165 + $0x244] sm:$0xff]
      %v1044 = vld [vmem:[%s165 + $0x24c] sm:$0xff]
      %v1045 = vld [vmem:[%s165 + $0x254] sm:$0xff]
      %v1046 = vld [vmem:[%s165 + $0x25c] sm:$0xff]
      %v1047 = vld [vmem:[%s165 + $0x264] sm:$0xff]
      %v1048 = vld [vmem:[%s165 + $0x26c] sm:$0xff]
      %v1049 = vld [vmem:[%s165 + $0x274] sm:$0xff]
      %v1050 = vld [vmem:[%s165 + $0x27c] sm:$0xff]
      %v1051 = vld [vmem:[%s165 + $0x284] sm:$0xff]
      %v1052 = vld [vmem:[%s165 + $0x28c] sm:$0xff]
      %v1053 = vld [vmem:[%s165 + $0x294] sm:$0xff]
      %v1054 = vld [vmem:[%s165 + $0x29c] sm:$0xff]
      %v1055 = vld [vmem:[%s165 + $0x2a4] sm:$0xff]
      %v1056 = vld [vmem:[%s165 + $0x2ac] sm:$0xff]
      %v1057 = vld [vmem:[%s165 + $0x2b4] sm:$0xff]
      %v1058 = vld [vmem:[%s165 + $0x2bc] sm:$0xff]
      %v1059 = vld [vmem:[%s165 + $0x2c4] sm:$0xff]
      %v1060 = vld [vmem:[%s165 + $0x2cc] sm:$0xff]
      %v1061 = vld [vmem:[%s165 + $0x2d4] sm:$0xff]
      %v1062 = vld [vmem:[%s165 + $0x2dc] sm:$0xff]
      %v1063 = vld [vmem:[%s165 + $0x2e4] sm:$0xff]
      %v1064 = vld [vmem:[%s165 + $0x2ec] sm:$0xff]
      %v1065 = vld [vmem:[%s165 + $0x2f4] sm:$0xff]
      %v1066 = vld [vmem:[%s165 + $0x2fc] sm:$0xff]
      %v1067 = vld [vmem:[%s165 + $0x304] sm:$0xff]
      %v1068 = vld [vmem:[%s165 + $0x30c] sm:$0xff]
      %v1069 = vld [vmem:[%s165 + $0x314] sm:$0xff]
      %v1070 = vld [vmem:[%s165 + $0x31c] sm:$0xff]
      %v1071 = vpack.c.bf16 %v971, %v971
      %v1072 = vpack.c.bf16 %v972, %v972
      %v1073 = vpack.c.bf16 %v973, %v973
      %v1074 = vpack.c.bf16 %v974, %v974
      %v1075 = vpack.c.bf16 %v975, %v975
      %v1076 = vpack.c.bf16 %v976, %v976
      %v1077 = vpack.c.bf16 %v977, %v977
      %v1078 = vpack.c.bf16 %v978, %v978
      %v1079 = vpack.c.bf16 %v979, %v979
      %v1080 = vpack.c.bf16 %v980, %v980
      %v1081 = vpack.c.bf16 %v981, %v981
      %v1082 = vpack.c.bf16 %v982, %v982
      %v1083 = vpack.c.bf16 %v983, %v983
      %v1084 = vpack.c.bf16 %v984, %v984
      %v1085 = vpack.c.bf16 %v985, %v985
      %v1086 = vpack.c.bf16 %v986, %v986
      %v1087 = vpack.c.bf16 %v987, %v987
      %v1088 = vpack.c.bf16 %v988, %v988
      %v1089 = vpack.c.bf16 %v989, %v989
      %v1090 = vpack.c.bf16 %v990, %v990
      %v1091 = vpack.c.bf16 %v991, %v991
      %v1092 = vpack.c.bf16 %v992, %v992
      %v1093 = vpack.c.bf16 %v993, %v993
      %v1094 = vpack.c.bf16 %v994, %v994
      %v1095 = vpack.c.bf16 %v995, %v995
      %v1096 = vpack.c.bf16 %v996, %v996
      %v1097 = vpack.c.bf16 %v997, %v997
      %v1098 = vpack.c.bf16 %v998, %v998
      %v1099 = vpack.c.bf16 %v999, %v999
      %v1100 = vpack.c.bf16 %v1000, %v1000
      %v1101 = vpack.c.bf16 %v1001, %v1001
      %v1102 = vpack.c.bf16 %v1002, %v1002
      %v1103 = vpack.c.bf16 %v1003, %v1003
      %v1104 = vpack.c.bf16 %v1004, %v1004
      %v1105 = vpack.c.bf16 %v1005, %v1005
      %v1106 = vpack.c.bf16 %v1006, %v1006
      %v1107 = vpack.c.bf16 %v1007, %v1007
      %v1108 = vpack.c.bf16 %v1008, %v1008
      %v1109 = vpack.c.bf16 %v1009, %v1009
      %v1110 = vpack.c.bf16 %v1010, %v1010
      %v1111 = vpack.c.bf16 %v1011, %v1011
      %v1112 = vpack.c.bf16 %v1012, %v1012
      %v1113 = vpack.c.bf16 %v1013, %v1013
      %v1114 = vpack.c.bf16 %v1014, %v1014
      %v1115 = vpack.c.bf16 %v1015, %v1015
      %v1116 = vpack.c.bf16 %v1016, %v1016
      %v1117 = vpack.c.bf16 %v1017, %v1017
      %v1118 = vpack.c.bf16 %v1018, %v1018
      %v1119 = vpack.c.bf16 %v1019, %v1019
      %v1120 = vpack.c.bf16 %v1020, %v1020
      %v1121 = vpack.c.bf16 %v1021, %v1021
      %v1122 = vpack.c.bf16 %v1022, %v1022
      %v1123 = vpack.c.bf16 %v1023, %v1023
      %v1124 = vpack.c.bf16 %v1024, %v1024
      %v1125 = vpack.c.bf16 %v1025, %v1025
      %v1126 = vpack.c.bf16 %v1026, %v1026
      %v1127 = vpack.c.bf16 %v1027, %v1027
      %v1128 = vpack.c.bf16 %v1028, %v1028
      %v1129 = vpack.c.bf16 %v1029, %v1029
      %v1130 = vpack.c.bf16 %v1030, %v1030
      %v1131 = vpack.c.bf16 %v1031, %v1031
      %v1132 = vpack.c.bf16 %v1032, %v1032
      %v1133 = vpack.c.bf16 %v1033, %v1033
      %v1134 = vpack.c.bf16 %v1034, %v1034
      %v1135 = vpack.c.bf16 %v1035, %v1035
      %v1136 = vpack.c.bf16 %v1036, %v1036
      %v1137 = vpack.c.bf16 %v1037, %v1037
      %v1138 = vpack.c.bf16 %v1038, %v1038
      %v1139 = vpack.c.bf16 %v1039, %v1039
      %v1140 = vpack.c.bf16 %v1040, %v1040
      %v1141 = vpack.c.bf16 %v1041, %v1041
      %v1142 = vpack.c.bf16 %v1042, %v1042
      %v1143 = vpack.c.bf16 %v1043, %v1043
      %v1144 = vpack.c.bf16 %v1044, %v1044
      %v1145 = vpack.c.bf16 %v1045, %v1045
      %v1146 = vpack.c.bf16 %v1046, %v1046
      %v1147 = vpack.c.bf16 %v1047, %v1047
      %v1148 = vpack.c.bf16 %v1048, %v1048
      %v1149 = vpack.c.bf16 %v1049, %v1049
      %v1150 = vpack.c.bf16 %v1050, %v1050
      %v1151 = vpack.c.bf16 %v1051, %v1051
      %v1152 = vpack.c.bf16 %v1052, %v1052
      %v1153 = vpack.c.bf16 %v1053, %v1053
      %v1154 = vpack.c.bf16 %v1054, %v1054
      %v1155 = vpack.c.bf16 %v1055, %v1055
      %v1156 = vpack.c.bf16 %v1056, %v1056
      %v1157 = vpack.c.bf16 %v1057, %v1057
      %v1158 = vpack.c.bf16 %v1058, %v1058
      %v1159 = vpack.c.bf16 %v1059, %v1059
      %v1160 = vpack.c.bf16 %v1060, %v1060
      %v1161 = vpack.c.bf16 %v1061, %v1061
      %v1162 = vpack.c.bf16 %v1062, %v1062
      %v1163 = vpack.c.bf16 %v1063, %v1063
      %v1164 = vpack.c.bf16 %v1064, %v1064
      %v1165 = vpack.c.bf16 %v1065, %v1065
      %v1166 = vpack.c.bf16 %v1066, %v1066
      %v1167 = vpack.c.bf16 %v1067, %v1067
      %v1168 = vpack.c.bf16 %v1068, %v1068
      %v1169 = vpack.c.bf16 %v1069, %v1069
      %v1170 = vpack.c.bf16 %v1070, %v1070
      %v1271 = vunpack.c.l.b16 %v271
      %v1272 = vunpack.c.l.b16 %v272
      %v1273 = vunpack.c.l.b16 %v273
      %v1274 = vunpack.c.l.b16 %v274
      %v1275 = vunpack.c.l.b16 %v275
      %v1276 = vunpack.c.l.b16 %v276
      %v1277 = vunpack.c.l.b16 %v277
      %v1278 = vunpack.c.l.b16 %v278
      %v1279 = vunpack.c.l.b16 %v279
      %v1280 = vunpack.c.l.b16 %v280
      %v1281 = vunpack.c.l.b16 %v281
      %v1282 = vunpack.c.l.b16 %v282
      %v1283 = vunpack.c.l.b16 %v283
      %v1284 = vunpack.c.l.b16 %v284
      %v1285 = vunpack.c.l.b16 %v285
      %v1286 = vunpack.c.l.b16 %v286
      %v1287 = vunpack.c.l.b16 %v287
      %v1288 = vunpack.c.l.b16 %v288
      %v1289 = vunpack.c.l.b16 %v289
      %v1290 = vunpack.c.l.b16 %v290
      %v1291 = vunpack.c.l.b16 %v291
      %v1292 = vunpack.c.l.b16 %v292
      %v1293 = vunpack.c.l.b16 %v293
      %v1294 = vunpack.c.l.b16 %v294
      %v1295 = vunpack.c.l.b16 %v295
      %v1296 = vunpack.c.l.b16 %v296
      %v1297 = vunpack.c.l.b16 %v297
      %v1298 = vunpack.c.l.b16 %v298
      %v1299 = vunpack.c.l.b16 %v299
      %v1300 = vunpack.c.l.b16 %v300
      %v1301 = vunpack.c.l.b16 %v301
      %v1302 = vunpack.c.l.b16 %v302
      %v1303 = vunpack.c.l.b16 %v303
      %v1304 = vunpack.c.l.b16 %v304
      %v1305 = vunpack.c.l.b16 %v305
      %v1306 = vunpack.c.l.b16 %v306
      %v1307 = vunpack.c.l.b16 %v307
      %v1308 = vunpack.c.l.b16 %v308
      %v1309 = vunpack.c.l.b16 %v309
      %v1310 = vunpack.c.l.b16 %v310
      %v1311 = vunpack.c.l.b16 %v311
      %v1312 = vunpack.c.l.b16 %v312
      %v1313 = vunpack.c.l.b16 %v313
      %v1314 = vunpack.c.l.b16 %v314
      %v1315 = vunpack.c.l.b16 %v315
      %v1316 = vunpack.c.l.b16 %v316
      %v1317 = vunpack.c.l.b16 %v317
      %v1318 = vunpack.c.l.b16 %v318
      %v1319 = vunpack.c.l.b16 %v319
      %v1320 = vunpack.c.l.b16 %v320
      %v1321 = vunpack.c.l.b16 %v321
      %v1322 = vunpack.c.l.b16 %v322
      %v1323 = vunpack.c.l.b16 %v323
      %v1324 = vunpack.c.l.b16 %v324
      %v1325 = vunpack.c.l.b16 %v325
      %v1326 = vunpack.c.l.b16 %v326
      %v1327 = vunpack.c.l.b16 %v327
      %v1328 = vunpack.c.l.b16 %v328
      %v1329 = vunpack.c.l.b16 %v329
      %v1330 = vunpack.c.l.b16 %v330
      %v1331 = vunpack.c.l.b16 %v331
      %v1332 = vunpack.c.l.b16 %v332
      %v1333 = vunpack.c.l.b16 %v333
      %v1334 = vunpack.c.l.b16 %v334
      %v1335 = vunpack.c.l.b16 %v335
      %v1336 = vunpack.c.l.b16 %v336
      %v1337 = vunpack.c.l.b16 %v337
      %v1338 = vunpack.c.l.b16 %v338
      %v1339 = vunpack.c.l.b16 %v339
      %v1340 = vunpack.c.l.b16 %v340
      %v1341 = vunpack.c.l.b16 %v341
      %v1342 = vunpack.c.l.b16 %v342
      %v1343 = vunpack.c.l.b16 %v343
      %v1344 = vunpack.c.l.b16 %v344
      %v1345 = vunpack.c.l.b16 %v345
      %v1346 = vunpack.c.l.b16 %v346
      %v1347 = vunpack.c.l.b16 %v347
      %v1348 = vunpack.c.l.b16 %v348
      %v1349 = vunpack.c.l.b16 %v349
      %v1350 = vunpack.c.l.b16 %v350
      %v1351 = vunpack.c.l.b16 %v351
      %v1352 = vunpack.c.l.b16 %v352
      %v1353 = vunpack.c.l.b16 %v353
      %v1354 = vunpack.c.l.b16 %v354
      %v1355 = vunpack.c.l.b16 %v355
      %v1356 = vunpack.c.l.b16 %v356
      %v1357 = vunpack.c.l.b16 %v357
      %v1358 = vunpack.c.l.b16 %v358
      %v1359 = vunpack.c.l.b16 %v359
      %v1360 = vunpack.c.l.b16 %v360
      %v1361 = vunpack.c.l.b16 %v361
      %v1362 = vunpack.c.l.b16 %v362
      %v1363 = vunpack.c.l.b16 %v363
      %v1364 = vunpack.c.l.b16 %v364
      %v1365 = vunpack.c.l.b16 %v365
      %v1366 = vunpack.c.l.b16 %v366
      %v1367 = vunpack.c.l.b16 %v367
      %v1368 = vunpack.c.l.b16 %v368
      %v1369 = vunpack.c.l.b16 %v369
      %v1370 = vunpack.c.l.b16 %v370
      %v1371 = vpack.c.b16 %v1272, %v1271
      %v1372 = vpack.c.b16 %v1274, %v1273
      %v1373 = vpack.c.b16 %v1276, %v1275
      %v1374 = vpack.c.b16 %v1278, %v1277
      %v1375 = vpack.c.b16 %v1280, %v1279
      %v1376 = vpack.c.b16 %v1282, %v1281
      %v1377 = vpack.c.b16 %v1284, %v1283
      %v1378 = vpack.c.b16 %v1286, %v1285
      %v1379 = vpack.c.b16 %v1288, %v1287
      %v1380 = vpack.c.b16 %v1290, %v1289
      %v1381 = vpack.c.b16 %v1292, %v1291
      %v1382 = vpack.c.b16 %v1294, %v1293
      %v1383 = vpack.c.b16 %v1296, %v1295
      %v1384 = vpack.c.b16 %v1298, %v1297
      %v1385 = vpack.c.b16 %v1300, %v1299
      %v1386 = vpack.c.b16 %v1302, %v1301
      %v1387 = vpack.c.b16 %v1304, %v1303
      %v1388 = vpack.c.b16 %v1306, %v1305
      %v1389 = vpack.c.b16 %v1308, %v1307
      %v1390 = vpack.c.b16 %v1310, %v1309
      %v1391 = vpack.c.b16 %v1312, %v1311
      %v1392 = vpack.c.b16 %v1314, %v1313
      %v1393 = vpack.c.b16 %v1316, %v1315
      %v1394 = vpack.c.b16 %v1318, %v1317
      %v1395 = vpack.c.b16 %v1320, %v1319
      %v1396 = vpack.c.b16 %v1322, %v1321
      %v1397 = vpack.c.b16 %v1324, %v1323
      %v1398 = vpack.c.b16 %v1326, %v1325
      %v1399 = vpack.c.b16 %v1328, %v1327
      %v1400 = vpack.c.b16 %v1330, %v1329
      %v1401 = vpack.c.b16 %v1332, %v1331
      %v1402 = vpack.c.b16 %v1334, %v1333
      %v1403 = vpack.c.b16 %v1336, %v1335
      %v1404 = vpack.c.b16 %v1338, %v1337
      %v1405 = vpack.c.b16 %v1340, %v1339
      %v1406 = vpack.c.b16 %v1342, %v1341
      %v1407 = vpack.c.b16 %v1344, %v1343
      %v1408 = vpack.c.b16 %v1346, %v1345
      %v1409 = vpack.c.b16 %v1348, %v1347
      %v1410 = vpack.c.b16 %v1350, %v1349
      %v1411 = vpack.c.b16 %v1352, %v1351
      %v1412 = vpack.c.b16 %v1354, %v1353
      %v1413 = vpack.c.b16 %v1356, %v1355
      %v1414 = vpack.c.b16 %v1358, %v1357
      %v1415 = vpack.c.b16 %v1360, %v1359
      %v1416 = vpack.c.b16 %v1362, %v1361
      %v1417 = vpack.c.b16 %v1364, %v1363
      %v1418 = vpack.c.b16 %v1366, %v1365
      %v1419 = vpack.c.b16 %v1368, %v1367
      %v1420 = vpack.c.b16 %v1370, %v1369
      %v1571 = vunpack.c.l.b16 %v471
      %v1572 = vunpack.c.l.b16 %v472
      %v1573 = vunpack.c.l.b16 %v473
      %v1574 = vunpack.c.l.b16 %v474
      %v1575 = vunpack.c.l.b16 %v475
      %v1576 = vunpack.c.l.b16 %v476
      %v1577 = vunpack.c.l.b16 %v477
      %v1578 = vunpack.c.l.b16 %v478
      %v1579 = vunpack.c.l.b16 %v479
      %v1580 = vunpack.c.l.b16 %v480
      %v1581 = vunpack.c.l.b16 %v481
      %v1582 = vunpack.c.l.b16 %v482
      %v1583 = vunpack.c.l.b16 %v483
      %v1584 = vunpack.c.l.b16 %v484
      %v1585 = vunpack.c.l.b16 %v485
      %v1586 = vunpack.c.l.b16 %v486
      %v1587 = vunpack.c.l.b16 %v487
      %v1588 = vunpack.c.l.b16 %v488
      %v1589 = vunpack.c.l.b16 %v489
      %v1590 = vunpack.c.l.b16 %v490
      %v1591 = vunpack.c.l.b16 %v491
      %v1592 = vunpack.c.l.b16 %v492
      %v1593 = vunpack.c.l.b16 %v493
      %v1594 = vunpack.c.l.b16 %v494
      %v1595 = vunpack.c.l.b16 %v495
      %v1596 = vunpack.c.l.b16 %v496
      %v1597 = vunpack.c.l.b16 %v497
      %v1598 = vunpack.c.l.b16 %v498
      %v1599 = vunpack.c.l.b16 %v499
      %v1600 = vunpack.c.l.b16 %v500
      %v1601 = vunpack.c.l.b16 %v501
      %v1602 = vunpack.c.l.b16 %v502
      %v1603 = vunpack.c.l.b16 %v503
      %v1604 = vunpack.c.l.b16 %v504
      %v1605 = vunpack.c.l.b16 %v505
      %v1606 = vunpack.c.l.b16 %v506
      %v1607 = vunpack.c.l.b16 %v507
      %v1608 = vunpack.c.l.b16 %v508
      %v1609 = vunpack.c.l.b16 %v509
      %v1610 = vunpack.c.l.b16 %v510
      %v1611 = vunpack.c.l.b16 %v511
      %v1612 = vunpack.c.l.b16 %v512
      %v1613 = vunpack.c.l.b16 %v513
      %v1614 = vunpack.c.l.b16 %v514
      %v1615 = vunpack.c.l.b16 %v515
      %v1616 = vunpack.c.l.b16 %v516
      %v1617 = vunpack.c.l.b16 %v517
      %v1618 = vunpack.c.l.b16 %v518
      %v1619 = vunpack.c.l.b16 %v519
      %v1620 = vunpack.c.l.b16 %v520
      %v1621 = vunpack.c.l.b16 %v521
      %v1622 = vunpack.c.l.b16 %v522
      %v1623 = vunpack.c.l.b16 %v523
      %v1624 = vunpack.c.l.b16 %v524
      %v1625 = vunpack.c.l.b16 %v525
      %v1626 = vunpack.c.l.b16 %v526
      %v1627 = vunpack.c.l.b16 %v527
      %v1628 = vunpack.c.l.b16 %v528
      %v1629 = vunpack.c.l.b16 %v529
      %v1630 = vunpack.c.l.b16 %v530
      %v1631 = vunpack.c.l.b16 %v531
      %v1632 = vunpack.c.l.b16 %v532
      %v1633 = vunpack.c.l.b16 %v533
      %v1634 = vunpack.c.l.b16 %v534
      %v1635 = vunpack.c.l.b16 %v535
      %v1636 = vunpack.c.l.b16 %v536
      %v1637 = vunpack.c.l.b16 %v537
      %v1638 = vunpack.c.l.b16 %v538
      %v1639 = vunpack.c.l.b16 %v539
      %v1640 = vunpack.c.l.b16 %v540
      %v1641 = vunpack.c.l.b16 %v541
      %v1642 = vunpack.c.l.b16 %v542
      %v1643 = vunpack.c.l.b16 %v543
      %v1644 = vunpack.c.l.b16 %v544
      %v1645 = vunpack.c.l.b16 %v545
      %v1646 = vunpack.c.l.b16 %v546
      %v1647 = vunpack.c.l.b16 %v547
      %v1648 = vunpack.c.l.b16 %v548
      %v1649 = vunpack.c.l.b16 %v549
      %v1650 = vunpack.c.l.b16 %v550
      %v1651 = vunpack.c.l.b16 %v551
      %v1652 = vunpack.c.l.b16 %v552
      %v1653 = vunpack.c.l.b16 %v553
      %v1654 = vunpack.c.l.b16 %v554
      %v1655 = vunpack.c.l.b16 %v555
      %v1656 = vunpack.c.l.b16 %v556
      %v1657 = vunpack.c.l.b16 %v557
      %v1658 = vunpack.c.l.b16 %v558
      %v1659 = vunpack.c.l.b16 %v559
      %v1660 = vunpack.c.l.b16 %v560
      %v1661 = vunpack.c.l.b16 %v561
      %v1662 = vunpack.c.l.b16 %v562
      %v1663 = vunpack.c.l.b16 %v563
      %v1664 = vunpack.c.l.b16 %v564
      %v1665 = vunpack.c.l.b16 %v565
      %v1666 = vunpack.c.l.b16 %v566
      %v1667 = vunpack.c.l.b16 %v567
      %v1668 = vunpack.c.l.b16 %v568
      %v1669 = vunpack.c.l.b16 %v569
      %v1670 = vunpack.c.l.b16 %v570
      %v1671 = vpack.c.b16 %v1572, %v1571
      %v1672 = vpack.c.b16 %v1574, %v1573
      %v1673 = vpack.c.b16 %v1576, %v1575
      %v1674 = vpack.c.b16 %v1578, %v1577
      %v1675 = vpack.c.b16 %v1580, %v1579
      %v1676 = vpack.c.b16 %v1582, %v1581
      %v1677 = vpack.c.b16 %v1584, %v1583
      %v1678 = vpack.c.b16 %v1586, %v1585
      %v1679 = vpack.c.b16 %v1588, %v1587
      %v1680 = vpack.c.b16 %v1590, %v1589
      %v1681 = vpack.c.b16 %v1592, %v1591
      %v1682 = vpack.c.b16 %v1594, %v1593
      %v1683 = vpack.c.b16 %v1596, %v1595
      %v1684 = vpack.c.b16 %v1598, %v1597
      %v1685 = vpack.c.b16 %v1600, %v1599
      %v1686 = vpack.c.b16 %v1602, %v1601
      %v1687 = vpack.c.b16 %v1604, %v1603
      %v1688 = vpack.c.b16 %v1606, %v1605
      %v1689 = vpack.c.b16 %v1608, %v1607
      %v1690 = vpack.c.b16 %v1610, %v1609
      %v1691 = vpack.c.b16 %v1612, %v1611
      %v1692 = vpack.c.b16 %v1614, %v1613
      %v1693 = vpack.c.b16 %v1616, %v1615
      %v1694 = vpack.c.b16 %v1618, %v1617
      %v1695 = vpack.c.b16 %v1620, %v1619
      %v1696 = vpack.c.b16 %v1622, %v1621
      %v1697 = vpack.c.b16 %v1624, %v1623
      %v1698 = vpack.c.b16 %v1626, %v1625
      %v1699 = vpack.c.b16 %v1628, %v1627
      %v1700 = vpack.c.b16 %v1630, %v1629
      %v1701 = vpack.c.b16 %v1632, %v1631
      %v1702 = vpack.c.b16 %v1634, %v1633
      %v1703 = vpack.c.b16 %v1636, %v1635
      %v1704 = vpack.c.b16 %v1638, %v1637
      %v1705 = vpack.c.b16 %v1640, %v1639
      %v1706 = vpack.c.b16 %v1642, %v1641
      %v1707 = vpack.c.b16 %v1644, %v1643
      %v1708 = vpack.c.b16 %v1646, %v1645
      %v1709 = vpack.c.b16 %v1648, %v1647
      %v1710 = vpack.c.b16 %v1650, %v1649
      %v1711 = vpack.c.b16 %v1652, %v1651
      %v1712 = vpack.c.b16 %v1654, %v1653
      %v1713 = vpack.c.b16 %v1656, %v1655
      %v1714 = vpack.c.b16 %v1658, %v1657
      %v1715 = vpack.c.b16 %v1660, %v1659
      %v1716 = vpack.c.b16 %v1662, %v1661
      %v1717 = vpack.c.b16 %v1664, %v1663
      %v1718 = vpack.c.b16 %v1666, %v1665
      %v1719 = vpack.c.b16 %v1668, %v1667
      %v1720 = vpack.c.b16 %v1670, %v1669
      %v1871 = vunpack.c.l.b16 %v671
      %v1872 = vunpack.c.l.b16 %v672
      %v1873 = vunpack.c.l.b16 %v673
      %v1874 = vunpack.c.l.b16 %v674
      %v1875 = vunpack.c.l.b16 %v675
      %v1876 = vunpack.c.l.b16 %v676
      %v1877 = vunpack.c.l.b16 %v677
      %v1878 = vunpack.c.l.b16 %v678
      %v1879 = vunpack.c.l.b16 %v679
      %v1880 = vunpack.c.l.b16 %v680
      %v1881 = vunpack.c.l.b16 %v681
      %v1882 = vunpack.c.l.b16 %v682
      %v1883 = vunpack.c.l.b16 %v683
      %v1884 = vunpack.c.l.b16 %v684
      %v1885 = vunpack.c.l.b16 %v685
      %v1886 = vunpack.c.l.b16 %v686
      %v1887 = vunpack.c.l.b16 %v687
      %v1888 = vunpack.c.l.b16 %v688
      %v1889 = vunpack.c.l.b16 %v689
      %v1890 = vunpack.c.l.b16 %v690
      %v1891 = vunpack.c.l.b16 %v691
      %v1892 = vunpack.c.l.b16 %v692
      %v1893 = vunpack.c.l.b16 %v693
      %v1894 = vunpack.c.l.b16 %v694
      %v1895 = vunpack.c.l.b16 %v695
      %v1896 = vunpack.c.l.b16 %v696
      %v1897 = vunpack.c.l.b16 %v697
      %v1898 = vunpack.c.l.b16 %v698
      %v1899 = vunpack.c.l.b16 %v699
      %v1900 = vunpack.c.l.b16 %v700
      %v1901 = vunpack.c.l.b16 %v701
      %v1902 = vunpack.c.l.b16 %v702
      %v1903 = vunpack.c.l.b16 %v703
      %v1904 = vunpack.c.l.b16 %v704
      %v1905 = vunpack.c.l.b16 %v705
      %v1906 = vunpack.c.l.b16 %v706
      %v1907 = vunpack.c.l.b16 %v707
      %v1908 = vunpack.c.l.b16 %v708
      %v1909 = vunpack.c.l.b16 %v709
      %v1910 = vunpack.c.l.b16 %v710
      %v1911 = vunpack.c.l.b16 %v711
      %v1912 = vunpack.c.l.b16 %v712
      %v1913 = vunpack.c.l.b16 %v713
      %v1914 = vunpack.c.l.b16 %v714
      %v1915 = vunpack.c.l.b16 %v715
      %v1916 = vunpack.c.l.b16 %v716
      %v1917 = vunpack.c.l.b16 %v717
      %v1918 = vunpack.c.l.b16 %v718
      %v1919 = vunpack.c.l.b16 %v719
      %v1920 = vunpack.c.l.b16 %v720
      %v1921 = vunpack.c.l.b16 %v721
      %v1922 = vunpack.c.l.b16 %v722
      %v1923 = vunpack.c.l.b16 %v723
      %v1924 = vunpack.c.l.b16 %v724
      %v1925 = vunpack.c.l.b16 %v725
      %v1926 = vunpack.c.l.b16 %v726
      %v1927 = vunpack.c.l.b16 %v727
      %v1928 = vunpack.c.l.b16 %v728
      %v1929 = vunpack.c.l.b16 %v729
      %v1930 = vunpack.c.l.b16 %v730
      %v1931 = vunpack.c.l.b16 %v731
      %v1932 = vunpack.c.l.b16 %v732
      %v1933 = vunpack.c.l.b16 %v733
      %v1934 = vunpack.c.l.b16 %v734
      %v1935 = vunpack.c.l.b16 %v735
      %v1936 = vunpack.c.l.b16 %v736
      %v1937 = vunpack.c.l.b16 %v737
      %v1938 = vunpack.c.l.b16 %v738
      %v1939 = vunpack.c.l.b16 %v739
      %v1940 = vunpack.c.l.b16 %v740
      %v1941 = vunpack.c.l.b16 %v741
      %v1942 = vunpack.c.l.b16 %v742
      %v1943 = vunpack.c.l.b16 %v743
      %v1944 = vunpack.c.l.b16 %v744
      %v1945 = vunpack.c.l.b16 %v745
      %v1946 = vunpack.c.l.b16 %v746
      %v1947 = vunpack.c.l.b16 %v747
      %v1948 = vunpack.c.l.b16 %v748
      %v1949 = vunpack.c.l.b16 %v749
      %v1950 = vunpack.c.l.b16 %v750
      %v1951 = vunpack.c.l.b16 %v751
      %v1952 = vunpack.c.l.b16 %v752
      %v1953 = vunpack.c.l.b16 %v753
      %v1954 = vunpack.c.l.b16 %v754
      %v1955 = vunpack.c.l.b16 %v755
      %v1956 = vunpack.c.l.b16 %v756
      %v1957 = vunpack.c.l.b16 %v757
      %v1958 = vunpack.c.l.b16 %v758
      %v1959 = vunpack.c.l.b16 %v759
      %v1960 = vunpack.c.l.b16 %v760
      %v1961 = vunpack.c.l.b16 %v761
      %v1962 = vunpack.c.l.b16 %v762
      %v1963 = vunpack.c.l.b16 %v763
      %v1964 = vunpack.c.l.b16 %v764
      %v1965 = vunpack.c.l.b16 %v765
      %v1966 = vunpack.c.l.b16 %v766
      %v1967 = vunpack.c.l.b16 %v767
      %v1968 = vunpack.c.l.b16 %v768
      %v1969 = vunpack.c.l.b16 %v769
      %v1970 = vunpack.c.l.b16 %v770
      %v1971 = vpack.c.b16 %v1872, %v1871
      %v1972 = vpack.c.b16 %v1874, %v1873
      %v1973 = vpack.c.b16 %v1876, %v1875
      %v1974 = vpack.c.b16 %v1878, %v1877
      %v1975 = vpack.c.b16 %v1880, %v1879
      %v1976 = vpack.c.b16 %v1882, %v1881
      %v1977 = vpack.c.b16 %v1884, %v1883
      %v1978 = vpack.c.b16 %v1886, %v1885
      %v1979 = vpack.c.b16 %v1888, %v1887
      %v1980 = vpack.c.b16 %v1890, %v1889
      %v1981 = vpack.c.b16 %v1892, %v1891
      %v1982 = vpack.c.b16 %v1894, %v1893
      %v1983 = vpack.c.b16 %v1896, %v1895
      %v1984 = vpack.c.b16 %v1898, %v1897
      %v1985 = vpack.c.b16 %v1900, %v1899
      %v1986 = vpack.c.b16 %v1902, %v1901
      %v1987 = vpack.c.b16 %v1904, %v1903
      %v1988 = vpack.c.b16 %v1906, %v1905
      %v1989 = vpack.c.b16 %v1908, %v1907
      %v1990 = vpack.c.b16 %v1910, %v1909
      %v1991 = vpack.c.b16 %v1912, %v1911
      %v1992 = vpack.c.b16 %v1914, %v1913
      %v1993 = vpack.c.b16 %v1916, %v1915
      %v1994 = vpack.c.b16 %v1918, %v1917
      %v1995 = vpack.c.b16 %v1920, %v1919
      %v1996 = vpack.c.b16 %v1922, %v1921
      %v1997 = vpack.c.b16 %v1924, %v1923
      %v1998 = vpack.c.b16 %v1926, %v1925
      %v1999 = vpack.c.b16 %v1928, %v1927
      %v2000 = vpack.c.b16 %v1930, %v1929
      %v2001 = vpack.c.b16 %v1932, %v1931
      %v2002 = vpack.c.b16 %v1934, %v1933
      %v2003 = vpack.c.b16 %v1936, %v1935
      %v2004 = vpack.c.b16 %v1938, %v1937
      %v2005 = vpack.c.b16 %v1940, %v1939
      %v2006 = vpack.c.b16 %v1942, %v1941
      %v2007 = vpack.c.b16 %v1944, %v1943
      %v2008 = vpack.c.b16 %v1946, %v1945
      %v2009 = vpack.c.b16 %v1948, %v1947
      %v2010 = vpack.c.b16 %v1950, %v1949
      %v2011 = vpack.c.b16 %v1952, %v1951
      %v2012 = vpack.c.b16 %v1954, %v1953
      %v2013 = vpack.c.b16 %v1956, %v1955
      %v2014 = vpack.c.b16 %v1958, %v1957
      %v2015 = vpack.c.b16 %v1960, %v1959
      %v2016 = vpack.c.b16 %v1962, %v1961
      %v2017 = vpack.c.b16 %v1964, %v1963
      %v2018 = vpack.c.b16 %v1966, %v1965
      %v2019 = vpack.c.b16 %v1968, %v1967
      %v2020 = vpack.c.b16 %v1970, %v1969
      %v2171 = vunpack.c.l.b16 %v871
      %v2172 = vunpack.c.l.b16 %v872
      %v2173 = vunpack.c.l.b16 %v873
      %v2174 = vunpack.c.l.b16 %v874
      %v2175 = vunpack.c.l.b16 %v875
      %v2176 = vunpack.c.l.b16 %v876
      %v2177 = vunpack.c.l.b16 %v877
      %v2178 = vunpack.c.l.b16 %v878
      %v2179 = vunpack.c.l.b16 %v879
      %v2180 = vunpack.c.l.b16 %v880
      %v2181 = vunpack.c.l.b16 %v881
      %v2182 = vunpack.c.l.b16 %v882
      %v2183 = vunpack.c.l.b16 %v883
      %v2184 = vunpack.c.l.b16 %v884
      %v2185 = vunpack.c.l.b16 %v885
      %v2186 = vunpack.c.l.b16 %v886
      %v2187 = vunpack.c.l.b16 %v887
      %v2188 = vunpack.c.l.b16 %v888
      %v2189 = vunpack.c.l.b16 %v889
      %v2190 = vunpack.c.l.b16 %v890
      %v2191 = vunpack.c.l.b16 %v891
      %v2192 = vunpack.c.l.b16 %v892
      %v2193 = vunpack.c.l.b16 %v893
      %v2194 = vunpack.c.l.b16 %v894
      %v2195 = vunpack.c.l.b16 %v895
      %v2196 = vunpack.c.l.b16 %v896
      %v2197 = vunpack.c.l.b16 %v897
      %v2198 = vunpack.c.l.b16 %v898
      %v2199 = vunpack.c.l.b16 %v899
      %v2200 = vunpack.c.l.b16 %v900
      %v2201 = vunpack.c.l.b16 %v901
      %v2202 = vunpack.c.l.b16 %v902
      %v2203 = vunpack.c.l.b16 %v903
      %v2204 = vunpack.c.l.b16 %v904
      %v2205 = vunpack.c.l.b16 %v905
      %v2206 = vunpack.c.l.b16 %v906
      %v2207 = vunpack.c.l.b16 %v907
      %v2208 = vunpack.c.l.b16 %v908
      %v2209 = vunpack.c.l.b16 %v909
      %v2210 = vunpack.c.l.b16 %v910
      %v2211 = vunpack.c.l.b16 %v911
      %v2212 = vunpack.c.l.b16 %v912
      %v2213 = vunpack.c.l.b16 %v913
      %v2214 = vunpack.c.l.b16 %v914
      %v2215 = vunpack.c.l.b16 %v915
      %v2216 = vunpack.c.l.b16 %v916
      %v2217 = vunpack.c.l.b16 %v917
      %v2218 = vunpack.c.l.b16 %v918
      %v2219 = vunpack.c.l.b16 %v919
      %v2220 = vunpack.c.l.b16 %v920
      %v2221 = vunpack.c.l.b16 %v921
      %v2222 = vunpack.c.l.b16 %v922
      %v2223 = vunpack.c.l.b16 %v923
      %v2224 = vunpack.c.l.b16 %v924
      %v2225 = vunpack.c.l.b16 %v925
      %v2226 = vunpack.c.l.b16 %v926
      %v2227 = vunpack.c.l.b16 %v927
      %v2228 = vunpack.c.l.b16 %v928
      %v2229 = vunpack.c.l.b16 %v929
      %v2230 = vunpack.c.l.b16 %v930
      %v2231 = vunpack.c.l.b16 %v931
      %v2232 = vunpack.c.l.b16 %v932
      %v2233 = vunpack.c.l.b16 %v933
      %v2234 = vunpack.c.l.b16 %v934
      %v2235 = vunpack.c.l.b16 %v935
      %v2236 = vunpack.c.l.b16 %v936
      %v2237 = vunpack.c.l.b16 %v937
      %v2238 = vunpack.c.l.b16 %v938
      %v2239 = vunpack.c.l.b16 %v939
      %v2240 = vunpack.c.l.b16 %v940
      %v2241 = vunpack.c.l.b16 %v941
      %v2242 = vunpack.c.l.b16 %v942
      %v2243 = vunpack.c.l.b16 %v943
      %v2244 = vunpack.c.l.b16 %v944
      %v2245 = vunpack.c.l.b16 %v945
      %v2246 = vunpack.c.l.b16 %v946
      %v2247 = vunpack.c.l.b16 %v947
      %v2248 = vunpack.c.l.b16 %v948
      %v2249 = vunpack.c.l.b16 %v949
      %v2250 = vunpack.c.l.b16 %v950
      %v2251 = vunpack.c.l.b16 %v951
      %v2252 = vunpack.c.l.b16 %v952
      %v2253 = vunpack.c.l.b16 %v953
      %v2254 = vunpack.c.l.b16 %v954
      %v2255 = vunpack.c.l.b16 %v955
      %v2256 = vunpack.c.l.b16 %v956
      %v2257 = vunpack.c.l.b16 %v957
      %v2258 = vunpack.c.l.b16 %v958
      %v2259 = vunpack.c.l.b16 %v959
      %v2260 = vunpack.c.l.b16 %v960
      %v2261 = vunpack.c.l.b16 %v961
      %v2262 = vunpack.c.l.b16 %v962
      %v2263 = vunpack.c.l.b16 %v963
      %v2264 = vunpack.c.l.b16 %v964
      %v2265 = vunpack.c.l.b16 %v965
      %v2266 = vunpack.c.l.b16 %v966
      %v2267 = vunpack.c.l.b16 %v967
      %v2268 = vunpack.c.l.b16 %v968
      %v2269 = vunpack.c.l.b16 %v969
      %v2270 = vunpack.c.l.b16 %v970
      %v2271 = vpack.c.b16 %v2172, %v2171
      %v2272 = vpack.c.b16 %v2174, %v2173
      %v2273 = vpack.c.b16 %v2176, %v2175
      %v2274 = vpack.c.b16 %v2178, %v2177
      %v2275 = vpack.c.b16 %v2180, %v2179
      %v2276 = vpack.c.b16 %v2182, %v2181
      %v2277 = vpack.c.b16 %v2184, %v2183
      %v2278 = vpack.c.b16 %v2186, %v2185
      %v2279 = vpack.c.b16 %v2188, %v2187
      %v2280 = vpack.c.b16 %v2190, %v2189
      %v2281 = vpack.c.b16 %v2192, %v2191
      %v2282 = vpack.c.b16 %v2194, %v2193
      %v2283 = vpack.c.b16 %v2196, %v2195
      %v2284 = vpack.c.b16 %v2198, %v2197
      %v2285 = vpack.c.b16 %v2200, %v2199
      %v2286 = vpack.c.b16 %v2202, %v2201
      %v2287 = vpack.c.b16 %v2204, %v2203
      %v2288 = vpack.c.b16 %v2206, %v2205
      %v2289 = vpack.c.b16 %v2208, %v2207
      %v2290 = vpack.c.b16 %v2210, %v2209
      %v2291 = vpack.c.b16 %v2212, %v2211
      %v2292 = vpack.c.b16 %v2214, %v2213
      %v2293 = vpack.c.b16 %v2216, %v2215
      %v2294 = vpack.c.b16 %v2218, %v2217
      %v2295 = vpack.c.b16 %v2220, %v2219
      %v2296 = vpack.c.b16 %v2222, %v2221
      %v2297 = vpack.c.b16 %v2224, %v2223
      %v2298 = vpack.c.b16 %v2226, %v2225
      %v2299 = vpack.c.b16 %v2228, %v2227
      %v2300 = vpack.c.b16 %v2230, %v2229
      %v2301 = vpack.c.b16 %v2232, %v2231
      %v2302 = vpack.c.b16 %v2234, %v2233
      %v2303 = vpack.c.b16 %v2236, %v2235
      %v2304 = vpack.c.b16 %v2238, %v2237
      %v2305 = vpack.c.b16 %v2240, %v2239
      %v2306 = vpack.c.b16 %v2242, %v2241
      %v2307 = vpack.c.b16 %v2244, %v2243
      %v2308 = vpack.c.b16 %v2246, %v2245
      %v2309 = vpack.c.b16 %v2248, %v2247
      %v2310 = vpack.c.b16 %v2250, %v2249
      %v2311 = vpack.c.b16 %v2252, %v2251
      %v2312 = vpack.c.b16 %v2254, %v2253
      %v2313 = vpack.c.b16 %v2256, %v2255
      %v2314 = vpack.c.b16 %v2258, %v2257
      %v2315 = vpack.c.b16 %v2260, %v2259
      %v2316 = vpack.c.b16 %v2262, %v2261
      %v2317 = vpack.c.b16 %v2264, %v2263
      %v2318 = vpack.c.b16 %v2266, %v2265
      %v2319 = vpack.c.b16 %v2268, %v2267
      %v2320 = vpack.c.b16 %v2270, %v2269
      %v2471 = vunpack.c.l.b16 %v1071
      %v2472 = vunpack.c.l.b16 %v1072
      %v2473 = vunpack.c.l.b16 %v1073
      %v2474 = vunpack.c.l.b16 %v1074
      %v2475 = vunpack.c.l.b16 %v1075
      %v2476 = vunpack.c.l.b16 %v1076
      %v2477 = vunpack.c.l.b16 %v1077
      %v2478 = vunpack.c.l.b16 %v1078
      %v2479 = vunpack.c.l.b16 %v1079
      %v2480 = vunpack.c.l.b16 %v1080
      %v2481 = vunpack.c.l.b16 %v1081
      %v2482 = vunpack.c.l.b16 %v1082
      %v2483 = vunpack.c.l.b16 %v1083
      %v2484 = vunpack.c.l.b16 %v1084
      %v2485 = vunpack.c.l.b16 %v1085
      %v2486 = vunpack.c.l.b16 %v1086
      %v2487 = vunpack.c.l.b16 %v1087
      %v2488 = vunpack.c.l.b16 %v1088
      %v2489 = vunpack.c.l.b16 %v1089
      %v2490 = vunpack.c.l.b16 %v1090
      %v2491 = vunpack.c.l.b16 %v1091
      %v2492 = vunpack.c.l.b16 %v1092
      %v2493 = vunpack.c.l.b16 %v1093
      %v2494 = vunpack.c.l.b16 %v1094
      %v2495 = vunpack.c.l.b16 %v1095
      %v2496 = vunpack.c.l.b16 %v1096
      %v2497 = vunpack.c.l.b16 %v1097
      %v2498 = vunpack.c.l.b16 %v1098
      %v2499 = vunpack.c.l.b16 %v1099
      %v2500 = vunpack.c.l.b16 %v1100
      %v2501 = vunpack.c.l.b16 %v1101
      %v2502 = vunpack.c.l.b16 %v1102
      %v2503 = vunpack.c.l.b16 %v1103
      %v2504 = vunpack.c.l.b16 %v1104
      %v2505 = vunpack.c.l.b16 %v1105
      %v2506 = vunpack.c.l.b16 %v1106
      %v2507 = vunpack.c.l.b16 %v1107
      %v2508 = vunpack.c.l.b16 %v1108
      %v2509 = vunpack.c.l.b16 %v1109
      %v2510 = vunpack.c.l.b16 %v1110
      %v2511 = vunpack.c.l.b16 %v1111
      %v2512 = vunpack.c.l.b16 %v1112
      %v2513 = vunpack.c.l.b16 %v1113
      %v2514 = vunpack.c.l.b16 %v1114
      %v2515 = vunpack.c.l.b16 %v1115
      %v2516 = vunpack.c.l.b16 %v1116
      %v2517 = vunpack.c.l.b16 %v1117
      %v2518 = vunpack.c.l.b16 %v1118
      %v2519 = vunpack.c.l.b16 %v1119
      %v2520 = vunpack.c.l.b16 %v1120
      %v2521 = vunpack.c.l.b16 %v1121
      %v2522 = vunpack.c.l.b16 %v1122
      %v2523 = vunpack.c.l.b16 %v1123
      %v2524 = vunpack.c.l.b16 %v1124
      %v2525 = vunpack.c.l.b16 %v1125
      %v2526 = vunpack.c.l.b16 %v1126
      %v2527 = vunpack.c.l.b16 %v1127
      %v2528 = vunpack.c.l.b16 %v1128
      %v2529 = vunpack.c.l.b16 %v1129
      %v2530 = vunpack.c.l.b16 %v1130
      %v2531 = vunpack.c.l.b16 %v1131
      %v2532 = vunpack.c.l.b16 %v1132
      %v2533 = vunpack.c.l.b16 %v1133
      %v2534 = vunpack.c.l.b16 %v1134
      %v2535 = vunpack.c.l.b16 %v1135
      %v2536 = vunpack.c.l.b16 %v1136
      %v2537 = vunpack.c.l.b16 %v1137
      %v2538 = vunpack.c.l.b16 %v1138
      %v2539 = vunpack.c.l.b16 %v1139
      %v2540 = vunpack.c.l.b16 %v1140
      %v2541 = vunpack.c.l.b16 %v1141
      %v2542 = vunpack.c.l.b16 %v1142
      %v2543 = vunpack.c.l.b16 %v1143
      %v2544 = vunpack.c.l.b16 %v1144
      %v2545 = vunpack.c.l.b16 %v1145
      %v2546 = vunpack.c.l.b16 %v1146
      %v2547 = vunpack.c.l.b16 %v1147
      %v2548 = vunpack.c.l.b16 %v1148
      %v2549 = vunpack.c.l.b16 %v1149
      %v2550 = vunpack.c.l.b16 %v1150
      %v2551 = vunpack.c.l.b16 %v1151
      %v2552 = vunpack.c.l.b16 %v1152
      %v2553 = vunpack.c.l.b16 %v1153
      %v2554 = vunpack.c.l.b16 %v1154
      %v2555 = vunpack.c.l.b16 %v1155
      %v2556 = vunpack.c.l.b16 %v1156
      %v2557 = vunpack.c.l.b16 %v1157
      %v2558 = vunpack.c.l.b16 %v1158
      %v2559 = vunpack.c.l.b16 %v1159
      %v2560 = vunpack.c.l.b16 %v1160
      %v2561 = vunpack.c.l.b16 %v1161
      %v2562 = vunpack.c.l.b16 %v1162
      %v2563 = vunpack.c.l.b16 %v1163
      %v2564 = vunpack.c.l.b16 %v1164
      %v2565 = vunpack.c.l.b16 %v1165
      %v2566 = vunpack.c.l.b16 %v1166
      %v2567 = vunpack.c.l.b16 %v1167
      %v2568 = vunpack.c.l.b16 %v1168
      %v2569 = vunpack.c.l.b16 %v1169
      %v2570 = vunpack.c.l.b16 %v1170
      %v2571 = vpack.c.b16 %v2472, %v2471
      %v2572 = vpack.c.b16 %v2474, %v2473
      %v2573 = vpack.c.b16 %v2476, %v2475
      %v2574 = vpack.c.b16 %v2478, %v2477
      %v2575 = vpack.c.b16 %v2480, %v2479
      %v2576 = vpack.c.b16 %v2482, %v2481
      %v2577 = vpack.c.b16 %v2484, %v2483
      %v2578 = vpack.c.b16 %v2486, %v2485
      %v2579 = vpack.c.b16 %v2488, %v2487
      %v2580 = vpack.c.b16 %v2490, %v2489
      %v2581 = vpack.c.b16 %v2492, %v2491
      %v2582 = vpack.c.b16 %v2494, %v2493
      %v2583 = vpack.c.b16 %v2496, %v2495
      %v2584 = vpack.c.b16 %v2498, %v2497
      %v2585 = vpack.c.b16 %v2500, %v2499
      %v2586 = vpack.c.b16 %v2502, %v2501
      %v2587 = vpack.c.b16 %v2504, %v2503
      %v2588 = vpack.c.b16 %v2506, %v2505
      %v2589 = vpack.c.b16 %v2508, %v2507
      %v2590 = vpack.c.b16 %v2510, %v2509
      %v2591 = vpack.c.b16 %v2512, %v2511
      %v2592 = vpack.c.b16 %v2514, %v2513
      %v2593 = vpack.c.b16 %v2516, %v2515
      %v2594 = vpack.c.b16 %v2518, %v2517
      %v2595 = vpack.c.b16 %v2520, %v2519
      %v2596 = vpack.c.b16 %v2522, %v2521
      %v2597 = vpack.c.b16 %v2524, %v2523
      %v2598 = vpack.c.b16 %v2526, %v2525
      %v2599 = vpack.c.b16 %v2528, %v2527
      %v2600 = vpack.c.b16 %v2530, %v2529
      %v2601 = vpack.c.b16 %v2532, %v2531
      %v2602 = vpack.c.b16 %v2534, %v2533
      %v2603 = vpack.c.b16 %v2536, %v2535
      %v2604 = vpack.c.b16 %v2538, %v2537
      %v2605 = vpack.c.b16 %v2540, %v2539
      %v2606 = vpack.c.b16 %v2542, %v2541
      %v2607 = vpack.c.b16 %v2544, %v2543
      %v2608 = vpack.c.b16 %v2546, %v2545
      %v2609 = vpack.c.b16 %v2548, %v2547
      %v2610 = vpack.c.b16 %v2550, %v2549
      %v2611 = vpack.c.b16 %v2552, %v2551
      %v2612 = vpack.c.b16 %v2554, %v2553
      %v2613 = vpack.c.b16 %v2556, %v2555
      %v2614 = vpack.c.b16 %v2558, %v2557
      %v2615 = vpack.c.b16 %v2560, %v2559
      %v2616 = vpack.c.b16 %v2562, %v2561
      %v2617 = vpack.c.b16 %v2564, %v2563
      %v2618 = vpack.c.b16 %v2566, %v2565
      %v2619 = vpack.c.b16 %v2568, %v2567
      %v2620 = vpack.c.b16 %v2570, %v2569
      %v2671 = vld [vmem:[%s1] sm:$0xff]
      %v2672 = vld [vmem:[%s1 + $0x8] sm:$0xf]
      %v2673 = vld [vmem:[%s1 + $0xc] sm:$0xff]
      %v2674 = vld [vmem:[%s1 + $0x14] sm:$0xf]
      %v2675 = vld [vmem:[%s1 + $0x18] sm:$0xff]
      %v2676 = vld [vmem:[%s1 + $0x20] sm:$0xf]
      %v2677 = vld [vmem:[%s1 + $0x24] sm:$0xff]
      %v2678 = vld [vmem:[%s1 + $0x2c] sm:$0xf]
      %v2679 = vld [vmem:[%s1 + $0x30] sm:$0xff]
      %v2680 = vld [vmem:[%s1 + $0x38] sm:$0xf]
      %v2681 = vld [vmem:[%s1 + $0x3c] sm:$0xff]
      %v2682 = vld [vmem:[%s1 + $0x44] sm:$0xf]
      %v2683 = vld [vmem:[%s1 + $0x48] sm:$0xff]
      %v2684 = vld [vmem:[%s1 + $0x50] sm:$0xf]
      %v2685 = vld [vmem:[%s1 + $0x54] sm:$0xff]
      %v2686 = vld [vmem:[%s1 + $0x5c] sm:$0xf]
      %v2687 = vld [vmem:[%s1 + $0x60] sm:$0xff]
      %v2688 = vld [vmem:[%s1 + $0x68] sm:$0xf]
      %v2689 = vld [vmem:[%s1 + $0x6c] sm:$0xff]
      %v2690 = vld [vmem:[%s1 + $0x74] sm:$0xf]
      %v2691 = vld [vmem:[%s1 + $0x78] sm:$0xff]
      %v2692 = vld [vmem:[%s1 + $0x80] sm:$0xf]
      %v2693 = vld [vmem:[%s1 + $0x84] sm:$0xff]
      %v2694 = vld [vmem:[%s1 + $0x8c] sm:$0xf]
      %v2695 = vld [vmem:[%s1 + $0x90] sm:$0xff]
      %v2696 = vld [vmem:[%s1 + $0x98] sm:$0xf]
      %v2697 = vld [vmem:[%s1 + $0x9c] sm:$0xff]
      %v2698 = vld [vmem:[%s1 + $0xa4] sm:$0xf]
      %v2699 = vld [vmem:[%s1 + $0xa8] sm:$0xff]
      %v2700 = vld [vmem:[%s1 + $0xb0] sm:$0xf]
      %v2701 = vld [vmem:[%s1 + $0xb4] sm:$0xff]
      %v2702 = vld [vmem:[%s1 + $0xbc] sm:$0xf]
      %v2703 = vld [vmem:[%s1 + $0xc0] sm:$0xff]
      %v2704 = vld [vmem:[%s1 + $0xc8] sm:$0xf]
      %v2705 = vld [vmem:[%s1 + $0xcc] sm:$0xff]
      %v2706 = vld [vmem:[%s1 + $0xd4] sm:$0xf]
      %v2707 = vld [vmem:[%s1 + $0xd8] sm:$0xff]
      %v2708 = vld [vmem:[%s1 + $0xe0] sm:$0xf]
      %v2709 = vld [vmem:[%s1 + $0xe4] sm:$0xff]
      %v2710 = vld [vmem:[%s1 + $0xec] sm:$0xf]
      %v2711 = vld [vmem:[%s1 + $0xf0] sm:$0xff]
      %v2712 = vld [vmem:[%s1 + $0xf8] sm:$0xf]
      %v2713 = vld [vmem:[%s1 + $0xfc] sm:$0xff]
      %v2714 = vld [vmem:[%s1 + $0x104] sm:$0xf]
      %v2715 = vld [vmem:[%s1 + $0x108] sm:$0xff]
      %v2716 = vld [vmem:[%s1 + $0x110] sm:$0xf]
      %v2717 = vld [vmem:[%s1 + $0x114] sm:$0xff]
      %v2718 = vld [vmem:[%s1 + $0x11c] sm:$0xf]
      %v2719 = vld [vmem:[%s1 + $0x120] sm:$0xff]
      %v2720 = vld [vmem:[%s1 + $0x128] sm:$0xf]
      %v2721 = vld [vmem:[%s1 + $0x12c] sm:$0xff]
      %v2722 = vld [vmem:[%s1 + $0x134] sm:$0xf]
      %v2723 = vld [vmem:[%s1 + $0x138] sm:$0xff]
      %v2724 = vld [vmem:[%s1 + $0x140] sm:$0xf]
      %v2725 = vld [vmem:[%s1 + $0x144] sm:$0xff]
      %v2726 = vld [vmem:[%s1 + $0x14c] sm:$0xf]
      %v2727 = vld [vmem:[%s1 + $0x150] sm:$0xff]
      %v2728 = vld [vmem:[%s1 + $0x158] sm:$0xf]
      %v2729 = vld [vmem:[%s1 + $0x15c] sm:$0xff]
      %v2730 = vld [vmem:[%s1 + $0x164] sm:$0xf]
      %v2731 = vld [vmem:[%s1 + $0x168] sm:$0xff]
      %v2732 = vld [vmem:[%s1 + $0x170] sm:$0xf]
      %v2733 = vld [vmem:[%s1 + $0x174] sm:$0xff]
      %v2734 = vld [vmem:[%s1 + $0x17c] sm:$0xf]
      %v2735 = vld [vmem:[%s1 + $0x180] sm:$0xff]
      %v2736 = vld [vmem:[%s1 + $0x188] sm:$0xf]
      %v2737 = vld [vmem:[%s1 + $0x18c] sm:$0xff]
      %v2738 = vld [vmem:[%s1 + $0x194] sm:$0xf]
      %v2739 = vld [vmem:[%s1 + $0x198] sm:$0xff]
      %v2740 = vld [vmem:[%s1 + $0x1a0] sm:$0xf]
      %v2741 = vld [vmem:[%s1 + $0x1a4] sm:$0xff]
      %v2742 = vld [vmem:[%s1 + $0x1ac] sm:$0xf]
      %v2743 = vld [vmem:[%s1 + $0x1b0] sm:$0xff]
      %v2744 = vld [vmem:[%s1 + $0x1b8] sm:$0xf]
      %v2745 = vld [vmem:[%s1 + $0x1bc] sm:$0xff]
      %v2746 = vld [vmem:[%s1 + $0x1c4] sm:$0xf]
      %v2747 = vld [vmem:[%s1 + $0x1c8] sm:$0xff]
      %v2748 = vld [vmem:[%s1 + $0x1d0] sm:$0xf]
      %v2749 = vld [vmem:[%s1 + $0x1d4] sm:$0xff]
      %v2750 = vld [vmem:[%s1 + $0x1dc] sm:$0xf]
      %v2751 = vld [vmem:[%s1 + $0x1e0] sm:$0xff]
      %v2752 = vld [vmem:[%s1 + $0x1e8] sm:$0xf]
      %v2753 = vld [vmem:[%s1 + $0x1ec] sm:$0xff]
      %v2754 = vld [vmem:[%s1 + $0x1f4] sm:$0xf]
      %v2755 = vld [vmem:[%s1 + $0x1f8] sm:$0xff]
      %v2756 = vld [vmem:[%s1 + $0x200] sm:$0xf]
      %v2757 = vld [vmem:[%s1 + $0x204] sm:$0xff]
      %v2758 = vld [vmem:[%s1 + $0x20c] sm:$0xf]
      %v2759 = vld [vmem:[%s1 + $0x210] sm:$0xff]
      %v2760 = vld [vmem:[%s1 + $0x218] sm:$0xf]
      %v2761 = vld [vmem:[%s1 + $0x21c] sm:$0xff]
      %v2762 = vld [vmem:[%s1 + $0x224] sm:$0xf]
      %v2763 = vld [vmem:[%s1 + $0x228] sm:$0xff]
      %v2764 = vld [vmem:[%s1 + $0x230] sm:$0xf]
      %v2765 = vld [vmem:[%s1 + $0x234] sm:$0xff]
      %v2766 = vld [vmem:[%s1 + $0x23c] sm:$0xf]
      %v2767 = vld [vmem:[%s1 + $0x240] sm:$0xff]
      %v2768 = vld [vmem:[%s1 + $0x248] sm:$0xf]
      %v2769 = vld [vmem:[%s1 + $0x24c] sm:$0xff]
      %v2770 = vld [vmem:[%s1 + $0x254] sm:$0xf]
      %v2771 = vld [vmem:[%s1 + $0x258] sm:$0xff]
      %v2772 = vld [vmem:[%s1 + $0x260] sm:$0xf]
      %v2773 = vld [vmem:[%s1 + $0x264] sm:$0xff]
      %v2774 = vld [vmem:[%s1 + $0x26c] sm:$0xf]
      %v2775 = vld [vmem:[%s1 + $0x270] sm:$0xff]
      %v2776 = vld [vmem:[%s1 + $0x278] sm:$0xf]
      %v2777 = vld [vmem:[%s1 + $0x27c] sm:$0xff]
      %v2778 = vld [vmem:[%s1 + $0x284] sm:$0xf]
      %v2779 = vld [vmem:[%s1 + $0x288] sm:$0xff]
      %v2780 = vld [vmem:[%s1 + $0x290] sm:$0xf]
      %v2781 = vld [vmem:[%s1 + $0x294] sm:$0xff]
      %v2782 = vld [vmem:[%s1 + $0x29c] sm:$0xf]
      %v2783 = vld [vmem:[%s1 + $0x2a0] sm:$0xff]
      %v2784 = vld [vmem:[%s1 + $0x2a8] sm:$0xf]
      %v2785 = vld [vmem:[%s1 + $0x2ac] sm:$0xff]
      %v2786 = vld [vmem:[%s1 + $0x2b4] sm:$0xf]
      %v2787 = vld [vmem:[%s1 + $0x2b8] sm:$0xff]
      %v2788 = vld [vmem:[%s1 + $0x2c0] sm:$0xf]
      %v2789 = vld [vmem:[%s1 + $0x2c4] sm:$0xff]
      %v2790 = vld [vmem:[%s1 + $0x2cc] sm:$0xf]
      %v2791 = vld [vmem:[%s1 + $0x2d0] sm:$0xff]
      %v2792 = vld [vmem:[%s1 + $0x2d8] sm:$0xf]
      %v2793 = vld [vmem:[%s1 + $0x2dc] sm:$0xff]
      %v2794 = vld [vmem:[%s1 + $0x2e4] sm:$0xf]
      %v2795 = vld [vmem:[%s1 + $0x2e8] sm:$0xff]
      %v2796 = vld [vmem:[%s1 + $0x2f0] sm:$0xf]
      %v2797 = vld [vmem:[%s1 + $0x2f4] sm:$0xff]
      %v2798 = vld [vmem:[%s1 + $0x2fc] sm:$0xf]
      %v2799 = vld [vmem:[%s1 + $0x300] sm:$0xff]
      %v2800 = vld [vmem:[%s1 + $0x308] sm:$0xf]
      %v2801 = vld [vmem:[%s1 + $0x30c] sm:$0xff]
      %v2802 = vld [vmem:[%s1 + $0x314] sm:$0xf]
      %v2803 = vld [vmem:[%s1 + $0x318] sm:$0xff]
      %v2804 = vld [vmem:[%s1 + $0x320] sm:$0xf]
      %v2805 = vld [vmem:[%s1 + $0x324] sm:$0xff]
      %v2806 = vld [vmem:[%s1 + $0x32c] sm:$0xf]
      %v2807 = vld [vmem:[%s1 + $0x330] sm:$0xff]
      %v2808 = vld [vmem:[%s1 + $0x338] sm:$0xf]
      %v2809 = vld [vmem:[%s1 + $0x33c] sm:$0xff]
      %v2810 = vld [vmem:[%s1 + $0x344] sm:$0xf]
      %v2811 = vld [vmem:[%s1 + $0x348] sm:$0xff]
      %v2812 = vld [vmem:[%s1 + $0x350] sm:$0xf]
      %v2813 = vld [vmem:[%s1 + $0x354] sm:$0xff]
      %v2814 = vld [vmem:[%s1 + $0x35c] sm:$0xf]
      %v2815 = vld [vmem:[%s1 + $0x360] sm:$0xff]
      %v2816 = vld [vmem:[%s1 + $0x368] sm:$0xf]
      %v2817 = vld [vmem:[%s1 + $0x36c] sm:$0xff]
      %v2818 = vld [vmem:[%s1 + $0x374] sm:$0xf]
      %v2819 = vld [vmem:[%s1 + $0x378] sm:$0xff]
      %v2820 = vld [vmem:[%s1 + $0x380] sm:$0xf]
      %v2821 = vld [vmem:[%s1 + $0x384] sm:$0xff]
      %v2822 = vld [vmem:[%s1 + $0x38c] sm:$0xf]
      %v2823 = vld [vmem:[%s1 + $0x390] sm:$0xff]
      %v2824 = vld [vmem:[%s1 + $0x398] sm:$0xf]
      %v2825 = vld [vmem:[%s1 + $0x39c] sm:$0xff]
      %v2826 = vld [vmem:[%s1 + $0x3a4] sm:$0xf]
      %v2827 = vld [vmem:[%s1 + $0x3a8] sm:$0xff]
      %v2828 = vld [vmem:[%s1 + $0x3b0] sm:$0xf]
      %v2829 = vld [vmem:[%s1 + $0x3b4] sm:$0xff]
      %v2830 = vld [vmem:[%s1 + $0x3bc] sm:$0xf]
      %v2831 = vld [vmem:[%s2] sm:$0x7]
      %v2833 = vperm.slane %v2831, 0
      %v2834 = vperm.slane %v2831, 1
      %v2835 = vperm.slane %v2831, 2
      %v2999 = vunpack.c.l.b16 %v2671
      %v3000 = vunpack.c.h.b16 %v2671
      %v3001 = vunpack.c.l.b16 %v2672
      %v3002 = vunpack.c.l.b16 %v2673
      %v3003 = vunpack.c.h.b16 %v2673
      %v3004 = vunpack.c.l.b16 %v2674
      %v3005 = vunpack.c.l.b16 %v2675
      %v3006 = vunpack.c.h.b16 %v2675
      %v3007 = vunpack.c.l.b16 %v2676
      %v3008 = vunpack.c.l.b16 %v2677
      %v3009 = vunpack.c.h.b16 %v2677
      %v3010 = vunpack.c.l.b16 %v2678
      %v3011 = vunpack.c.l.b16 %v2679
      %v3012 = vunpack.c.h.b16 %v2679
      %v3013 = vunpack.c.l.b16 %v2680
      %v3014 = vunpack.c.l.b16 %v2681
      %v3015 = vunpack.c.h.b16 %v2681
      %v3016 = vunpack.c.l.b16 %v2682
      %v3017 = vunpack.c.l.b16 %v2683
      %v3018 = vunpack.c.h.b16 %v2683
      %v3019 = vunpack.c.l.b16 %v2684
      %v3020 = vunpack.c.l.b16 %v2685
      %v3021 = vunpack.c.h.b16 %v2685
      %v3022 = vunpack.c.l.b16 %v2686
      %v3023 = vunpack.c.l.b16 %v2687
      %v3024 = vunpack.c.h.b16 %v2687
      %v3025 = vunpack.c.l.b16 %v2688
      %v3026 = vunpack.c.l.b16 %v2689
      %v3027 = vunpack.c.h.b16 %v2689
      %v3028 = vunpack.c.l.b16 %v2690
      %v3029 = vunpack.c.l.b16 %v2691
      %v3030 = vunpack.c.h.b16 %v2691
      %v3031 = vunpack.c.l.b16 %v2692
      %v3032 = vunpack.c.l.b16 %v2693
      %v3033 = vunpack.c.h.b16 %v2693
      %v3034 = vunpack.c.l.b16 %v2694
      %v3035 = vunpack.c.l.b16 %v2695
      %v3036 = vunpack.c.h.b16 %v2695
      %v3037 = vunpack.c.l.b16 %v2696
      %v3038 = vunpack.c.l.b16 %v2697
      %v3039 = vunpack.c.h.b16 %v2697
      %v3040 = vunpack.c.l.b16 %v2698
      %v3041 = vunpack.c.l.b16 %v2699
      %v3042 = vunpack.c.h.b16 %v2699
      %v3043 = vunpack.c.l.b16 %v2700
      %v3044 = vunpack.c.l.b16 %v2701
      %v3045 = vunpack.c.h.b16 %v2701
      %v3046 = vunpack.c.l.b16 %v2702
      %v3047 = vunpack.c.l.b16 %v2703
      %v3048 = vunpack.c.h.b16 %v2703
      %v3049 = vunpack.c.l.b16 %v2704
      %v3050 = vunpack.c.l.b16 %v2705
      %v3051 = vunpack.c.h.b16 %v2705
      %v3052 = vunpack.c.l.b16 %v2706
      %v3053 = vunpack.c.l.b16 %v2707
      %v3054 = vunpack.c.h.b16 %v2707
      %v3055 = vunpack.c.l.b16 %v2708
      %v3056 = vunpack.c.l.b16 %v2709
      %v3057 = vunpack.c.h.b16 %v2709
      %v3058 = vunpack.c.l.b16 %v2710
      %v3059 = vunpack.c.l.b16 %v2711
      %v3060 = vunpack.c.h.b16 %v2711
      %v3061 = vunpack.c.l.b16 %v2712
      %v3062 = vunpack.c.l.b16 %v2713
      %v3063 = vunpack.c.h.b16 %v2713
      %v3064 = vunpack.c.l.b16 %v2714
      %v3065 = vunpack.c.l.b16 %v2715
      %v3066 = vunpack.c.h.b16 %v2715
      %v3067 = vunpack.c.l.b16 %v2716
      %v3068 = vunpack.c.l.b16 %v2717
      %v3069 = vunpack.c.h.b16 %v2717
      %v3070 = vunpack.c.l.b16 %v2718
      %v3071 = vunpack.c.l.b16 %v2719
      %v3072 = vunpack.c.h.b16 %v2719
      %v3073 = vunpack.c.l.b16 %v2720
      %v3074 = vunpack.c.l.b16 %v2721
      %v3075 = vunpack.c.h.b16 %v2721
      %v3076 = vunpack.c.l.b16 %v2722
      %v3077 = vunpack.c.l.b16 %v2723
      %v3078 = vunpack.c.h.b16 %v2723
      %v3079 = vunpack.c.l.b16 %v2724
      %v3080 = vunpack.c.l.b16 %v2725
      %v3081 = vunpack.c.h.b16 %v2725
      %v3082 = vunpack.c.l.b16 %v2726
      %v3083 = vunpack.c.l.b16 %v2727
      %v3084 = vunpack.c.h.b16 %v2727
      %v3085 = vunpack.c.l.b16 %v2728
      %v3086 = vunpack.c.l.b16 %v2729
      %v3087 = vunpack.c.h.b16 %v2729
      %v3088 = vunpack.c.l.b16 %v2730
      %v3089 = vunpack.c.l.b16 %v2731
      %v3090 = vunpack.c.h.b16 %v2731
      %v3091 = vunpack.c.l.b16 %v2732
      %v3092 = vunpack.c.l.b16 %v2733
      %v3093 = vunpack.c.h.b16 %v2733
      %v3094 = vunpack.c.l.b16 %v2734
      %v3095 = vunpack.c.l.b16 %v2735
      %v3096 = vunpack.c.h.b16 %v2735
      %v3097 = vunpack.c.l.b16 %v2736
      %v3098 = vunpack.c.l.b16 %v2737
      %v3099 = vunpack.c.h.b16 %v2737
      %v3100 = vunpack.c.l.b16 %v2738
      %v3101 = vunpack.c.l.b16 %v2739
      %v3102 = vunpack.c.h.b16 %v2739
      %v3103 = vunpack.c.l.b16 %v2740
      %v3104 = vunpack.c.l.b16 %v2741
      %v3105 = vunpack.c.h.b16 %v2741
      %v3106 = vunpack.c.l.b16 %v2742
      %v3107 = vunpack.c.l.b16 %v2743
      %v3108 = vunpack.c.h.b16 %v2743
      %v3109 = vunpack.c.l.b16 %v2744
      %v3110 = vunpack.c.l.b16 %v2745
      %v3111 = vunpack.c.h.b16 %v2745
      %v3112 = vunpack.c.l.b16 %v2746
      %v3113 = vunpack.c.l.b16 %v2747
      %v3114 = vunpack.c.h.b16 %v2747
      %v3115 = vunpack.c.l.b16 %v2748
      %v3116 = vunpack.c.l.b16 %v2749
      %v3117 = vunpack.c.h.b16 %v2749
      %v3118 = vunpack.c.l.b16 %v2750
      %v3119 = vunpack.c.l.b16 %v2751
      %v3120 = vunpack.c.h.b16 %v2751
      %v3121 = vunpack.c.l.b16 %v2752
      %v3122 = vunpack.c.l.b16 %v2753
      %v3123 = vunpack.c.h.b16 %v2753
      %v3124 = vunpack.c.l.b16 %v2754
      %v3125 = vunpack.c.l.b16 %v2755
      %v3126 = vunpack.c.h.b16 %v2755
      %v3127 = vunpack.c.l.b16 %v2756
      %v3128 = vunpack.c.l.b16 %v2757
      %v3129 = vunpack.c.h.b16 %v2757
      %v3130 = vunpack.c.l.b16 %v2758
      %v3131 = vunpack.c.l.b16 %v2759
      %v3132 = vunpack.c.h.b16 %v2759
      %v3133 = vunpack.c.l.b16 %v2760
      %v3134 = vunpack.c.l.b16 %v2761
      %v3135 = vunpack.c.h.b16 %v2761
      %v3136 = vunpack.c.l.b16 %v2762
      %v3137 = vunpack.c.l.b16 %v2763
      %v3138 = vunpack.c.h.b16 %v2763
      %v3139 = vunpack.c.l.b16 %v2764
      %v3140 = vunpack.c.l.b16 %v2765
      %v3141 = vunpack.c.h.b16 %v2765
      %v3142 = vunpack.c.l.b16 %v2766
      %v3143 = vunpack.c.l.b16 %v2767
      %v3144 = vunpack.c.h.b16 %v2767
      %v3145 = vunpack.c.l.b16 %v2768
      %v3146 = vunpack.c.l.b16 %v2769
      %v3147 = vunpack.c.h.b16 %v2769
      %v3148 = vunpack.c.l.b16 %v2770
      %v3149 = vunpack.c.l.b16 %v2771
      %v3150 = vunpack.c.h.b16 %v2771
      %v3151 = vunpack.c.l.b16 %v2772
      %v3152 = vunpack.c.l.b16 %v2773
      %v3153 = vunpack.c.h.b16 %v2773
      %v3154 = vunpack.c.l.b16 %v2774
      %v3155 = vunpack.c.l.b16 %v2775
      %v3156 = vunpack.c.h.b16 %v2775
      %v3157 = vunpack.c.l.b16 %v2776
      %v3158 = vunpack.c.l.b16 %v2777
      %v3159 = vunpack.c.h.b16 %v2777
      %v3160 = vunpack.c.l.b16 %v2778
      %v3161 = vunpack.c.l.b16 %v2779
      %v3162 = vunpack.c.h.b16 %v2779
      %v3163 = vunpack.c.l.b16 %v2780
      %v3164 = vunpack.c.l.b16 %v2781
      %v3165 = vunpack.c.h.b16 %v2781
      %v3166 = vunpack.c.l.b16 %v2782
      %v3167 = vunpack.c.l.b16 %v2783
      %v3168 = vunpack.c.h.b16 %v2783
      %v3169 = vunpack.c.l.b16 %v2784
      %v3170 = vunpack.c.l.b16 %v2785
      %v3171 = vunpack.c.h.b16 %v2785
      %v3172 = vunpack.c.l.b16 %v2786
      %v3173 = vunpack.c.l.b16 %v2787
      %v3174 = vunpack.c.h.b16 %v2787
      %v3175 = vunpack.c.l.b16 %v2788
      %v3176 = vunpack.c.l.b16 %v2789
      %v3177 = vunpack.c.h.b16 %v2789
      %v3178 = vunpack.c.l.b16 %v2790
      %v3179 = vunpack.c.l.b16 %v2791
      %v3180 = vunpack.c.h.b16 %v2791
      %v3181 = vunpack.c.l.b16 %v2792
      %v3182 = vunpack.c.l.b16 %v2793
      %v3183 = vunpack.c.h.b16 %v2793
      %v3184 = vunpack.c.l.b16 %v2794
      %v3185 = vunpack.c.l.b16 %v2795
      %v3186 = vunpack.c.h.b16 %v2795
      %v3187 = vunpack.c.l.b16 %v2796
      %v3188 = vunpack.c.l.b16 %v2797
      %v3189 = vunpack.c.h.b16 %v2797
      %v3190 = vunpack.c.l.b16 %v2798
      %v3191 = vunpack.c.l.b16 %v2799
      %v3192 = vunpack.c.h.b16 %v2799
      %v3193 = vunpack.c.l.b16 %v2800
      %v3194 = vunpack.c.l.b16 %v2801
      %v3195 = vunpack.c.h.b16 %v2801
      %v3196 = vunpack.c.l.b16 %v2802
      %v3197 = vunpack.c.l.b16 %v2803
      %v3198 = vunpack.c.h.b16 %v2803
      %v3199 = vunpack.c.l.b16 %v2804
      %v3200 = vunpack.c.l.b16 %v2805
      %v3201 = vunpack.c.h.b16 %v2805
      %v3202 = vunpack.c.l.b16 %v2806
      %v3203 = vunpack.c.l.b16 %v2807
      %v3204 = vunpack.c.h.b16 %v2807
      %v3205 = vunpack.c.l.b16 %v2808
      %v3206 = vunpack.c.l.b16 %v2809
      %v3207 = vunpack.c.h.b16 %v2809
      %v3208 = vunpack.c.l.b16 %v2810
      %v3209 = vunpack.c.l.b16 %v2811
      %v3210 = vunpack.c.h.b16 %v2811
      %v3211 = vunpack.c.l.b16 %v2812
      %v3212 = vunpack.c.l.b16 %v2813
      %v3213 = vunpack.c.h.b16 %v2813
      %v3214 = vunpack.c.l.b16 %v2814
      %v3215 = vunpack.c.l.b16 %v2815
      %v3216 = vunpack.c.h.b16 %v2815
      %v3217 = vunpack.c.l.b16 %v2816
      %v3218 = vunpack.c.l.b16 %v2817
      %v3219 = vunpack.c.h.b16 %v2817
      %v3220 = vunpack.c.l.b16 %v2818
      %v3221 = vunpack.c.l.b16 %v2819
      %v3222 = vunpack.c.h.b16 %v2819
      %v3223 = vunpack.c.l.b16 %v2820
      %v3224 = vunpack.c.l.b16 %v2821
      %v3225 = vunpack.c.h.b16 %v2821
      %v3226 = vunpack.c.l.b16 %v2822
      %v3227 = vunpack.c.l.b16 %v2823
      %v3228 = vunpack.c.h.b16 %v2823
      %v3229 = vunpack.c.l.b16 %v2824
      %v3230 = vunpack.c.l.b16 %v2825
      %v3231 = vunpack.c.h.b16 %v2825
      %v3232 = vunpack.c.l.b16 %v2826
      %v3233 = vunpack.c.l.b16 %v2827
      %v3234 = vunpack.c.h.b16 %v2827
      %v3235 = vunpack.c.l.b16 %v2828
      %v3236 = vunpack.c.l.b16 %v2829
      %v3237 = vunpack.c.h.b16 %v2829
      %v3238 = vunpack.c.l.b16 %v2830
      %v3239 = vpack.c.b16 %v3002, %v2999
      %v3240 = vpack.c.b16 %v3003, %v3000
      %v3241 = vpack.c.b16 %v3004, %v3001
      %v3242 = vpack.c.b16 %v3008, %v3005
      %v3243 = vpack.c.b16 %v3009, %v3006
      %v3244 = vpack.c.b16 %v3010, %v3007
      %v3245 = vpack.c.b16 %v3014, %v3011
      %v3246 = vpack.c.b16 %v3015, %v3012
      %v3247 = vpack.c.b16 %v3016, %v3013
      %v3248 = vpack.c.b16 %v3020, %v3017
      %v3249 = vpack.c.b16 %v3021, %v3018
      %v3250 = vpack.c.b16 %v3022, %v3019
      %v3251 = vpack.c.b16 %v3026, %v3023
      %v3252 = vpack.c.b16 %v3027, %v3024
      %v3253 = vpack.c.b16 %v3028, %v3025
      %v3254 = vpack.c.b16 %v3032, %v3029
      %v3255 = vpack.c.b16 %v3033, %v3030
      %v3256 = vpack.c.b16 %v3034, %v3031
      %v3257 = vpack.c.b16 %v3038, %v3035
      %v3258 = vpack.c.b16 %v3039, %v3036
      %v3259 = vpack.c.b16 %v3040, %v3037
      %v3260 = vpack.c.b16 %v3044, %v3041
      %v3261 = vpack.c.b16 %v3045, %v3042
      %v3262 = vpack.c.b16 %v3046, %v3043
      %v3263 = vpack.c.b16 %v3050, %v3047
      %v3264 = vpack.c.b16 %v3051, %v3048
      %v3265 = vpack.c.b16 %v3052, %v3049
      %v3266 = vpack.c.b16 %v3056, %v3053
      %v3267 = vpack.c.b16 %v3057, %v3054
      %v3268 = vpack.c.b16 %v3058, %v3055
      %v3269 = vpack.c.b16 %v3062, %v3059
      %v3270 = vpack.c.b16 %v3063, %v3060
      %v3271 = vpack.c.b16 %v3064, %v3061
      %v3272 = vpack.c.b16 %v3068, %v3065
      %v3273 = vpack.c.b16 %v3069, %v3066
      %v3274 = vpack.c.b16 %v3070, %v3067
      %v3275 = vpack.c.b16 %v3074, %v3071
      %v3276 = vpack.c.b16 %v3075, %v3072
      %v3277 = vpack.c.b16 %v3076, %v3073
      %v3278 = vpack.c.b16 %v3080, %v3077
      %v3279 = vpack.c.b16 %v3081, %v3078
      %v3280 = vpack.c.b16 %v3082, %v3079
      %v3281 = vpack.c.b16 %v3086, %v3083
      %v3282 = vpack.c.b16 %v3087, %v3084
      %v3283 = vpack.c.b16 %v3088, %v3085
      %v3284 = vpack.c.b16 %v3092, %v3089
      %v3285 = vpack.c.b16 %v3093, %v3090
      %v3286 = vpack.c.b16 %v3094, %v3091
      %v3287 = vpack.c.b16 %v3098, %v3095
      %v3288 = vpack.c.b16 %v3099, %v3096
      %v3289 = vpack.c.b16 %v3100, %v3097
      %v3290 = vpack.c.b16 %v3104, %v3101
      %v3291 = vpack.c.b16 %v3105, %v3102
      %v3292 = vpack.c.b16 %v3106, %v3103
      %v3293 = vpack.c.b16 %v3110, %v3107
      %v3294 = vpack.c.b16 %v3111, %v3108
      %v3295 = vpack.c.b16 %v3112, %v3109
      %v3296 = vpack.c.b16 %v3116, %v3113
      %v3297 = vpack.c.b16 %v3117, %v3114
      %v3298 = vpack.c.b16 %v3118, %v3115
      %v3299 = vpack.c.b16 %v3122, %v3119
      %v3300 = vpack.c.b16 %v3123, %v3120
      %v3301 = vpack.c.b16 %v3124, %v3121
      %v3302 = vpack.c.b16 %v3128, %v3125
      %v3303 = vpack.c.b16 %v3129, %v3126
      %v3304 = vpack.c.b16 %v3130, %v3127
      %v3305 = vpack.c.b16 %v3134, %v3131
      %v3306 = vpack.c.b16 %v3135, %v3132
      %v3307 = vpack.c.b16 %v3136, %v3133
      %v3308 = vpack.c.b16 %v3140, %v3137
      %v3309 = vpack.c.b16 %v3141, %v3138
      %v3310 = vpack.c.b16 %v3142, %v3139
      %v3311 = vpack.c.b16 %v3146, %v3143
      %v3312 = vpack.c.b16 %v3147, %v3144
      %v3313 = vpack.c.b16 %v3148, %v3145
      %v3314 = vpack.c.b16 %v3152, %v3149
      %v3315 = vpack.c.b16 %v3153, %v3150
      %v3316 = vpack.c.b16 %v3154, %v3151
      %v3317 = vpack.c.b16 %v3158, %v3155
      %v3318 = vpack.c.b16 %v3159, %v3156
      %v3319 = vpack.c.b16 %v3160, %v3157
      %v3320 = vpack.c.b16 %v3164, %v3161
      %v3321 = vpack.c.b16 %v3165, %v3162
      %v3322 = vpack.c.b16 %v3166, %v3163
      %v3323 = vpack.c.b16 %v3170, %v3167
      %v3324 = vpack.c.b16 %v3171, %v3168
      %v3325 = vpack.c.b16 %v3172, %v3169
      %v3326 = vpack.c.b16 %v3176, %v3173
      %v3327 = vpack.c.b16 %v3177, %v3174
      %v3328 = vpack.c.b16 %v3178, %v3175
      %v3329 = vpack.c.b16 %v3182, %v3179
      %v3330 = vpack.c.b16 %v3183, %v3180
      %v3331 = vpack.c.b16 %v3184, %v3181
      %v3332 = vpack.c.b16 %v3188, %v3185
      %v3333 = vpack.c.b16 %v3189, %v3186
      %v3334 = vpack.c.b16 %v3190, %v3187
      %v3335 = vpack.c.b16 %v3194, %v3191
      %v3336 = vpack.c.b16 %v3195, %v3192
      %v3337 = vpack.c.b16 %v3196, %v3193
      %v3338 = vpack.c.b16 %v3200, %v3197
      %v3339 = vpack.c.b16 %v3201, %v3198
      %v3340 = vpack.c.b16 %v3202, %v3199
      %v3341 = vpack.c.b16 %v3206, %v3203
      %v3342 = vpack.c.b16 %v3207, %v3204
      %v3343 = vpack.c.b16 %v3208, %v3205
      %v3344 = vpack.c.b16 %v3212, %v3209
      %v3345 = vpack.c.b16 %v3213, %v3210
      %v3346 = vpack.c.b16 %v3214, %v3211
      %v3347 = vpack.c.b16 %v3218, %v3215
      %v3348 = vpack.c.b16 %v3219, %v3216
      %v3349 = vpack.c.b16 %v3220, %v3217
      %v3350 = vpack.c.b16 %v3224, %v3221
      %v3351 = vpack.c.b16 %v3225, %v3222
      %v3352 = vpack.c.b16 %v3226, %v3223
      %v3353 = vpack.c.b16 %v3230, %v3227
      %v3354 = vpack.c.b16 %v3231, %v3228
      %v3355 = vpack.c.b16 %v3232, %v3229
      %v3356 = vpack.c.b16 %v3236, %v3233
      %v3357 = vpack.c.b16 %v3237, %v3234
      %v3358 = vpack.c.b16 %v3238, %v3235
      %3479 = vmatpush.bf16.msra.mxu0 %v3260
      %3480 = vmatpush.bf16.msra.mxu0 %v3257
      %3481 = vmatpush.bf16.msra.mxu0 %v3254
      %3482 = vmatpush.bf16.msra.mxu0 %v3251
      %3483 = vmatpush.bf16.msra.mxu0 %v3248
      %3484 = vmatpush.bf16.msra.mxu0 %v3245
      %3485 = vmatpush.bf16.msra.mxu0 %v3242
      %3486 = vmatpush.bf16.msra.mxu0 %v3239
      %3487 = vmatmul.bf16.gmra.mxu0 %v1371
      %v3488 = vpop.f32.mrf.mxu0
      %v3489 = vadd.f32 %v2833, %v3488
      %v3490 = vpop.f32.mrf.mxu0
      %v3491 = vadd.f32 %v2833, %v3490
      %3492 = vmatmul.bf16.gmra.mxu0 %v1372
      %v3493 = vpop.f32.mrf.mxu0
      %v3494 = vadd.f32 %v2833, %v3493
      %v3495 = vpop.f32.mrf.mxu0
      %v3496 = vadd.f32 %v2833, %v3495
      %3497 = vmatmul.bf16.gmra.mxu0 %v1373
      %v3498 = vpop.f32.mrf.mxu0
      %v3499 = vadd.f32 %v2833, %v3498
      %v3500 = vpop.f32.mrf.mxu0
      %v3501 = vadd.f32 %v2833, %v3500
      %3502 = vmatmul.bf16.gmra.mxu0 %v1374
      %v3503 = vpop.f32.mrf.mxu0
      %v3504 = vadd.f32 %v2833, %v3503
      %v3505 = vpop.f32.mrf.mxu0
      %v3506 = vadd.f32 %v2833, %v3505
      %3507 = vmatmul.bf16.gmra.mxu0 %v1375
      %v3508 = vpop.f32.mrf.mxu0
      %v3509 = vadd.f32 %v2833, %v3508
      %v3510 = vpop.f32.mrf.mxu0
      %v3511 = vadd.f32 %v2833, %v3510
      %3512 = vmatmul.bf16.gmra.mxu0 %v1376
      %v3513 = vpop.f32.mrf.mxu0
      %v3514 = vadd.f32 %v2833, %v3513
      %v3515 = vpop.f32.mrf.mxu0
      %v3516 = vadd.f32 %v2833, %v3515
      %3517 = vmatmul.bf16.gmra.mxu0 %v1377
      %v3518 = vpop.f32.mrf.mxu0
      %v3519 = vadd.f32 %v2833, %v3518
      %v3520 = vpop.f32.mrf.mxu0
      %v3521 = vadd.f32 %v2833, %v3520
      %3522 = vmatmul.bf16.gmra.mxu0 %v1378
      %v3523 = vpop.f32.mrf.mxu0
      %v3524 = vadd.f32 %v2833, %v3523
      %v3525 = vpop.f32.mrf.mxu0
      %v3526 = vadd.f32 %v2833, %v3525
      %3527 = vmatmul.bf16.gmra.mxu0 %v1379
      %v3528 = vpop.f32.mrf.mxu0
      %v3529 = vadd.f32 %v2833, %v3528
      %v3530 = vpop.f32.mrf.mxu0
      %v3531 = vadd.f32 %v2833, %v3530
      %3532 = vmatmul.bf16.gmra.mxu0 %v1380
      %v3533 = vpop.f32.mrf.mxu0
      %v3534 = vadd.f32 %v2833, %v3533
      %v3535 = vpop.f32.mrf.mxu0
      %v3536 = vadd.f32 %v2833, %v3535
      %3537 = vmatmul.bf16.gmra.mxu0 %v1381
      %v3538 = vpop.f32.mrf.mxu0
      %v3539 = vadd.f32 %v2833, %v3538
      %v3540 = vpop.f32.mrf.mxu0
      %v3541 = vadd.f32 %v2833, %v3540
      %3542 = vmatmul.bf16.gmra.mxu0 %v1382
      %v3543 = vpop.f32.mrf.mxu0
      %v3544 = vadd.f32 %v2833, %v3543
      %v3545 = vpop.f32.mrf.mxu0
      %v3546 = vadd.f32 %v2833, %v3545
      %3547 = vmatmul.bf16.gmra.mxu0 %v1383
      %v3548 = vpop.f32.mrf.mxu0
      %v3549 = vadd.f32 %v2833, %v3548
      %v3550 = vpop.f32.mrf.mxu0
      %v3551 = vadd.f32 %v2833, %v3550
      %3552 = vmatmul.bf16.gmra.mxu0 %v1384
      %v3553 = vpop.f32.mrf.mxu0
      %v3554 = vadd.f32 %v2833, %v3553
      %v3555 = vpop.f32.mrf.mxu0
      %v3556 = vadd.f32 %v2833, %v3555
      %3557 = vmatmul.bf16.gmra.mxu0 %v1385
      %v3558 = vpop.f32.mrf.mxu0
      %v3559 = vadd.f32 %v2833, %v3558
      %v3560 = vpop.f32.mrf.mxu0
      %v3561 = vadd.f32 %v2833, %v3560
      %3562 = vmatmul.bf16.gmra.mxu0 %v1386
      %v3563 = vpop.f32.mrf.mxu0
      %v3564 = vadd.f32 %v2833, %v3563
      %v3565 = vpop.f32.mrf.mxu0
      %v3566 = vadd.f32 %v2833, %v3565
      %3567 = vmatmul.bf16.gmra.mxu0 %v1387
      %v3568 = vpop.f32.mrf.mxu0
      %v3569 = vadd.f32 %v2833, %v3568
      %v3570 = vpop.f32.mrf.mxu0
      %v3571 = vadd.f32 %v2833, %v3570
      %3572 = vmatmul.bf16.gmra.mxu0 %v1388
      %v3573 = vpop.f32.mrf.mxu0
      %v3574 = vadd.f32 %v2833, %v3573
      %v3575 = vpop.f32.mrf.mxu0
      %v3576 = vadd.f32 %v2833, %v3575
      %3577 = vmatmul.bf16.gmra.mxu0 %v1389
      %v3578 = vpop.f32.mrf.mxu0
      %v3579 = vadd.f32 %v2833, %v3578
      %v3580 = vpop.f32.mrf.mxu0
      %v3581 = vadd.f32 %v2833, %v3580
      %3582 = vmatmul.bf16.gmra.mxu0 %v1390
      %v3583 = vpop.f32.mrf.mxu0
      %v3584 = vadd.f32 %v2833, %v3583
      %v3585 = vpop.f32.mrf.mxu0
      %v3586 = vadd.f32 %v2833, %v3585
      %3587 = vmatmul.bf16.gmra.mxu0 %v1391
      %v3588 = vpop.f32.mrf.mxu0
      %v3589 = vadd.f32 %v2833, %v3588
      %v3590 = vpop.f32.mrf.mxu0
      %v3591 = vadd.f32 %v2833, %v3590
      %3592 = vmatmul.bf16.gmra.mxu0 %v1392
      %v3593 = vpop.f32.mrf.mxu0
      %v3594 = vadd.f32 %v2833, %v3593
      %v3595 = vpop.f32.mrf.mxu0
      %v3596 = vadd.f32 %v2833, %v3595
      %3597 = vmatmul.bf16.gmra.mxu0 %v1393
      %v3598 = vpop.f32.mrf.mxu0
      %v3599 = vadd.f32 %v2833, %v3598
      %v3600 = vpop.f32.mrf.mxu0
      %v3601 = vadd.f32 %v2833, %v3600
      %3602 = vmatmul.bf16.gmra.mxu0 %v1394
      %v3603 = vpop.f32.mrf.mxu0
      %v3604 = vadd.f32 %v2833, %v3603
      %v3605 = vpop.f32.mrf.mxu0
      %v3606 = vadd.f32 %v2833, %v3605
      %3607 = vmatmul.bf16.gmra.mxu0 %v1395
      %v3608 = vpop.f32.mrf.mxu0
      %v3609 = vadd.f32 %v2833, %v3608
      %v3610 = vpop.f32.mrf.mxu0
      %v3611 = vadd.f32 %v2833, %v3610
      %3612 = vmatmul.bf16.gmra.mxu0 %v1396
      %v3613 = vpop.f32.mrf.mxu0
      %v3614 = vadd.f32 %v2833, %v3613
      %v3615 = vpop.f32.mrf.mxu0
      %v3616 = vadd.f32 %v2833, %v3615
      %3617 = vmatmul.bf16.gmra.mxu0 %v1397
      %v3618 = vpop.f32.mrf.mxu0
      %v3619 = vadd.f32 %v2833, %v3618
      %v3620 = vpop.f32.mrf.mxu0
      %v3621 = vadd.f32 %v2833, %v3620
      %3622 = vmatmul.bf16.gmra.mxu0 %v1398
      %v3623 = vpop.f32.mrf.mxu0
      %v3624 = vadd.f32 %v2833, %v3623
      %v3625 = vpop.f32.mrf.mxu0
      %v3626 = vadd.f32 %v2833, %v3625
      %3627 = vmatmul.bf16.gmra.mxu0 %v1399
      %v3628 = vpop.f32.mrf.mxu0
      %v3629 = vadd.f32 %v2833, %v3628
      %v3630 = vpop.f32.mrf.mxu0
      %v3631 = vadd.f32 %v2833, %v3630
      %3632 = vmatmul.bf16.gmra.mxu0 %v1400
      %v3633 = vpop.f32.mrf.mxu0
      %v3634 = vadd.f32 %v2833, %v3633
      %v3635 = vpop.f32.mrf.mxu0
      %v3636 = vadd.f32 %v2833, %v3635
      %3637 = vmatmul.bf16.gmra.mxu0 %v1401
      %v3638 = vpop.f32.mrf.mxu0
      %v3639 = vadd.f32 %v2833, %v3638
      %v3640 = vpop.f32.mrf.mxu0
      %v3641 = vadd.f32 %v2833, %v3640
      %3642 = vmatmul.bf16.gmra.mxu0 %v1402
      %v3643 = vpop.f32.mrf.mxu0
      %v3644 = vadd.f32 %v2833, %v3643
      %v3645 = vpop.f32.mrf.mxu0
      %v3646 = vadd.f32 %v2833, %v3645
      %3647 = vmatmul.bf16.gmra.mxu0 %v1403
      %v3648 = vpop.f32.mrf.mxu0
      %v3649 = vadd.f32 %v2833, %v3648
      %v3650 = vpop.f32.mrf.mxu0
      %v3651 = vadd.f32 %v2833, %v3650
      %3652 = vmatmul.bf16.gmra.mxu0 %v1404
      %v3653 = vpop.f32.mrf.mxu0
      %v3654 = vadd.f32 %v2833, %v3653
      %v3655 = vpop.f32.mrf.mxu0
      %v3656 = vadd.f32 %v2833, %v3655
      %3657 = vmatmul.bf16.gmra.mxu0 %v1405
      %v3658 = vpop.f32.mrf.mxu0
      %v3659 = vadd.f32 %v2833, %v3658
      %v3660 = vpop.f32.mrf.mxu0
      %v3661 = vadd.f32 %v2833, %v3660
      %3662 = vmatmul.bf16.gmra.mxu0 %v1406
      %v3663 = vpop.f32.mrf.mxu0
      %v3664 = vadd.f32 %v2833, %v3663
      %v3665 = vpop.f32.mrf.mxu0
      %v3666 = vadd.f32 %v2833, %v3665
      %3667 = vmatmul.bf16.gmra.mxu0 %v1407
      %v3668 = vpop.f32.mrf.mxu0
      %v3669 = vadd.f32 %v2833, %v3668
      %v3670 = vpop.f32.mrf.mxu0
      %v3671 = vadd.f32 %v2833, %v3670
      %3672 = vmatmul.bf16.gmra.mxu0 %v1408
      %v3673 = vpop.f32.mrf.mxu0
      %v3674 = vadd.f32 %v2833, %v3673
      %v3675 = vpop.f32.mrf.mxu0
      %v3676 = vadd.f32 %v2833, %v3675
      %3677 = vmatmul.bf16.gmra.mxu0 %v1409
      %v3678 = vpop.f32.mrf.mxu0
      %v3679 = vadd.f32 %v2833, %v3678
      %v3680 = vpop.f32.mrf.mxu0
      %v3681 = vadd.f32 %v2833, %v3680
      %3682 = vmatmul.bf16.gmra.mxu0 %v1410
      %v3683 = vpop.f32.mrf.mxu0
      %v3684 = vadd.f32 %v2833, %v3683
      %v3685 = vpop.f32.mrf.mxu0
      %v3686 = vadd.f32 %v2833, %v3685
      %3687 = vmatmul.bf16.gmra.mxu0 %v1411
      %v3688 = vpop.f32.mrf.mxu0
      %v3689 = vadd.f32 %v2833, %v3688
      %v3690 = vpop.f32.mrf.mxu0
      %v3691 = vadd.f32 %v2833, %v3690
      %3692 = vmatmul.bf16.gmra.mxu0 %v1412
      %v3693 = vpop.f32.mrf.mxu0
      %v3694 = vadd.f32 %v2833, %v3693
      %v3695 = vpop.f32.mrf.mxu0
      %v3696 = vadd.f32 %v2833, %v3695
      %3697 = vmatmul.bf16.gmra.mxu0 %v1413
      %v3698 = vpop.f32.mrf.mxu0
      %v3699 = vadd.f32 %v2833, %v3698
      %v3700 = vpop.f32.mrf.mxu0
      %v3701 = vadd.f32 %v2833, %v3700
      %3702 = vmatmul.bf16.gmra.mxu0 %v1414
      %v3703 = vpop.f32.mrf.mxu0
      %v3704 = vadd.f32 %v2833, %v3703
      %v3705 = vpop.f32.mrf.mxu0
      %v3706 = vadd.f32 %v2833, %v3705
      %3707 = vmatmul.bf16.gmra.mxu0 %v1415
      %v3708 = vpop.f32.mrf.mxu0
      %v3709 = vadd.f32 %v2833, %v3708
      %v3710 = vpop.f32.mrf.mxu0
      %v3711 = vadd.f32 %v2833, %v3710
      %3712 = vmatmul.bf16.gmra.mxu0 %v1416
      %v3713 = vpop.f32.mrf.mxu0
      %v3714 = vadd.f32 %v2833, %v3713
      %v3715 = vpop.f32.mrf.mxu0
      %v3716 = vadd.f32 %v2833, %v3715
      %3717 = vmatmul.bf16.gmra.mxu0 %v1417
      %v3718 = vpop.f32.mrf.mxu0
      %v3719 = vadd.f32 %v2833, %v3718
      %v3720 = vpop.f32.mrf.mxu0
      %v3721 = vadd.f32 %v2833, %v3720
      %3722 = vmatmul.bf16.gmra.mxu0 %v1418
      %v3723 = vpop.f32.mrf.mxu0
      %v3724 = vadd.f32 %v2833, %v3723
      %v3725 = vpop.f32.mrf.mxu0
      %v3726 = vadd.f32 %v2833, %v3725
      %3727 = vmatmul.bf16.gmra.mxu0 %v1419
      %v3728 = vpop.f32.mrf.mxu0
      %v3729 = vadd.f32 %v2833, %v3728
      %v3730 = vpop.f32.mrf.mxu0
      %v3731 = vadd.f32 %v2833, %v3730
      %3732 = vmatmul.bf16.gmra.mxu0 %v1420
      %v3733 = vpop.f32.mrf.mxu0
      %v3734 = vadd.f32 %v2833, %v3733
      %v3735 = vpop.f32.mrf.mxu0
      %v3736 = vadd.f32 %v2833, %v3735
      %3737 = vdwg.mxu0
      %3738 = vmatpush.bf16.msra.mxu0 %v3284
      %3739 = vmatpush.bf16.msra.mxu0 %v3281
      %3740 = vmatpush.bf16.msra.mxu0 %v3278
      %3741 = vmatpush.bf16.msra.mxu0 %v3275
      %3742 = vmatpush.bf16.msra.mxu0 %v3272
      %3743 = vmatpush.bf16.msra.mxu0 %v3269
      %3744 = vmatpush.bf16.msra.mxu0 %v3266
      %3745 = vmatpush.bf16.msra.mxu0 %v3263
      %3746 = vmatmul.bf16.gmra.mxu0 %v1671
      %v3747 = vpop.f32.mrf.mxu0
      %v3748 = vadd.f32 %v3489, %v3747
      %v3749 = vpop.f32.mrf.mxu0
      %v3750 = vadd.f32 %v3491, %v3749
      %3751 = vmatmul.bf16.gmra.mxu0 %v1672
      %v3752 = vpop.f32.mrf.mxu0
      %v3753 = vadd.f32 %v3494, %v3752
      %v3754 = vpop.f32.mrf.mxu0
      %v3755 = vadd.f32 %v3496, %v3754
      %3756 = vmatmul.bf16.gmra.mxu0 %v1673
      %v3757 = vpop.f32.mrf.mxu0
      %v3758 = vadd.f32 %v3499, %v3757
      %v3759 = vpop.f32.mrf.mxu0
      %v3760 = vadd.f32 %v3501, %v3759
      %3761 = vmatmul.bf16.gmra.mxu0 %v1674
      %v3762 = vpop.f32.mrf.mxu0
      %v3763 = vadd.f32 %v3504, %v3762
      %v3764 = vpop.f32.mrf.mxu0
      %v3765 = vadd.f32 %v3506, %v3764
      %3766 = vmatmul.bf16.gmra.mxu0 %v1675
      %v3767 = vpop.f32.mrf.mxu0
      %v3768 = vadd.f32 %v3509, %v3767
      %v3769 = vpop.f32.mrf.mxu0
      %v3770 = vadd.f32 %v3511, %v3769
      %3771 = vmatmul.bf16.gmra.mxu0 %v1676
      %v3772 = vpop.f32.mrf.mxu0
      %v3773 = vadd.f32 %v3514, %v3772
      %v3774 = vpop.f32.mrf.mxu0
      %v3775 = vadd.f32 %v3516, %v3774
      %3776 = vmatmul.bf16.gmra.mxu0 %v1677
      %v3777 = vpop.f32.mrf.mxu0
      %v3778 = vadd.f32 %v3519, %v3777
      %v3779 = vpop.f32.mrf.mxu0
      %v3780 = vadd.f32 %v3521, %v3779
      %3781 = vmatmul.bf16.gmra.mxu0 %v1678
      %v3782 = vpop.f32.mrf.mxu0
      %v3783 = vadd.f32 %v3524, %v3782
      %v3784 = vpop.f32.mrf.mxu0
      %v3785 = vadd.f32 %v3526, %v3784
      %3786 = vmatmul.bf16.gmra.mxu0 %v1679
      %v3787 = vpop.f32.mrf.mxu0
      %v3788 = vadd.f32 %v3529, %v3787
      %v3789 = vpop.f32.mrf.mxu0
      %v3790 = vadd.f32 %v3531, %v3789
      %3791 = vmatmul.bf16.gmra.mxu0 %v1680
      %v3792 = vpop.f32.mrf.mxu0
      %v3793 = vadd.f32 %v3534, %v3792
      %v3794 = vpop.f32.mrf.mxu0
      %v3795 = vadd.f32 %v3536, %v3794
      %3796 = vmatmul.bf16.gmra.mxu0 %v1681
      %v3797 = vpop.f32.mrf.mxu0
      %v3798 = vadd.f32 %v3539, %v3797
      %v3799 = vpop.f32.mrf.mxu0
      %v3800 = vadd.f32 %v3541, %v3799
      %3801 = vmatmul.bf16.gmra.mxu0 %v1682
      %v3802 = vpop.f32.mrf.mxu0
      %v3803 = vadd.f32 %v3544, %v3802
      %v3804 = vpop.f32.mrf.mxu0
      %v3805 = vadd.f32 %v3546, %v3804
      %3806 = vmatmul.bf16.gmra.mxu0 %v1683
      %v3807 = vpop.f32.mrf.mxu0
      %v3808 = vadd.f32 %v3549, %v3807
      %v3809 = vpop.f32.mrf.mxu0
      %v3810 = vadd.f32 %v3551, %v3809
      %3811 = vmatmul.bf16.gmra.mxu0 %v1684
      %v3812 = vpop.f32.mrf.mxu0
      %v3813 = vadd.f32 %v3554, %v3812
      %v3814 = vpop.f32.mrf.mxu0
      %v3815 = vadd.f32 %v3556, %v3814
      %3816 = vmatmul.bf16.gmra.mxu0 %v1685
      %v3817 = vpop.f32.mrf.mxu0
      %v3818 = vadd.f32 %v3559, %v3817
      %v3819 = vpop.f32.mrf.mxu0
      %v3820 = vadd.f32 %v3561, %v3819
      %3821 = vmatmul.bf16.gmra.mxu0 %v1686
      %v3822 = vpop.f32.mrf.mxu0
      %v3823 = vadd.f32 %v3564, %v3822
      %v3824 = vpop.f32.mrf.mxu0
      %v3825 = vadd.f32 %v3566, %v3824
      %3826 = vmatmul.bf16.gmra.mxu0 %v1687
      %v3827 = vpop.f32.mrf.mxu0
      %v3828 = vadd.f32 %v3569, %v3827
      %v3829 = vpop.f32.mrf.mxu0
      %v3830 = vadd.f32 %v3571, %v3829
      %3831 = vmatmul.bf16.gmra.mxu0 %v1688
      %v3832 = vpop.f32.mrf.mxu0
      %v3833 = vadd.f32 %v3574, %v3832
      %v3834 = vpop.f32.mrf.mxu0
      %v3835 = vadd.f32 %v3576, %v3834
      %3836 = vmatmul.bf16.gmra.mxu0 %v1689
      %v3837 = vpop.f32.mrf.mxu0
      %v3838 = vadd.f32 %v3579, %v3837
      %v3839 = vpop.f32.mrf.mxu0
      %v3840 = vadd.f32 %v3581, %v3839
      %3841 = vmatmul.bf16.gmra.mxu0 %v1690
      %v3842 = vpop.f32.mrf.mxu0
      %v3843 = vadd.f32 %v3584, %v3842
      %v3844 = vpop.f32.mrf.mxu0
      %v3845 = vadd.f32 %v3586, %v3844
      %3846 = vmatmul.bf16.gmra.mxu0 %v1691
      %v3847 = vpop.f32.mrf.mxu0
      %v3848 = vadd.f32 %v3589, %v3847
      %v3849 = vpop.f32.mrf.mxu0
      %v3850 = vadd.f32 %v3591, %v3849
      %3851 = vmatmul.bf16.gmra.mxu0 %v1692
      %v3852 = vpop.f32.mrf.mxu0
      %v3853 = vadd.f32 %v3594, %v3852
      %v3854 = vpop.f32.mrf.mxu0
      %v3855 = vadd.f32 %v3596, %v3854
      %3856 = vmatmul.bf16.gmra.mxu0 %v1693
      %v3857 = vpop.f32.mrf.mxu0
      %v3858 = vadd.f32 %v3599, %v3857
      %v3859 = vpop.f32.mrf.mxu0
      %v3860 = vadd.f32 %v3601, %v3859
      %3861 = vmatmul.bf16.gmra.mxu0 %v1694
      %v3862 = vpop.f32.mrf.mxu0
      %v3863 = vadd.f32 %v3604, %v3862
      %v3864 = vpop.f32.mrf.mxu0
      %v3865 = vadd.f32 %v3606, %v3864
      %3866 = vmatmul.bf16.gmra.mxu0 %v1695
      %v3867 = vpop.f32.mrf.mxu0
      %v3868 = vadd.f32 %v3609, %v3867
      %v3869 = vpop.f32.mrf.mxu0
      %v3870 = vadd.f32 %v3611, %v3869
      %3871 = vmatmul.bf16.gmra.mxu0 %v1696
      %v3872 = vpop.f32.mrf.mxu0
      %v3873 = vadd.f32 %v3614, %v3872
      %v3874 = vpop.f32.mrf.mxu0
      %v3875 = vadd.f32 %v3616, %v3874
      %3876 = vmatmul.bf16.gmra.mxu0 %v1697
      %v3877 = vpop.f32.mrf.mxu0
      %v3878 = vadd.f32 %v3619, %v3877
      %v3879 = vpop.f32.mrf.mxu0
      %v3880 = vadd.f32 %v3621, %v3879
      %3881 = vmatmul.bf16.gmra.mxu0 %v1698
      %v3882 = vpop.f32.mrf.mxu0
      %v3883 = vadd.f32 %v3624, %v3882
      %v3884 = vpop.f32.mrf.mxu0
      %v3885 = vadd.f32 %v3626, %v3884
      %3886 = vmatmul.bf16.gmra.mxu0 %v1699
      %v3887 = vpop.f32.mrf.mxu0
      %v3888 = vadd.f32 %v3629, %v3887
      %v3889 = vpop.f32.mrf.mxu0
      %v3890 = vadd.f32 %v3631, %v3889
      %3891 = vmatmul.bf16.gmra.mxu0 %v1700
      %v3892 = vpop.f32.mrf.mxu0
      %v3893 = vadd.f32 %v3634, %v3892
      %v3894 = vpop.f32.mrf.mxu0
      %v3895 = vadd.f32 %v3636, %v3894
      %3896 = vmatmul.bf16.gmra.mxu0 %v1701
      %v3897 = vpop.f32.mrf.mxu0
      %v3898 = vadd.f32 %v3639, %v3897
      %v3899 = vpop.f32.mrf.mxu0
      %v3900 = vadd.f32 %v3641, %v3899
      %3901 = vmatmul.bf16.gmra.mxu0 %v1702
      %v3902 = vpop.f32.mrf.mxu0
      %v3903 = vadd.f32 %v3644, %v3902
      %v3904 = vpop.f32.mrf.mxu0
      %v3905 = vadd.f32 %v3646, %v3904
      %3906 = vmatmul.bf16.gmra.mxu0 %v1703
      %v3907 = vpop.f32.mrf.mxu0
      %v3908 = vadd.f32 %v3649, %v3907
      %v3909 = vpop.f32.mrf.mxu0
      %v3910 = vadd.f32 %v3651, %v3909
      %3911 = vmatmul.bf16.gmra.mxu0 %v1704
      %v3912 = vpop.f32.mrf.mxu0
      %v3913 = vadd.f32 %v3654, %v3912
      %v3914 = vpop.f32.mrf.mxu0
      %v3915 = vadd.f32 %v3656, %v3914
      %3916 = vmatmul.bf16.gmra.mxu0 %v1705
      %v3917 = vpop.f32.mrf.mxu0
      %v3918 = vadd.f32 %v3659, %v3917
      %v3919 = vpop.f32.mrf.mxu0
      %v3920 = vadd.f32 %v3661, %v3919
      %3921 = vmatmul.bf16.gmra.mxu0 %v1706
      %v3922 = vpop.f32.mrf.mxu0
      %v3923 = vadd.f32 %v3664, %v3922
      %v3924 = vpop.f32.mrf.mxu0
      %v3925 = vadd.f32 %v3666, %v3924
      %3926 = vmatmul.bf16.gmra.mxu0 %v1707
      %v3927 = vpop.f32.mrf.mxu0
      %v3928 = vadd.f32 %v3669, %v3927
      %v3929 = vpop.f32.mrf.mxu0
      %v3930 = vadd.f32 %v3671, %v3929
      %3931 = vmatmul.bf16.gmra.mxu0 %v1708
      %v3932 = vpop.f32.mrf.mxu0
      %v3933 = vadd.f32 %v3674, %v3932
      %v3934 = vpop.f32.mrf.mxu0
      %v3935 = vadd.f32 %v3676, %v3934
      %3936 = vmatmul.bf16.gmra.mxu0 %v1709
      %v3937 = vpop.f32.mrf.mxu0
      %v3938 = vadd.f32 %v3679, %v3937
      %v3939 = vpop.f32.mrf.mxu0
      %v3940 = vadd.f32 %v3681, %v3939
      %3941 = vmatmul.bf16.gmra.mxu0 %v1710
      %v3942 = vpop.f32.mrf.mxu0
      %v3943 = vadd.f32 %v3684, %v3942
      %v3944 = vpop.f32.mrf.mxu0
      %v3945 = vadd.f32 %v3686, %v3944
      %3946 = vmatmul.bf16.gmra.mxu0 %v1711
      %v3947 = vpop.f32.mrf.mxu0
      %v3948 = vadd.f32 %v3689, %v3947
      %v3949 = vpop.f32.mrf.mxu0
      %v3950 = vadd.f32 %v3691, %v3949
      %3951 = vmatmul.bf16.gmra.mxu0 %v1712
      %v3952 = vpop.f32.mrf.mxu0
      %v3953 = vadd.f32 %v3694, %v3952
      %v3954 = vpop.f32.mrf.mxu0
      %v3955 = vadd.f32 %v3696, %v3954
      %3956 = vmatmul.bf16.gmra.mxu0 %v1713
      %v3957 = vpop.f32.mrf.mxu0
      %v3958 = vadd.f32 %v3699, %v3957
      %v3959 = vpop.f32.mrf.mxu0
      %v3960 = vadd.f32 %v3701, %v3959
      %3961 = vmatmul.bf16.gmra.mxu0 %v1714
      %v3962 = vpop.f32.mrf.mxu0
      %v3963 = vadd.f32 %v3704, %v3962
      %v3964 = vpop.f32.mrf.mxu0
      %v3965 = vadd.f32 %v3706, %v3964
      %3966 = vmatmul.bf16.gmra.mxu0 %v1715
      %v3967 = vpop.f32.mrf.mxu0
      %v3968 = vadd.f32 %v3709, %v3967
      %v3969 = vpop.f32.mrf.mxu0
      %v3970 = vadd.f32 %v3711, %v3969
      %3971 = vmatmul.bf16.gmra.mxu0 %v1716
      %v3972 = vpop.f32.mrf.mxu0
      %v3973 = vadd.f32 %v3714, %v3972
      %v3974 = vpop.f32.mrf.mxu0
      %v3975 = vadd.f32 %v3716, %v3974
      %3976 = vmatmul.bf16.gmra.mxu0 %v1717
      %v3977 = vpop.f32.mrf.mxu0
      %v3978 = vadd.f32 %v3719, %v3977
      %v3979 = vpop.f32.mrf.mxu0
      %v3980 = vadd.f32 %v3721, %v3979
      %3981 = vmatmul.bf16.gmra.mxu0 %v1718
      %v3982 = vpop.f32.mrf.mxu0
      %v3983 = vadd.f32 %v3724, %v3982
      %v3984 = vpop.f32.mrf.mxu0
      %v3985 = vadd.f32 %v3726, %v3984
      %3986 = vmatmul.bf16.gmra.mxu0 %v1719
      %v3987 = vpop.f32.mrf.mxu0
      %v3988 = vadd.f32 %v3729, %v3987
      %v3989 = vpop.f32.mrf.mxu0
      %v3990 = vadd.f32 %v3731, %v3989
      %3991 = vmatmul.bf16.gmra.mxu0 %v1720
      %v3992 = vpop.f32.mrf.mxu0
      %v3993 = vadd.f32 %v3734, %v3992
      %v3994 = vpop.f32.mrf.mxu0
      %v3995 = vadd.f32 %v3736, %v3994
      %3996 = vdwg.mxu0
      %3997 = vmatpush.bf16.msra.mxu0 %v3308
      %3998 = vmatpush.bf16.msra.mxu0 %v3305
      %3999 = vmatpush.bf16.msra.mxu0 %v3302
      %4000 = vmatpush.bf16.msra.mxu0 %v3299
      %4001 = vmatpush.bf16.msra.mxu0 %v3296
      %4002 = vmatpush.bf16.msra.mxu0 %v3293
      %4003 = vmatpush.bf16.msra.mxu0 %v3290
      %4004 = vmatpush.bf16.msra.mxu0 %v3287
      %4005 = vmatmul.bf16.gmra.mxu0 %v1971
      %v4006 = vpop.f32.mrf.mxu0
      %v4007 = vadd.f32 %v3748, %v4006
      %v4008 = vpop.f32.mrf.mxu0
      %v4009 = vadd.f32 %v3750, %v4008
      %4010 = vmatmul.bf16.gmra.mxu0 %v1972
      %v4011 = vpop.f32.mrf.mxu0
      %v4012 = vadd.f32 %v3753, %v4011
      %v4013 = vpop.f32.mrf.mxu0
      %v4014 = vadd.f32 %v3755, %v4013
      %4015 = vmatmul.bf16.gmra.mxu0 %v1973
      %v4016 = vpop.f32.mrf.mxu0
      %v4017 = vadd.f32 %v3758, %v4016
      %v4018 = vpop.f32.mrf.mxu0
      %v4019 = vadd.f32 %v3760, %v4018
      %4020 = vmatmul.bf16.gmra.mxu0 %v1974
      %v4021 = vpop.f32.mrf.mxu0
      %v4022 = vadd.f32 %v3763, %v4021
      %v4023 = vpop.f32.mrf.mxu0
      %v4024 = vadd.f32 %v3765, %v4023
      %4025 = vmatmul.bf16.gmra.mxu0 %v1975
      %v4026 = vpop.f32.mrf.mxu0
      %v4027 = vadd.f32 %v3768, %v4026
      %v4028 = vpop.f32.mrf.mxu0
      %v4029 = vadd.f32 %v3770, %v4028
      %4030 = vmatmul.bf16.gmra.mxu0 %v1976
      %v4031 = vpop.f32.mrf.mxu0
      %v4032 = vadd.f32 %v3773, %v4031
      %v4033 = vpop.f32.mrf.mxu0
      %v4034 = vadd.f32 %v3775, %v4033
      %4035 = vmatmul.bf16.gmra.mxu0 %v1977
      %v4036 = vpop.f32.mrf.mxu0
      %v4037 = vadd.f32 %v3778, %v4036
      %v4038 = vpop.f32.mrf.mxu0
      %v4039 = vadd.f32 %v3780, %v4038
      %4040 = vmatmul.bf16.gmra.mxu0 %v1978
      %v4041 = vpop.f32.mrf.mxu0
      %v4042 = vadd.f32 %v3783, %v4041
      %v4043 = vpop.f32.mrf.mxu0
      %v4044 = vadd.f32 %v3785, %v4043
      %4045 = vmatmul.bf16.gmra.mxu0 %v1979
      %v4046 = vpop.f32.mrf.mxu0
      %v4047 = vadd.f32 %v3788, %v4046
      %v4048 = vpop.f32.mrf.mxu0
      %v4049 = vadd.f32 %v3790, %v4048
      %4050 = vmatmul.bf16.gmra.mxu0 %v1980
      %v4051 = vpop.f32.mrf.mxu0
      %v4052 = vadd.f32 %v3793, %v4051
      %v4053 = vpop.f32.mrf.mxu0
      %v4054 = vadd.f32 %v3795, %v4053
      %4055 = vmatmul.bf16.gmra.mxu0 %v1981
      %v4056 = vpop.f32.mrf.mxu0
      %v4057 = vadd.f32 %v3798, %v4056
      %v4058 = vpop.f32.mrf.mxu0
      %v4059 = vadd.f32 %v3800, %v4058
      %4060 = vmatmul.bf16.gmra.mxu0 %v1982
      %v4061 = vpop.f32.mrf.mxu0
      %v4062 = vadd.f32 %v3803, %v4061
      %v4063 = vpop.f32.mrf.mxu0
      %v4064 = vadd.f32 %v3805, %v4063
      %4065 = vmatmul.bf16.gmra.mxu0 %v1983
      %v4066 = vpop.f32.mrf.mxu0
      %v4067 = vadd.f32 %v3808, %v4066
      %v4068 = vpop.f32.mrf.mxu0
      %v4069 = vadd.f32 %v3810, %v4068
      %4070 = vmatmul.bf16.gmra.mxu0 %v1984
      %v4071 = vpop.f32.mrf.mxu0
      %v4072 = vadd.f32 %v3813, %v4071
      %v4073 = vpop.f32.mrf.mxu0
      %v4074 = vadd.f32 %v3815, %v4073
      %4075 = vmatmul.bf16.gmra.mxu0 %v1985
      %v4076 = vpop.f32.mrf.mxu0
      %v4077 = vadd.f32 %v3818, %v4076
      %v4078 = vpop.f32.mrf.mxu0
      %v4079 = vadd.f32 %v3820, %v4078
      %4080 = vmatmul.bf16.gmra.mxu0 %v1986
      %v4081 = vpop.f32.mrf.mxu0
      %v4082 = vadd.f32 %v3823, %v4081
      %v4083 = vpop.f32.mrf.mxu0
      %v4084 = vadd.f32 %v3825, %v4083
      %4085 = vmatmul.bf16.gmra.mxu0 %v1987
      %v4086 = vpop.f32.mrf.mxu0
      %v4087 = vadd.f32 %v3828, %v4086
      %v4088 = vpop.f32.mrf.mxu0
      %v4089 = vadd.f32 %v3830, %v4088
      %4090 = vmatmul.bf16.gmra.mxu0 %v1988
      %v4091 = vpop.f32.mrf.mxu0
      %v4092 = vadd.f32 %v3833, %v4091
      %v4093 = vpop.f32.mrf.mxu0
      %v4094 = vadd.f32 %v3835, %v4093
      %4095 = vmatmul.bf16.gmra.mxu0 %v1989
      %v4096 = vpop.f32.mrf.mxu0
      %v4097 = vadd.f32 %v3838, %v4096
      %v4098 = vpop.f32.mrf.mxu0
      %v4099 = vadd.f32 %v3840, %v4098
      %4100 = vmatmul.bf16.gmra.mxu0 %v1990
      %v4101 = vpop.f32.mrf.mxu0
      %v4102 = vadd.f32 %v3843, %v4101
      %v4103 = vpop.f32.mrf.mxu0
      %v4104 = vadd.f32 %v3845, %v4103
      %4105 = vmatmul.bf16.gmra.mxu0 %v1991
      %v4106 = vpop.f32.mrf.mxu0
      %v4107 = vadd.f32 %v3848, %v4106
      %v4108 = vpop.f32.mrf.mxu0
      %v4109 = vadd.f32 %v3850, %v4108
      %4110 = vmatmul.bf16.gmra.mxu0 %v1992
      %v4111 = vpop.f32.mrf.mxu0
      %v4112 = vadd.f32 %v3853, %v4111
      %v4113 = vpop.f32.mrf.mxu0
      %v4114 = vadd.f32 %v3855, %v4113
      %4115 = vmatmul.bf16.gmra.mxu0 %v1993
      %v4116 = vpop.f32.mrf.mxu0
      %v4117 = vadd.f32 %v3858, %v4116
      %v4118 = vpop.f32.mrf.mxu0
      %v4119 = vadd.f32 %v3860, %v4118
      %4120 = vmatmul.bf16.gmra.mxu0 %v1994
      %v4121 = vpop.f32.mrf.mxu0
      %v4122 = vadd.f32 %v3863, %v4121
      %v4123 = vpop.f32.mrf.mxu0
      %v4124 = vadd.f32 %v3865, %v4123
      %4125 = vmatmul.bf16.gmra.mxu0 %v1995
      %v4126 = vpop.f32.mrf.mxu0
      %v4127 = vadd.f32 %v3868, %v4126
      %v4128 = vpop.f32.mrf.mxu0
      %v4129 = vadd.f32 %v3870, %v4128
      %4130 = vmatmul.bf16.gmra.mxu0 %v1996
      %v4131 = vpop.f32.mrf.mxu0
      %v4132 = vadd.f32 %v3873, %v4131
      %v4133 = vpop.f32.mrf.mxu0
      %v4134 = vadd.f32 %v3875, %v4133
      %4135 = vmatmul.bf16.gmra.mxu0 %v1997
      %v4136 = vpop.f32.mrf.mxu0
      %v4137 = vadd.f32 %v3878, %v4136
      %v4138 = vpop.f32.mrf.mxu0
      %v4139 = vadd.f32 %v3880, %v4138
      %4140 = vmatmul.bf16.gmra.mxu0 %v1998
      %v4141 = vpop.f32.mrf.mxu0
      %v4142 = vadd.f32 %v3883, %v4141
      %v4143 = vpop.f32.mrf.mxu0
      %v4144 = vadd.f32 %v3885, %v4143
      %4145 = vmatmul.bf16.gmra.mxu0 %v1999
      %v4146 = vpop.f32.mrf.mxu0
      %v4147 = vadd.f32 %v3888, %v4146
      %v4148 = vpop.f32.mrf.mxu0
      %v4149 = vadd.f32 %v3890, %v4148
      %4150 = vmatmul.bf16.gmra.mxu0 %v2000
      %v4151 = vpop.f32.mrf.mxu0
      %v4152 = vadd.f32 %v3893, %v4151
      %v4153 = vpop.f32.mrf.mxu0
      %v4154 = vadd.f32 %v3895, %v4153
      %4155 = vmatmul.bf16.gmra.mxu0 %v2001
      %v4156 = vpop.f32.mrf.mxu0
      %v4157 = vadd.f32 %v3898, %v4156
      %v4158 = vpop.f32.mrf.mxu0
      %v4159 = vadd.f32 %v3900, %v4158
      %4160 = vmatmul.bf16.gmra.mxu0 %v2002
      %v4161 = vpop.f32.mrf.mxu0
      %v4162 = vadd.f32 %v3903, %v4161
      %v4163 = vpop.f32.mrf.mxu0
      %v4164 = vadd.f32 %v3905, %v4163
      %4165 = vmatmul.bf16.gmra.mxu0 %v2003
      %v4166 = vpop.f32.mrf.mxu0
      %v4167 = vadd.f32 %v3908, %v4166
      %v4168 = vpop.f32.mrf.mxu0
      %v4169 = vadd.f32 %v3910, %v4168
      %4170 = vmatmul.bf16.gmra.mxu0 %v2004
      %v4171 = vpop.f32.mrf.mxu0
      %v4172 = vadd.f32 %v3913, %v4171
      %v4173 = vpop.f32.mrf.mxu0
      %v4174 = vadd.f32 %v3915, %v4173
      %4175 = vmatmul.bf16.gmra.mxu0 %v2005
      %v4176 = vpop.f32.mrf.mxu0
      %v4177 = vadd.f32 %v3918, %v4176
      %v4178 = vpop.f32.mrf.mxu0
      %v4179 = vadd.f32 %v3920, %v4178
      %4180 = vmatmul.bf16.gmra.mxu0 %v2006
      %v4181 = vpop.f32.mrf.mxu0
      %v4182 = vadd.f32 %v3923, %v4181
      %v4183 = vpop.f32.mrf.mxu0
      %v4184 = vadd.f32 %v3925, %v4183
      %4185 = vmatmul.bf16.gmra.mxu0 %v2007
      %v4186 = vpop.f32.mrf.mxu0
      %v4187 = vadd.f32 %v3928, %v4186
      %v4188 = vpop.f32.mrf.mxu0
      %v4189 = vadd.f32 %v3930, %v4188
      %4190 = vmatmul.bf16.gmra.mxu0 %v2008
      %v4191 = vpop.f32.mrf.mxu0
      %v4192 = vadd.f32 %v3933, %v4191
      %v4193 = vpop.f32.mrf.mxu0
      %v4194 = vadd.f32 %v3935, %v4193
      %4195 = vmatmul.bf16.gmra.mxu0 %v2009
      %v4196 = vpop.f32.mrf.mxu0
      %v4197 = vadd.f32 %v3938, %v4196
      %v4198 = vpop.f32.mrf.mxu0
      %v4199 = vadd.f32 %v3940, %v4198
      %4200 = vmatmul.bf16.gmra.mxu0 %v2010
      %v4201 = vpop.f32.mrf.mxu0
      %v4202 = vadd.f32 %v3943, %v4201
      %v4203 = vpop.f32.mrf.mxu0
      %v4204 = vadd.f32 %v3945, %v4203
      %4205 = vmatmul.bf16.gmra.mxu0 %v2011
      %v4206 = vpop.f32.mrf.mxu0
      %v4207 = vadd.f32 %v3948, %v4206
      %v4208 = vpop.f32.mrf.mxu0
      %v4209 = vadd.f32 %v3950, %v4208
      %4210 = vmatmul.bf16.gmra.mxu0 %v2012
      %v4211 = vpop.f32.mrf.mxu0
      %v4212 = vadd.f32 %v3953, %v4211
      %v4213 = vpop.f32.mrf.mxu0
      %v4214 = vadd.f32 %v3955, %v4213
      %4215 = vmatmul.bf16.gmra.mxu0 %v2013
      %v4216 = vpop.f32.mrf.mxu0
      %v4217 = vadd.f32 %v3958, %v4216
      %v4218 = vpop.f32.mrf.mxu0
      %v4219 = vadd.f32 %v3960, %v4218
      %4220 = vmatmul.bf16.gmra.mxu0 %v2014
      %v4221 = vpop.f32.mrf.mxu0
      %v4222 = vadd.f32 %v3963, %v4221
      %v4223 = vpop.f32.mrf.mxu0
      %v4224 = vadd.f32 %v3965, %v4223
      %4225 = vmatmul.bf16.gmra.mxu0 %v2015
      %v4226 = vpop.f32.mrf.mxu0
      %v4227 = vadd.f32 %v3968, %v4226
      %v4228 = vpop.f32.mrf.mxu0
      %v4229 = vadd.f32 %v3970, %v4228
      %4230 = vmatmul.bf16.gmra.mxu0 %v2016
      %v4231 = vpop.f32.mrf.mxu0
      %v4232 = vadd.f32 %v3973, %v4231
      %v4233 = vpop.f32.mrf.mxu0
      %v4234 = vadd.f32 %v3975, %v4233
      %4235 = vmatmul.bf16.gmra.mxu0 %v2017
      %v4236 = vpop.f32.mrf.mxu0
      %v4237 = vadd.f32 %v3978, %v4236
      %v4238 = vpop.f32.mrf.mxu0
      %v4239 = vadd.f32 %v3980, %v4238
      %4240 = vmatmul.bf16.gmra.mxu0 %v2018
      %v4241 = vpop.f32.mrf.mxu0
      %v4242 = vadd.f32 %v3983, %v4241
      %v4243 = vpop.f32.mrf.mxu0
      %v4244 = vadd.f32 %v3985, %v4243
      %4245 = vmatmul.bf16.gmra.mxu0 %v2019
      %v4246 = vpop.f32.mrf.mxu0
      %v4247 = vadd.f32 %v3988, %v4246
      %v4248 = vpop.f32.mrf.mxu0
      %v4249 = vadd.f32 %v3990, %v4248
      %4250 = vmatmul.bf16.gmra.mxu0 %v2020
      %v4251 = vpop.f32.mrf.mxu0
      %v4252 = vadd.f32 %v3993, %v4251
      %v4253 = vpop.f32.mrf.mxu0
      %v4254 = vadd.f32 %v3995, %v4253
      %4255 = vdwg.mxu0
      %4256 = vmatpush.bf16.msra.mxu0 %v3332
      %4257 = vmatpush.bf16.msra.mxu0 %v3329
      %4258 = vmatpush.bf16.msra.mxu0 %v3326
      %4259 = vmatpush.bf16.msra.mxu0 %v3323
      %4260 = vmatpush.bf16.msra.mxu0 %v3320
      %4261 = vmatpush.bf16.msra.mxu0 %v3317
      %4262 = vmatpush.bf16.msra.mxu0 %v3314
      %4263 = vmatpush.bf16.msra.mxu0 %v3311
      %4264 = vmatmul.bf16.gmra.mxu0 %v2271
      %v4265 = vpop.f32.mrf.mxu0
      %v4266 = vadd.f32 %v4007, %v4265
      %v4267 = vpop.f32.mrf.mxu0
      %v4268 = vadd.f32 %v4009, %v4267
      %4269 = vmatmul.bf16.gmra.mxu0 %v2272
      %v4270 = vpop.f32.mrf.mxu0
      %v4271 = vadd.f32 %v4012, %v4270
      %v4272 = vpop.f32.mrf.mxu0
      %v4273 = vadd.f32 %v4014, %v4272
      %4274 = vmatmul.bf16.gmra.mxu0 %v2273
      %v4275 = vpop.f32.mrf.mxu0
      %v4276 = vadd.f32 %v4017, %v4275
      %v4277 = vpop.f32.mrf.mxu0
      %v4278 = vadd.f32 %v4019, %v4277
      %4279 = vmatmul.bf16.gmra.mxu0 %v2274
      %v4280 = vpop.f32.mrf.mxu0
      %v4281 = vadd.f32 %v4022, %v4280
      %v4282 = vpop.f32.mrf.mxu0
      %v4283 = vadd.f32 %v4024, %v4282
      %4284 = vmatmul.bf16.gmra.mxu0 %v2275
      %v4285 = vpop.f32.mrf.mxu0
      %v4286 = vadd.f32 %v4027, %v4285
      %v4287 = vpop.f32.mrf.mxu0
      %v4288 = vadd.f32 %v4029, %v4287
      %4289 = vmatmul.bf16.gmra.mxu0 %v2276
      %v4290 = vpop.f32.mrf.mxu0
      %v4291 = vadd.f32 %v4032, %v4290
      %v4292 = vpop.f32.mrf.mxu0
      %v4293 = vadd.f32 %v4034, %v4292
      %4294 = vmatmul.bf16.gmra.mxu0 %v2277
      %v4295 = vpop.f32.mrf.mxu0
      %v4296 = vadd.f32 %v4037, %v4295
      %v4297 = vpop.f32.mrf.mxu0
      %v4298 = vadd.f32 %v4039, %v4297
      %4299 = vmatmul.bf16.gmra.mxu0 %v2278
      %v4300 = vpop.f32.mrf.mxu0
      %v4301 = vadd.f32 %v4042, %v4300
      %v4302 = vpop.f32.mrf.mxu0
      %v4303 = vadd.f32 %v4044, %v4302
      %4304 = vmatmul.bf16.gmra.mxu0 %v2279
      %v4305 = vpop.f32.mrf.mxu0
      %v4306 = vadd.f32 %v4047, %v4305
      %v4307 = vpop.f32.mrf.mxu0
      %v4308 = vadd.f32 %v4049, %v4307
      %4309 = vmatmul.bf16.gmra.mxu0 %v2280
      %v4310 = vpop.f32.mrf.mxu0
      %v4311 = vadd.f32 %v4052, %v4310
      %v4312 = vpop.f32.mrf.mxu0
      %v4313 = vadd.f32 %v4054, %v4312
      %4314 = vmatmul.bf16.gmra.mxu0 %v2281
      %v4315 = vpop.f32.mrf.mxu0
      %v4316 = vadd.f32 %v4057, %v4315
      %v4317 = vpop.f32.mrf.mxu0
      %v4318 = vadd.f32 %v4059, %v4317
      %4319 = vmatmul.bf16.gmra.mxu0 %v2282
      %v4320 = vpop.f32.mrf.mxu0
      %v4321 = vadd.f32 %v4062, %v4320
      %v4322 = vpop.f32.mrf.mxu0
      %v4323 = vadd.f32 %v4064, %v4322
      %4324 = vmatmul.bf16.gmra.mxu0 %v2283
      %v4325 = vpop.f32.mrf.mxu0
      %v4326 = vadd.f32 %v4067, %v4325
      %v4327 = vpop.f32.mrf.mxu0
      %v4328 = vadd.f32 %v4069, %v4327
      %4329 = vmatmul.bf16.gmra.mxu0 %v2284
      %v4330 = vpop.f32.mrf.mxu0
      %v4331 = vadd.f32 %v4072, %v4330
      %v4332 = vpop.f32.mrf.mxu0
      %v4333 = vadd.f32 %v4074, %v4332
      %4334 = vmatmul.bf16.gmra.mxu0 %v2285
      %v4335 = vpop.f32.mrf.mxu0
      %v4336 = vadd.f32 %v4077, %v4335
      %v4337 = vpop.f32.mrf.mxu0
      %v4338 = vadd.f32 %v4079, %v4337
      %4339 = vmatmul.bf16.gmra.mxu0 %v2286
      %v4340 = vpop.f32.mrf.mxu0
      %v4341 = vadd.f32 %v4082, %v4340
      %v4342 = vpop.f32.mrf.mxu0
      %v4343 = vadd.f32 %v4084, %v4342
      %4344 = vmatmul.bf16.gmra.mxu0 %v2287
      %v4345 = vpop.f32.mrf.mxu0
      %v4346 = vadd.f32 %v4087, %v4345
      %v4347 = vpop.f32.mrf.mxu0
      %v4348 = vadd.f32 %v4089, %v4347
      %4349 = vmatmul.bf16.gmra.mxu0 %v2288
      %v4350 = vpop.f32.mrf.mxu0
      %v4351 = vadd.f32 %v4092, %v4350
      %v4352 = vpop.f32.mrf.mxu0
      %v4353 = vadd.f32 %v4094, %v4352
      %4354 = vmatmul.bf16.gmra.mxu0 %v2289
      %v4355 = vpop.f32.mrf.mxu0
      %v4356 = vadd.f32 %v4097, %v4355
      %v4357 = vpop.f32.mrf.mxu0
      %v4358 = vadd.f32 %v4099, %v4357
      %4359 = vmatmul.bf16.gmra.mxu0 %v2290
      %v4360 = vpop.f32.mrf.mxu0
      %v4361 = vadd.f32 %v4102, %v4360
      %v4362 = vpop.f32.mrf.mxu0
      %v4363 = vadd.f32 %v4104, %v4362
      %4364 = vmatmul.bf16.gmra.mxu0 %v2291
      %v4365 = vpop.f32.mrf.mxu0
      %v4366 = vadd.f32 %v4107, %v4365
      %v4367 = vpop.f32.mrf.mxu0
      %v4368 = vadd.f32 %v4109, %v4367
      %4369 = vmatmul.bf16.gmra.mxu0 %v2292
      %v4370 = vpop.f32.mrf.mxu0
      %v4371 = vadd.f32 %v4112, %v4370
      %v4372 = vpop.f32.mrf.mxu0
      %v4373 = vadd.f32 %v4114, %v4372
      %4374 = vmatmul.bf16.gmra.mxu0 %v2293
      %v4375 = vpop.f32.mrf.mxu0
      %v4376 = vadd.f32 %v4117, %v4375
      %v4377 = vpop.f32.mrf.mxu0
      %v4378 = vadd.f32 %v4119, %v4377
      %4379 = vmatmul.bf16.gmra.mxu0 %v2294
      %v4380 = vpop.f32.mrf.mxu0
      %v4381 = vadd.f32 %v4122, %v4380
      %v4382 = vpop.f32.mrf.mxu0
      %v4383 = vadd.f32 %v4124, %v4382
      %4384 = vmatmul.bf16.gmra.mxu0 %v2295
      %v4385 = vpop.f32.mrf.mxu0
      %v4386 = vadd.f32 %v4127, %v4385
      %v4387 = vpop.f32.mrf.mxu0
      %v4388 = vadd.f32 %v4129, %v4387
      %4389 = vmatmul.bf16.gmra.mxu0 %v2296
      %v4390 = vpop.f32.mrf.mxu0
      %v4391 = vadd.f32 %v4132, %v4390
      %v4392 = vpop.f32.mrf.mxu0
      %v4393 = vadd.f32 %v4134, %v4392
      %4394 = vmatmul.bf16.gmra.mxu0 %v2297
      %v4395 = vpop.f32.mrf.mxu0
      %v4396 = vadd.f32 %v4137, %v4395
      %v4397 = vpop.f32.mrf.mxu0
      %v4398 = vadd.f32 %v4139, %v4397
      %4399 = vmatmul.bf16.gmra.mxu0 %v2298
      %v4400 = vpop.f32.mrf.mxu0
      %v4401 = vadd.f32 %v4142, %v4400
      %v4402 = vpop.f32.mrf.mxu0
      %v4403 = vadd.f32 %v4144, %v4402
      %4404 = vmatmul.bf16.gmra.mxu0 %v2299
      %v4405 = vpop.f32.mrf.mxu0
      %v4406 = vadd.f32 %v4147, %v4405
      %v4407 = vpop.f32.mrf.mxu0
      %v4408 = vadd.f32 %v4149, %v4407
      %4409 = vmatmul.bf16.gmra.mxu0 %v2300
      %v4410 = vpop.f32.mrf.mxu0
      %v4411 = vadd.f32 %v4152, %v4410
      %v4412 = vpop.f32.mrf.mxu0
      %v4413 = vadd.f32 %v4154, %v4412
      %4414 = vmatmul.bf16.gmra.mxu0 %v2301
      %v4415 = vpop.f32.mrf.mxu0
      %v4416 = vadd.f32 %v4157, %v4415
      %v4417 = vpop.f32.mrf.mxu0
      %v4418 = vadd.f32 %v4159, %v4417
      %4419 = vmatmul.bf16.gmra.mxu0 %v2302
      %v4420 = vpop.f32.mrf.mxu0
      %v4421 = vadd.f32 %v4162, %v4420
      %v4422 = vpop.f32.mrf.mxu0
      %v4423 = vadd.f32 %v4164, %v4422
      %4424 = vmatmul.bf16.gmra.mxu0 %v2303
      %v4425 = vpop.f32.mrf.mxu0
      %v4426 = vadd.f32 %v4167, %v4425
      %v4427 = vpop.f32.mrf.mxu0
      %v4428 = vadd.f32 %v4169, %v4427
      %4429 = vmatmul.bf16.gmra.mxu0 %v2304
      %v4430 = vpop.f32.mrf.mxu0
      %v4431 = vadd.f32 %v4172, %v4430
      %v4432 = vpop.f32.mrf.mxu0
      %v4433 = vadd.f32 %v4174, %v4432
      %4434 = vmatmul.bf16.gmra.mxu0 %v2305
      %v4435 = vpop.f32.mrf.mxu0
      %v4436 = vadd.f32 %v4177, %v4435
      %v4437 = vpop.f32.mrf.mxu0
      %v4438 = vadd.f32 %v4179, %v4437
      %4439 = vmatmul.bf16.gmra.mxu0 %v2306
      %v4440 = vpop.f32.mrf.mxu0
      %v4441 = vadd.f32 %v4182, %v4440
      %v4442 = vpop.f32.mrf.mxu0
      %v4443 = vadd.f32 %v4184, %v4442
      %4444 = vmatmul.bf16.gmra.mxu0 %v2307
      %v4445 = vpop.f32.mrf.mxu0
      %v4446 = vadd.f32 %v4187, %v4445
      %v4447 = vpop.f32.mrf.mxu0
      %v4448 = vadd.f32 %v4189, %v4447
      %4449 = vmatmul.bf16.gmra.mxu0 %v2308
      %v4450 = vpop.f32.mrf.mxu0
      %v4451 = vadd.f32 %v4192, %v4450
      %v4452 = vpop.f32.mrf.mxu0
      %v4453 = vadd.f32 %v4194, %v4452
      %4454 = vmatmul.bf16.gmra.mxu0 %v2309
      %v4455 = vpop.f32.mrf.mxu0
      %v4456 = vadd.f32 %v4197, %v4455
      %v4457 = vpop.f32.mrf.mxu0
      %v4458 = vadd.f32 %v4199, %v4457
      %4459 = vmatmul.bf16.gmra.mxu0 %v2310
      %v4460 = vpop.f32.mrf.mxu0
      %v4461 = vadd.f32 %v4202, %v4460
      %v4462 = vpop.f32.mrf.mxu0
      %v4463 = vadd.f32 %v4204, %v4462
      %4464 = vmatmul.bf16.gmra.mxu0 %v2311
      %v4465 = vpop.f32.mrf.mxu0
      %v4466 = vadd.f32 %v4207, %v4465
      %v4467 = vpop.f32.mrf.mxu0
      %v4468 = vadd.f32 %v4209, %v4467
      %4469 = vmatmul.bf16.gmra.mxu0 %v2312
      %v4470 = vpop.f32.mrf.mxu0
      %v4471 = vadd.f32 %v4212, %v4470
      %v4472 = vpop.f32.mrf.mxu0
      %v4473 = vadd.f32 %v4214, %v4472
      %4474 = vmatmul.bf16.gmra.mxu0 %v2313
      %v4475 = vpop.f32.mrf.mxu0
      %v4476 = vadd.f32 %v4217, %v4475
      %v4477 = vpop.f32.mrf.mxu0
      %v4478 = vadd.f32 %v4219, %v4477
      %4479 = vmatmul.bf16.gmra.mxu0 %v2314
      %v4480 = vpop.f32.mrf.mxu0
      %v4481 = vadd.f32 %v4222, %v4480
      %v4482 = vpop.f32.mrf.mxu0
      %v4483 = vadd.f32 %v4224, %v4482
      %4484 = vmatmul.bf16.gmra.mxu0 %v2315
      %v4485 = vpop.f32.mrf.mxu0
      %v4486 = vadd.f32 %v4227, %v4485
      %v4487 = vpop.f32.mrf.mxu0
      %v4488 = vadd.f32 %v4229, %v4487
      %4489 = vmatmul.bf16.gmra.mxu0 %v2316
      %v4490 = vpop.f32.mrf.mxu0
      %v4491 = vadd.f32 %v4232, %v4490
      %v4492 = vpop.f32.mrf.mxu0
      %v4493 = vadd.f32 %v4234, %v4492
      %4494 = vmatmul.bf16.gmra.mxu0 %v2317
      %v4495 = vpop.f32.mrf.mxu0
      %v4496 = vadd.f32 %v4237, %v4495
      %v4497 = vpop.f32.mrf.mxu0
      %v4498 = vadd.f32 %v4239, %v4497
      %4499 = vmatmul.bf16.gmra.mxu0 %v2318
      %v4500 = vpop.f32.mrf.mxu0
      %v4501 = vadd.f32 %v4242, %v4500
      %v4502 = vpop.f32.mrf.mxu0
      %v4503 = vadd.f32 %v4244, %v4502
      %4504 = vmatmul.bf16.gmra.mxu0 %v2319
      %v4505 = vpop.f32.mrf.mxu0
      %v4506 = vadd.f32 %v4247, %v4505
      %v4507 = vpop.f32.mrf.mxu0
      %v4508 = vadd.f32 %v4249, %v4507
      %4509 = vmatmul.bf16.gmra.mxu0 %v2320
      %v4510 = vpop.f32.mrf.mxu0
      %v4511 = vadd.f32 %v4252, %v4510
      %v4512 = vpop.f32.mrf.mxu0
      %v4513 = vadd.f32 %v4254, %v4512
      %4514 = vdwg.mxu0
      %4515 = vmatpush.bf16.msra.mxu0 %v3356
      %4516 = vmatpush.bf16.msra.mxu0 %v3353
      %4517 = vmatpush.bf16.msra.mxu0 %v3350
      %4518 = vmatpush.bf16.msra.mxu0 %v3347
      %4519 = vmatpush.bf16.msra.mxu0 %v3344
      %4520 = vmatpush.bf16.msra.mxu0 %v3341
      %4521 = vmatpush.bf16.msra.mxu0 %v3338
      %4522 = vmatpush.bf16.msra.mxu0 %v3335
      %4523 = vmatmul.bf16.gmra.mxu0 %v2571
      %v4524 = vpop.f32.mrf.mxu0
      %v4525 = vadd.f32 %v4266, %v4524
      %v4526 = vpop.f32.mrf.mxu0
      %v4527 = vadd.f32 %v4268, %v4526
      %4528 = vmatmul.bf16.gmra.mxu0 %v2572
      %v4529 = vpop.f32.mrf.mxu0
      %v4530 = vadd.f32 %v4271, %v4529
      %v4531 = vpop.f32.mrf.mxu0
      %v4532 = vadd.f32 %v4273, %v4531
      %4533 = vmatmul.bf16.gmra.mxu0 %v2573
      %v4534 = vpop.f32.mrf.mxu0
      %v4535 = vadd.f32 %v4276, %v4534
      %v4536 = vpop.f32.mrf.mxu0
      %v4537 = vadd.f32 %v4278, %v4536
      %4538 = vmatmul.bf16.gmra.mxu0 %v2574
      %v4539 = vpop.f32.mrf.mxu0
      %v4540 = vadd.f32 %v4281, %v4539
      %v4541 = vpop.f32.mrf.mxu0
      %v4542 = vadd.f32 %v4283, %v4541
      %4543 = vmatmul.bf16.gmra.mxu0 %v2575
      %v4544 = vpop.f32.mrf.mxu0
      %v4545 = vadd.f32 %v4286, %v4544
      %v4546 = vpop.f32.mrf.mxu0
      %v4547 = vadd.f32 %v4288, %v4546
      %4548 = vmatmul.bf16.gmra.mxu0 %v2576
      %v4549 = vpop.f32.mrf.mxu0
      %v4550 = vadd.f32 %v4291, %v4549
      %v4551 = vpop.f32.mrf.mxu0
      %v4552 = vadd.f32 %v4293, %v4551
      %4553 = vmatmul.bf16.gmra.mxu0 %v2577
      %v4554 = vpop.f32.mrf.mxu0
      %v4555 = vadd.f32 %v4296, %v4554
      %v4556 = vpop.f32.mrf.mxu0
      %v4557 = vadd.f32 %v4298, %v4556
      %4558 = vmatmul.bf16.gmra.mxu0 %v2578
      %v4559 = vpop.f32.mrf.mxu0
      %v4560 = vadd.f32 %v4301, %v4559
      %v4561 = vpop.f32.mrf.mxu0
      %v4562 = vadd.f32 %v4303, %v4561
      %4563 = vmatmul.bf16.gmra.mxu0 %v2579
      %v4564 = vpop.f32.mrf.mxu0
      %v4565 = vadd.f32 %v4306, %v4564
      %v4566 = vpop.f32.mrf.mxu0
      %v4567 = vadd.f32 %v4308, %v4566
      %4568 = vmatmul.bf16.gmra.mxu0 %v2580
      %v4569 = vpop.f32.mrf.mxu0
      %v4570 = vadd.f32 %v4311, %v4569
      %v4571 = vpop.f32.mrf.mxu0
      %v4572 = vadd.f32 %v4313, %v4571
      %4573 = vmatmul.bf16.gmra.mxu0 %v2581
      %v4574 = vpop.f32.mrf.mxu0
      %v4575 = vadd.f32 %v4316, %v4574
      %v4576 = vpop.f32.mrf.mxu0
      %v4577 = vadd.f32 %v4318, %v4576
      %4578 = vmatmul.bf16.gmra.mxu0 %v2582
      %v4579 = vpop.f32.mrf.mxu0
      %v4580 = vadd.f32 %v4321, %v4579
      %v4581 = vpop.f32.mrf.mxu0
      %v4582 = vadd.f32 %v4323, %v4581
      %4583 = vmatmul.bf16.gmra.mxu0 %v2583
      %v4584 = vpop.f32.mrf.mxu0
      %v4585 = vadd.f32 %v4326, %v4584
      %v4586 = vpop.f32.mrf.mxu0
      %v4587 = vadd.f32 %v4328, %v4586
      %4588 = vmatmul.bf16.gmra.mxu0 %v2584
      %v4589 = vpop.f32.mrf.mxu0
      %v4590 = vadd.f32 %v4331, %v4589
      %v4591 = vpop.f32.mrf.mxu0
      %v4592 = vadd.f32 %v4333, %v4591
      %4593 = vmatmul.bf16.gmra.mxu0 %v2585
      %v4594 = vpop.f32.mrf.mxu0
      %v4595 = vadd.f32 %v4336, %v4594
      %v4596 = vpop.f32.mrf.mxu0
      %v4597 = vadd.f32 %v4338, %v4596
      %4598 = vmatmul.bf16.gmra.mxu0 %v2586
      %v4599 = vpop.f32.mrf.mxu0
      %v4600 = vadd.f32 %v4341, %v4599
      %v4601 = vpop.f32.mrf.mxu0
      %v4602 = vadd.f32 %v4343, %v4601
      %4603 = vmatmul.bf16.gmra.mxu0 %v2587
      %v4604 = vpop.f32.mrf.mxu0
      %v4605 = vadd.f32 %v4346, %v4604
      %v4606 = vpop.f32.mrf.mxu0
      %v4607 = vadd.f32 %v4348, %v4606
      %4608 = vmatmul.bf16.gmra.mxu0 %v2588
      %v4609 = vpop.f32.mrf.mxu0
      %v4610 = vadd.f32 %v4351, %v4609
      %v4611 = vpop.f32.mrf.mxu0
      %v4612 = vadd.f32 %v4353, %v4611
      %4613 = vmatmul.bf16.gmra.mxu0 %v2589
      %v4614 = vpop.f32.mrf.mxu0
      %v4615 = vadd.f32 %v4356, %v4614
      %v4616 = vpop.f32.mrf.mxu0
      %v4617 = vadd.f32 %v4358, %v4616
      %4618 = vmatmul.bf16.gmra.mxu0 %v2590
      %v4619 = vpop.f32.mrf.mxu0
      %v4620 = vadd.f32 %v4361, %v4619
      %v4621 = vpop.f32.mrf.mxu0
      %v4622 = vadd.f32 %v4363, %v4621
      %4623 = vmatmul.bf16.gmra.mxu0 %v2591
      %v4624 = vpop.f32.mrf.mxu0
      %v4625 = vadd.f32 %v4366, %v4624
      %v4626 = vpop.f32.mrf.mxu0
      %v4627 = vadd.f32 %v4368, %v4626
      %4628 = vmatmul.bf16.gmra.mxu0 %v2592
      %v4629 = vpop.f32.mrf.mxu0
      %v4630 = vadd.f32 %v4371, %v4629
      %v4631 = vpop.f32.mrf.mxu0
      %v4632 = vadd.f32 %v4373, %v4631
      %4633 = vmatmul.bf16.gmra.mxu0 %v2593
      %v4634 = vpop.f32.mrf.mxu0
      %v4635 = vadd.f32 %v4376, %v4634
      %v4636 = vpop.f32.mrf.mxu0
      %v4637 = vadd.f32 %v4378, %v4636
      %4638 = vmatmul.bf16.gmra.mxu0 %v2594
      %v4639 = vpop.f32.mrf.mxu0
      %v4640 = vadd.f32 %v4381, %v4639
      %v4641 = vpop.f32.mrf.mxu0
      %v4642 = vadd.f32 %v4383, %v4641
      %4643 = vmatmul.bf16.gmra.mxu0 %v2595
      %v4644 = vpop.f32.mrf.mxu0
      %v4645 = vadd.f32 %v4386, %v4644
      %v4646 = vpop.f32.mrf.mxu0
      %v4647 = vadd.f32 %v4388, %v4646
      %4648 = vmatmul.bf16.gmra.mxu0 %v2596
      %v4649 = vpop.f32.mrf.mxu0
      %v4650 = vadd.f32 %v4391, %v4649
      %v4651 = vpop.f32.mrf.mxu0
      %v4652 = vadd.f32 %v4393, %v4651
      %4653 = vmatmul.bf16.gmra.mxu0 %v2597
      %v4654 = vpop.f32.mrf.mxu0
      %v4655 = vadd.f32 %v4396, %v4654
      %v4656 = vpop.f32.mrf.mxu0
      %v4657 = vadd.f32 %v4398, %v4656
      %4658 = vmatmul.bf16.gmra.mxu0 %v2598
      %v4659 = vpop.f32.mrf.mxu0
      %v4660 = vadd.f32 %v4401, %v4659
      %v4661 = vpop.f32.mrf.mxu0
      %v4662 = vadd.f32 %v4403, %v4661
      %4663 = vmatmul.bf16.gmra.mxu0 %v2599
      %v4664 = vpop.f32.mrf.mxu0
      %v4665 = vadd.f32 %v4406, %v4664
      %v4666 = vpop.f32.mrf.mxu0
      %v4667 = vadd.f32 %v4408, %v4666
      %4668 = vmatmul.bf16.gmra.mxu0 %v2600
      %v4669 = vpop.f32.mrf.mxu0
      %v4670 = vadd.f32 %v4411, %v4669
      %v4671 = vpop.f32.mrf.mxu0
      %v4672 = vadd.f32 %v4413, %v4671
      %4673 = vmatmul.bf16.gmra.mxu0 %v2601
      %v4674 = vpop.f32.mrf.mxu0
      %v4675 = vadd.f32 %v4416, %v4674
      %v4676 = vpop.f32.mrf.mxu0
      %v4677 = vadd.f32 %v4418, %v4676
      %4678 = vmatmul.bf16.gmra.mxu0 %v2602
      %v4679 = vpop.f32.mrf.mxu0
      %v4680 = vadd.f32 %v4421, %v4679
      %v4681 = vpop.f32.mrf.mxu0
      %v4682 = vadd.f32 %v4423, %v4681
      %4683 = vmatmul.bf16.gmra.mxu0 %v2603
      %v4684 = vpop.f32.mrf.mxu0
      %v4685 = vadd.f32 %v4426, %v4684
      %v4686 = vpop.f32.mrf.mxu0
      %v4687 = vadd.f32 %v4428, %v4686
      %4688 = vmatmul.bf16.gmra.mxu0 %v2604
      %v4689 = vpop.f32.mrf.mxu0
      %v4690 = vadd.f32 %v4431, %v4689
      %v4691 = vpop.f32.mrf.mxu0
      %v4692 = vadd.f32 %v4433, %v4691
      %4693 = vmatmul.bf16.gmra.mxu0 %v2605
      %v4694 = vpop.f32.mrf.mxu0
      %v4695 = vadd.f32 %v4436, %v4694
      %v4696 = vpop.f32.mrf.mxu0
      %v4697 = vadd.f32 %v4438, %v4696
      %4698 = vmatmul.bf16.gmra.mxu0 %v2606
      %v4699 = vpop.f32.mrf.mxu0
      %v4700 = vadd.f32 %v4441, %v4699
      %v4701 = vpop.f32.mrf.mxu0
      %v4702 = vadd.f32 %v4443, %v4701
      %4703 = vmatmul.bf16.gmra.mxu0 %v2607
      %v4704 = vpop.f32.mrf.mxu0
      %v4705 = vadd.f32 %v4446, %v4704
      %v4706 = vpop.f32.mrf.mxu0
      %v4707 = vadd.f32 %v4448, %v4706
      %4708 = vmatmul.bf16.gmra.mxu0 %v2608
      %v4709 = vpop.f32.mrf.mxu0
      %v4710 = vadd.f32 %v4451, %v4709
      %v4711 = vpop.f32.mrf.mxu0
      %v4712 = vadd.f32 %v4453, %v4711
      %4713 = vmatmul.bf16.gmra.mxu0 %v2609
      %v4714 = vpop.f32.mrf.mxu0
      %v4715 = vadd.f32 %v4456, %v4714
      %v4716 = vpop.f32.mrf.mxu0
      %v4717 = vadd.f32 %v4458, %v4716
      %4718 = vmatmul.bf16.gmra.mxu0 %v2610
      %v4719 = vpop.f32.mrf.mxu0
      %v4720 = vadd.f32 %v4461, %v4719
      %v4721 = vpop.f32.mrf.mxu0
      %v4722 = vadd.f32 %v4463, %v4721
      %4723 = vmatmul.bf16.gmra.mxu0 %v2611
      %v4724 = vpop.f32.mrf.mxu0
      %v4725 = vadd.f32 %v4466, %v4724
      %v4726 = vpop.f32.mrf.mxu0
      %v4727 = vadd.f32 %v4468, %v4726
      %4728 = vmatmul.bf16.gmra.mxu0 %v2612
      %v4729 = vpop.f32.mrf.mxu0
      %v4730 = vadd.f32 %v4471, %v4729
      %v4731 = vpop.f32.mrf.mxu0
      %v4732 = vadd.f32 %v4473, %v4731
      %4733 = vmatmul.bf16.gmra.mxu0 %v2613
      %v4734 = vpop.f32.mrf.mxu0
      %v4735 = vadd.f32 %v4476, %v4734
      %v4736 = vpop.f32.mrf.mxu0
      %v4737 = vadd.f32 %v4478, %v4736
      %4738 = vmatmul.bf16.gmra.mxu0 %v2614
      %v4739 = vpop.f32.mrf.mxu0
      %v4740 = vadd.f32 %v4481, %v4739
      %v4741 = vpop.f32.mrf.mxu0
      %v4742 = vadd.f32 %v4483, %v4741
      %4743 = vmatmul.bf16.gmra.mxu0 %v2615
      %v4744 = vpop.f32.mrf.mxu0
      %v4745 = vadd.f32 %v4486, %v4744
      %v4746 = vpop.f32.mrf.mxu0
      %v4747 = vadd.f32 %v4488, %v4746
      %4748 = vmatmul.bf16.gmra.mxu0 %v2616
      %v4749 = vpop.f32.mrf.mxu0
      %v4750 = vadd.f32 %v4491, %v4749
      %v4751 = vpop.f32.mrf.mxu0
      %v4752 = vadd.f32 %v4493, %v4751
      %4753 = vmatmul.bf16.gmra.mxu0 %v2617
      %v4754 = vpop.f32.mrf.mxu0
      %v4755 = vadd.f32 %v4496, %v4754
      %v4756 = vpop.f32.mrf.mxu0
      %v4757 = vadd.f32 %v4498, %v4756
      %4758 = vmatmul.bf16.gmra.mxu0 %v2618
      %v4759 = vpop.f32.mrf.mxu0
      %v4760 = vadd.f32 %v4501, %v4759
      %v4761 = vpop.f32.mrf.mxu0
      %v4762 = vadd.f32 %v4503, %v4761
      %4763 = vmatmul.bf16.gmra.mxu0 %v2619
      %v4764 = vpop.f32.mrf.mxu0
      %v4765 = vadd.f32 %v4506, %v4764
      %v4766 = vpop.f32.mrf.mxu0
      %v4767 = vadd.f32 %v4508, %v4766
      %4768 = vmatmul.bf16.gmra.mxu0 %v2620
      %v4769 = vpop.f32.mrf.mxu0
      %v4770 = vadd.f32 %v4511, %v4769
      %v4771 = vpop.f32.mrf.mxu0
      %v4772 = vadd.f32 %v4513, %v4771
      %4773 = vdwg.mxu0
      %4774 = vmatpush.bf16.msra.mxu0 %v3261
      %4775 = vmatpush.bf16.msra.mxu0 %v3258
      %4776 = vmatpush.bf16.msra.mxu0 %v3255
      %4777 = vmatpush.bf16.msra.mxu0 %v3252
      %4778 = vmatpush.bf16.msra.mxu0 %v3249
      %4779 = vmatpush.bf16.msra.mxu0 %v3246
      %4780 = vmatpush.bf16.msra.mxu0 %v3243
      %4781 = vmatpush.bf16.msra.mxu0 %v3240
      %4782 = vmatmul.bf16.gmra.mxu0 %v1371
      %v4783 = vpop.f32.mrf.mxu0
      %v4784 = vadd.f32 %v2834, %v4783
      %v4785 = vpop.f32.mrf.mxu0
      %v4786 = vadd.f32 %v2834, %v4785
      %4787 = vmatmul.bf16.gmra.mxu0 %v1372
      %v4788 = vpop.f32.mrf.mxu0
      %v4789 = vadd.f32 %v2834, %v4788
      %v4790 = vpop.f32.mrf.mxu0
      %v4791 = vadd.f32 %v2834, %v4790
      %4792 = vmatmul.bf16.gmra.mxu0 %v1373
      %v4793 = vpop.f32.mrf.mxu0
      %v4794 = vadd.f32 %v2834, %v4793
      %v4795 = vpop.f32.mrf.mxu0
      %v4796 = vadd.f32 %v2834, %v4795
      %4797 = vmatmul.bf16.gmra.mxu0 %v1374
      %v4798 = vpop.f32.mrf.mxu0
      %v4799 = vadd.f32 %v2834, %v4798
      %v4800 = vpop.f32.mrf.mxu0
      %v4801 = vadd.f32 %v2834, %v4800
      %4802 = vmatmul.bf16.gmra.mxu0 %v1375
      %v4803 = vpop.f32.mrf.mxu0
      %v4804 = vadd.f32 %v2834, %v4803
      %v4805 = vpop.f32.mrf.mxu0
      %v4806 = vadd.f32 %v2834, %v4805
      %4807 = vmatmul.bf16.gmra.mxu0 %v1376
      %v4808 = vpop.f32.mrf.mxu0
      %v4809 = vadd.f32 %v2834, %v4808
      %v4810 = vpop.f32.mrf.mxu0
      %v4811 = vadd.f32 %v2834, %v4810
      %4812 = vmatmul.bf16.gmra.mxu0 %v1377
      %v4813 = vpop.f32.mrf.mxu0
      %v4814 = vadd.f32 %v2834, %v4813
      %v4815 = vpop.f32.mrf.mxu0
      %v4816 = vadd.f32 %v2834, %v4815
      %4817 = vmatmul.bf16.gmra.mxu0 %v1378
      %v4818 = vpop.f32.mrf.mxu0
      %v4819 = vadd.f32 %v2834, %v4818
      %v4820 = vpop.f32.mrf.mxu0
      %v4821 = vadd.f32 %v2834, %v4820
      %4822 = vmatmul.bf16.gmra.mxu0 %v1379
      %v4823 = vpop.f32.mrf.mxu0
      %v4824 = vadd.f32 %v2834, %v4823
      %v4825 = vpop.f32.mrf.mxu0
      %v4826 = vadd.f32 %v2834, %v4825
      %4827 = vmatmul.bf16.gmra.mxu0 %v1380
      %v4828 = vpop.f32.mrf.mxu0
      %v4829 = vadd.f32 %v2834, %v4828
      %v4830 = vpop.f32.mrf.mxu0
      %v4831 = vadd.f32 %v2834, %v4830
      %4832 = vmatmul.bf16.gmra.mxu0 %v1381
      %v4833 = vpop.f32.mrf.mxu0
      %v4834 = vadd.f32 %v2834, %v4833
      %v4835 = vpop.f32.mrf.mxu0
      %v4836 = vadd.f32 %v2834, %v4835
      %4837 = vmatmul.bf16.gmra.mxu0 %v1382
      %v4838 = vpop.f32.mrf.mxu0
      %v4839 = vadd.f32 %v2834, %v4838
      %v4840 = vpop.f32.mrf.mxu0
      %v4841 = vadd.f32 %v2834, %v4840
      %4842 = vmatmul.bf16.gmra.mxu0 %v1383
      %v4843 = vpop.f32.mrf.mxu0
      %v4844 = vadd.f32 %v2834, %v4843
      %v4845 = vpop.f32.mrf.mxu0
      %v4846 = vadd.f32 %v2834, %v4845
      %4847 = vmatmul.bf16.gmra.mxu0 %v1384
      %v4848 = vpop.f32.mrf.mxu0
      %v4849 = vadd.f32 %v2834, %v4848
      %v4850 = vpop.f32.mrf.mxu0
      %v4851 = vadd.f32 %v2834, %v4850
      %4852 = vmatmul.bf16.gmra.mxu0 %v1385
      %v4853 = vpop.f32.mrf.mxu0
      %v4854 = vadd.f32 %v2834, %v4853
      %v4855 = vpop.f32.mrf.mxu0
      %v4856 = vadd.f32 %v2834, %v4855
      %4857 = vmatmul.bf16.gmra.mxu0 %v1386
      %v4858 = vpop.f32.mrf.mxu0
      %v4859 = vadd.f32 %v2834, %v4858
      %v4860 = vpop.f32.mrf.mxu0
      %v4861 = vadd.f32 %v2834, %v4860
      %4862 = vmatmul.bf16.gmra.mxu0 %v1387
      %v4863 = vpop.f32.mrf.mxu0
      %v4864 = vadd.f32 %v2834, %v4863
      %v4865 = vpop.f32.mrf.mxu0
      %v4866 = vadd.f32 %v2834, %v4865
      %4867 = vmatmul.bf16.gmra.mxu0 %v1388
      %v4868 = vpop.f32.mrf.mxu0
      %v4869 = vadd.f32 %v2834, %v4868
      %v4870 = vpop.f32.mrf.mxu0
      %v4871 = vadd.f32 %v2834, %v4870
      %4872 = vmatmul.bf16.gmra.mxu0 %v1389
      %v4873 = vpop.f32.mrf.mxu0
      %v4874 = vadd.f32 %v2834, %v4873
      %v4875 = vpop.f32.mrf.mxu0
      %v4876 = vadd.f32 %v2834, %v4875
      %4877 = vmatmul.bf16.gmra.mxu0 %v1390
      %v4878 = vpop.f32.mrf.mxu0
      %v4879 = vadd.f32 %v2834, %v4878
      %v4880 = vpop.f32.mrf.mxu0
      %v4881 = vadd.f32 %v2834, %v4880
      %4882 = vmatmul.bf16.gmra.mxu0 %v1391
      %v4883 = vpop.f32.mrf.mxu0
      %v4884 = vadd.f32 %v2834, %v4883
      %v4885 = vpop.f32.mrf.mxu0
      %v4886 = vadd.f32 %v2834, %v4885
      %4887 = vmatmul.bf16.gmra.mxu0 %v1392
      %v4888 = vpop.f32.mrf.mxu0
      %v4889 = vadd.f32 %v2834, %v4888
      %v4890 = vpop.f32.mrf.mxu0
      %v4891 = vadd.f32 %v2834, %v4890
      %4892 = vmatmul.bf16.gmra.mxu0 %v1393
      %v4893 = vpop.f32.mrf.mxu0
      %v4894 = vadd.f32 %v2834, %v4893
      %v4895 = vpop.f32.mrf.mxu0
      %v4896 = vadd.f32 %v2834, %v4895
      %4897 = vmatmul.bf16.gmra.mxu0 %v1394
      %v4898 = vpop.f32.mrf.mxu0
      %v4899 = vadd.f32 %v2834, %v4898
      %v4900 = vpop.f32.mrf.mxu0
      %v4901 = vadd.f32 %v2834, %v4900
      %4902 = vmatmul.bf16.gmra.mxu0 %v1395
      %v4903 = vpop.f32.mrf.mxu0
      %v4904 = vadd.f32 %v2834, %v4903
      %v4905 = vpop.f32.mrf.mxu0
      %v4906 = vadd.f32 %v2834, %v4905
      %4907 = vmatmul.bf16.gmra.mxu0 %v1396
      %v4908 = vpop.f32.mrf.mxu0
      %v4909 = vadd.f32 %v2834, %v4908
      %v4910 = vpop.f32.mrf.mxu0
      %v4911 = vadd.f32 %v2834, %v4910
      %4912 = vmatmul.bf16.gmra.mxu0 %v1397
      %v4913 = vpop.f32.mrf.mxu0
      %v4914 = vadd.f32 %v2834, %v4913
      %v4915 = vpop.f32.mrf.mxu0
      %v4916 = vadd.f32 %v2834, %v4915
      %4917 = vmatmul.bf16.gmra.mxu0 %v1398
      %v4918 = vpop.f32.mrf.mxu0
      %v4919 = vadd.f32 %v2834, %v4918
      %v4920 = vpop.f32.mrf.mxu0
      %v4921 = vadd.f32 %v2834, %v4920
      %4922 = vmatmul.bf16.gmra.mxu0 %v1399
      %v4923 = vpop.f32.mrf.mxu0
      %v4924 = vadd.f32 %v2834, %v4923
      %v4925 = vpop.f32.mrf.mxu0
      %v4926 = vadd.f32 %v2834, %v4925
      %4927 = vmatmul.bf16.gmra.mxu0 %v1400
      %v4928 = vpop.f32.mrf.mxu0
      %v4929 = vadd.f32 %v2834, %v4928
      %v4930 = vpop.f32.mrf.mxu0
      %v4931 = vadd.f32 %v2834, %v4930
      %4932 = vmatmul.bf16.gmra.mxu0 %v1401
      %v4933 = vpop.f32.mrf.mxu0
      %v4934 = vadd.f32 %v2834, %v4933
      %v4935 = vpop.f32.mrf.mxu0
      %v4936 = vadd.f32 %v2834, %v4935
      %4937 = vmatmul.bf16.gmra.mxu0 %v1402
      %v4938 = vpop.f32.mrf.mxu0
      %v4939 = vadd.f32 %v2834, %v4938
      %v4940 = vpop.f32.mrf.mxu0
      %v4941 = vadd.f32 %v2834, %v4940
      %4942 = vmatmul.bf16.gmra.mxu0 %v1403
      %v4943 = vpop.f32.mrf.mxu0
      %v4944 = vadd.f32 %v2834, %v4943
      %v4945 = vpop.f32.mrf.mxu0
      %v4946 = vadd.f32 %v2834, %v4945
      %4947 = vmatmul.bf16.gmra.mxu0 %v1404
      %v4948 = vpop.f32.mrf.mxu0
      %v4949 = vadd.f32 %v2834, %v4948
      %v4950 = vpop.f32.mrf.mxu0
      %v4951 = vadd.f32 %v2834, %v4950
      %4952 = vmatmul.bf16.gmra.mxu0 %v1405
      %v4953 = vpop.f32.mrf.mxu0
      %v4954 = vadd.f32 %v2834, %v4953
      %v4955 = vpop.f32.mrf.mxu0
      %v4956 = vadd.f32 %v2834, %v4955
      %4957 = vmatmul.bf16.gmra.mxu0 %v1406
      %v4958 = vpop.f32.mrf.mxu0
      %v4959 = vadd.f32 %v2834, %v4958
      %v4960 = vpop.f32.mrf.mxu0
      %v4961 = vadd.f32 %v2834, %v4960
      %4962 = vmatmul.bf16.gmra.mxu0 %v1407
      %v4963 = vpop.f32.mrf.mxu0
      %v4964 = vadd.f32 %v2834, %v4963
      %v4965 = vpop.f32.mrf.mxu0
      %v4966 = vadd.f32 %v2834, %v4965
      %4967 = vmatmul.bf16.gmra.mxu0 %v1408
      %v4968 = vpop.f32.mrf.mxu0
      %v4969 = vadd.f32 %v2834, %v4968
      %v4970 = vpop.f32.mrf.mxu0
      %v4971 = vadd.f32 %v2834, %v4970
      %4972 = vmatmul.bf16.gmra.mxu0 %v1409
      %v4973 = vpop.f32.mrf.mxu0
      %v4974 = vadd.f32 %v2834, %v4973
      %v4975 = vpop.f32.mrf.mxu0
      %v4976 = vadd.f32 %v2834, %v4975
      %4977 = vmatmul.bf16.gmra.mxu0 %v1410
      %v4978 = vpop.f32.mrf.mxu0
      %v4979 = vadd.f32 %v2834, %v4978
      %v4980 = vpop.f32.mrf.mxu0
      %v4981 = vadd.f32 %v2834, %v4980
      %4982 = vmatmul.bf16.gmra.mxu0 %v1411
      %v4983 = vpop.f32.mrf.mxu0
      %v4984 = vadd.f32 %v2834, %v4983
      %v4985 = vpop.f32.mrf.mxu0
      %v4986 = vadd.f32 %v2834, %v4985
      %4987 = vmatmul.bf16.gmra.mxu0 %v1412
      %v4988 = vpop.f32.mrf.mxu0
      %v4989 = vadd.f32 %v2834, %v4988
      %v4990 = vpop.f32.mrf.mxu0
      %v4991 = vadd.f32 %v2834, %v4990
      %4992 = vmatmul.bf16.gmra.mxu0 %v1413
      %v4993 = vpop.f32.mrf.mxu0
      %v4994 = vadd.f32 %v2834, %v4993
      %v4995 = vpop.f32.mrf.mxu0
      %v4996 = vadd.f32 %v2834, %v4995
      %4997 = vmatmul.bf16.gmra.mxu0 %v1414
      %v4998 = vpop.f32.mrf.mxu0
      %v4999 = vadd.f32 %v2834, %v4998
      %v5000 = vpop.f32.mrf.mxu0
      %v5001 = vadd.f32 %v2834, %v5000
      %5002 = vmatmul.bf16.gmra.mxu0 %v1415
      %v5003 = vpop.f32.mrf.mxu0
      %v5004 = vadd.f32 %v2834, %v5003
      %v5005 = vpop.f32.mrf.mxu0
      %v5006 = vadd.f32 %v2834, %v5005
      %5007 = vmatmul.bf16.gmra.mxu0 %v1416
      %v5008 = vpop.f32.mrf.mxu0
      %v5009 = vadd.f32 %v2834, %v5008
      %v5010 = vpop.f32.mrf.mxu0
      %v5011 = vadd.f32 %v2834, %v5010
      %5012 = vmatmul.bf16.gmra.mxu0 %v1417
      %v5013 = vpop.f32.mrf.mxu0
      %v5014 = vadd.f32 %v2834, %v5013
      %v5015 = vpop.f32.mrf.mxu0
      %v5016 = vadd.f32 %v2834, %v5015
      %5017 = vmatmul.bf16.gmra.mxu0 %v1418
      %v5018 = vpop.f32.mrf.mxu0
      %v5019 = vadd.f32 %v2834, %v5018
      %v5020 = vpop.f32.mrf.mxu0
      %v5021 = vadd.f32 %v2834, %v5020
      %5022 = vmatmul.bf16.gmra.mxu0 %v1419
      %v5023 = vpop.f32.mrf.mxu0
      %v5024 = vadd.f32 %v2834, %v5023
      %v5025 = vpop.f32.mrf.mxu0
      %v5026 = vadd.f32 %v2834, %v5025
      %5027 = vmatmul.bf16.gmra.mxu0 %v1420
      %v5028 = vpop.f32.mrf.mxu0
      %v5029 = vadd.f32 %v2834, %v5028
      %v5030 = vpop.f32.mrf.mxu0
      %v5031 = vadd.f32 %v2834, %v5030
      %5032 = vdwg.mxu0
      %5033 = vmatpush.bf16.msra.mxu0 %v3285
      %5034 = vmatpush.bf16.msra.mxu0 %v3282
      %5035 = vmatpush.bf16.msra.mxu0 %v3279
      %5036 = vmatpush.bf16.msra.mxu0 %v3276
      %5037 = vmatpush.bf16.msra.mxu0 %v3273
      %5038 = vmatpush.bf16.msra.mxu0 %v3270
      %5039 = vmatpush.bf16.msra.mxu0 %v3267
      %5040 = vmatpush.bf16.msra.mxu0 %v3264
      %5041 = vmatmul.bf16.gmra.mxu0 %v1671
      %v5042 = vpop.f32.mrf.mxu0
      %v5043 = vadd.f32 %v4784, %v5042
      %v5044 = vpop.f32.mrf.mxu0
      %v5045 = vadd.f32 %v4786, %v5044
      %5046 = vmatmul.bf16.gmra.mxu0 %v1672
      %v5047 = vpop.f32.mrf.mxu0
      %v5048 = vadd.f32 %v4789, %v5047
      %v5049 = vpop.f32.mrf.mxu0
      %v5050 = vadd.f32 %v4791, %v5049
      %5051 = vmatmul.bf16.gmra.mxu0 %v1673
      %v5052 = vpop.f32.mrf.mxu0
      %v5053 = vadd.f32 %v4794, %v5052
      %v5054 = vpop.f32.mrf.mxu0
      %v5055 = vadd.f32 %v4796, %v5054
      %5056 = vmatmul.bf16.gmra.mxu0 %v1674
      %v5057 = vpop.f32.mrf.mxu0
      %v5058 = vadd.f32 %v4799, %v5057
      %v5059 = vpop.f32.mrf.mxu0
      %v5060 = vadd.f32 %v4801, %v5059
      %5061 = vmatmul.bf16.gmra.mxu0 %v1675
      %v5062 = vpop.f32.mrf.mxu0
      %v5063 = vadd.f32 %v4804, %v5062
      %v5064 = vpop.f32.mrf.mxu0
      %v5065 = vadd.f32 %v4806, %v5064
      %5066 = vmatmul.bf16.gmra.mxu0 %v1676
      %v5067 = vpop.f32.mrf.mxu0
      %v5068 = vadd.f32 %v4809, %v5067
      %v5069 = vpop.f32.mrf.mxu0
      %v5070 = vadd.f32 %v4811, %v5069
      %5071 = vmatmul.bf16.gmra.mxu0 %v1677
      %v5072 = vpop.f32.mrf.mxu0
      %v5073 = vadd.f32 %v4814, %v5072
      %v5074 = vpop.f32.mrf.mxu0
      %v5075 = vadd.f32 %v4816, %v5074
      %5076 = vmatmul.bf16.gmra.mxu0 %v1678
      %v5077 = vpop.f32.mrf.mxu0
      %v5078 = vadd.f32 %v4819, %v5077
      %v5079 = vpop.f32.mrf.mxu0
      %v5080 = vadd.f32 %v4821, %v5079
      %5081 = vmatmul.bf16.gmra.mxu0 %v1679
      %v5082 = vpop.f32.mrf.mxu0
      %v5083 = vadd.f32 %v4824, %v5082
      %v5084 = vpop.f32.mrf.mxu0
      %v5085 = vadd.f32 %v4826, %v5084
      %5086 = vmatmul.bf16.gmra.mxu0 %v1680
      %v5087 = vpop.f32.mrf.mxu0
      %v5088 = vadd.f32 %v4829, %v5087
      %v5089 = vpop.f32.mrf.mxu0
      %v5090 = vadd.f32 %v4831, %v5089
      %5091 = vmatmul.bf16.gmra.mxu0 %v1681
      %v5092 = vpop.f32.mrf.mxu0
      %v5093 = vadd.f32 %v4834, %v5092
      %v5094 = vpop.f32.mrf.mxu0
      %v5095 = vadd.f32 %v4836, %v5094
      %5096 = vmatmul.bf16.gmra.mxu0 %v1682
      %v5097 = vpop.f32.mrf.mxu0
      %v5098 = vadd.f32 %v4839, %v5097
      %v5099 = vpop.f32.mrf.mxu0
      %v5100 = vadd.f32 %v4841, %v5099
      %5101 = vmatmul.bf16.gmra.mxu0 %v1683
      %v5102 = vpop.f32.mrf.mxu0
      %v5103 = vadd.f32 %v4844, %v5102
      %v5104 = vpop.f32.mrf.mxu0
      %v5105 = vadd.f32 %v4846, %v5104
      %5106 = vmatmul.bf16.gmra.mxu0 %v1684
      %v5107 = vpop.f32.mrf.mxu0
      %v5108 = vadd.f32 %v4849, %v5107
      %v5109 = vpop.f32.mrf.mxu0
      %v5110 = vadd.f32 %v4851, %v5109
      %5111 = vmatmul.bf16.gmra.mxu0 %v1685
      %v5112 = vpop.f32.mrf.mxu0
      %v5113 = vadd.f32 %v4854, %v5112
      %v5114 = vpop.f32.mrf.mxu0
      %v5115 = vadd.f32 %v4856, %v5114
      %5116 = vmatmul.bf16.gmra.mxu0 %v1686
      %v5117 = vpop.f32.mrf.mxu0
      %v5118 = vadd.f32 %v4859, %v5117
      %v5119 = vpop.f32.mrf.mxu0
      %v5120 = vadd.f32 %v4861, %v5119
      %5121 = vmatmul.bf16.gmra.mxu0 %v1687
      %v5122 = vpop.f32.mrf.mxu0
      %v5123 = vadd.f32 %v4864, %v5122
      %v5124 = vpop.f32.mrf.mxu0
      %v5125 = vadd.f32 %v4866, %v5124
      %5126 = vmatmul.bf16.gmra.mxu0 %v1688
      %v5127 = vpop.f32.mrf.mxu0
      %v5128 = vadd.f32 %v4869, %v5127
      %v5129 = vpop.f32.mrf.mxu0
      %v5130 = vadd.f32 %v4871, %v5129
      %5131 = vmatmul.bf16.gmra.mxu0 %v1689
      %v5132 = vpop.f32.mrf.mxu0
      %v5133 = vadd.f32 %v4874, %v5132
      %v5134 = vpop.f32.mrf.mxu0
      %v5135 = vadd.f32 %v4876, %v5134
      %5136 = vmatmul.bf16.gmra.mxu0 %v1690
      %v5137 = vpop.f32.mrf.mxu0
      %v5138 = vadd.f32 %v4879, %v5137
      %v5139 = vpop.f32.mrf.mxu0
      %v5140 = vadd.f32 %v4881, %v5139
      %5141 = vmatmul.bf16.gmra.mxu0 %v1691
      %v5142 = vpop.f32.mrf.mxu0
      %v5143 = vadd.f32 %v4884, %v5142
      %v5144 = vpop.f32.mrf.mxu0
      %v5145 = vadd.f32 %v4886, %v5144
      %5146 = vmatmul.bf16.gmra.mxu0 %v1692
      %v5147 = vpop.f32.mrf.mxu0
      %v5148 = vadd.f32 %v4889, %v5147
      %v5149 = vpop.f32.mrf.mxu0
      %v5150 = vadd.f32 %v4891, %v5149
      %5151 = vmatmul.bf16.gmra.mxu0 %v1693
      %v5152 = vpop.f32.mrf.mxu0
      %v5153 = vadd.f32 %v4894, %v5152
      %v5154 = vpop.f32.mrf.mxu0
      %v5155 = vadd.f32 %v4896, %v5154
      %5156 = vmatmul.bf16.gmra.mxu0 %v1694
      %v5157 = vpop.f32.mrf.mxu0
      %v5158 = vadd.f32 %v4899, %v5157
      %v5159 = vpop.f32.mrf.mxu0
      %v5160 = vadd.f32 %v4901, %v5159
      %5161 = vmatmul.bf16.gmra.mxu0 %v1695
      %v5162 = vpop.f32.mrf.mxu0
      %v5163 = vadd.f32 %v4904, %v5162
      %v5164 = vpop.f32.mrf.mxu0
      %v5165 = vadd.f32 %v4906, %v5164
      %5166 = vmatmul.bf16.gmra.mxu0 %v1696
      %v5167 = vpop.f32.mrf.mxu0
      %v5168 = vadd.f32 %v4909, %v5167
      %v5169 = vpop.f32.mrf.mxu0
      %v5170 = vadd.f32 %v4911, %v5169
      %5171 = vmatmul.bf16.gmra.mxu0 %v1697
      %v5172 = vpop.f32.mrf.mxu0
      %v5173 = vadd.f32 %v4914, %v5172
      %v5174 = vpop.f32.mrf.mxu0
      %v5175 = vadd.f32 %v4916, %v5174
      %5176 = vmatmul.bf16.gmra.mxu0 %v1698
      %v5177 = vpop.f32.mrf.mxu0
      %v5178 = vadd.f32 %v4919, %v5177
      %v5179 = vpop.f32.mrf.mxu0
      %v5180 = vadd.f32 %v4921, %v5179
      %5181 = vmatmul.bf16.gmra.mxu0 %v1699
      %v5182 = vpop.f32.mrf.mxu0
      %v5183 = vadd.f32 %v4924, %v5182
      %v5184 = vpop.f32.mrf.mxu0
      %v5185 = vadd.f32 %v4926, %v5184
      %5186 = vmatmul.bf16.gmra.mxu0 %v1700
      %v5187 = vpop.f32.mrf.mxu0
      %v5188 = vadd.f32 %v4929, %v5187
      %v5189 = vpop.f32.mrf.mxu0
      %v5190 = vadd.f32 %v4931, %v5189
      %5191 = vmatmul.bf16.gmra.mxu0 %v1701
      %v5192 = vpop.f32.mrf.mxu0
      %v5193 = vadd.f32 %v4934, %v5192
      %v5194 = vpop.f32.mrf.mxu0
      %v5195 = vadd.f32 %v4936, %v5194
      %5196 = vmatmul.bf16.gmra.mxu0 %v1702
      %v5197 = vpop.f32.mrf.mxu0
      %v5198 = vadd.f32 %v4939, %v5197
      %v5199 = vpop.f32.mrf.mxu0
      %v5200 = vadd.f32 %v4941, %v5199
      %5201 = vmatmul.bf16.gmra.mxu0 %v1703
      %v5202 = vpop.f32.mrf.mxu0
      %v5203 = vadd.f32 %v4944, %v5202
      %v5204 = vpop.f32.mrf.mxu0
      %v5205 = vadd.f32 %v4946, %v5204
      %5206 = vmatmul.bf16.gmra.mxu0 %v1704
      %v5207 = vpop.f32.mrf.mxu0
      %v5208 = vadd.f32 %v4949, %v5207
      %v5209 = vpop.f32.mrf.mxu0
      %v5210 = vadd.f32 %v4951, %v5209
      %5211 = vmatmul.bf16.gmra.mxu0 %v1705
      %v5212 = vpop.f32.mrf.mxu0
      %v5213 = vadd.f32 %v4954, %v5212
      %v5214 = vpop.f32.mrf.mxu0
      %v5215 = vadd.f32 %v4956, %v5214
      %5216 = vmatmul.bf16.gmra.mxu0 %v1706
      %v5217 = vpop.f32.mrf.mxu0
      %v5218 = vadd.f32 %v4959, %v5217
      %v5219 = vpop.f32.mrf.mxu0
      %v5220 = vadd.f32 %v4961, %v5219
      %5221 = vmatmul.bf16.gmra.mxu0 %v1707
      %v5222 = vpop.f32.mrf.mxu0
      %v5223 = vadd.f32 %v4964, %v5222
      %v5224 = vpop.f32.mrf.mxu0
      %v5225 = vadd.f32 %v4966, %v5224
      %5226 = vmatmul.bf16.gmra.mxu0 %v1708
      %v5227 = vpop.f32.mrf.mxu0
      %v5228 = vadd.f32 %v4969, %v5227
      %v5229 = vpop.f32.mrf.mxu0
      %v5230 = vadd.f32 %v4971, %v5229
      %5231 = vmatmul.bf16.gmra.mxu0 %v1709
      %v5232 = vpop.f32.mrf.mxu0
      %v5233 = vadd.f32 %v4974, %v5232
      %v5234 = vpop.f32.mrf.mxu0
      %v5235 = vadd.f32 %v4976, %v5234
      %5236 = vmatmul.bf16.gmra.mxu0 %v1710
      %v5237 = vpop.f32.mrf.mxu0
      %v5238 = vadd.f32 %v4979, %v5237
      %v5239 = vpop.f32.mrf.mxu0
      %v5240 = vadd.f32 %v4981, %v5239
      %5241 = vmatmul.bf16.gmra.mxu0 %v1711
      %v5242 = vpop.f32.mrf.mxu0
      %v5243 = vadd.f32 %v4984, %v5242
      %v5244 = vpop.f32.mrf.mxu0
      %v5245 = vadd.f32 %v4986, %v5244
      %5246 = vmatmul.bf16.gmra.mxu0 %v1712
      %v5247 = vpop.f32.mrf.mxu0
      %v5248 = vadd.f32 %v4989, %v5247
      %v5249 = vpop.f32.mrf.mxu0
      %v5250 = vadd.f32 %v4991, %v5249
      %5251 = vmatmul.bf16.gmra.mxu0 %v1713
      %v5252 = vpop.f32.mrf.mxu0
      %v5253 = vadd.f32 %v4994, %v5252
      %v5254 = vpop.f32.mrf.mxu0
      %v5255 = vadd.f32 %v4996, %v5254
      %5256 = vmatmul.bf16.gmra.mxu0 %v1714
      %v5257 = vpop.f32.mrf.mxu0
      %v5258 = vadd.f32 %v4999, %v5257
      %v5259 = vpop.f32.mrf.mxu0
      %v5260 = vadd.f32 %v5001, %v5259
      %5261 = vmatmul.bf16.gmra.mxu0 %v1715
      %v5262 = vpop.f32.mrf.mxu0
      %v5263 = vadd.f32 %v5004, %v5262
      %v5264 = vpop.f32.mrf.mxu0
      %v5265 = vadd.f32 %v5006, %v5264
      %5266 = vmatmul.bf16.gmra.mxu0 %v1716
      %v5267 = vpop.f32.mrf.mxu0
      %v5268 = vadd.f32 %v5009, %v5267
      %v5269 = vpop.f32.mrf.mxu0
      %v5270 = vadd.f32 %v5011, %v5269
      %5271 = vmatmul.bf16.gmra.mxu0 %v1717
      %v5272 = vpop.f32.mrf.mxu0
      %v5273 = vadd.f32 %v5014, %v5272
      %v5274 = vpop.f32.mrf.mxu0
      %v5275 = vadd.f32 %v5016, %v5274
      %5276 = vmatmul.bf16.gmra.mxu0 %v1718
      %v5277 = vpop.f32.mrf.mxu0
      %v5278 = vadd.f32 %v5019, %v5277
      %v5279 = vpop.f32.mrf.mxu0
      %v5280 = vadd.f32 %v5021, %v5279
      %5281 = vmatmul.bf16.gmra.mxu0 %v1719
      %v5282 = vpop.f32.mrf.mxu0
      %v5283 = vadd.f32 %v5024, %v5282
      %v5284 = vpop.f32.mrf.mxu0
      %v5285 = vadd.f32 %v5026, %v5284
      %5286 = vmatmul.bf16.gmra.mxu0 %v1720
      %v5287 = vpop.f32.mrf.mxu0
      %v5288 = vadd.f32 %v5029, %v5287
      %v5289 = vpop.f32.mrf.mxu0
      %v5290 = vadd.f32 %v5031, %v5289
      %5291 = vdwg.mxu0
      %5292 = vmatpush.bf16.msra.mxu0 %v3309
      %5293 = vmatpush.bf16.msra.mxu0 %v3306
      %5294 = vmatpush.bf16.msra.mxu0 %v3303
      %5295 = vmatpush.bf16.msra.mxu0 %v3300
      %5296 = vmatpush.bf16.msra.mxu0 %v3297
      %5297 = vmatpush.bf16.msra.mxu0 %v3294
      %5298 = vmatpush.bf16.msra.mxu0 %v3291
      %5299 = vmatpush.bf16.msra.mxu0 %v3288
      %5300 = vmatmul.bf16.gmra.mxu0 %v1971
      %v5301 = vpop.f32.mrf.mxu0
      %v5302 = vadd.f32 %v5043, %v5301
      %v5303 = vpop.f32.mrf.mxu0
      %v5304 = vadd.f32 %v5045, %v5303
      %5305 = vmatmul.bf16.gmra.mxu0 %v1972
      %v5306 = vpop.f32.mrf.mxu0
      %v5307 = vadd.f32 %v5048, %v5306
      %v5308 = vpop.f32.mrf.mxu0
      %v5309 = vadd.f32 %v5050, %v5308
      %5310 = vmatmul.bf16.gmra.mxu0 %v1973
      %v5311 = vpop.f32.mrf.mxu0
      %v5312 = vadd.f32 %v5053, %v5311
      %v5313 = vpop.f32.mrf.mxu0
      %v5314 = vadd.f32 %v5055, %v5313
      %5315 = vmatmul.bf16.gmra.mxu0 %v1974
      %v5316 = vpop.f32.mrf.mxu0
      %v5317 = vadd.f32 %v5058, %v5316
      %v5318 = vpop.f32.mrf.mxu0
      %v5319 = vadd.f32 %v5060, %v5318
      %5320 = vmatmul.bf16.gmra.mxu0 %v1975
      %v5321 = vpop.f32.mrf.mxu0
      %v5322 = vadd.f32 %v5063, %v5321
      %v5323 = vpop.f32.mrf.mxu0
      %v5324 = vadd.f32 %v5065, %v5323
      %5325 = vmatmul.bf16.gmra.mxu0 %v1976
      %v5326 = vpop.f32.mrf.mxu0
      %v5327 = vadd.f32 %v5068, %v5326
      %v5328 = vpop.f32.mrf.mxu0
      %v5329 = vadd.f32 %v5070, %v5328
      %5330 = vmatmul.bf16.gmra.mxu0 %v1977
      %v5331 = vpop.f32.mrf.mxu0
      %v5332 = vadd.f32 %v5073, %v5331
      %v5333 = vpop.f32.mrf.mxu0
      %v5334 = vadd.f32 %v5075, %v5333
      %5335 = vmatmul.bf16.gmra.mxu0 %v1978
      %v5336 = vpop.f32.mrf.mxu0
      %v5337 = vadd.f32 %v5078, %v5336
      %v5338 = vpop.f32.mrf.mxu0
      %v5339 = vadd.f32 %v5080, %v5338
      %5340 = vmatmul.bf16.gmra.mxu0 %v1979
      %v5341 = vpop.f32.mrf.mxu0
      %v5342 = vadd.f32 %v5083, %v5341
      %v5343 = vpop.f32.mrf.mxu0
      %v5344 = vadd.f32 %v5085, %v5343
      %5345 = vmatmul.bf16.gmra.mxu0 %v1980
      %v5346 = vpop.f32.mrf.mxu0
      %v5347 = vadd.f32 %v5088, %v5346
      %v5348 = vpop.f32.mrf.mxu0
      %v5349 = vadd.f32 %v5090, %v5348
      %5350 = vmatmul.bf16.gmra.mxu0 %v1981
      %v5351 = vpop.f32.mrf.mxu0
      %v5352 = vadd.f32 %v5093, %v5351
      %v5353 = vpop.f32.mrf.mxu0
      %v5354 = vadd.f32 %v5095, %v5353
      %5355 = vmatmul.bf16.gmra.mxu0 %v1982
      %v5356 = vpop.f32.mrf.mxu0
      %v5357 = vadd.f32 %v5098, %v5356
      %v5358 = vpop.f32.mrf.mxu0
      %v5359 = vadd.f32 %v5100, %v5358
      %5360 = vmatmul.bf16.gmra.mxu0 %v1983
      %v5361 = vpop.f32.mrf.mxu0
      %v5362 = vadd.f32 %v5103, %v5361
      %v5363 = vpop.f32.mrf.mxu0
      %v5364 = vadd.f32 %v5105, %v5363
      %5365 = vmatmul.bf16.gmra.mxu0 %v1984
      %v5366 = vpop.f32.mrf.mxu0
      %v5367 = vadd.f32 %v5108, %v5366
      %v5368 = vpop.f32.mrf.mxu0
      %v5369 = vadd.f32 %v5110, %v5368
      %5370 = vmatmul.bf16.gmra.mxu0 %v1985
      %v5371 = vpop.f32.mrf.mxu0
      %v5372 = vadd.f32 %v5113, %v5371
      %v5373 = vpop.f32.mrf.mxu0
      %v5374 = vadd.f32 %v5115, %v5373
      %5375 = vmatmul.bf16.gmra.mxu0 %v1986
      %v5376 = vpop.f32.mrf.mxu0
      %v5377 = vadd.f32 %v5118, %v5376
      %v5378 = vpop.f32.mrf.mxu0
      %v5379 = vadd.f32 %v5120, %v5378
      %5380 = vmatmul.bf16.gmra.mxu0 %v1987
      %v5381 = vpop.f32.mrf.mxu0
      %v5382 = vadd.f32 %v5123, %v5381
      %v5383 = vpop.f32.mrf.mxu0
      %v5384 = vadd.f32 %v5125, %v5383
      %5385 = vmatmul.bf16.gmra.mxu0 %v1988
      %v5386 = vpop.f32.mrf.mxu0
      %v5387 = vadd.f32 %v5128, %v5386
      %v5388 = vpop.f32.mrf.mxu0
      %v5389 = vadd.f32 %v5130, %v5388
      %5390 = vmatmul.bf16.gmra.mxu0 %v1989
      %v5391 = vpop.f32.mrf.mxu0
      %v5392 = vadd.f32 %v5133, %v5391
      %v5393 = vpop.f32.mrf.mxu0
      %v5394 = vadd.f32 %v5135, %v5393
      %5395 = vmatmul.bf16.gmra.mxu0 %v1990
      %v5396 = vpop.f32.mrf.mxu0
      %v5397 = vadd.f32 %v5138, %v5396
      %v5398 = vpop.f32.mrf.mxu0
      %v5399 = vadd.f32 %v5140, %v5398
      %5400 = vmatmul.bf16.gmra.mxu0 %v1991
      %v5401 = vpop.f32.mrf.mxu0
      %v5402 = vadd.f32 %v5143, %v5401
      %v5403 = vpop.f32.mrf.mxu0
      %v5404 = vadd.f32 %v5145, %v5403
      %5405 = vmatmul.bf16.gmra.mxu0 %v1992
      %v5406 = vpop.f32.mrf.mxu0
      %v5407 = vadd.f32 %v5148, %v5406
      %v5408 = vpop.f32.mrf.mxu0
      %v5409 = vadd.f32 %v5150, %v5408
      %5410 = vmatmul.bf16.gmra.mxu0 %v1993
      %v5411 = vpop.f32.mrf.mxu0
      %v5412 = vadd.f32 %v5153, %v5411
      %v5413 = vpop.f32.mrf.mxu0
      %v5414 = vadd.f32 %v5155, %v5413
      %5415 = vmatmul.bf16.gmra.mxu0 %v1994
      %v5416 = vpop.f32.mrf.mxu0
      %v5417 = vadd.f32 %v5158, %v5416
      %v5418 = vpop.f32.mrf.mxu0
      %v5419 = vadd.f32 %v5160, %v5418
      %5420 = vmatmul.bf16.gmra.mxu0 %v1995
      %v5421 = vpop.f32.mrf.mxu0
      %v5422 = vadd.f32 %v5163, %v5421
      %v5423 = vpop.f32.mrf.mxu0
      %v5424 = vadd.f32 %v5165, %v5423
      %5425 = vmatmul.bf16.gmra.mxu0 %v1996
      %v5426 = vpop.f32.mrf.mxu0
      %v5427 = vadd.f32 %v5168, %v5426
      %v5428 = vpop.f32.mrf.mxu0
      %v5429 = vadd.f32 %v5170, %v5428
      %5430 = vmatmul.bf16.gmra.mxu0 %v1997
      %v5431 = vpop.f32.mrf.mxu0
      %v5432 = vadd.f32 %v5173, %v5431
      %v5433 = vpop.f32.mrf.mxu0
      %v5434 = vadd.f32 %v5175, %v5433
      %5435 = vmatmul.bf16.gmra.mxu0 %v1998
      %v5436 = vpop.f32.mrf.mxu0
      %v5437 = vadd.f32 %v5178, %v5436
      %v5438 = vpop.f32.mrf.mxu0
      %v5439 = vadd.f32 %v5180, %v5438
      %5440 = vmatmul.bf16.gmra.mxu0 %v1999
      %v5441 = vpop.f32.mrf.mxu0
      %v5442 = vadd.f32 %v5183, %v5441
      %v5443 = vpop.f32.mrf.mxu0
      %v5444 = vadd.f32 %v5185, %v5443
      %5445 = vmatmul.bf16.gmra.mxu0 %v2000
      %v5446 = vpop.f32.mrf.mxu0
      %v5447 = vadd.f32 %v5188, %v5446
      %v5448 = vpop.f32.mrf.mxu0
      %v5449 = vadd.f32 %v5190, %v5448
      %5450 = vmatmul.bf16.gmra.mxu0 %v2001
      %v5451 = vpop.f32.mrf.mxu0
      %v5452 = vadd.f32 %v5193, %v5451
      %v5453 = vpop.f32.mrf.mxu0
      %v5454 = vadd.f32 %v5195, %v5453
      %5455 = vmatmul.bf16.gmra.mxu0 %v2002
      %v5456 = vpop.f32.mrf.mxu0
      %v5457 = vadd.f32 %v5198, %v5456
      %v5458 = vpop.f32.mrf.mxu0
      %v5459 = vadd.f32 %v5200, %v5458
      %5460 = vmatmul.bf16.gmra.mxu0 %v2003
      %v5461 = vpop.f32.mrf.mxu0
      %v5462 = vadd.f32 %v5203, %v5461
      %v5463 = vpop.f32.mrf.mxu0
      %v5464 = vadd.f32 %v5205, %v5463
      %5465 = vmatmul.bf16.gmra.mxu0 %v2004
      %v5466 = vpop.f32.mrf.mxu0
      %v5467 = vadd.f32 %v5208, %v5466
      %v5468 = vpop.f32.mrf.mxu0
      %v5469 = vadd.f32 %v5210, %v5468
      %5470 = vmatmul.bf16.gmra.mxu0 %v2005
      %v5471 = vpop.f32.mrf.mxu0
      %v5472 = vadd.f32 %v5213, %v5471
      %v5473 = vpop.f32.mrf.mxu0
      %v5474 = vadd.f32 %v5215, %v5473
      %5475 = vmatmul.bf16.gmra.mxu0 %v2006
      %v5476 = vpop.f32.mrf.mxu0
      %v5477 = vadd.f32 %v5218, %v5476
      %v5478 = vpop.f32.mrf.mxu0
      %v5479 = vadd.f32 %v5220, %v5478
      %5480 = vmatmul.bf16.gmra.mxu0 %v2007
      %v5481 = vpop.f32.mrf.mxu0
      %v5482 = vadd.f32 %v5223, %v5481
      %v5483 = vpop.f32.mrf.mxu0
      %v5484 = vadd.f32 %v5225, %v5483
      %5485 = vmatmul.bf16.gmra.mxu0 %v2008
      %v5486 = vpop.f32.mrf.mxu0
      %v5487 = vadd.f32 %v5228, %v5486
      %v5488 = vpop.f32.mrf.mxu0
      %v5489 = vadd.f32 %v5230, %v5488
      %5490 = vmatmul.bf16.gmra.mxu0 %v2009
      %v5491 = vpop.f32.mrf.mxu0
      %v5492 = vadd.f32 %v5233, %v5491
      %v5493 = vpop.f32.mrf.mxu0
      %v5494 = vadd.f32 %v5235, %v5493
      %5495 = vmatmul.bf16.gmra.mxu0 %v2010
      %v5496 = vpop.f32.mrf.mxu0
      %v5497 = vadd.f32 %v5238, %v5496
      %v5498 = vpop.f32.mrf.mxu0
      %v5499 = vadd.f32 %v5240, %v5498
      %5500 = vmatmul.bf16.gmra.mxu0 %v2011
      %v5501 = vpop.f32.mrf.mxu0
      %v5502 = vadd.f32 %v5243, %v5501
      %v5503 = vpop.f32.mrf.mxu0
      %v5504 = vadd.f32 %v5245, %v5503
      %5505 = vmatmul.bf16.gmra.mxu0 %v2012
      %v5506 = vpop.f32.mrf.mxu0
      %v5507 = vadd.f32 %v5248, %v5506
      %v5508 = vpop.f32.mrf.mxu0
      %v5509 = vadd.f32 %v5250, %v5508
      %5510 = vmatmul.bf16.gmra.mxu0 %v2013
      %v5511 = vpop.f32.mrf.mxu0
      %v5512 = vadd.f32 %v5253, %v5511
      %v5513 = vpop.f32.mrf.mxu0
      %v5514 = vadd.f32 %v5255, %v5513
      %5515 = vmatmul.bf16.gmra.mxu0 %v2014
      %v5516 = vpop.f32.mrf.mxu0
      %v5517 = vadd.f32 %v5258, %v5516
      %v5518 = vpop.f32.mrf.mxu0
      %v5519 = vadd.f32 %v5260, %v5518
      %5520 = vmatmul.bf16.gmra.mxu0 %v2015
      %v5521 = vpop.f32.mrf.mxu0
      %v5522 = vadd.f32 %v5263, %v5521
      %v5523 = vpop.f32.mrf.mxu0
      %v5524 = vadd.f32 %v5265, %v5523
      %5525 = vmatmul.bf16.gmra.mxu0 %v2016
      %v5526 = vpop.f32.mrf.mxu0
      %v5527 = vadd.f32 %v5268, %v5526
      %v5528 = vpop.f32.mrf.mxu0
      %v5529 = vadd.f32 %v5270, %v5528
      %5530 = vmatmul.bf16.gmra.mxu0 %v2017
      %v5531 = vpop.f32.mrf.mxu0
      %v5532 = vadd.f32 %v5273, %v5531
      %v5533 = vpop.f32.mrf.mxu0
      %v5534 = vadd.f32 %v5275, %v5533
      %5535 = vmatmul.bf16.gmra.mxu0 %v2018
      %v5536 = vpop.f32.mrf.mxu0
      %v5537 = vadd.f32 %v5278, %v5536
      %v5538 = vpop.f32.mrf.mxu0
      %v5539 = vadd.f32 %v5280, %v5538
      %5540 = vmatmul.bf16.gmra.mxu0 %v2019
      %v5541 = vpop.f32.mrf.mxu0
      %v5542 = vadd.f32 %v5283, %v5541
      %v5543 = vpop.f32.mrf.mxu0
      %v5544 = vadd.f32 %v5285, %v5543
      %5545 = vmatmul.bf16.gmra.mxu0 %v2020
      %v5546 = vpop.f32.mrf.mxu0
      %v5547 = vadd.f32 %v5288, %v5546
      %v5548 = vpop.f32.mrf.mxu0
      %v5549 = vadd.f32 %v5290, %v5548
      %5550 = vdwg.mxu0
      %5551 = vmatpush.bf16.msra.mxu0 %v3333
      %5552 = vmatpush.bf16.msra.mxu0 %v3330
      %5553 = vmatpush.bf16.msra.mxu0 %v3327
      %5554 = vmatpush.bf16.msra.mxu0 %v3324
      %5555 = vmatpush.bf16.msra.mxu0 %v3321
      %5556 = vmatpush.bf16.msra.mxu0 %v3318
      %5557 = vmatpush.bf16.msra.mxu0 %v3315
      %5558 = vmatpush.bf16.msra.mxu0 %v3312
      %5559 = vmatmul.bf16.gmra.mxu0 %v2271
      %v5560 = vpop.f32.mrf.mxu0
      %v5561 = vadd.f32 %v5302, %v5560
      %v5562 = vpop.f32.mrf.mxu0
      %v5563 = vadd.f32 %v5304, %v5562
      %5564 = vmatmul.bf16.gmra.mxu0 %v2272
      %v5565 = vpop.f32.mrf.mxu0
      %v5566 = vadd.f32 %v5307, %v5565
      %v5567 = vpop.f32.mrf.mxu0
      %v5568 = vadd.f32 %v5309, %v5567
      %5569 = vmatmul.bf16.gmra.mxu0 %v2273
      %v5570 = vpop.f32.mrf.mxu0
      %v5571 = vadd.f32 %v5312, %v5570
      %v5572 = vpop.f32.mrf.mxu0
      %v5573 = vadd.f32 %v5314, %v5572
      %5574 = vmatmul.bf16.gmra.mxu0 %v2274
      %v5575 = vpop.f32.mrf.mxu0
      %v5576 = vadd.f32 %v5317, %v5575
      %v5577 = vpop.f32.mrf.mxu0
      %v5578 = vadd.f32 %v5319, %v5577
      %5579 = vmatmul.bf16.gmra.mxu0 %v2275
      %v5580 = vpop.f32.mrf.mxu0
      %v5581 = vadd.f32 %v5322, %v5580
      %v5582 = vpop.f32.mrf.mxu0
      %v5583 = vadd.f32 %v5324, %v5582
      %5584 = vmatmul.bf16.gmra.mxu0 %v2276
      %v5585 = vpop.f32.mrf.mxu0
      %v5586 = vadd.f32 %v5327, %v5585
      %v5587 = vpop.f32.mrf.mxu0
      %v5588 = vadd.f32 %v5329, %v5587
      %5589 = vmatmul.bf16.gmra.mxu0 %v2277
      %v5590 = vpop.f32.mrf.mxu0
      %v5591 = vadd.f32 %v5332, %v5590
      %v5592 = vpop.f32.mrf.mxu0
      %v5593 = vadd.f32 %v5334, %v5592
      %5594 = vmatmul.bf16.gmra.mxu0 %v2278
      %v5595 = vpop.f32.mrf.mxu0
      %v5596 = vadd.f32 %v5337, %v5595
      %v5597 = vpop.f32.mrf.mxu0
      %v5598 = vadd.f32 %v5339, %v5597
      %5599 = vmatmul.bf16.gmra.mxu0 %v2279
      %v5600 = vpop.f32.mrf.mxu0
      %v5601 = vadd.f32 %v5342, %v5600
      %v5602 = vpop.f32.mrf.mxu0
      %v5603 = vadd.f32 %v5344, %v5602
      %5604 = vmatmul.bf16.gmra.mxu0 %v2280
      %v5605 = vpop.f32.mrf.mxu0
      %v5606 = vadd.f32 %v5347, %v5605
      %v5607 = vpop.f32.mrf.mxu0
      %v5608 = vadd.f32 %v5349, %v5607
      %5609 = vmatmul.bf16.gmra.mxu0 %v2281
      %v5610 = vpop.f32.mrf.mxu0
      %v5611 = vadd.f32 %v5352, %v5610
      %v5612 = vpop.f32.mrf.mxu0
      %v5613 = vadd.f32 %v5354, %v5612
      %5614 = vmatmul.bf16.gmra.mxu0 %v2282
      %v5615 = vpop.f32.mrf.mxu0
      %v5616 = vadd.f32 %v5357, %v5615
      %v5617 = vpop.f32.mrf.mxu0
      %v5618 = vadd.f32 %v5359, %v5617
      %5619 = vmatmul.bf16.gmra.mxu0 %v2283
      %v5620 = vpop.f32.mrf.mxu0
      %v5621 = vadd.f32 %v5362, %v5620
      %v5622 = vpop.f32.mrf.mxu0
      %v5623 = vadd.f32 %v5364, %v5622
      %5624 = vmatmul.bf16.gmra.mxu0 %v2284
      %v5625 = vpop.f32.mrf.mxu0
      %v5626 = vadd.f32 %v5367, %v5625
      %v5627 = vpop.f32.mrf.mxu0
      %v5628 = vadd.f32 %v5369, %v5627
      %5629 = vmatmul.bf16.gmra.mxu0 %v2285
      %v5630 = vpop.f32.mrf.mxu0
      %v5631 = vadd.f32 %v5372, %v5630
      %v5632 = vpop.f32.mrf.mxu0
      %v5633 = vadd.f32 %v5374, %v5632
      %5634 = vmatmul.bf16.gmra.mxu0 %v2286
      %v5635 = vpop.f32.mrf.mxu0
      %v5636 = vadd.f32 %v5377, %v5635
      %v5637 = vpop.f32.mrf.mxu0
      %v5638 = vadd.f32 %v5379, %v5637
      %5639 = vmatmul.bf16.gmra.mxu0 %v2287
      %v5640 = vpop.f32.mrf.mxu0
      %v5641 = vadd.f32 %v5382, %v5640
      %v5642 = vpop.f32.mrf.mxu0
      %v5643 = vadd.f32 %v5384, %v5642
      %5644 = vmatmul.bf16.gmra.mxu0 %v2288
      %v5645 = vpop.f32.mrf.mxu0
      %v5646 = vadd.f32 %v5387, %v5645
      %v5647 = vpop.f32.mrf.mxu0
      %v5648 = vadd.f32 %v5389, %v5647
      %5649 = vmatmul.bf16.gmra.mxu0 %v2289
      %v5650 = vpop.f32.mrf.mxu0
      %v5651 = vadd.f32 %v5392, %v5650
      %v5652 = vpop.f32.mrf.mxu0
      %v5653 = vadd.f32 %v5394, %v5652
      %5654 = vmatmul.bf16.gmra.mxu0 %v2290
      %v5655 = vpop.f32.mrf.mxu0
      %v5656 = vadd.f32 %v5397, %v5655
      %v5657 = vpop.f32.mrf.mxu0
      %v5658 = vadd.f32 %v5399, %v5657
      %5659 = vmatmul.bf16.gmra.mxu0 %v2291
      %v5660 = vpop.f32.mrf.mxu0
      %v5661 = vadd.f32 %v5402, %v5660
      %v5662 = vpop.f32.mrf.mxu0
      %v5663 = vadd.f32 %v5404, %v5662
      %5664 = vmatmul.bf16.gmra.mxu0 %v2292
      %v5665 = vpop.f32.mrf.mxu0
      %v5666 = vadd.f32 %v5407, %v5665
      %v5667 = vpop.f32.mrf.mxu0
      %v5668 = vadd.f32 %v5409, %v5667
      %5669 = vmatmul.bf16.gmra.mxu0 %v2293
      %v5670 = vpop.f32.mrf.mxu0
      %v5671 = vadd.f32 %v5412, %v5670
      %v5672 = vpop.f32.mrf.mxu0
      %v5673 = vadd.f32 %v5414, %v5672
      %5674 = vmatmul.bf16.gmra.mxu0 %v2294
      %v5675 = vpop.f32.mrf.mxu0
      %v5676 = vadd.f32 %v5417, %v5675
      %v5677 = vpop.f32.mrf.mxu0
      %v5678 = vadd.f32 %v5419, %v5677
      %5679 = vmatmul.bf16.gmra.mxu0 %v2295
      %v5680 = vpop.f32.mrf.mxu0
      %v5681 = vadd.f32 %v5422, %v5680
      %v5682 = vpop.f32.mrf.mxu0
      %v5683 = vadd.f32 %v5424, %v5682
      %5684 = vmatmul.bf16.gmra.mxu0 %v2296
      %v5685 = vpop.f32.mrf.mxu0
      %v5686 = vadd.f32 %v5427, %v5685
      %v5687 = vpop.f32.mrf.mxu0
      %v5688 = vadd.f32 %v5429, %v5687
      %5689 = vmatmul.bf16.gmra.mxu0 %v2297
      %v5690 = vpop.f32.mrf.mxu0
      %v5691 = vadd.f32 %v5432, %v5690
      %v5692 = vpop.f32.mrf.mxu0
      %v5693 = vadd.f32 %v5434, %v5692
      %5694 = vmatmul.bf16.gmra.mxu0 %v2298
      %v5695 = vpop.f32.mrf.mxu0
      %v5696 = vadd.f32 %v5437, %v5695
      %v5697 = vpop.f32.mrf.mxu0
      %v5698 = vadd.f32 %v5439, %v5697
      %5699 = vmatmul.bf16.gmra.mxu0 %v2299
      %v5700 = vpop.f32.mrf.mxu0
      %v5701 = vadd.f32 %v5442, %v5700
      %v5702 = vpop.f32.mrf.mxu0
      %v5703 = vadd.f32 %v5444, %v5702
      %5704 = vmatmul.bf16.gmra.mxu0 %v2300
      %v5705 = vpop.f32.mrf.mxu0
      %v5706 = vadd.f32 %v5447, %v5705
      %v5707 = vpop.f32.mrf.mxu0
      %v5708 = vadd.f32 %v5449, %v5707
      %5709 = vmatmul.bf16.gmra.mxu0 %v2301
      %v5710 = vpop.f32.mrf.mxu0
      %v5711 = vadd.f32 %v5452, %v5710
      %v5712 = vpop.f32.mrf.mxu0
      %v5713 = vadd.f32 %v5454, %v5712
      %5714 = vmatmul.bf16.gmra.mxu0 %v2302
      %v5715 = vpop.f32.mrf.mxu0
      %v5716 = vadd.f32 %v5457, %v5715
      %v5717 = vpop.f32.mrf.mxu0
      %v5718 = vadd.f32 %v5459, %v5717
      %5719 = vmatmul.bf16.gmra.mxu0 %v2303
      %v5720 = vpop.f32.mrf.mxu0
      %v5721 = vadd.f32 %v5462, %v5720
      %v5722 = vpop.f32.mrf.mxu0
      %v5723 = vadd.f32 %v5464, %v5722
      %5724 = vmatmul.bf16.gmra.mxu0 %v2304
      %v5725 = vpop.f32.mrf.mxu0
      %v5726 = vadd.f32 %v5467, %v5725
      %v5727 = vpop.f32.mrf.mxu0
      %v5728 = vadd.f32 %v5469, %v5727
      %5729 = vmatmul.bf16.gmra.mxu0 %v2305
      %v5730 = vpop.f32.mrf.mxu0
      %v5731 = vadd.f32 %v5472, %v5730
      %v5732 = vpop.f32.mrf.mxu0
      %v5733 = vadd.f32 %v5474, %v5732
      %5734 = vmatmul.bf16.gmra.mxu0 %v2306
      %v5735 = vpop.f32.mrf.mxu0
      %v5736 = vadd.f32 %v5477, %v5735
      %v5737 = vpop.f32.mrf.mxu0
      %v5738 = vadd.f32 %v5479, %v5737
      %5739 = vmatmul.bf16.gmra.mxu0 %v2307
      %v5740 = vpop.f32.mrf.mxu0
      %v5741 = vadd.f32 %v5482, %v5740
      %v5742 = vpop.f32.mrf.mxu0
      %v5743 = vadd.f32 %v5484, %v5742
      %5744 = vmatmul.bf16.gmra.mxu0 %v2308
      %v5745 = vpop.f32.mrf.mxu0
      %v5746 = vadd.f32 %v5487, %v5745
      %v5747 = vpop.f32.mrf.mxu0
      %v5748 = vadd.f32 %v5489, %v5747
      %5749 = vmatmul.bf16.gmra.mxu0 %v2309
      %v5750 = vpop.f32.mrf.mxu0
      %v5751 = vadd.f32 %v5492, %v5750
      %v5752 = vpop.f32.mrf.mxu0
      %v5753 = vadd.f32 %v5494, %v5752
      %5754 = vmatmul.bf16.gmra.mxu0 %v2310
      %v5755 = vpop.f32.mrf.mxu0
      %v5756 = vadd.f32 %v5497, %v5755
      %v5757 = vpop.f32.mrf.mxu0
      %v5758 = vadd.f32 %v5499, %v5757
      %5759 = vmatmul.bf16.gmra.mxu0 %v2311
      %v5760 = vpop.f32.mrf.mxu0
      %v5761 = vadd.f32 %v5502, %v5760
      %v5762 = vpop.f32.mrf.mxu0
      %v5763 = vadd.f32 %v5504, %v5762
      %5764 = vmatmul.bf16.gmra.mxu0 %v2312
      %v5765 = vpop.f32.mrf.mxu0
      %v5766 = vadd.f32 %v5507, %v5765
      %v5767 = vpop.f32.mrf.mxu0
      %v5768 = vadd.f32 %v5509, %v5767
      %5769 = vmatmul.bf16.gmra.mxu0 %v2313
      %v5770 = vpop.f32.mrf.mxu0
      %v5771 = vadd.f32 %v5512, %v5770
      %v5772 = vpop.f32.mrf.mxu0
      %v5773 = vadd.f32 %v5514, %v5772
      %5774 = vmatmul.bf16.gmra.mxu0 %v2314
      %v5775 = vpop.f32.mrf.mxu0
      %v5776 = vadd.f32 %v5517, %v5775
      %v5777 = vpop.f32.mrf.mxu0
      %v5778 = vadd.f32 %v5519, %v5777
      %5779 = vmatmul.bf16.gmra.mxu0 %v2315
      %v5780 = vpop.f32.mrf.mxu0
      %v5781 = vadd.f32 %v5522, %v5780
      %v5782 = vpop.f32.mrf.mxu0
      %v5783 = vadd.f32 %v5524, %v5782
      %5784 = vmatmul.bf16.gmra.mxu0 %v2316
      %v5785 = vpop.f32.mrf.mxu0
      %v5786 = vadd.f32 %v5527, %v5785
      %v5787 = vpop.f32.mrf.mxu0
      %v5788 = vadd.f32 %v5529, %v5787
      %5789 = vmatmul.bf16.gmra.mxu0 %v2317
      %v5790 = vpop.f32.mrf.mxu0
      %v5791 = vadd.f32 %v5532, %v5790
      %v5792 = vpop.f32.mrf.mxu0
      %v5793 = vadd.f32 %v5534, %v5792
      %5794 = vmatmul.bf16.gmra.mxu0 %v2318
      %v5795 = vpop.f32.mrf.mxu0
      %v5796 = vadd.f32 %v5537, %v5795
      %v5797 = vpop.f32.mrf.mxu0
      %v5798 = vadd.f32 %v5539, %v5797
      %5799 = vmatmul.bf16.gmra.mxu0 %v2319
      %v5800 = vpop.f32.mrf.mxu0
      %v5801 = vadd.f32 %v5542, %v5800
      %v5802 = vpop.f32.mrf.mxu0
      %v5803 = vadd.f32 %v5544, %v5802
      %5804 = vmatmul.bf16.gmra.mxu0 %v2320
      %v5805 = vpop.f32.mrf.mxu0
      %v5806 = vadd.f32 %v5547, %v5805
      %v5807 = vpop.f32.mrf.mxu0
      %v5808 = vadd.f32 %v5549, %v5807
      %5809 = vdwg.mxu0
      %5810 = vmatpush.bf16.msra.mxu0 %v3357
      %5811 = vmatpush.bf16.msra.mxu0 %v3354
      %5812 = vmatpush.bf16.msra.mxu0 %v3351
      %5813 = vmatpush.bf16.msra.mxu0 %v3348
      %5814 = vmatpush.bf16.msra.mxu0 %v3345
      %5815 = vmatpush.bf16.msra.mxu0 %v3342
      %5816 = vmatpush.bf16.msra.mxu0 %v3339
      %5817 = vmatpush.bf16.msra.mxu0 %v3336
      %5818 = vmatmul.bf16.gmra.mxu0 %v2571
      %v5819 = vpop.f32.mrf.mxu0
      %v5820 = vadd.f32 %v5561, %v5819
      %v5821 = vpop.f32.mrf.mxu0
      %v5822 = vadd.f32 %v5563, %v5821
      %5823 = vmatmul.bf16.gmra.mxu0 %v2572
      %v5824 = vpop.f32.mrf.mxu0
      %v5825 = vadd.f32 %v5566, %v5824
      %v5826 = vpop.f32.mrf.mxu0
      %v5827 = vadd.f32 %v5568, %v5826
      %5828 = vmatmul.bf16.gmra.mxu0 %v2573
      %v5829 = vpop.f32.mrf.mxu0
      %v5830 = vadd.f32 %v5571, %v5829
      %v5831 = vpop.f32.mrf.mxu0
      %v5832 = vadd.f32 %v5573, %v5831
      %5833 = vmatmul.bf16.gmra.mxu0 %v2574
      %v5834 = vpop.f32.mrf.mxu0
      %v5835 = vadd.f32 %v5576, %v5834
      %v5836 = vpop.f32.mrf.mxu0
      %v5837 = vadd.f32 %v5578, %v5836
      %5838 = vmatmul.bf16.gmra.mxu0 %v2575
      %v5839 = vpop.f32.mrf.mxu0
      %v5840 = vadd.f32 %v5581, %v5839
      %v5841 = vpop.f32.mrf.mxu0
      %v5842 = vadd.f32 %v5583, %v5841
      %5843 = vmatmul.bf16.gmra.mxu0 %v2576
      %v5844 = vpop.f32.mrf.mxu0
      %v5845 = vadd.f32 %v5586, %v5844
      %v5846 = vpop.f32.mrf.mxu0
      %v5847 = vadd.f32 %v5588, %v5846
      %5848 = vmatmul.bf16.gmra.mxu0 %v2577
      %v5849 = vpop.f32.mrf.mxu0
      %v5850 = vadd.f32 %v5591, %v5849
      %v5851 = vpop.f32.mrf.mxu0
      %v5852 = vadd.f32 %v5593, %v5851
      %5853 = vmatmul.bf16.gmra.mxu0 %v2578
      %v5854 = vpop.f32.mrf.mxu0
      %v5855 = vadd.f32 %v5596, %v5854
      %v5856 = vpop.f32.mrf.mxu0
      %v5857 = vadd.f32 %v5598, %v5856
      %5858 = vmatmul.bf16.gmra.mxu0 %v2579
      %v5859 = vpop.f32.mrf.mxu0
      %v5860 = vadd.f32 %v5601, %v5859
      %v5861 = vpop.f32.mrf.mxu0
      %v5862 = vadd.f32 %v5603, %v5861
      %5863 = vmatmul.bf16.gmra.mxu0 %v2580
      %v5864 = vpop.f32.mrf.mxu0
      %v5865 = vadd.f32 %v5606, %v5864
      %v5866 = vpop.f32.mrf.mxu0
      %v5867 = vadd.f32 %v5608, %v5866
      %5868 = vmatmul.bf16.gmra.mxu0 %v2581
      %v5869 = vpop.f32.mrf.mxu0
      %v5870 = vadd.f32 %v5611, %v5869
      %v5871 = vpop.f32.mrf.mxu0
      %v5872 = vadd.f32 %v5613, %v5871
      %5873 = vmatmul.bf16.gmra.mxu0 %v2582
      %v5874 = vpop.f32.mrf.mxu0
      %v5875 = vadd.f32 %v5616, %v5874
      %v5876 = vpop.f32.mrf.mxu0
      %v5877 = vadd.f32 %v5618, %v5876
      %5878 = vmatmul.bf16.gmra.mxu0 %v2583
      %v5879 = vpop.f32.mrf.mxu0
      %v5880 = vadd.f32 %v5621, %v5879
      %v5881 = vpop.f32.mrf.mxu0
      %v5882 = vadd.f32 %v5623, %v5881
      %5883 = vmatmul.bf16.gmra.mxu0 %v2584
      %v5884 = vpop.f32.mrf.mxu0
      %v5885 = vadd.f32 %v5626, %v5884
      %v5886 = vpop.f32.mrf.mxu0
      %v5887 = vadd.f32 %v5628, %v5886
      %5888 = vmatmul.bf16.gmra.mxu0 %v2585
      %v5889 = vpop.f32.mrf.mxu0
      %v5890 = vadd.f32 %v5631, %v5889
      %v5891 = vpop.f32.mrf.mxu0
      %v5892 = vadd.f32 %v5633, %v5891
      %5893 = vmatmul.bf16.gmra.mxu0 %v2586
      %v5894 = vpop.f32.mrf.mxu0
      %v5895 = vadd.f32 %v5636, %v5894
      %v5896 = vpop.f32.mrf.mxu0
      %v5897 = vadd.f32 %v5638, %v5896
      %5898 = vmatmul.bf16.gmra.mxu0 %v2587
      %v5899 = vpop.f32.mrf.mxu0
      %v5900 = vadd.f32 %v5641, %v5899
      %v5901 = vpop.f32.mrf.mxu0
      %v5902 = vadd.f32 %v5643, %v5901
      %5903 = vmatmul.bf16.gmra.mxu0 %v2588
      %v5904 = vpop.f32.mrf.mxu0
      %v5905 = vadd.f32 %v5646, %v5904
      %v5906 = vpop.f32.mrf.mxu0
      %v5907 = vadd.f32 %v5648, %v5906
      %5908 = vmatmul.bf16.gmra.mxu0 %v2589
      %v5909 = vpop.f32.mrf.mxu0
      %v5910 = vadd.f32 %v5651, %v5909
      %v5911 = vpop.f32.mrf.mxu0
      %v5912 = vadd.f32 %v5653, %v5911
      %5913 = vmatmul.bf16.gmra.mxu0 %v2590
      %v5914 = vpop.f32.mrf.mxu0
      %v5915 = vadd.f32 %v5656, %v5914
      %v5916 = vpop.f32.mrf.mxu0
      %v5917 = vadd.f32 %v5658, %v5916
      %5918 = vmatmul.bf16.gmra.mxu0 %v2591
      %v5919 = vpop.f32.mrf.mxu0
      %v5920 = vadd.f32 %v5661, %v5919
      %v5921 = vpop.f32.mrf.mxu0
      %v5922 = vadd.f32 %v5663, %v5921
      %5923 = vmatmul.bf16.gmra.mxu0 %v2592
      %v5924 = vpop.f32.mrf.mxu0
      %v5925 = vadd.f32 %v5666, %v5924
      %v5926 = vpop.f32.mrf.mxu0
      %v5927 = vadd.f32 %v5668, %v5926
      %5928 = vmatmul.bf16.gmra.mxu0 %v2593
      %v5929 = vpop.f32.mrf.mxu0
      %v5930 = vadd.f32 %v5671, %v5929
      %v5931 = vpop.f32.mrf.mxu0
      %v5932 = vadd.f32 %v5673, %v5931
      %5933 = vmatmul.bf16.gmra.mxu0 %v2594
      %v5934 = vpop.f32.mrf.mxu0
      %v5935 = vadd.f32 %v5676, %v5934
      %v5936 = vpop.f32.mrf.mxu0
      %v5937 = vadd.f32 %v5678, %v5936
      %5938 = vmatmul.bf16.gmra.mxu0 %v2595
      %v5939 = vpop.f32.mrf.mxu0
      %v5940 = vadd.f32 %v5681, %v5939
      %v5941 = vpop.f32.mrf.mxu0
      %v5942 = vadd.f32 %v5683, %v5941
      %5943 = vmatmul.bf16.gmra.mxu0 %v2596
      %v5944 = vpop.f32.mrf.mxu0
      %v5945 = vadd.f32 %v5686, %v5944
      %v5946 = vpop.f32.mrf.mxu0
      %v5947 = vadd.f32 %v5688, %v5946
      %5948 = vmatmul.bf16.gmra.mxu0 %v2597
      %v5949 = vpop.f32.mrf.mxu0
      %v5950 = vadd.f32 %v5691, %v5949
      %v5951 = vpop.f32.mrf.mxu0
      %v5952 = vadd.f32 %v5693, %v5951
      %5953 = vmatmul.bf16.gmra.mxu0 %v2598
      %v5954 = vpop.f32.mrf.mxu0
      %v5955 = vadd.f32 %v5696, %v5954
      %v5956 = vpop.f32.mrf.mxu0
      %v5957 = vadd.f32 %v5698, %v5956
      %5958 = vmatmul.bf16.gmra.mxu0 %v2599
      %v5959 = vpop.f32.mrf.mxu0
      %v5960 = vadd.f32 %v5701, %v5959
      %v5961 = vpop.f32.mrf.mxu0
      %v5962 = vadd.f32 %v5703, %v5961
      %5963 = vmatmul.bf16.gmra.mxu0 %v2600
      %v5964 = vpop.f32.mrf.mxu0
      %v5965 = vadd.f32 %v5706, %v5964
      %v5966 = vpop.f32.mrf.mxu0
      %v5967 = vadd.f32 %v5708, %v5966
      %5968 = vmatmul.bf16.gmra.mxu0 %v2601
      %v5969 = vpop.f32.mrf.mxu0
      %v5970 = vadd.f32 %v5711, %v5969
      %v5971 = vpop.f32.mrf.mxu0
      %v5972 = vadd.f32 %v5713, %v5971
      %5973 = vmatmul.bf16.gmra.mxu0 %v2602
      %v5974 = vpop.f32.mrf.mxu0
      %v5975 = vadd.f32 %v5716, %v5974
      %v5976 = vpop.f32.mrf.mxu0
      %v5977 = vadd.f32 %v5718, %v5976
      %5978 = vmatmul.bf16.gmra.mxu0 %v2603
      %v5979 = vpop.f32.mrf.mxu0
      %v5980 = vadd.f32 %v5721, %v5979
      %v5981 = vpop.f32.mrf.mxu0
      %v5982 = vadd.f32 %v5723, %v5981
      %5983 = vmatmul.bf16.gmra.mxu0 %v2604
      %v5984 = vpop.f32.mrf.mxu0
      %v5985 = vadd.f32 %v5726, %v5984
      %v5986 = vpop.f32.mrf.mxu0
      %v5987 = vadd.f32 %v5728, %v5986
      %5988 = vmatmul.bf16.gmra.mxu0 %v2605
      %v5989 = vpop.f32.mrf.mxu0
      %v5990 = vadd.f32 %v5731, %v5989
      %v5991 = vpop.f32.mrf.mxu0
      %v5992 = vadd.f32 %v5733, %v5991
      %5993 = vmatmul.bf16.gmra.mxu0 %v2606
      %v5994 = vpop.f32.mrf.mxu0
      %v5995 = vadd.f32 %v5736, %v5994
      %v5996 = vpop.f32.mrf.mxu0
      %v5997 = vadd.f32 %v5738, %v5996
      %5998 = vmatmul.bf16.gmra.mxu0 %v2607
      %v5999 = vpop.f32.mrf.mxu0
      %v6000 = vadd.f32 %v5741, %v5999
      %v6001 = vpop.f32.mrf.mxu0
      %v6002 = vadd.f32 %v5743, %v6001
      %6003 = vmatmul.bf16.gmra.mxu0 %v2608
      %v6004 = vpop.f32.mrf.mxu0
      %v6005 = vadd.f32 %v5746, %v6004
      %v6006 = vpop.f32.mrf.mxu0
      %v6007 = vadd.f32 %v5748, %v6006
      %6008 = vmatmul.bf16.gmra.mxu0 %v2609
      %v6009 = vpop.f32.mrf.mxu0
      %v6010 = vadd.f32 %v5751, %v6009
      %v6011 = vpop.f32.mrf.mxu0
      %v6012 = vadd.f32 %v5753, %v6011
      %6013 = vmatmul.bf16.gmra.mxu0 %v2610
      %v6014 = vpop.f32.mrf.mxu0
      %v6015 = vadd.f32 %v5756, %v6014
      %v6016 = vpop.f32.mrf.mxu0
      %v6017 = vadd.f32 %v5758, %v6016
      %6018 = vmatmul.bf16.gmra.mxu0 %v2611
      %v6019 = vpop.f32.mrf.mxu0
      %v6020 = vadd.f32 %v5761, %v6019
      %v6021 = vpop.f32.mrf.mxu0
      %v6022 = vadd.f32 %v5763, %v6021
      %6023 = vmatmul.bf16.gmra.mxu0 %v2612
      %v6024 = vpop.f32.mrf.mxu0
      %v6025 = vadd.f32 %v5766, %v6024
      %v6026 = vpop.f32.mrf.mxu0
      %v6027 = vadd.f32 %v5768, %v6026
      %6028 = vmatmul.bf16.gmra.mxu0 %v2613
      %v6029 = vpop.f32.mrf.mxu0
      %v6030 = vadd.f32 %v5771, %v6029
      %v6031 = vpop.f32.mrf.mxu0
      %v6032 = vadd.f32 %v5773, %v6031
      %6033 = vmatmul.bf16.gmra.mxu0 %v2614
      %v6034 = vpop.f32.mrf.mxu0
      %v6035 = vadd.f32 %v5776, %v6034
      %v6036 = vpop.f32.mrf.mxu0
      %v6037 = vadd.f32 %v5778, %v6036
      %6038 = vmatmul.bf16.gmra.mxu0 %v2615
      %v6039 = vpop.f32.mrf.mxu0
      %v6040 = vadd.f32 %v5781, %v6039
      %v6041 = vpop.f32.mrf.mxu0
      %v6042 = vadd.f32 %v5783, %v6041
      %6043 = vmatmul.bf16.gmra.mxu0 %v2616
      %v6044 = vpop.f32.mrf.mxu0
      %v6045 = vadd.f32 %v5786, %v6044
      %v6046 = vpop.f32.mrf.mxu0
      %v6047 = vadd.f32 %v5788, %v6046
      %6048 = vmatmul.bf16.gmra.mxu0 %v2617
      %v6049 = vpop.f32.mrf.mxu0
      %v6050 = vadd.f32 %v5791, %v6049
      %v6051 = vpop.f32.mrf.mxu0
      %v6052 = vadd.f32 %v5793, %v6051
      %6053 = vmatmul.bf16.gmra.mxu0 %v2618
      %v6054 = vpop.f32.mrf.mxu0
      %v6055 = vadd.f32 %v5796, %v6054
      %v6056 = vpop.f32.mrf.mxu0
      %v6057 = vadd.f32 %v5798, %v6056
      %6058 = vmatmul.bf16.gmra.mxu0 %v2619
      %v6059 = vpop.f32.mrf.mxu0
      %v6060 = vadd.f32 %v5801, %v6059
      %v6061 = vpop.f32.mrf.mxu0
      %v6062 = vadd.f32 %v5803, %v6061
      %6063 = vmatmul.bf16.gmra.mxu0 %v2620
      %v6064 = vpop.f32.mrf.mxu0
      %v6065 = vadd.f32 %v5806, %v6064
      %v6066 = vpop.f32.mrf.mxu0
      %v6067 = vadd.f32 %v5808, %v6066
      %6068 = vdwg.mxu0
      %6069 = vmatpush.bf16.msra.mxu0 %v3262
      %6070 = vmatpush.bf16.msra.mxu0 %v3259
      %6071 = vmatpush.bf16.msra.mxu0 %v3256
      %6072 = vmatpush.bf16.msra.mxu0 %v3253
      %6073 = vmatpush.bf16.msra.mxu0 %v3250
      %6074 = vmatpush.bf16.msra.mxu0 %v3247
      %6075 = vmatpush.bf16.msra.mxu0 %v3244
      %6076 = vmatpush.bf16.msra.mxu0 %v3241
      %6077 = vmatmul.bf16.gmra.mxu0 %v1371
      %v6078 = vpop.f32.mrf.mxu0
      %v6079 = vadd.f32 %v2835, %v6078
      %v6080 = vpop.f32.mrf.mxu0
      %v6081 = vadd.f32 %v2835, %v6080
      %6082 = vmatmul.bf16.gmra.mxu0 %v1372
      %v6083 = vpop.f32.mrf.mxu0
      %v6084 = vadd.f32 %v2835, %v6083
      %v6085 = vpop.f32.mrf.mxu0
      %v6086 = vadd.f32 %v2835, %v6085
      %6087 = vmatmul.bf16.gmra.mxu0 %v1373
      %v6088 = vpop.f32.mrf.mxu0
      %v6089 = vadd.f32 %v2835, %v6088
      %v6090 = vpop.f32.mrf.mxu0
      %v6091 = vadd.f32 %v2835, %v6090
      %6092 = vmatmul.bf16.gmra.mxu0 %v1374
      %v6093 = vpop.f32.mrf.mxu0
      %v6094 = vadd.f32 %v2835, %v6093
      %v6095 = vpop.f32.mrf.mxu0
      %v6096 = vadd.f32 %v2835, %v6095
      %6097 = vmatmul.bf16.gmra.mxu0 %v1375
      %v6098 = vpop.f32.mrf.mxu0
      %v6099 = vadd.f32 %v2835, %v6098
      %v6100 = vpop.f32.mrf.mxu0
      %v6101 = vadd.f32 %v2835, %v6100
      %6102 = vmatmul.bf16.gmra.mxu0 %v1376
      %v6103 = vpop.f32.mrf.mxu0
      %v6104 = vadd.f32 %v2835, %v6103
      %v6105 = vpop.f32.mrf.mxu0
      %v6106 = vadd.f32 %v2835, %v6105
      %6107 = vmatmul.bf16.gmra.mxu0 %v1377
      %v6108 = vpop.f32.mrf.mxu0
      %v6109 = vadd.f32 %v2835, %v6108
      %v6110 = vpop.f32.mrf.mxu0
      %v6111 = vadd.f32 %v2835, %v6110
      %6112 = vmatmul.bf16.gmra.mxu0 %v1378
      %v6113 = vpop.f32.mrf.mxu0
      %v6114 = vadd.f32 %v2835, %v6113
      %v6115 = vpop.f32.mrf.mxu0
      %v6116 = vadd.f32 %v2835, %v6115
      %6117 = vmatmul.bf16.gmra.mxu0 %v1379
      %v6118 = vpop.f32.mrf.mxu0
      %v6119 = vadd.f32 %v2835, %v6118
      %v6120 = vpop.f32.mrf.mxu0
      %v6121 = vadd.f32 %v2835, %v6120
      %6122 = vmatmul.bf16.gmra.mxu0 %v1380
      %v6123 = vpop.f32.mrf.mxu0
      %v6124 = vadd.f32 %v2835, %v6123
      %v6125 = vpop.f32.mrf.mxu0
      %v6126 = vadd.f32 %v2835, %v6125
      %6127 = vmatmul.bf16.gmra.mxu0 %v1381
      %v6128 = vpop.f32.mrf.mxu0
      %v6129 = vadd.f32 %v2835, %v6128
      %v6130 = vpop.f32.mrf.mxu0
      %v6131 = vadd.f32 %v2835, %v6130
      %6132 = vmatmul.bf16.gmra.mxu0 %v1382
      %v6133 = vpop.f32.mrf.mxu0
      %v6134 = vadd.f32 %v2835, %v6133
      %v6135 = vpop.f32.mrf.mxu0
      %v6136 = vadd.f32 %v2835, %v6135
      %6137 = vmatmul.bf16.gmra.mxu0 %v1383
      %v6138 = vpop.f32.mrf.mxu0
      %v6139 = vadd.f32 %v2835, %v6138
      %v6140 = vpop.f32.mrf.mxu0
      %v6141 = vadd.f32 %v2835, %v6140
      %6142 = vmatmul.bf16.gmra.mxu0 %v1384
      %v6143 = vpop.f32.mrf.mxu0
      %v6144 = vadd.f32 %v2835, %v6143
      %v6145 = vpop.f32.mrf.mxu0
      %v6146 = vadd.f32 %v2835, %v6145
      %6147 = vmatmul.bf16.gmra.mxu0 %v1385
      %v6148 = vpop.f32.mrf.mxu0
      %v6149 = vadd.f32 %v2835, %v6148
      %v6150 = vpop.f32.mrf.mxu0
      %v6151 = vadd.f32 %v2835, %v6150
      %6152 = vmatmul.bf16.gmra.mxu0 %v1386
      %v6153 = vpop.f32.mrf.mxu0
      %v6154 = vadd.f32 %v2835, %v6153
      %v6155 = vpop.f32.mrf.mxu0
      %v6156 = vadd.f32 %v2835, %v6155
      %6157 = vmatmul.bf16.gmra.mxu0 %v1387
      %v6158 = vpop.f32.mrf.mxu0
      %v6159 = vadd.f32 %v2835, %v6158
      %v6160 = vpop.f32.mrf.mxu0
      %v6161 = vadd.f32 %v2835, %v6160
      %6162 = vmatmul.bf16.gmra.mxu0 %v1388
      %v6163 = vpop.f32.mrf.mxu0
      %v6164 = vadd.f32 %v2835, %v6163
      %v6165 = vpop.f32.mrf.mxu0
      %v6166 = vadd.f32 %v2835, %v6165
      %6167 = vmatmul.bf16.gmra.mxu0 %v1389
      %v6168 = vpop.f32.mrf.mxu0
      %v6169 = vadd.f32 %v2835, %v6168
      %v6170 = vpop.f32.mrf.mxu0
      %v6171 = vadd.f32 %v2835, %v6170
      %6172 = vmatmul.bf16.gmra.mxu0 %v1390
      %v6173 = vpop.f32.mrf.mxu0
      %v6174 = vadd.f32 %v2835, %v6173
      %v6175 = vpop.f32.mrf.mxu0
      %v6176 = vadd.f32 %v2835, %v6175
      %6177 = vmatmul.bf16.gmra.mxu0 %v1391
      %v6178 = vpop.f32.mrf.mxu0
      %v6179 = vadd.f32 %v2835, %v6178
      %v6180 = vpop.f32.mrf.mxu0
      %v6181 = vadd.f32 %v2835, %v6180
      %6182 = vmatmul.bf16.gmra.mxu0 %v1392
      %v6183 = vpop.f32.mrf.mxu0
      %v6184 = vadd.f32 %v2835, %v6183
      %v6185 = vpop.f32.mrf.mxu0
      %v6186 = vadd.f32 %v2835, %v6185
      %6187 = vmatmul.bf16.gmra.mxu0 %v1393
      %v6188 = vpop.f32.mrf.mxu0
      %v6189 = vadd.f32 %v2835, %v6188
      %v6190 = vpop.f32.mrf.mxu0
      %v6191 = vadd.f32 %v2835, %v6190
      %6192 = vmatmul.bf16.gmra.mxu0 %v1394
      %v6193 = vpop.f32.mrf.mxu0
      %v6194 = vadd.f32 %v2835, %v6193
      %v6195 = vpop.f32.mrf.mxu0
      %v6196 = vadd.f32 %v2835, %v6195
      %6197 = vmatmul.bf16.gmra.mxu0 %v1395
      %v6198 = vpop.f32.mrf.mxu0
      %v6199 = vadd.f32 %v2835, %v6198
      %v6200 = vpop.f32.mrf.mxu0
      %v6201 = vadd.f32 %v2835, %v6200
      %6202 = vmatmul.bf16.gmra.mxu0 %v1396
      %v6203 = vpop.f32.mrf.mxu0
      %v6204 = vadd.f32 %v2835, %v6203
      %v6205 = vpop.f32.mrf.mxu0
      %v6206 = vadd.f32 %v2835, %v6205
      %6207 = vmatmul.bf16.gmra.mxu0 %v1397
      %v6208 = vpop.f32.mrf.mxu0
      %v6209 = vadd.f32 %v2835, %v6208
      %v6210 = vpop.f32.mrf.mxu0
      %v6211 = vadd.f32 %v2835, %v6210
      %6212 = vmatmul.bf16.gmra.mxu0 %v1398
      %v6213 = vpop.f32.mrf.mxu0
      %v6214 = vadd.f32 %v2835, %v6213
      %v6215 = vpop.f32.mrf.mxu0
      %v6216 = vadd.f32 %v2835, %v6215
      %6217 = vmatmul.bf16.gmra.mxu0 %v1399
      %v6218 = vpop.f32.mrf.mxu0
      %v6219 = vadd.f32 %v2835, %v6218
      %v6220 = vpop.f32.mrf.mxu0
      %v6221 = vadd.f32 %v2835, %v6220
      %6222 = vmatmul.bf16.gmra.mxu0 %v1400
      %v6223 = vpop.f32.mrf.mxu0
      %v6224 = vadd.f32 %v2835, %v6223
      %v6225 = vpop.f32.mrf.mxu0
      %v6226 = vadd.f32 %v2835, %v6225
      %6227 = vmatmul.bf16.gmra.mxu0 %v1401
      %v6228 = vpop.f32.mrf.mxu0
      %v6229 = vadd.f32 %v2835, %v6228
      %v6230 = vpop.f32.mrf.mxu0
      %v6231 = vadd.f32 %v2835, %v6230
      %6232 = vmatmul.bf16.gmra.mxu0 %v1402
      %v6233 = vpop.f32.mrf.mxu0
      %v6234 = vadd.f32 %v2835, %v6233
      %v6235 = vpop.f32.mrf.mxu0
      %v6236 = vadd.f32 %v2835, %v6235
      %6237 = vmatmul.bf16.gmra.mxu0 %v1403
      %v6238 = vpop.f32.mrf.mxu0
      %v6239 = vadd.f32 %v2835, %v6238
      %v6240 = vpop.f32.mrf.mxu0
      %v6241 = vadd.f32 %v2835, %v6240
      %6242 = vmatmul.bf16.gmra.mxu0 %v1404
      %v6243 = vpop.f32.mrf.mxu0
      %v6244 = vadd.f32 %v2835, %v6243
      %v6245 = vpop.f32.mrf.mxu0
      %v6246 = vadd.f32 %v2835, %v6245
      %6247 = vmatmul.bf16.gmra.mxu0 %v1405
      %v6248 = vpop.f32.mrf.mxu0
      %v6249 = vadd.f32 %v2835, %v6248
      %v6250 = vpop.f32.mrf.mxu0
      %v6251 = vadd.f32 %v2835, %v6250
      %6252 = vmatmul.bf16.gmra.mxu0 %v1406
      %v6253 = vpop.f32.mrf.mxu0
      %v6254 = vadd.f32 %v2835, %v6253
      %v6255 = vpop.f32.mrf.mxu0
      %v6256 = vadd.f32 %v2835, %v6255
      %6257 = vmatmul.bf16.gmra.mxu0 %v1407
      %v6258 = vpop.f32.mrf.mxu0
      %v6259 = vadd.f32 %v2835, %v6258
      %v6260 = vpop.f32.mrf.mxu0
      %v6261 = vadd.f32 %v2835, %v6260
      %6262 = vmatmul.bf16.gmra.mxu0 %v1408
      %v6263 = vpop.f32.mrf.mxu0
      %v6264 = vadd.f32 %v2835, %v6263
      %v6265 = vpop.f32.mrf.mxu0
      %v6266 = vadd.f32 %v2835, %v6265
      %6267 = vmatmul.bf16.gmra.mxu0 %v1409
      %v6268 = vpop.f32.mrf.mxu0
      %v6269 = vadd.f32 %v2835, %v6268
      %v6270 = vpop.f32.mrf.mxu0
      %v6271 = vadd.f32 %v2835, %v6270
      %6272 = vmatmul.bf16.gmra.mxu0 %v1410
      %v6273 = vpop.f32.mrf.mxu0
      %v6274 = vadd.f32 %v2835, %v6273
      %v6275 = vpop.f32.mrf.mxu0
      %v6276 = vadd.f32 %v2835, %v6275
      %6277 = vmatmul.bf16.gmra.mxu0 %v1411
      %v6278 = vpop.f32.mrf.mxu0
      %v6279 = vadd.f32 %v2835, %v6278
      %v6280 = vpop.f32.mrf.mxu0
      %v6281 = vadd.f32 %v2835, %v6280
      %6282 = vmatmul.bf16.gmra.mxu0 %v1412
      %v6283 = vpop.f32.mrf.mxu0
      %v6284 = vadd.f32 %v2835, %v6283
      %v6285 = vpop.f32.mrf.mxu0
      %v6286 = vadd.f32 %v2835, %v6285
      %6287 = vmatmul.bf16.gmra.mxu0 %v1413
      %v6288 = vpop.f32.mrf.mxu0
      %v6289 = vadd.f32 %v2835, %v6288
      %v6290 = vpop.f32.mrf.mxu0
      %v6291 = vadd.f32 %v2835, %v6290
      %6292 = vmatmul.bf16.gmra.mxu0 %v1414
      %v6293 = vpop.f32.mrf.mxu0
      %v6294 = vadd.f32 %v2835, %v6293
      %v6295 = vpop.f32.mrf.mxu0
      %v6296 = vadd.f32 %v2835, %v6295
      %6297 = vmatmul.bf16.gmra.mxu0 %v1415
      %v6298 = vpop.f32.mrf.mxu0
      %v6299 = vadd.f32 %v2835, %v6298
      %v6300 = vpop.f32.mrf.mxu0
      %v6301 = vadd.f32 %v2835, %v6300
      %6302 = vmatmul.bf16.gmra.mxu0 %v1416
      %v6303 = vpop.f32.mrf.mxu0
      %v6304 = vadd.f32 %v2835, %v6303
      %v6305 = vpop.f32.mrf.mxu0
      %v6306 = vadd.f32 %v2835, %v6305
      %6307 = vmatmul.bf16.gmra.mxu0 %v1417
      %v6308 = vpop.f32.mrf.mxu0
      %v6309 = vadd.f32 %v2835, %v6308
      %v6310 = vpop.f32.mrf.mxu0
      %v6311 = vadd.f32 %v2835, %v6310
      %6312 = vmatmul.bf16.gmra.mxu0 %v1418
      %v6313 = vpop.f32.mrf.mxu0
      %v6314 = vadd.f32 %v2835, %v6313
      %v6315 = vpop.f32.mrf.mxu0
      %v6316 = vadd.f32 %v2835, %v6315
      %6317 = vmatmul.bf16.gmra.mxu0 %v1419
      %v6318 = vpop.f32.mrf.mxu0
      %v6319 = vadd.f32 %v2835, %v6318
      %v6320 = vpop.f32.mrf.mxu0
      %v6321 = vadd.f32 %v2835, %v6320
      %6322 = vmatmul.bf16.gmra.mxu0 %v1420
      %v6323 = vpop.f32.mrf.mxu0
      %v6324 = vadd.f32 %v2835, %v6323
      %v6325 = vpop.f32.mrf.mxu0
      %v6326 = vadd.f32 %v2835, %v6325
      %6327 = vdwg.mxu0
      %6328 = vmatpush.bf16.msra.mxu0 %v3286
      %6329 = vmatpush.bf16.msra.mxu0 %v3283
      %6330 = vmatpush.bf16.msra.mxu0 %v3280
      %6331 = vmatpush.bf16.msra.mxu0 %v3277
      %6332 = vmatpush.bf16.msra.mxu0 %v3274
      %6333 = vmatpush.bf16.msra.mxu0 %v3271
      %6334 = vmatpush.bf16.msra.mxu0 %v3268
      %6335 = vmatpush.bf16.msra.mxu0 %v3265
      %6336 = vmatmul.bf16.gmra.mxu0 %v1671
      %v6337 = vpop.f32.mrf.mxu0
      %v6338 = vadd.f32 %v6079, %v6337
      %v6339 = vpop.f32.mrf.mxu0
      %v6340 = vadd.f32 %v6081, %v6339
      %6341 = vmatmul.bf16.gmra.mxu0 %v1672
      %v6342 = vpop.f32.mrf.mxu0
      %v6343 = vadd.f32 %v6084, %v6342
      %v6344 = vpop.f32.mrf.mxu0
      %v6345 = vadd.f32 %v6086, %v6344
      %6346 = vmatmul.bf16.gmra.mxu0 %v1673
      %v6347 = vpop.f32.mrf.mxu0
      %v6348 = vadd.f32 %v6089, %v6347
      %v6349 = vpop.f32.mrf.mxu0
      %v6350 = vadd.f32 %v6091, %v6349
      %6351 = vmatmul.bf16.gmra.mxu0 %v1674
      %v6352 = vpop.f32.mrf.mxu0
      %v6353 = vadd.f32 %v6094, %v6352
      %v6354 = vpop.f32.mrf.mxu0
      %v6355 = vadd.f32 %v6096, %v6354
      %6356 = vmatmul.bf16.gmra.mxu0 %v1675
      %v6357 = vpop.f32.mrf.mxu0
      %v6358 = vadd.f32 %v6099, %v6357
      %v6359 = vpop.f32.mrf.mxu0
      %v6360 = vadd.f32 %v6101, %v6359
      %6361 = vmatmul.bf16.gmra.mxu0 %v1676
      %v6362 = vpop.f32.mrf.mxu0
      %v6363 = vadd.f32 %v6104, %v6362
      %v6364 = vpop.f32.mrf.mxu0
      %v6365 = vadd.f32 %v6106, %v6364
      %6366 = vmatmul.bf16.gmra.mxu0 %v1677
      %v6367 = vpop.f32.mrf.mxu0
      %v6368 = vadd.f32 %v6109, %v6367
      %v6369 = vpop.f32.mrf.mxu0
      %v6370 = vadd.f32 %v6111, %v6369
      %6371 = vmatmul.bf16.gmra.mxu0 %v1678
      %v6372 = vpop.f32.mrf.mxu0
      %v6373 = vadd.f32 %v6114, %v6372
      %v6374 = vpop.f32.mrf.mxu0
      %v6375 = vadd.f32 %v6116, %v6374
      %6376 = vmatmul.bf16.gmra.mxu0 %v1679
      %v6377 = vpop.f32.mrf.mxu0
      %v6378 = vadd.f32 %v6119, %v6377
      %v6379 = vpop.f32.mrf.mxu0
      %v6380 = vadd.f32 %v6121, %v6379
      %6381 = vmatmul.bf16.gmra.mxu0 %v1680
      %v6382 = vpop.f32.mrf.mxu0
      %v6383 = vadd.f32 %v6124, %v6382
      %v6384 = vpop.f32.mrf.mxu0
      %v6385 = vadd.f32 %v6126, %v6384
      %6386 = vmatmul.bf16.gmra.mxu0 %v1681
      %v6387 = vpop.f32.mrf.mxu0
      %v6388 = vadd.f32 %v6129, %v6387
      %v6389 = vpop.f32.mrf.mxu0
      %v6390 = vadd.f32 %v6131, %v6389
      %6391 = vmatmul.bf16.gmra.mxu0 %v1682
      %v6392 = vpop.f32.mrf.mxu0
      %v6393 = vadd.f32 %v6134, %v6392
      %v6394 = vpop.f32.mrf.mxu0
      %v6395 = vadd.f32 %v6136, %v6394
      %6396 = vmatmul.bf16.gmra.mxu0 %v1683
      %v6397 = vpop.f32.mrf.mxu0
      %v6398 = vadd.f32 %v6139, %v6397
      %v6399 = vpop.f32.mrf.mxu0
      %v6400 = vadd.f32 %v6141, %v6399
      %6401 = vmatmul.bf16.gmra.mxu0 %v1684
      %v6402 = vpop.f32.mrf.mxu0
      %v6403 = vadd.f32 %v6144, %v6402
      %v6404 = vpop.f32.mrf.mxu0
      %v6405 = vadd.f32 %v6146, %v6404
      %6406 = vmatmul.bf16.gmra.mxu0 %v1685
      %v6407 = vpop.f32.mrf.mxu0
      %v6408 = vadd.f32 %v6149, %v6407
      %v6409 = vpop.f32.mrf.mxu0
      %v6410 = vadd.f32 %v6151, %v6409
      %6411 = vmatmul.bf16.gmra.mxu0 %v1686
      %v6412 = vpop.f32.mrf.mxu0
      %v6413 = vadd.f32 %v6154, %v6412
      %v6414 = vpop.f32.mrf.mxu0
      %v6415 = vadd.f32 %v6156, %v6414
      %6416 = vmatmul.bf16.gmra.mxu0 %v1687
      %v6417 = vpop.f32.mrf.mxu0
      %v6418 = vadd.f32 %v6159, %v6417
      %v6419 = vpop.f32.mrf.mxu0
      %v6420 = vadd.f32 %v6161, %v6419
      %6421 = vmatmul.bf16.gmra.mxu0 %v1688
      %v6422 = vpop.f32.mrf.mxu0
      %v6423 = vadd.f32 %v6164, %v6422
      %v6424 = vpop.f32.mrf.mxu0
      %v6425 = vadd.f32 %v6166, %v6424
      %6426 = vmatmul.bf16.gmra.mxu0 %v1689
      %v6427 = vpop.f32.mrf.mxu0
      %v6428 = vadd.f32 %v6169, %v6427
      %v6429 = vpop.f32.mrf.mxu0
      %v6430 = vadd.f32 %v6171, %v6429
      %6431 = vmatmul.bf16.gmra.mxu0 %v1690
      %v6432 = vpop.f32.mrf.mxu0
      %v6433 = vadd.f32 %v6174, %v6432
      %v6434 = vpop.f32.mrf.mxu0
      %v6435 = vadd.f32 %v6176, %v6434
      %6436 = vmatmul.bf16.gmra.mxu0 %v1691
      %v6437 = vpop.f32.mrf.mxu0
      %v6438 = vadd.f32 %v6179, %v6437
      %v6439 = vpop.f32.mrf.mxu0
      %v6440 = vadd.f32 %v6181, %v6439
      %6441 = vmatmul.bf16.gmra.mxu0 %v1692
      %v6442 = vpop.f32.mrf.mxu0
      %v6443 = vadd.f32 %v6184, %v6442
      %v6444 = vpop.f32.mrf.mxu0
      %v6445 = vadd.f32 %v6186, %v6444
      %6446 = vmatmul.bf16.gmra.mxu0 %v1693
      %v6447 = vpop.f32.mrf.mxu0
      %v6448 = vadd.f32 %v6189, %v6447
      %v6449 = vpop.f32.mrf.mxu0
      %v6450 = vadd.f32 %v6191, %v6449
      %6451 = vmatmul.bf16.gmra.mxu0 %v1694
      %v6452 = vpop.f32.mrf.mxu0
      %v6453 = vadd.f32 %v6194, %v6452
      %v6454 = vpop.f32.mrf.mxu0
      %v6455 = vadd.f32 %v6196, %v6454
      %6456 = vmatmul.bf16.gmra.mxu0 %v1695
      %v6457 = vpop.f32.mrf.mxu0
      %v6458 = vadd.f32 %v6199, %v6457
      %v6459 = vpop.f32.mrf.mxu0
      %v6460 = vadd.f32 %v6201, %v6459
      %6461 = vmatmul.bf16.gmra.mxu0 %v1696
      %v6462 = vpop.f32.mrf.mxu0
      %v6463 = vadd.f32 %v6204, %v6462
      %v6464 = vpop.f32.mrf.mxu0
      %v6465 = vadd.f32 %v6206, %v6464
      %6466 = vmatmul.bf16.gmra.mxu0 %v1697
      %v6467 = vpop.f32.mrf.mxu0
      %v6468 = vadd.f32 %v6209, %v6467
      %v6469 = vpop.f32.mrf.mxu0
      %v6470 = vadd.f32 %v6211, %v6469
      %6471 = vmatmul.bf16.gmra.mxu0 %v1698
      %v6472 = vpop.f32.mrf.mxu0
      %v6473 = vadd.f32 %v6214, %v6472
      %v6474 = vpop.f32.mrf.mxu0
      %v6475 = vadd.f32 %v6216, %v6474
      %6476 = vmatmul.bf16.gmra.mxu0 %v1699
      %v6477 = vpop.f32.mrf.mxu0
      %v6478 = vadd.f32 %v6219, %v6477
      %v6479 = vpop.f32.mrf.mxu0
      %v6480 = vadd.f32 %v6221, %v6479
      %6481 = vmatmul.bf16.gmra.mxu0 %v1700
      %v6482 = vpop.f32.mrf.mxu0
      %v6483 = vadd.f32 %v6224, %v6482
      %v6484 = vpop.f32.mrf.mxu0
      %v6485 = vadd.f32 %v6226, %v6484
      %6486 = vmatmul.bf16.gmra.mxu0 %v1701
      %v6487 = vpop.f32.mrf.mxu0
      %v6488 = vadd.f32 %v6229, %v6487
      %v6489 = vpop.f32.mrf.mxu0
      %v6490 = vadd.f32 %v6231, %v6489
      %6491 = vmatmul.bf16.gmra.mxu0 %v1702
      %v6492 = vpop.f32.mrf.mxu0
      %v6493 = vadd.f32 %v6234, %v6492
      %v6494 = vpop.f32.mrf.mxu0
      %v6495 = vadd.f32 %v6236, %v6494
      %6496 = vmatmul.bf16.gmra.mxu0 %v1703
      %v6497 = vpop.f32.mrf.mxu0
      %v6498 = vadd.f32 %v6239, %v6497
      %v6499 = vpop.f32.mrf.mxu0
      %v6500 = vadd.f32 %v6241, %v6499
      %6501 = vmatmul.bf16.gmra.mxu0 %v1704
      %v6502 = vpop.f32.mrf.mxu0
      %v6503 = vadd.f32 %v6244, %v6502
      %v6504 = vpop.f32.mrf.mxu0
      %v6505 = vadd.f32 %v6246, %v6504
      %6506 = vmatmul.bf16.gmra.mxu0 %v1705
      %v6507 = vpop.f32.mrf.mxu0
      %v6508 = vadd.f32 %v6249, %v6507
      %v6509 = vpop.f32.mrf.mxu0
      %v6510 = vadd.f32 %v6251, %v6509
      %6511 = vmatmul.bf16.gmra.mxu0 %v1706
      %v6512 = vpop.f32.mrf.mxu0
      %v6513 = vadd.f32 %v6254, %v6512
      %v6514 = vpop.f32.mrf.mxu0
      %v6515 = vadd.f32 %v6256, %v6514
      %6516 = vmatmul.bf16.gmra.mxu0 %v1707
      %v6517 = vpop.f32.mrf.mxu0
      %v6518 = vadd.f32 %v6259, %v6517
      %v6519 = vpop.f32.mrf.mxu0
      %v6520 = vadd.f32 %v6261, %v6519
      %6521 = vmatmul.bf16.gmra.mxu0 %v1708
      %v6522 = vpop.f32.mrf.mxu0
      %v6523 = vadd.f32 %v6264, %v6522
      %v6524 = vpop.f32.mrf.mxu0
      %v6525 = vadd.f32 %v6266, %v6524
      %6526 = vmatmul.bf16.gmra.mxu0 %v1709
      %v6527 = vpop.f32.mrf.mxu0
      %v6528 = vadd.f32 %v6269, %v6527
      %v6529 = vpop.f32.mrf.mxu0
      %v6530 = vadd.f32 %v6271, %v6529
      %6531 = vmatmul.bf16.gmra.mxu0 %v1710
      %v6532 = vpop.f32.mrf.mxu0
      %v6533 = vadd.f32 %v6274, %v6532
      %v6534 = vpop.f32.mrf.mxu0
      %v6535 = vadd.f32 %v6276, %v6534
      %6536 = vmatmul.bf16.gmra.mxu0 %v1711
      %v6537 = vpop.f32.mrf.mxu0
      %v6538 = vadd.f32 %v6279, %v6537
      %v6539 = vpop.f32.mrf.mxu0
      %v6540 = vadd.f32 %v6281, %v6539
      %6541 = vmatmul.bf16.gmra.mxu0 %v1712
      %v6542 = vpop.f32.mrf.mxu0
      %v6543 = vadd.f32 %v6284, %v6542
      %v6544 = vpop.f32.mrf.mxu0
      %v6545 = vadd.f32 %v6286, %v6544
      %6546 = vmatmul.bf16.gmra.mxu0 %v1713
      %v6547 = vpop.f32.mrf.mxu0
      %v6548 = vadd.f32 %v6289, %v6547
      %v6549 = vpop.f32.mrf.mxu0
      %v6550 = vadd.f32 %v6291, %v6549
      %6551 = vmatmul.bf16.gmra.mxu0 %v1714
      %v6552 = vpop.f32.mrf.mxu0
      %v6553 = vadd.f32 %v6294, %v6552
      %v6554 = vpop.f32.mrf.mxu0
      %v6555 = vadd.f32 %v6296, %v6554
      %6556 = vmatmul.bf16.gmra.mxu0 %v1715
      %v6557 = vpop.f32.mrf.mxu0
      %v6558 = vadd.f32 %v6299, %v6557
      %v6559 = vpop.f32.mrf.mxu0
      %v6560 = vadd.f32 %v6301, %v6559
      %6561 = vmatmul.bf16.gmra.mxu0 %v1716
      %v6562 = vpop.f32.mrf.mxu0
      %v6563 = vadd.f32 %v6304, %v6562
      %v6564 = vpop.f32.mrf.mxu0
      %v6565 = vadd.f32 %v6306, %v6564
      %6566 = vmatmul.bf16.gmra.mxu0 %v1717
      %v6567 = vpop.f32.mrf.mxu0
      %v6568 = vadd.f32 %v6309, %v6567
      %v6569 = vpop.f32.mrf.mxu0
      %v6570 = vadd.f32 %v6311, %v6569
      %6571 = vmatmul.bf16.gmra.mxu0 %v1718
      %v6572 = vpop.f32.mrf.mxu0
      %v6573 = vadd.f32 %v6314, %v6572
      %v6574 = vpop.f32.mrf.mxu0
      %v6575 = vadd.f32 %v6316, %v6574
      %6576 = vmatmul.bf16.gmra.mxu0 %v1719
      %v6577 = vpop.f32.mrf.mxu0
      %v6578 = vadd.f32 %v6319, %v6577
      %v6579 = vpop.f32.mrf.mxu0
      %v6580 = vadd.f32 %v6321, %v6579
      %6581 = vmatmul.bf16.gmra.mxu0 %v1720
      %v6582 = vpop.f32.mrf.mxu0
      %v6583 = vadd.f32 %v6324, %v6582
      %v6584 = vpop.f32.mrf.mxu0
      %v6585 = vadd.f32 %v6326, %v6584
      %6586 = vdwg.mxu0
      %6587 = vmatpush.bf16.msra.mxu0 %v3310
      %6588 = vmatpush.bf16.msra.mxu0 %v3307
      %6589 = vmatpush.bf16.msra.mxu0 %v3304
      %6590 = vmatpush.bf16.msra.mxu0 %v3301
      %6591 = vmatpush.bf16.msra.mxu0 %v3298
      %6592 = vmatpush.bf16.msra.mxu0 %v3295
      %6593 = vmatpush.bf16.msra.mxu0 %v3292
      %6594 = vmatpush.bf16.msra.mxu0 %v3289
      %6595 = vmatmul.bf16.gmra.mxu0 %v1971
      %v6596 = vpop.f32.mrf.mxu0
      %v6597 = vadd.f32 %v6338, %v6596
      %v6598 = vpop.f32.mrf.mxu0
      %v6599 = vadd.f32 %v6340, %v6598
      %6600 = vmatmul.bf16.gmra.mxu0 %v1972
      %v6601 = vpop.f32.mrf.mxu0
      %v6602 = vadd.f32 %v6343, %v6601
      %v6603 = vpop.f32.mrf.mxu0
      %v6604 = vadd.f32 %v6345, %v6603
      %6605 = vmatmul.bf16.gmra.mxu0 %v1973
      %v6606 = vpop.f32.mrf.mxu0
      %v6607 = vadd.f32 %v6348, %v6606
      %v6608 = vpop.f32.mrf.mxu0
      %v6609 = vadd.f32 %v6350, %v6608
      %6610 = vmatmul.bf16.gmra.mxu0 %v1974
      %v6611 = vpop.f32.mrf.mxu0
      %v6612 = vadd.f32 %v6353, %v6611
      %v6613 = vpop.f32.mrf.mxu0
      %v6614 = vadd.f32 %v6355, %v6613
      %6615 = vmatmul.bf16.gmra.mxu0 %v1975
      %v6616 = vpop.f32.mrf.mxu0
      %v6617 = vadd.f32 %v6358, %v6616
      %v6618 = vpop.f32.mrf.mxu0
      %v6619 = vadd.f32 %v6360, %v6618
      %6620 = vmatmul.bf16.gmra.mxu0 %v1976
      %v6621 = vpop.f32.mrf.mxu0
      %v6622 = vadd.f32 %v6363, %v6621
      %v6623 = vpop.f32.mrf.mxu0
      %v6624 = vadd.f32 %v6365, %v6623
      %6625 = vmatmul.bf16.gmra.mxu0 %v1977
      %v6626 = vpop.f32.mrf.mxu0
      %v6627 = vadd.f32 %v6368, %v6626
      %v6628 = vpop.f32.mrf.mxu0
      %v6629 = vadd.f32 %v6370, %v6628
      %6630 = vmatmul.bf16.gmra.mxu0 %v1978
      %v6631 = vpop.f32.mrf.mxu0
      %v6632 = vadd.f32 %v6373, %v6631
      %v6633 = vpop.f32.mrf.mxu0
      %v6634 = vadd.f32 %v6375, %v6633
      %6635 = vmatmul.bf16.gmra.mxu0 %v1979
      %v6636 = vpop.f32.mrf.mxu0
      %v6637 = vadd.f32 %v6378, %v6636
      %v6638 = vpop.f32.mrf.mxu0
      %v6639 = vadd.f32 %v6380, %v6638
      %6640 = vmatmul.bf16.gmra.mxu0 %v1980
      %v6641 = vpop.f32.mrf.mxu0
      %v6642 = vadd.f32 %v6383, %v6641
      %v6643 = vpop.f32.mrf.mxu0
      %v6644 = vadd.f32 %v6385, %v6643
      %6645 = vmatmul.bf16.gmra.mxu0 %v1981
      %v6646 = vpop.f32.mrf.mxu0
      %v6647 = vadd.f32 %v6388, %v6646
      %v6648 = vpop.f32.mrf.mxu0
      %v6649 = vadd.f32 %v6390, %v6648
      %6650 = vmatmul.bf16.gmra.mxu0 %v1982
      %v6651 = vpop.f32.mrf.mxu0
      %v6652 = vadd.f32 %v6393, %v6651
      %v6653 = vpop.f32.mrf.mxu0
      %v6654 = vadd.f32 %v6395, %v6653
      %6655 = vmatmul.bf16.gmra.mxu0 %v1983
      %v6656 = vpop.f32.mrf.mxu0
      %v6657 = vadd.f32 %v6398, %v6656
      %v6658 = vpop.f32.mrf.mxu0
      %v6659 = vadd.f32 %v6400, %v6658
      %6660 = vmatmul.bf16.gmra.mxu0 %v1984
      %v6661 = vpop.f32.mrf.mxu0
      %v6662 = vadd.f32 %v6403, %v6661
      %v6663 = vpop.f32.mrf.mxu0
      %v6664 = vadd.f32 %v6405, %v6663
      %6665 = vmatmul.bf16.gmra.mxu0 %v1985
      %v6666 = vpop.f32.mrf.mxu0
      %v6667 = vadd.f32 %v6408, %v6666
      %v6668 = vpop.f32.mrf.mxu0
      %v6669 = vadd.f32 %v6410, %v6668
      %6670 = vmatmul.bf16.gmra.mxu0 %v1986
      %v6671 = vpop.f32.mrf.mxu0
      %v6672 = vadd.f32 %v6413, %v6671
      %v6673 = vpop.f32.mrf.mxu0
      %v6674 = vadd.f32 %v6415, %v6673
      %6675 = vmatmul.bf16.gmra.mxu0 %v1987
      %v6676 = vpop.f32.mrf.mxu0
      %v6677 = vadd.f32 %v6418, %v6676
      %v6678 = vpop.f32.mrf.mxu0
      %v6679 = vadd.f32 %v6420, %v6678
      %6680 = vmatmul.bf16.gmra.mxu0 %v1988
      %v6681 = vpop.f32.mrf.mxu0
      %v6682 = vadd.f32 %v6423, %v6681
      %v6683 = vpop.f32.mrf.mxu0
      %v6684 = vadd.f32 %v6425, %v6683
      %6685 = vmatmul.bf16.gmra.mxu0 %v1989
      %v6686 = vpop.f32.mrf.mxu0
      %v6687 = vadd.f32 %v6428, %v6686
      %v6688 = vpop.f32.mrf.mxu0
      %v6689 = vadd.f32 %v6430, %v6688
      %6690 = vmatmul.bf16.gmra.mxu0 %v1990
      %v6691 = vpop.f32.mrf.mxu0
      %v6692 = vadd.f32 %v6433, %v6691
      %v6693 = vpop.f32.mrf.mxu0
      %v6694 = vadd.f32 %v6435, %v6693
      %6695 = vmatmul.bf16.gmra.mxu0 %v1991
      %v6696 = vpop.f32.mrf.mxu0
      %v6697 = vadd.f32 %v6438, %v6696
      %v6698 = vpop.f32.mrf.mxu0
      %v6699 = vadd.f32 %v6440, %v6698
      %6700 = vmatmul.bf16.gmra.mxu0 %v1992
      %v6701 = vpop.f32.mrf.mxu0
      %v6702 = vadd.f32 %v6443, %v6701
      %v6703 = vpop.f32.mrf.mxu0
      %v6704 = vadd.f32 %v6445, %v6703
      %6705 = vmatmul.bf16.gmra.mxu0 %v1993
      %v6706 = vpop.f32.mrf.mxu0
      %v6707 = vadd.f32 %v6448, %v6706
      %v6708 = vpop.f32.mrf.mxu0
      %v6709 = vadd.f32 %v6450, %v6708
      %6710 = vmatmul.bf16.gmra.mxu0 %v1994
      %v6711 = vpop.f32.mrf.mxu0
      %v6712 = vadd.f32 %v6453, %v6711
      %v6713 = vpop.f32.mrf.mxu0
      %v6714 = vadd.f32 %v6455, %v6713
      %6715 = vmatmul.bf16.gmra.mxu0 %v1995
      %v6716 = vpop.f32.mrf.mxu0
      %v6717 = vadd.f32 %v6458, %v6716
      %v6718 = vpop.f32.mrf.mxu0
      %v6719 = vadd.f32 %v6460, %v6718
      %6720 = vmatmul.bf16.gmra.mxu0 %v1996
      %v6721 = vpop.f32.mrf.mxu0
      %v6722 = vadd.f32 %v6463, %v6721
      %v6723 = vpop.f32.mrf.mxu0
      %v6724 = vadd.f32 %v6465, %v6723
      %6725 = vmatmul.bf16.gmra.mxu0 %v1997
      %v6726 = vpop.f32.mrf.mxu0
      %v6727 = vadd.f32 %v6468, %v6726
      %v6728 = vpop.f32.mrf.mxu0
      %v6729 = vadd.f32 %v6470, %v6728
      %6730 = vmatmul.bf16.gmra.mxu0 %v1998
      %v6731 = vpop.f32.mrf.mxu0
      %v6732 = vadd.f32 %v6473, %v6731
      %v6733 = vpop.f32.mrf.mxu0
      %v6734 = vadd.f32 %v6475, %v6733
      %6735 = vmatmul.bf16.gmra.mxu0 %v1999
      %v6736 = vpop.f32.mrf.mxu0
      %v6737 = vadd.f32 %v6478, %v6736
      %v6738 = vpop.f32.mrf.mxu0
      %v6739 = vadd.f32 %v6480, %v6738
      %6740 = vmatmul.bf16.gmra.mxu0 %v2000
      %v6741 = vpop.f32.mrf.mxu0
      %v6742 = vadd.f32 %v6483, %v6741
      %v6743 = vpop.f32.mrf.mxu0
      %v6744 = vadd.f32 %v6485, %v6743
      %6745 = vmatmul.bf16.gmra.mxu0 %v2001
      %v6746 = vpop.f32.mrf.mxu0
      %v6747 = vadd.f32 %v6488, %v6746
      %v6748 = vpop.f32.mrf.mxu0
      %v6749 = vadd.f32 %v6490, %v6748
      %6750 = vmatmul.bf16.gmra.mxu0 %v2002
      %v6751 = vpop.f32.mrf.mxu0
      %v6752 = vadd.f32 %v6493, %v6751
      %v6753 = vpop.f32.mrf.mxu0
      %v6754 = vadd.f32 %v6495, %v6753
      %6755 = vmatmul.bf16.gmra.mxu0 %v2003
      %v6756 = vpop.f32.mrf.mxu0
      %v6757 = vadd.f32 %v6498, %v6756
      %v6758 = vpop.f32.mrf.mxu0
      %v6759 = vadd.f32 %v6500, %v6758
      %6760 = vmatmul.bf16.gmra.mxu0 %v2004
      %v6761 = vpop.f32.mrf.mxu0
      %v6762 = vadd.f32 %v6503, %v6761
      %v6763 = vpop.f32.mrf.mxu0
      %v6764 = vadd.f32 %v6505, %v6763
      %6765 = vmatmul.bf16.gmra.mxu0 %v2005
      %v6766 = vpop.f32.mrf.mxu0
      %v6767 = vadd.f32 %v6508, %v6766
      %v6768 = vpop.f32.mrf.mxu0
      %v6769 = vadd.f32 %v6510, %v6768
      %6770 = vmatmul.bf16.gmra.mxu0 %v2006
      %v6771 = vpop.f32.mrf.mxu0
      %v6772 = vadd.f32 %v6513, %v6771
      %v6773 = vpop.f32.mrf.mxu0
      %v6774 = vadd.f32 %v6515, %v6773
      %6775 = vmatmul.bf16.gmra.mxu0 %v2007
      %v6776 = vpop.f32.mrf.mxu0
      %v6777 = vadd.f32 %v6518, %v6776
      %v6778 = vpop.f32.mrf.mxu0
      %v6779 = vadd.f32 %v6520, %v6778
      %6780 = vmatmul.bf16.gmra.mxu0 %v2008
      %v6781 = vpop.f32.mrf.mxu0
      %v6782 = vadd.f32 %v6523, %v6781
      %v6783 = vpop.f32.mrf.mxu0
      %v6784 = vadd.f32 %v6525, %v6783
      %6785 = vmatmul.bf16.gmra.mxu0 %v2009
      %v6786 = vpop.f32.mrf.mxu0
      %v6787 = vadd.f32 %v6528, %v6786
      %v6788 = vpop.f32.mrf.mxu0
      %v6789 = vadd.f32 %v6530, %v6788
      %6790 = vmatmul.bf16.gmra.mxu0 %v2010
      %v6791 = vpop.f32.mrf.mxu0
      %v6792 = vadd.f32 %v6533, %v6791
      %v6793 = vpop.f32.mrf.mxu0
      %v6794 = vadd.f32 %v6535, %v6793
      %6795 = vmatmul.bf16.gmra.mxu0 %v2011
      %v6796 = vpop.f32.mrf.mxu0
      %v6797 = vadd.f32 %v6538, %v6796
      %v6798 = vpop.f32.mrf.mxu0
      %v6799 = vadd.f32 %v6540, %v6798
      %6800 = vmatmul.bf16.gmra.mxu0 %v2012
      %v6801 = vpop.f32.mrf.mxu0
      %v6802 = vadd.f32 %v6543, %v6801
      %v6803 = vpop.f32.mrf.mxu0
      %v6804 = vadd.f32 %v6545, %v6803
      %6805 = vmatmul.bf16.gmra.mxu0 %v2013
      %v6806 = vpop.f32.mrf.mxu0
      %v6807 = vadd.f32 %v6548, %v6806
      %v6808 = vpop.f32.mrf.mxu0
      %v6809 = vadd.f32 %v6550, %v6808
      %6810 = vmatmul.bf16.gmra.mxu0 %v2014
      %v6811 = vpop.f32.mrf.mxu0
      %v6812 = vadd.f32 %v6553, %v6811
      %v6813 = vpop.f32.mrf.mxu0
      %v6814 = vadd.f32 %v6555, %v6813
      %6815 = vmatmul.bf16.gmra.mxu0 %v2015
      %v6816 = vpop.f32.mrf.mxu0
      %v6817 = vadd.f32 %v6558, %v6816
      %v6818 = vpop.f32.mrf.mxu0
      %v6819 = vadd.f32 %v6560, %v6818
      %6820 = vmatmul.bf16.gmra.mxu0 %v2016
      %v6821 = vpop.f32.mrf.mxu0
      %v6822 = vadd.f32 %v6563, %v6821
      %v6823 = vpop.f32.mrf.mxu0
      %v6824 = vadd.f32 %v6565, %v6823
      %6825 = vmatmul.bf16.gmra.mxu0 %v2017
      %v6826 = vpop.f32.mrf.mxu0
      %v6827 = vadd.f32 %v6568, %v6826
      %v6828 = vpop.f32.mrf.mxu0
      %v6829 = vadd.f32 %v6570, %v6828
      %6830 = vmatmul.bf16.gmra.mxu0 %v2018
      %v6831 = vpop.f32.mrf.mxu0
      %v6832 = vadd.f32 %v6573, %v6831
      %v6833 = vpop.f32.mrf.mxu0
      %v6834 = vadd.f32 %v6575, %v6833
      %6835 = vmatmul.bf16.gmra.mxu0 %v2019
      %v6836 = vpop.f32.mrf.mxu0
      %v6837 = vadd.f32 %v6578, %v6836
      %v6838 = vpop.f32.mrf.mxu0
      %v6839 = vadd.f32 %v6580, %v6838
      %6840 = vmatmul.bf16.gmra.mxu0 %v2020
      %v6841 = vpop.f32.mrf.mxu0
      %v6842 = vadd.f32 %v6583, %v6841
      %v6843 = vpop.f32.mrf.mxu0
      %v6844 = vadd.f32 %v6585, %v6843
      %6845 = vdwg.mxu0
      %6846 = vmatpush.bf16.msra.mxu0 %v3334
      %6847 = vmatpush.bf16.msra.mxu0 %v3331
      %6848 = vmatpush.bf16.msra.mxu0 %v3328
      %6849 = vmatpush.bf16.msra.mxu0 %v3325
      %6850 = vmatpush.bf16.msra.mxu0 %v3322
      %6851 = vmatpush.bf16.msra.mxu0 %v3319
      %6852 = vmatpush.bf16.msra.mxu0 %v3316
      %6853 = vmatpush.bf16.msra.mxu0 %v3313
      %6854 = vmatmul.bf16.gmra.mxu0 %v2271
      %v6855 = vpop.f32.mrf.mxu0
      %v6856 = vadd.f32 %v6597, %v6855
      %v6857 = vpop.f32.mrf.mxu0
      %v6858 = vadd.f32 %v6599, %v6857
      %6859 = vmatmul.bf16.gmra.mxu0 %v2272
      %v6860 = vpop.f32.mrf.mxu0
      %v6861 = vadd.f32 %v6602, %v6860
      %v6862 = vpop.f32.mrf.mxu0
      %v6863 = vadd.f32 %v6604, %v6862
      %6864 = vmatmul.bf16.gmra.mxu0 %v2273
      %v6865 = vpop.f32.mrf.mxu0
      %v6866 = vadd.f32 %v6607, %v6865
      %v6867 = vpop.f32.mrf.mxu0
      %v6868 = vadd.f32 %v6609, %v6867
      %6869 = vmatmul.bf16.gmra.mxu0 %v2274
      %v6870 = vpop.f32.mrf.mxu0
      %v6871 = vadd.f32 %v6612, %v6870
      %v6872 = vpop.f32.mrf.mxu0
      %v6873 = vadd.f32 %v6614, %v6872
      %6874 = vmatmul.bf16.gmra.mxu0 %v2275
      %v6875 = vpop.f32.mrf.mxu0
      %v6876 = vadd.f32 %v6617, %v6875
      %v6877 = vpop.f32.mrf.mxu0
      %v6878 = vadd.f32 %v6619, %v6877
      %6879 = vmatmul.bf16.gmra.mxu0 %v2276
      %v6880 = vpop.f32.mrf.mxu0
      %v6881 = vadd.f32 %v6622, %v6880
      %v6882 = vpop.f32.mrf.mxu0
      %v6883 = vadd.f32 %v6624, %v6882
      %6884 = vmatmul.bf16.gmra.mxu0 %v2277
      %v6885 = vpop.f32.mrf.mxu0
      %v6886 = vadd.f32 %v6627, %v6885
      %v6887 = vpop.f32.mrf.mxu0
      %v6888 = vadd.f32 %v6629, %v6887
      %6889 = vmatmul.bf16.gmra.mxu0 %v2278
      %v6890 = vpop.f32.mrf.mxu0
      %v6891 = vadd.f32 %v6632, %v6890
      %v6892 = vpop.f32.mrf.mxu0
      %v6893 = vadd.f32 %v6634, %v6892
      %6894 = vmatmul.bf16.gmra.mxu0 %v2279
      %v6895 = vpop.f32.mrf.mxu0
      %v6896 = vadd.f32 %v6637, %v6895
      %v6897 = vpop.f32.mrf.mxu0
      %v6898 = vadd.f32 %v6639, %v6897
      %6899 = vmatmul.bf16.gmra.mxu0 %v2280
      %v6900 = vpop.f32.mrf.mxu0
      %v6901 = vadd.f32 %v6642, %v6900
      %v6902 = vpop.f32.mrf.mxu0
      %v6903 = vadd.f32 %v6644, %v6902
      %6904 = vmatmul.bf16.gmra.mxu0 %v2281
      %v6905 = vpop.f32.mrf.mxu0
      %v6906 = vadd.f32 %v6647, %v6905
      %v6907 = vpop.f32.mrf.mxu0
      %v6908 = vadd.f32 %v6649, %v6907
      %6909 = vmatmul.bf16.gmra.mxu0 %v2282
      %v6910 = vpop.f32.mrf.mxu0
      %v6911 = vadd.f32 %v6652, %v6910
      %v6912 = vpop.f32.mrf.mxu0
      %v6913 = vadd.f32 %v6654, %v6912
      %6914 = vmatmul.bf16.gmra.mxu0 %v2283
      %v6915 = vpop.f32.mrf.mxu0
      %v6916 = vadd.f32 %v6657, %v6915
      %v6917 = vpop.f32.mrf.mxu0
      %v6918 = vadd.f32 %v6659, %v6917
      %6919 = vmatmul.bf16.gmra.mxu0 %v2284
      %v6920 = vpop.f32.mrf.mxu0
      %v6921 = vadd.f32 %v6662, %v6920
      %v6922 = vpop.f32.mrf.mxu0
      %v6923 = vadd.f32 %v6664, %v6922
      %6924 = vmatmul.bf16.gmra.mxu0 %v2285
      %v6925 = vpop.f32.mrf.mxu0
      %v6926 = vadd.f32 %v6667, %v6925
      %v6927 = vpop.f32.mrf.mxu0
      %v6928 = vadd.f32 %v6669, %v6927
      %6929 = vmatmul.bf16.gmra.mxu0 %v2286
      %v6930 = vpop.f32.mrf.mxu0
      %v6931 = vadd.f32 %v6672, %v6930
      %v6932 = vpop.f32.mrf.mxu0
      %v6933 = vadd.f32 %v6674, %v6932
      %6934 = vmatmul.bf16.gmra.mxu0 %v2287
      %v6935 = vpop.f32.mrf.mxu0
      %v6936 = vadd.f32 %v6677, %v6935
      %v6937 = vpop.f32.mrf.mxu0
      %v6938 = vadd.f32 %v6679, %v6937
      %6939 = vmatmul.bf16.gmra.mxu0 %v2288
      %v6940 = vpop.f32.mrf.mxu0
      %v6941 = vadd.f32 %v6682, %v6940
      %v6942 = vpop.f32.mrf.mxu0
      %v6943 = vadd.f32 %v6684, %v6942
      %6944 = vmatmul.bf16.gmra.mxu0 %v2289
      %v6945 = vpop.f32.mrf.mxu0
      %v6946 = vadd.f32 %v6687, %v6945
      %v6947 = vpop.f32.mrf.mxu0
      %v6948 = vadd.f32 %v6689, %v6947
      %6949 = vmatmul.bf16.gmra.mxu0 %v2290
      %v6950 = vpop.f32.mrf.mxu0
      %v6951 = vadd.f32 %v6692, %v6950
      %v6952 = vpop.f32.mrf.mxu0
      %v6953 = vadd.f32 %v6694, %v6952
      %6954 = vmatmul.bf16.gmra.mxu0 %v2291
      %v6955 = vpop.f32.mrf.mxu0
      %v6956 = vadd.f32 %v6697, %v6955
      %v6957 = vpop.f32.mrf.mxu0
      %v6958 = vadd.f32 %v6699, %v6957
      %6959 = vmatmul.bf16.gmra.mxu0 %v2292
      %v6960 = vpop.f32.mrf.mxu0
      %v6961 = vadd.f32 %v6702, %v6960
      %v6962 = vpop.f32.mrf.mxu0
      %v6963 = vadd.f32 %v6704, %v6962
      %6964 = vmatmul.bf16.gmra.mxu0 %v2293
      %v6965 = vpop.f32.mrf.mxu0
      %v6966 = vadd.f32 %v6707, %v6965
      %v6967 = vpop.f32.mrf.mxu0
      %v6968 = vadd.f32 %v6709, %v6967
      %6969 = vmatmul.bf16.gmra.mxu0 %v2294
      %v6970 = vpop.f32.mrf.mxu0
      %v6971 = vadd.f32 %v6712, %v6970
      %v6972 = vpop.f32.mrf.mxu0
      %v6973 = vadd.f32 %v6714, %v6972
      %6974 = vmatmul.bf16.gmra.mxu0 %v2295
      %v6975 = vpop.f32.mrf.mxu0
      %v6976 = vadd.f32 %v6717, %v6975
      %v6977 = vpop.f32.mrf.mxu0
      %v6978 = vadd.f32 %v6719, %v6977
      %6979 = vmatmul.bf16.gmra.mxu0 %v2296
      %v6980 = vpop.f32.mrf.mxu0
      %v6981 = vadd.f32 %v6722, %v6980
      %v6982 = vpop.f32.mrf.mxu0
      %v6983 = vadd.f32 %v6724, %v6982
      %6984 = vmatmul.bf16.gmra.mxu0 %v2297
      %v6985 = vpop.f32.mrf.mxu0
      %v6986 = vadd.f32 %v6727, %v6985
      %v6987 = vpop.f32.mrf.mxu0
      %v6988 = vadd.f32 %v6729, %v6987
      %6989 = vmatmul.bf16.gmra.mxu0 %v2298
      %v6990 = vpop.f32.mrf.mxu0
      %v6991 = vadd.f32 %v6732, %v6990
      %v6992 = vpop.f32.mrf.mxu0
      %v6993 = vadd.f32 %v6734, %v6992
      %6994 = vmatmul.bf16.gmra.mxu0 %v2299
      %v6995 = vpop.f32.mrf.mxu0
      %v6996 = vadd.f32 %v6737, %v6995
      %v6997 = vpop.f32.mrf.mxu0
      %v6998 = vadd.f32 %v6739, %v6997
      %6999 = vmatmul.bf16.gmra.mxu0 %v2300
      %v7000 = vpop.f32.mrf.mxu0
      %v7001 = vadd.f32 %v6742, %v7000
      %v7002 = vpop.f32.mrf.mxu0
      %v7003 = vadd.f32 %v6744, %v7002
      %7004 = vmatmul.bf16.gmra.mxu0 %v2301
      %v7005 = vpop.f32.mrf.mxu0
      %v7006 = vadd.f32 %v6747, %v7005
      %v7007 = vpop.f32.mrf.mxu0
      %v7008 = vadd.f32 %v6749, %v7007
      %7009 = vmatmul.bf16.gmra.mxu0 %v2302
      %v7010 = vpop.f32.mrf.mxu0
      %v7011 = vadd.f32 %v6752, %v7010
      %v7012 = vpop.f32.mrf.mxu0
      %v7013 = vadd.f32 %v6754, %v7012
      %7014 = vmatmul.bf16.gmra.mxu0 %v2303
      %v7015 = vpop.f32.mrf.mxu0
      %v7016 = vadd.f32 %v6757, %v7015
      %v7017 = vpop.f32.mrf.mxu0
      %v7018 = vadd.f32 %v6759, %v7017
      %7019 = vmatmul.bf16.gmra.mxu0 %v2304
      %v7020 = vpop.f32.mrf.mxu0
      %v7021 = vadd.f32 %v6762, %v7020
      %v7022 = vpop.f32.mrf.mxu0
      %v7023 = vadd.f32 %v6764, %v7022
      %7024 = vmatmul.bf16.gmra.mxu0 %v2305
      %v7025 = vpop.f32.mrf.mxu0
      %v7026 = vadd.f32 %v6767, %v7025
      %v7027 = vpop.f32.mrf.mxu0
      %v7028 = vadd.f32 %v6769, %v7027
      %7029 = vmatmul.bf16.gmra.mxu0 %v2306
      %v7030 = vpop.f32.mrf.mxu0
      %v7031 = vadd.f32 %v6772, %v7030
      %v7032 = vpop.f32.mrf.mxu0
      %v7033 = vadd.f32 %v6774, %v7032
      %7034 = vmatmul.bf16.gmra.mxu0 %v2307
      %v7035 = vpop.f32.mrf.mxu0
      %v7036 = vadd.f32 %v6777, %v7035
      %v7037 = vpop.f32.mrf.mxu0
      %v7038 = vadd.f32 %v6779, %v7037
      %7039 = vmatmul.bf16.gmra.mxu0 %v2308
      %v7040 = vpop.f32.mrf.mxu0
      %v7041 = vadd.f32 %v6782, %v7040
      %v7042 = vpop.f32.mrf.mxu0
      %v7043 = vadd.f32 %v6784, %v7042
      %7044 = vmatmul.bf16.gmra.mxu0 %v2309
      %v7045 = vpop.f32.mrf.mxu0
      %v7046 = vadd.f32 %v6787, %v7045
      %v7047 = vpop.f32.mrf.mxu0
      %v7048 = vadd.f32 %v6789, %v7047
      %7049 = vmatmul.bf16.gmra.mxu0 %v2310
      %v7050 = vpop.f32.mrf.mxu0
      %v7051 = vadd.f32 %v6792, %v7050
      %v7052 = vpop.f32.mrf.mxu0
      %v7053 = vadd.f32 %v6794, %v7052
      %7054 = vmatmul.bf16.gmra.mxu0 %v2311
      %v7055 = vpop.f32.mrf.mxu0
      %v7056 = vadd.f32 %v6797, %v7055
      %v7057 = vpop.f32.mrf.mxu0
      %v7058 = vadd.f32 %v6799, %v7057
      %7059 = vmatmul.bf16.gmra.mxu0 %v2312
      %v7060 = vpop.f32.mrf.mxu0
      %v7061 = vadd.f32 %v6802, %v7060
      %v7062 = vpop.f32.mrf.mxu0
      %v7063 = vadd.f32 %v6804, %v7062
      %7064 = vmatmul.bf16.gmra.mxu0 %v2313
      %v7065 = vpop.f32.mrf.mxu0
      %v7066 = vadd.f32 %v6807, %v7065
      %v7067 = vpop.f32.mrf.mxu0
      %v7068 = vadd.f32 %v6809, %v7067
      %7069 = vmatmul.bf16.gmra.mxu0 %v2314
      %v7070 = vpop.f32.mrf.mxu0
      %v7071 = vadd.f32 %v6812, %v7070
      %v7072 = vpop.f32.mrf.mxu0
      %v7073 = vadd.f32 %v6814, %v7072
      %7074 = vmatmul.bf16.gmra.mxu0 %v2315
      %v7075 = vpop.f32.mrf.mxu0
      %v7076 = vadd.f32 %v6817, %v7075
      %v7077 = vpop.f32.mrf.mxu0
      %v7078 = vadd.f32 %v6819, %v7077
      %7079 = vmatmul.bf16.gmra.mxu0 %v2316
      %v7080 = vpop.f32.mrf.mxu0
      %v7081 = vadd.f32 %v6822, %v7080
      %v7082 = vpop.f32.mrf.mxu0
      %v7083 = vadd.f32 %v6824, %v7082
      %7084 = vmatmul.bf16.gmra.mxu0 %v2317
      %v7085 = vpop.f32.mrf.mxu0
      %v7086 = vadd.f32 %v6827, %v7085
      %v7087 = vpop.f32.mrf.mxu0
      %v7088 = vadd.f32 %v6829, %v7087
      %7089 = vmatmul.bf16.gmra.mxu0 %v2318
      %v7090 = vpop.f32.mrf.mxu0
      %v7091 = vadd.f32 %v6832, %v7090
      %v7092 = vpop.f32.mrf.mxu0
      %v7093 = vadd.f32 %v6834, %v7092
      %7094 = vmatmul.bf16.gmra.mxu0 %v2319
      %v7095 = vpop.f32.mrf.mxu0
      %v7096 = vadd.f32 %v6837, %v7095
      %v7097 = vpop.f32.mrf.mxu0
      %v7098 = vadd.f32 %v6839, %v7097
      %7099 = vmatmul.bf16.gmra.mxu0 %v2320
      %v7100 = vpop.f32.mrf.mxu0
      %v7101 = vadd.f32 %v6842, %v7100
      %v7102 = vpop.f32.mrf.mxu0
      %v7103 = vadd.f32 %v6844, %v7102
      %7104 = vdwg.mxu0
      %7105 = vmatpush.bf16.msra.mxu0 %v3358
      %7106 = vmatpush.bf16.msra.mxu0 %v3355
      %7107 = vmatpush.bf16.msra.mxu0 %v3352
      %7108 = vmatpush.bf16.msra.mxu0 %v3349
      %7109 = vmatpush.bf16.msra.mxu0 %v3346
      %7110 = vmatpush.bf16.msra.mxu0 %v3343
      %7111 = vmatpush.bf16.msra.mxu0 %v3340
      %7112 = vmatpush.bf16.msra.mxu0 %v3337
      %7113 = vmatmul.bf16.gmra.mxu0 %v2571
      %v7114 = vpop.f32.mrf.mxu0
      %v7115 = vadd.f32 %v6856, %v7114
      %v7116 = vpop.f32.mrf.mxu0
      %v7117 = vadd.f32 %v6858, %v7116
      %7118 = vmatmul.bf16.gmra.mxu0 %v2572
      %v7119 = vpop.f32.mrf.mxu0
      %v7120 = vadd.f32 %v6861, %v7119
      %v7121 = vpop.f32.mrf.mxu0
      %v7122 = vadd.f32 %v6863, %v7121
      %7123 = vmatmul.bf16.gmra.mxu0 %v2573
      %v7124 = vpop.f32.mrf.mxu0
      %v7125 = vadd.f32 %v6866, %v7124
      %v7126 = vpop.f32.mrf.mxu0
      %v7127 = vadd.f32 %v6868, %v7126
      %7128 = vmatmul.bf16.gmra.mxu0 %v2574
      %v7129 = vpop.f32.mrf.mxu0
      %v7130 = vadd.f32 %v6871, %v7129
      %v7131 = vpop.f32.mrf.mxu0
      %v7132 = vadd.f32 %v6873, %v7131
      %7133 = vmatmul.bf16.gmra.mxu0 %v2575
      %v7134 = vpop.f32.mrf.mxu0
      %v7135 = vadd.f32 %v6876, %v7134
      %v7136 = vpop.f32.mrf.mxu0
      %v7137 = vadd.f32 %v6878, %v7136
      %7138 = vmatmul.bf16.gmra.mxu0 %v2576
      %v7139 = vpop.f32.mrf.mxu0
      %v7140 = vadd.f32 %v6881, %v7139
      %v7141 = vpop.f32.mrf.mxu0
      %v7142 = vadd.f32 %v6883, %v7141
      %7143 = vmatmul.bf16.gmra.mxu0 %v2577
      %v7144 = vpop.f32.mrf.mxu0
      %v7145 = vadd.f32 %v6886, %v7144
      %v7146 = vpop.f32.mrf.mxu0
      %v7147 = vadd.f32 %v6888, %v7146
      %7148 = vmatmul.bf16.gmra.mxu0 %v2578
      %v7149 = vpop.f32.mrf.mxu0
      %v7150 = vadd.f32 %v6891, %v7149
      %v7151 = vpop.f32.mrf.mxu0
      %v7152 = vadd.f32 %v6893, %v7151
      %7153 = vmatmul.bf16.gmra.mxu0 %v2579
      %v7154 = vpop.f32.mrf.mxu0
      %v7155 = vadd.f32 %v6896, %v7154
      %v7156 = vpop.f32.mrf.mxu0
      %v7157 = vadd.f32 %v6898, %v7156
      %7158 = vmatmul.bf16.gmra.mxu0 %v2580
      %v7159 = vpop.f32.mrf.mxu0
      %v7160 = vadd.f32 %v6901, %v7159
      %v7161 = vpop.f32.mrf.mxu0
      %v7162 = vadd.f32 %v6903, %v7161
      %7163 = vmatmul.bf16.gmra.mxu0 %v2581
      %v7164 = vpop.f32.mrf.mxu0
      %v7165 = vadd.f32 %v6906, %v7164
      %v7166 = vpop.f32.mrf.mxu0
      %v7167 = vadd.f32 %v6908, %v7166
      %7168 = vmatmul.bf16.gmra.mxu0 %v2582
      %v7169 = vpop.f32.mrf.mxu0
      %v7170 = vadd.f32 %v6911, %v7169
      %v7171 = vpop.f32.mrf.mxu0
      %v7172 = vadd.f32 %v6913, %v7171
      %7173 = vmatmul.bf16.gmra.mxu0 %v2583
      %v7174 = vpop.f32.mrf.mxu0
      %v7175 = vadd.f32 %v6916, %v7174
      %v7176 = vpop.f32.mrf.mxu0
      %v7177 = vadd.f32 %v6918, %v7176
      %7178 = vmatmul.bf16.gmra.mxu0 %v2584
      %v7179 = vpop.f32.mrf.mxu0
      %v7180 = vadd.f32 %v6921, %v7179
      %v7181 = vpop.f32.mrf.mxu0
      %v7182 = vadd.f32 %v6923, %v7181
      %7183 = vmatmul.bf16.gmra.mxu0 %v2585
      %v7184 = vpop.f32.mrf.mxu0
      %v7185 = vadd.f32 %v6926, %v7184
      %v7186 = vpop.f32.mrf.mxu0
      %v7187 = vadd.f32 %v6928, %v7186
      %7188 = vmatmul.bf16.gmra.mxu0 %v2586
      %v7189 = vpop.f32.mrf.mxu0
      %v7190 = vadd.f32 %v6931, %v7189
      %v7191 = vpop.f32.mrf.mxu0
      %v7192 = vadd.f32 %v6933, %v7191
      %7193 = vmatmul.bf16.gmra.mxu0 %v2587
      %v7194 = vpop.f32.mrf.mxu0
      %v7195 = vadd.f32 %v6936, %v7194
      %v7196 = vpop.f32.mrf.mxu0
      %v7197 = vadd.f32 %v6938, %v7196
      %7198 = vmatmul.bf16.gmra.mxu0 %v2588
      %v7199 = vpop.f32.mrf.mxu0
      %v7200 = vadd.f32 %v6941, %v7199
      %v7201 = vpop.f32.mrf.mxu0
      %v7202 = vadd.f32 %v6943, %v7201
      %7203 = vmatmul.bf16.gmra.mxu0 %v2589
      %v7204 = vpop.f32.mrf.mxu0
      %v7205 = vadd.f32 %v6946, %v7204
      %v7206 = vpop.f32.mrf.mxu0
      %v7207 = vadd.f32 %v6948, %v7206
      %7208 = vmatmul.bf16.gmra.mxu0 %v2590
      %v7209 = vpop.f32.mrf.mxu0
      %v7210 = vadd.f32 %v6951, %v7209
      %v7211 = vpop.f32.mrf.mxu0
      %v7212 = vadd.f32 %v6953, %v7211
      %7213 = vmatmul.bf16.gmra.mxu0 %v2591
      %v7214 = vpop.f32.mrf.mxu0
      %v7215 = vadd.f32 %v6956, %v7214
      %v7216 = vpop.f32.mrf.mxu0
      %v7217 = vadd.f32 %v6958, %v7216
      %7218 = vmatmul.bf16.gmra.mxu0 %v2592
      %v7219 = vpop.f32.mrf.mxu0
      %v7220 = vadd.f32 %v6961, %v7219
      %v7221 = vpop.f32.mrf.mxu0
      %v7222 = vadd.f32 %v6963, %v7221
      %7223 = vmatmul.bf16.gmra.mxu0 %v2593
      %v7224 = vpop.f32.mrf.mxu0
      %v7225 = vadd.f32 %v6966, %v7224
      %v7226 = vpop.f32.mrf.mxu0
      %v7227 = vadd.f32 %v6968, %v7226
      %7228 = vmatmul.bf16.gmra.mxu0 %v2594
      %v7229 = vpop.f32.mrf.mxu0
      %v7230 = vadd.f32 %v6971, %v7229
      %v7231 = vpop.f32.mrf.mxu0
      %v7232 = vadd.f32 %v6973, %v7231
      %7233 = vmatmul.bf16.gmra.mxu0 %v2595
      %v7234 = vpop.f32.mrf.mxu0
      %v7235 = vadd.f32 %v6976, %v7234
      %v7236 = vpop.f32.mrf.mxu0
      %v7237 = vadd.f32 %v6978, %v7236
      %7238 = vmatmul.bf16.gmra.mxu0 %v2596
      %v7239 = vpop.f32.mrf.mxu0
      %v7240 = vadd.f32 %v6981, %v7239
      %v7241 = vpop.f32.mrf.mxu0
      %v7242 = vadd.f32 %v6983, %v7241
      %7243 = vmatmul.bf16.gmra.mxu0 %v2597
      %v7244 = vpop.f32.mrf.mxu0
      %v7245 = vadd.f32 %v6986, %v7244
      %v7246 = vpop.f32.mrf.mxu0
      %v7247 = vadd.f32 %v6988, %v7246
      %7248 = vmatmul.bf16.gmra.mxu0 %v2598
      %v7249 = vpop.f32.mrf.mxu0
      %v7250 = vadd.f32 %v6991, %v7249
      %v7251 = vpop.f32.mrf.mxu0
      %v7252 = vadd.f32 %v6993, %v7251
      %7253 = vmatmul.bf16.gmra.mxu0 %v2599
      %v7254 = vpop.f32.mrf.mxu0
      %v7255 = vadd.f32 %v6996, %v7254
      %v7256 = vpop.f32.mrf.mxu0
      %v7257 = vadd.f32 %v6998, %v7256
      %7258 = vmatmul.bf16.gmra.mxu0 %v2600
      %v7259 = vpop.f32.mrf.mxu0
      %v7260 = vadd.f32 %v7001, %v7259
      %v7261 = vpop.f32.mrf.mxu0
      %v7262 = vadd.f32 %v7003, %v7261
      %7263 = vmatmul.bf16.gmra.mxu0 %v2601
      %v7264 = vpop.f32.mrf.mxu0
      %v7265 = vadd.f32 %v7006, %v7264
      %v7266 = vpop.f32.mrf.mxu0
      %v7267 = vadd.f32 %v7008, %v7266
      %7268 = vmatmul.bf16.gmra.mxu0 %v2602
      %v7269 = vpop.f32.mrf.mxu0
      %v7270 = vadd.f32 %v7011, %v7269
      %v7271 = vpop.f32.mrf.mxu0
      %v7272 = vadd.f32 %v7013, %v7271
      %7273 = vmatmul.bf16.gmra.mxu0 %v2603
      %v7274 = vpop.f32.mrf.mxu0
      %v7275 = vadd.f32 %v7016, %v7274
      %v7276 = vpop.f32.mrf.mxu0
      %v7277 = vadd.f32 %v7018, %v7276
      %7278 = vmatmul.bf16.gmra.mxu0 %v2604
      %v7279 = vpop.f32.mrf.mxu0
      %v7280 = vadd.f32 %v7021, %v7279
      %v7281 = vpop.f32.mrf.mxu0
      %v7282 = vadd.f32 %v7023, %v7281
      %7283 = vmatmul.bf16.gmra.mxu0 %v2605
      %v7284 = vpop.f32.mrf.mxu0
      %v7285 = vadd.f32 %v7026, %v7284
      %v7286 = vpop.f32.mrf.mxu0
      %v7287 = vadd.f32 %v7028, %v7286
      %7288 = vmatmul.bf16.gmra.mxu0 %v2606
      %v7289 = vpop.f32.mrf.mxu0
      %v7290 = vadd.f32 %v7031, %v7289
      %v7291 = vpop.f32.mrf.mxu0
      %v7292 = vadd.f32 %v7033, %v7291
      %7293 = vmatmul.bf16.gmra.mxu0 %v2607
      %v7294 = vpop.f32.mrf.mxu0
      %v7295 = vadd.f32 %v7036, %v7294
      %v7296 = vpop.f32.mrf.mxu0
      %v7297 = vadd.f32 %v7038, %v7296
      %7298 = vmatmul.bf16.gmra.mxu0 %v2608
      %v7299 = vpop.f32.mrf.mxu0
      %v7300 = vadd.f32 %v7041, %v7299
      %v7301 = vpop.f32.mrf.mxu0
      %v7302 = vadd.f32 %v7043, %v7301
      %7303 = vmatmul.bf16.gmra.mxu0 %v2609
      %v7304 = vpop.f32.mrf.mxu0
      %v7305 = vadd.f32 %v7046, %v7304
      %v7306 = vpop.f32.mrf.mxu0
      %v7307 = vadd.f32 %v7048, %v7306
      %7308 = vmatmul.bf16.gmra.mxu0 %v2610
      %v7309 = vpop.f32.mrf.mxu0
      %v7310 = vadd.f32 %v7051, %v7309
      %v7311 = vpop.f32.mrf.mxu0
      %v7312 = vadd.f32 %v7053, %v7311
      %7313 = vmatmul.bf16.gmra.mxu0 %v2611
      %v7314 = vpop.f32.mrf.mxu0
      %v7315 = vadd.f32 %v7056, %v7314
      %v7316 = vpop.f32.mrf.mxu0
      %v7317 = vadd.f32 %v7058, %v7316
      %7318 = vmatmul.bf16.gmra.mxu0 %v2612
      %v7319 = vpop.f32.mrf.mxu0
      %v7320 = vadd.f32 %v7061, %v7319
      %v7321 = vpop.f32.mrf.mxu0
      %v7322 = vadd.f32 %v7063, %v7321
      %7323 = vmatmul.bf16.gmra.mxu0 %v2613
      %v7324 = vpop.f32.mrf.mxu0
      %v7325 = vadd.f32 %v7066, %v7324
      %v7326 = vpop.f32.mrf.mxu0
      %v7327 = vadd.f32 %v7068, %v7326
      %7328 = vmatmul.bf16.gmra.mxu0 %v2614
      %v7329 = vpop.f32.mrf.mxu0
      %v7330 = vadd.f32 %v7071, %v7329
      %v7331 = vpop.f32.mrf.mxu0
      %v7332 = vadd.f32 %v7073, %v7331
      %7333 = vmatmul.bf16.gmra.mxu0 %v2615
      %v7334 = vpop.f32.mrf.mxu0
      %v7335 = vadd.f32 %v7076, %v7334
      %v7336 = vpop.f32.mrf.mxu0
      %v7337 = vadd.f32 %v7078, %v7336
      %7338 = vmatmul.bf16.gmra.mxu0 %v2616
      %v7339 = vpop.f32.mrf.mxu0
      %v7340 = vadd.f32 %v7081, %v7339
      %v7341 = vpop.f32.mrf.mxu0
      %v7342 = vadd.f32 %v7083, %v7341
      %7343 = vmatmul.bf16.gmra.mxu0 %v2617
      %v7344 = vpop.f32.mrf.mxu0
      %v7345 = vadd.f32 %v7086, %v7344
      %v7346 = vpop.f32.mrf.mxu0
      %v7347 = vadd.f32 %v7088, %v7346
      %7348 = vmatmul.bf16.gmra.mxu0 %v2618
      %v7349 = vpop.f32.mrf.mxu0
      %v7350 = vadd.f32 %v7091, %v7349
      %v7351 = vpop.f32.mrf.mxu0
      %v7352 = vadd.f32 %v7093, %v7351
      %7353 = vmatmul.bf16.gmra.mxu0 %v2619
      %v7354 = vpop.f32.mrf.mxu0
      %v7355 = vadd.f32 %v7096, %v7354
      %v7356 = vpop.f32.mrf.mxu0
      %v7357 = vadd.f32 %v7098, %v7356
      %7358 = vmatmul.bf16.gmra.mxu0 %v2620
      %v7359 = vpop.f32.mrf.mxu0
      %v7360 = vadd.f32 %v7101, %v7359
      %v7361 = vpop.f32.mrf.mxu0
      %v7362 = vadd.f32 %v7103, %v7361
      %7363 = vdwg.mxu0
      %v7364 = vmax.f32 %v4525, 0.0
      %v7365 = vmax.f32 %v5820, 0.0
      %v7366 = vmax.f32 %v7115, 0.0
      %v7367 = vmax.f32 %v4527, 0.0
      %v7368 = vmax.f32 %v5822, 0.0
      %v7369 = vmax.f32 %v7117, 0.0
      %v7370 = vmax.f32 %v4530, 0.0
      %v7371 = vmax.f32 %v5825, 0.0
      %v7372 = vmax.f32 %v7120, 0.0
      %v7373 = vmax.f32 %v4532, 0.0
      %v7374 = vmax.f32 %v5827, 0.0
      %v7375 = vmax.f32 %v7122, 0.0
      %v7376 = vmax.f32 %v4535, 0.0
      %v7377 = vmax.f32 %v5830, 0.0
      %v7378 = vmax.f32 %v7125, 0.0
      %v7379 = vmax.f32 %v4537, 0.0
      %v7380 = vmax.f32 %v5832, 0.0
      %v7381 = vmax.f32 %v7127, 0.0
      %v7382 = vmax.f32 %v4540, 0.0
      %v7383 = vmax.f32 %v5835, 0.0
      %v7384 = vmax.f32 %v7130, 0.0
      %v7385 = vmax.f32 %v4542, 0.0
      %v7386 = vmax.f32 %v5837, 0.0
      %v7387 = vmax.f32 %v7132, 0.0
      %v7388 = vmax.f32 %v4545, 0.0
      %v7389 = vmax.f32 %v5840, 0.0
      %v7390 = vmax.f32 %v7135, 0.0
      %v7391 = vmax.f32 %v4547, 0.0
      %v7392 = vmax.f32 %v5842, 0.0
      %v7393 = vmax.f32 %v7137, 0.0
      %v7394 = vmax.f32 %v4550, 0.0
      %v7395 = vmax.f32 %v5845, 0.0
      %v7396 = vmax.f32 %v7140, 0.0
      %v7397 = vmax.f32 %v4552, 0.0
      %v7398 = vmax.f32 %v5847, 0.0
      %v7399 = vmax.f32 %v7142, 0.0
      %v7400 = vmax.f32 %v4555, 0.0
      %v7401 = vmax.f32 %v5850, 0.0
      %v7402 = vmax.f32 %v7145, 0.0
      %v7403 = vmax.f32 %v4557, 0.0
      %v7404 = vmax.f32 %v5852, 0.0
      %v7405 = vmax.f32 %v7147, 0.0
      %v7406 = vmax.f32 %v4560, 0.0
      %v7407 = vmax.f32 %v5855, 0.0
      %v7408 = vmax.f32 %v7150, 0.0
      %v7409 = vmax.f32 %v4562, 0.0
      %v7410 = vmax.f32 %v5857, 0.0
      %v7411 = vmax.f32 %v7152, 0.0
      %v7412 = vmax.f32 %v4565, 0.0
      %v7413 = vmax.f32 %v5860, 0.0
      %v7414 = vmax.f32 %v7155, 0.0
      %v7415 = vmax.f32 %v4567, 0.0
      %v7416 = vmax.f32 %v5862, 0.0
      %v7417 = vmax.f32 %v7157, 0.0
      %v7418 = vmax.f32 %v4570, 0.0
      %v7419 = vmax.f32 %v5865, 0.0
      %v7420 = vmax.f32 %v7160, 0.0
      %v7421 = vmax.f32 %v4572, 0.0
      %v7422 = vmax.f32 %v5867, 0.0
      %v7423 = vmax.f32 %v7162, 0.0
      %v7424 = vmax.f32 %v4575, 0.0
      %v7425 = vmax.f32 %v5870, 0.0
      %v7426 = vmax.f32 %v7165, 0.0
      %v7427 = vmax.f32 %v4577, 0.0
      %v7428 = vmax.f32 %v5872, 0.0
      %v7429 = vmax.f32 %v7167, 0.0
      %v7430 = vmax.f32 %v4580, 0.0
      %v7431 = vmax.f32 %v5875, 0.0
      %v7432 = vmax.f32 %v7170, 0.0
      %v7433 = vmax.f32 %v4582, 0.0
      %v7434 = vmax.f32 %v5877, 0.0
      %v7435 = vmax.f32 %v7172, 0.0
      %v7436 = vmax.f32 %v4585, 0.0
      %v7437 = vmax.f32 %v5880, 0.0
      %v7438 = vmax.f32 %v7175, 0.0
      %v7439 = vmax.f32 %v4587, 0.0
      %v7440 = vmax.f32 %v5882, 0.0
      %v7441 = vmax.f32 %v7177, 0.0
      %v7442 = vmax.f32 %v4590, 0.0
      %v7443 = vmax.f32 %v5885, 0.0
      %v7444 = vmax.f32 %v7180, 0.0
      %v7445 = vmax.f32 %v4592, 0.0
      %v7446 = vmax.f32 %v5887, 0.0
      %v7447 = vmax.f32 %v7182, 0.0
      %v7448 = vmax.f32 %v4595, 0.0
      %v7449 = vmax.f32 %v5890, 0.0
      %v7450 = vmax.f32 %v7185, 0.0
      %v7451 = vmax.f32 %v4597, 0.0
      %v7452 = vmax.f32 %v5892, 0.0
      %v7453 = vmax.f32 %v7187, 0.0
      %v7454 = vmax.f32 %v4600, 0.0
      %v7455 = vmax.f32 %v5895, 0.0
      %v7456 = vmax.f32 %v7190, 0.0
      %v7457 = vmax.f32 %v4602, 0.0
      %v7458 = vmax.f32 %v5897, 0.0
      %v7459 = vmax.f32 %v7192, 0.0
      %v7460 = vmax.f32 %v4605, 0.0
      %v7461 = vmax.f32 %v5900, 0.0
      %v7462 = vmax.f32 %v7195, 0.0
      %v7463 = vmax.f32 %v4607, 0.0
      %v7464 = vmax.f32 %v5902, 0.0
      %v7465 = vmax.f32 %v7197, 0.0
      %v7466 = vmax.f32 %v4610, 0.0
      %v7467 = vmax.f32 %v5905, 0.0
      %v7468 = vmax.f32 %v7200, 0.0
      %v7469 = vmax.f32 %v4612, 0.0
      %v7470 = vmax.f32 %v5907, 0.0
      %v7471 = vmax.f32 %v7202, 0.0
      %v7472 = vmax.f32 %v4615, 0.0
      %v7473 = vmax.f32 %v5910, 0.0
      %v7474 = vmax.f32 %v7205, 0.0
      %v7475 = vmax.f32 %v4617, 0.0
      %v7476 = vmax.f32 %v5912, 0.0
      %v7477 = vmax.f32 %v7207, 0.0
      %v7478 = vmax.f32 %v4620, 0.0
      %v7479 = vmax.f32 %v5915, 0.0
      %v7480 = vmax.f32 %v7210, 0.0
      %v7481 = vmax.f32 %v4622, 0.0
      %v7482 = vmax.f32 %v5917, 0.0
      %v7483 = vmax.f32 %v7212, 0.0
      %v7484 = vmax.f32 %v4625, 0.0
      %v7485 = vmax.f32 %v5920, 0.0
      %v7486 = vmax.f32 %v7215, 0.0
      %v7487 = vmax.f32 %v4627, 0.0
      %v7488 = vmax.f32 %v5922, 0.0
      %v7489 = vmax.f32 %v7217, 0.0
      %v7490 = vmax.f32 %v4630, 0.0
      %v7491 = vmax.f32 %v5925, 0.0
      %v7492 = vmax.f32 %v7220, 0.0
      %v7493 = vmax.f32 %v4632, 0.0
      %v7494 = vmax.f32 %v5927, 0.0
      %v7495 = vmax.f32 %v7222, 0.0
      %v7496 = vmax.f32 %v4635, 0.0
      %v7497 = vmax.f32 %v5930, 0.0
      %v7498 = vmax.f32 %v7225, 0.0
      %v7499 = vmax.f32 %v4637, 0.0
      %v7500 = vmax.f32 %v5932, 0.0
      %v7501 = vmax.f32 %v7227, 0.0
      %v7502 = vmax.f32 %v4640, 0.0
      %v7503 = vmax.f32 %v5935, 0.0
      %v7504 = vmax.f32 %v7230, 0.0
      %v7505 = vmax.f32 %v4642, 0.0
      %v7506 = vmax.f32 %v5937, 0.0
      %v7507 = vmax.f32 %v7232, 0.0
      %v7508 = vmax.f32 %v4645, 0.0
      %v7509 = vmax.f32 %v5940, 0.0
      %v7510 = vmax.f32 %v7235, 0.0
      %v7511 = vmax.f32 %v4647, 0.0
      %v7512 = vmax.f32 %v5942, 0.0
      %v7513 = vmax.f32 %v7237, 0.0
      %v7514 = vmax.f32 %v4650, 0.0
      %v7515 = vmax.f32 %v5945, 0.0
      %v7516 = vmax.f32 %v7240, 0.0
      %v7517 = vmax.f32 %v4652, 0.0
      %v7518 = vmax.f32 %v5947, 0.0
      %v7519 = vmax.f32 %v7242, 0.0
      %v7520 = vmax.f32 %v4655, 0.0
      %v7521 = vmax.f32 %v5950, 0.0
      %v7522 = vmax.f32 %v7245, 0.0
      %v7523 = vmax.f32 %v4657, 0.0
      %v7524 = vmax.f32 %v5952, 0.0
      %v7525 = vmax.f32 %v7247, 0.0
      %v7526 = vmax.f32 %v4660, 0.0
      %v7527 = vmax.f32 %v5955, 0.0
      %v7528 = vmax.f32 %v7250, 0.0
      %v7529 = vmax.f32 %v4662, 0.0
      %v7530 = vmax.f32 %v5957, 0.0
      %v7531 = vmax.f32 %v7252, 0.0
      %v7532 = vmax.f32 %v4665, 0.0
      %v7533 = vmax.f32 %v5960, 0.0
      %v7534 = vmax.f32 %v7255, 0.0
      %v7535 = vmax.f32 %v4667, 0.0
      %v7536 = vmax.f32 %v5962, 0.0
      %v7537 = vmax.f32 %v7257, 0.0
      %v7538 = vmax.f32 %v4670, 0.0
      %v7539 = vmax.f32 %v5965, 0.0
      %v7540 = vmax.f32 %v7260, 0.0
      %v7541 = vmax.f32 %v4672, 0.0
      %v7542 = vmax.f32 %v5967, 0.0
      %v7543 = vmax.f32 %v7262, 0.0
      %v7544 = vmax.f32 %v4675, 0.0
      %v7545 = vmax.f32 %v5970, 0.0
      %v7546 = vmax.f32 %v7265, 0.0
      %v7547 = vmax.f32 %v4677, 0.0
      %v7548 = vmax.f32 %v5972, 0.0
      %v7549 = vmax.f32 %v7267, 0.0
      %v7550 = vmax.f32 %v4680, 0.0
      %v7551 = vmax.f32 %v5975, 0.0
      %v7552 = vmax.f32 %v7270, 0.0
      %v7553 = vmax.f32 %v4682, 0.0
      %v7554 = vmax.f32 %v5977, 0.0
      %v7555 = vmax.f32 %v7272, 0.0
      %v7556 = vmax.f32 %v4685, 0.0
      %v7557 = vmax.f32 %v5980, 0.0
      %v7558 = vmax.f32 %v7275, 0.0
      %v7559 = vmax.f32 %v4687, 0.0
      %v7560 = vmax.f32 %v5982, 0.0
      %v7561 = vmax.f32 %v7277, 0.0
      %v7562 = vmax.f32 %v4690, 0.0
      %v7563 = vmax.f32 %v5985, 0.0
      %v7564 = vmax.f32 %v7280, 0.0
      %v7565 = vmax.f32 %v4692, 0.0
      %v7566 = vmax.f32 %v5987, 0.0
      %v7567 = vmax.f32 %v7282, 0.0
      %v7568 = vmax.f32 %v4695, 0.0
      %v7569 = vmax.f32 %v5990, 0.0
      %v7570 = vmax.f32 %v7285, 0.0
      %v7571 = vmax.f32 %v4697, 0.0
      %v7572 = vmax.f32 %v5992, 0.0
      %v7573 = vmax.f32 %v7287, 0.0
      %v7574 = vmax.f32 %v4700, 0.0
      %v7575 = vmax.f32 %v5995, 0.0
      %v7576 = vmax.f32 %v7290, 0.0
      %v7577 = vmax.f32 %v4702, 0.0
      %v7578 = vmax.f32 %v5997, 0.0
      %v7579 = vmax.f32 %v7292, 0.0
      %v7580 = vmax.f32 %v4705, 0.0
      %v7581 = vmax.f32 %v6000, 0.0
      %v7582 = vmax.f32 %v7295, 0.0
      %v7583 = vmax.f32 %v4707, 0.0
      %v7584 = vmax.f32 %v6002, 0.0
      %v7585 = vmax.f32 %v7297, 0.0
      %v7586 = vmax.f32 %v4710, 0.0
      %v7587 = vmax.f32 %v6005, 0.0
      %v7588 = vmax.f32 %v7300, 0.0
      %v7589 = vmax.f32 %v4712, 0.0
      %v7590 = vmax.f32 %v6007, 0.0
      %v7591 = vmax.f32 %v7302, 0.0
      %v7592 = vmax.f32 %v4715, 0.0
      %v7593 = vmax.f32 %v6010, 0.0
      %v7594 = vmax.f32 %v7305, 0.0
      %v7595 = vmax.f32 %v4717, 0.0
      %v7596 = vmax.f32 %v6012, 0.0
      %v7597 = vmax.f32 %v7307, 0.0
      %v7598 = vmax.f32 %v4720, 0.0
      %v7599 = vmax.f32 %v6015, 0.0
      %v7600 = vmax.f32 %v7310, 0.0
      %v7601 = vmax.f32 %v4722, 0.0
      %v7602 = vmax.f32 %v6017, 0.0
      %v7603 = vmax.f32 %v7312, 0.0
      %v7604 = vmax.f32 %v4725, 0.0
      %v7605 = vmax.f32 %v6020, 0.0
      %v7606 = vmax.f32 %v7315, 0.0
      %v7607 = vmax.f32 %v4727, 0.0
      %v7608 = vmax.f32 %v6022, 0.0
      %v7609 = vmax.f32 %v7317, 0.0
      %v7610 = vmax.f32 %v4730, 0.0
      %v7611 = vmax.f32 %v6025, 0.0
      %v7612 = vmax.f32 %v7320, 0.0
      %v7613 = vmax.f32 %v4732, 0.0
      %v7614 = vmax.f32 %v6027, 0.0
      %v7615 = vmax.f32 %v7322, 0.0
      %v7616 = vmax.f32 %v4735, 0.0
      %v7617 = vmax.f32 %v6030, 0.0
      %v7618 = vmax.f32 %v7325, 0.0
      %v7619 = vmax.f32 %v4737, 0.0
      %v7620 = vmax.f32 %v6032, 0.0
      %v7621 = vmax.f32 %v7327, 0.0
      %v7622 = vmax.f32 %v4740, 0.0
      %v7623 = vmax.f32 %v6035, 0.0
      %v7624 = vmax.f32 %v7330, 0.0
      %v7625 = vmax.f32 %v4742, 0.0
      %v7626 = vmax.f32 %v6037, 0.0
      %v7627 = vmax.f32 %v7332, 0.0
      %v7628 = vmax.f32 %v4745, 0.0
      %v7629 = vmax.f32 %v6040, 0.0
      %v7630 = vmax.f32 %v7335, 0.0
      %v7631 = vmax.f32 %v4747, 0.0
      %v7632 = vmax.f32 %v6042, 0.0
      %v7633 = vmax.f32 %v7337, 0.0
      %v7634 = vmax.f32 %v4750, 0.0
      %v7635 = vmax.f32 %v6045, 0.0
      %v7636 = vmax.f32 %v7340, 0.0
      %v7637 = vmax.f32 %v4752, 0.0
      %v7638 = vmax.f32 %v6047, 0.0
      %v7639 = vmax.f32 %v7342, 0.0
      %v7640 = vmax.f32 %v4755, 0.0
      %v7641 = vmax.f32 %v6050, 0.0
      %v7642 = vmax.f32 %v7345, 0.0
      %v7643 = vmax.f32 %v4757, 0.0
      %v7644 = vmax.f32 %v6052, 0.0
      %v7645 = vmax.f32 %v7347, 0.0
      %v7646 = vmax.f32 %v4760, 0.0
      %v7647 = vmax.f32 %v6055, 0.0
      %v7648 = vmax.f32 %v7350, 0.0
      %v7649 = vmax.f32 %v4762, 0.0
      %v7650 = vmax.f32 %v6057, 0.0
      %v7651 = vmax.f32 %v7352, 0.0
      %v7652 = vmax.f32 %v4765, 0.0
      %v7653 = vmax.f32 %v6060, 0.0
      %v7654 = vmax.f32 %v7355, 0.0
      %v7655 = vmax.f32 %v4767, 0.0
      %v7656 = vmax.f32 %v6062, 0.0
      %v7657 = vmax.f32 %v7357, 0.0
      %v7658 = vmax.f32 %v4770, 0.0
      %v7659 = vmax.f32 %v6065, 0.0
      %v7660 = vmax.f32 %v7360, 0.0
      %v7661 = vmax.f32 %v4772, 0.0
      %v7662 = vmax.f32 %v6067, 0.0
      %v7663 = vmax.f32 %v7362, 0.0
      %v7664 = vlaneseq
      %v7665 = vshrl.u32 %v7664, 7
      %v7666 = vadd.s32 %v7665, 8
      %v7667 = vadd.s32 %v7665, 16
      %v7668 = vadd.s32 %v7665, 24
      %v7669 = vadd.s32 %v7665, 32
      %v7670 = vadd.s32 %v7665, 40
      %v7671 = vadd.s32 %v7665, 48
      %v7672 = vadd.s32 %v7665, 56
      %v7673 = vadd.s32 %v7665, 64
      %v7674 = vadd.s32 %v7665, 72
      %v7675 = vadd.s32 %v7665, 80
      %v7676 = vadd.s32 %v7665, 88
      %v7677 = vadd.s32 %v7665, 96
      %v7678 = vadd.s32 %v7665, 104
      %v7679 = vadd.s32 %v7665, 112
      %v7680 = vadd.s32 %v7665, 120
      %v7681 = vadd.s32 %v7665, 128
      %v7682 = vadd.s32 %v7665, 136
      %v7683 = vadd.s32 %v7665, 144
      %v7684 = vadd.s32 %v7665, 152
      %v7685 = vadd.s32 %v7665, 160
      %v7686 = vadd.s32 %v7665, 168
      %v7687 = vadd.s32 %v7665, 176
      %v7688 = vadd.s32 %v7665, 184
      %v7689 = vadd.s32 %v7665, 192
      %vm7690 = vcmp.le.s32.totalorder %v7665, 197
      %vm7691 = vcmp.le.s32.totalorder %v7666, 197
      %vm7692 = vcmp.le.s32.totalorder %v7667, 197
      %vm7693 = vcmp.le.s32.totalorder %v7668, 197
      %vm7694 = vcmp.le.s32.totalorder %v7669, 197
      %vm7695 = vcmp.le.s32.totalorder %v7670, 197
      %vm7696 = vcmp.le.s32.totalorder %v7671, 197
      %vm7697 = vcmp.le.s32.totalorder %v7672, 197
      %vm7698 = vcmp.le.s32.totalorder %v7673, 197
      %vm7699 = vcmp.le.s32.totalorder %v7674, 197
      %vm7700 = vcmp.le.s32.totalorder %v7675, 197
      %vm7701 = vcmp.le.s32.totalorder %v7676, 197
      %vm7702 = vcmp.le.s32.totalorder %v7677, 197
      %vm7703 = vcmp.le.s32.totalorder %v7678, 197
      %vm7704 = vcmp.le.s32.totalorder %v7679, 197
      %vm7705 = vcmp.le.s32.totalorder %v7680, 197
      %vm7706 = vcmp.le.s32.totalorder %v7681, 197
      %vm7707 = vcmp.le.s32.totalorder %v7682, 197
      %vm7708 = vcmp.le.s32.totalorder %v7683, 197
      %vm7709 = vcmp.le.s32.totalorder %v7684, 197
      %vm7710 = vcmp.le.s32.totalorder %v7685, 197
      %vm7711 = vcmp.le.s32.totalorder %v7686, 197
      %vm7712 = vcmp.le.s32.totalorder %v7687, 197
      %vm7713 = vcmp.le.s32.totalorder %v7688, 197
      %vm7714 = vcmp.le.s32.totalorder %v7689, 197
      %v7715 = vsel %vm7690, 1, 0
      %v7716 = vsel %vm7691, 1, 0
      %v7717 = vsel %vm7692, 1, 0
      %v7718 = vsel %vm7693, 1, 0
      %v7719 = vsel %vm7694, 1, 0
      %v7720 = vsel %vm7695, 1, 0
      %v7721 = vsel %vm7696, 1, 0
      %v7722 = vsel %vm7697, 1, 0
      %v7723 = vsel %vm7698, 1, 0
      %v7724 = vsel %vm7699, 1, 0
      %v7725 = vsel %vm7700, 1, 0
      %v7726 = vsel %vm7701, 1, 0
      %v7727 = vsel %vm7702, 1, 0
      %v7728 = vsel %vm7703, 1, 0
      %v7729 = vsel %vm7704, 1, 0
      %v7730 = vsel %vm7705, 1, 0
      %v7731 = vsel %vm7706, 1, 0
      %v7732 = vsel %vm7707, 1, 0
      %v7733 = vsel %vm7708, 1, 0
      %v7734 = vsel %vm7709, 1, 0
      %v7735 = vsel %vm7710, 1, 0
      %v7736 = vsel %vm7711, 1, 0
      %v7737 = vsel %vm7712, 1, 0
      %v7738 = vsel %vm7713, 1, 0
      %v7739 = vsel %vm7714, 1, 0
      %vm7740 = vcmp.eq.s32.totalorder %v7715, 1
      %vm7741 = vcmp.eq.s32.totalorder %v7716, 1
      %vm7742 = vcmp.eq.s32.totalorder %v7717, 1
      %vm7743 = vcmp.eq.s32.totalorder %v7718, 1
      %vm7744 = vcmp.eq.s32.totalorder %v7719, 1
      %vm7745 = vcmp.eq.s32.totalorder %v7720, 1
      %vm7746 = vcmp.eq.s32.totalorder %v7721, 1
      %vm7747 = vcmp.eq.s32.totalorder %v7722, 1
      %vm7748 = vcmp.eq.s32.totalorder %v7723, 1
      %vm7749 = vcmp.eq.s32.totalorder %v7724, 1
      %vm7750 = vcmp.eq.s32.totalorder %v7725, 1
      %vm7751 = vcmp.eq.s32.totalorder %v7726, 1
      %vm7752 = vcmp.eq.s32.totalorder %v7727, 1
      %vm7753 = vcmp.eq.s32.totalorder %v7728, 1
      %vm7754 = vcmp.eq.s32.totalorder %v7729, 1
      %vm7755 = vcmp.eq.s32.totalorder %v7730, 1
      %vm7756 = vcmp.eq.s32.totalorder %v7731, 1
      %vm7757 = vcmp.eq.s32.totalorder %v7732, 1
      %vm7758 = vcmp.eq.s32.totalorder %v7733, 1
      %vm7759 = vcmp.eq.s32.totalorder %v7734, 1
      %vm7760 = vcmp.eq.s32.totalorder %v7735, 1
      %vm7761 = vcmp.eq.s32.totalorder %v7736, 1
      %vm7762 = vcmp.eq.s32.totalorder %v7737, 1
      %vm7763 = vcmp.eq.s32.totalorder %v7738, 1
      %vm7764 = vcmp.eq.s32.totalorder %v7739, 1
      %v7765 = vsel %vm7740, %v7364, 0.0
      %v7766 = vsel %vm7741, %v7367, 0.0
      %v7767 = vsel %vm7742, %v7370, 0.0
      %v7768 = vsel %vm7743, %v7373, 0.0
      %v7769 = vsel %vm7744, %v7376, 0.0
      %v7770 = vsel %vm7745, %v7379, 0.0
      %v7771 = vsel %vm7746, %v7382, 0.0
      %v7772 = vsel %vm7747, %v7385, 0.0
      %v7773 = vsel %vm7748, %v7388, 0.0
      %v7774 = vsel %vm7749, %v7391, 0.0
      %v7775 = vsel %vm7750, %v7394, 0.0
      %v7776 = vsel %vm7751, %v7397, 0.0
      %v7777 = vsel %vm7752, %v7400, 0.0
      %v7778 = vsel %vm7753, %v7403, 0.0
      %v7779 = vsel %vm7754, %v7406, 0.0
      %v7780 = vsel %vm7755, %v7409, 0.0
      %v7781 = vsel %vm7756, %v7412, 0.0
      %v7782 = vsel %vm7757, %v7415, 0.0
      %v7783 = vsel %vm7758, %v7418, 0.0
      %v7784 = vsel %vm7759, %v7421, 0.0
      %v7785 = vsel %vm7760, %v7424, 0.0
      %v7786 = vsel %vm7761, %v7427, 0.0
      %v7787 = vsel %vm7762, %v7430, 0.0
      %v7788 = vsel %vm7763, %v7433, 0.0
      %v7789 = vsel %vm7764, %v7436, 0.0
      %v7790 = vsel %vm7740, %v7439, 0.0
      %v7791 = vsel %vm7741, %v7442, 0.0
      %v7792 = vsel %vm7742, %v7445, 0.0
      %v7793 = vsel %vm7743, %v7448, 0.0
      %v7794 = vsel %vm7744, %v7451, 0.0
      %v7795 = vsel %vm7745, %v7454, 0.0
      %v7796 = vsel %vm7746, %v7457, 0.0
      %v7797 = vsel %vm7747, %v7460, 0.0
      %v7798 = vsel %vm7748, %v7463, 0.0
      %v7799 = vsel %vm7749, %v7466, 0.0
      %v7800 = vsel %vm7750, %v7469, 0.0
      %v7801 = vsel %vm7751, %v7472, 0.0
      %v7802 = vsel %vm7752, %v7475, 0.0
      %v7803 = vsel %vm7753, %v7478, 0.0
      %v7804 = vsel %vm7754, %v7481, 0.0
      %v7805 = vsel %vm7755, %v7484, 0.0
      %v7806 = vsel %vm7756, %v7487, 0.0
      %v7807 = vsel %vm7757, %v7490, 0.0
      %v7808 = vsel %vm7758, %v7493, 0.0
      %v7809 = vsel %vm7759, %v7496, 0.0
      %v7810 = vsel %vm7760, %v7499, 0.0
      %v7811 = vsel %vm7761, %v7502, 0.0
      %v7812 = vsel %vm7762, %v7505, 0.0
      %v7813 = vsel %vm7763, %v7508, 0.0
      %v7814 = vsel %vm7764, %v7511, 0.0
      %v7815 = vsel %vm7740, %v7514, 0.0
      %v7816 = vsel %vm7741, %v7517, 0.0
      %v7817 = vsel %vm7742, %v7520, 0.0
      %v7818 = vsel %vm7743, %v7523, 0.0
      %v7819 = vsel %vm7744, %v7526, 0.0
      %v7820 = vsel %vm7745, %v7529, 0.0
      %v7821 = vsel %vm7746, %v7532, 0.0
      %v7822 = vsel %vm7747, %v7535, 0.0
      %v7823 = vsel %vm7748, %v7538, 0.0
      %v7824 = vsel %vm7749, %v7541, 0.0
      %v7825 = vsel %vm7750, %v7544, 0.0
      %v7826 = vsel %vm7751, %v7547, 0.0
      %v7827 = vsel %vm7752, %v7550, 0.0
      %v7828 = vsel %vm7753, %v7553, 0.0
      %v7829 = vsel %vm7754, %v7556, 0.0
      %v7830 = vsel %vm7755, %v7559, 0.0
      %v7831 = vsel %vm7756, %v7562, 0.0
      %v7832 = vsel %vm7757, %v7565, 0.0
      %v7833 = vsel %vm7758, %v7568, 0.0
      %v7834 = vsel %vm7759, %v7571, 0.0
      %v7835 = vsel %vm7760, %v7574, 0.0
      %v7836 = vsel %vm7761, %v7577, 0.0
      %v7837 = vsel %vm7762, %v7580, 0.0
      %v7838 = vsel %vm7763, %v7583, 0.0
      %v7839 = vsel %vm7764, %v7586, 0.0
      %v7840 = vsel %vm7740, %v7589, 0.0
      %v7841 = vsel %vm7741, %v7592, 0.0
      %v7842 = vsel %vm7742, %v7595, 0.0
      %v7843 = vsel %vm7743, %v7598, 0.0
      %v7844 = vsel %vm7744, %v7601, 0.0
      %v7845 = vsel %vm7745, %v7604, 0.0
      %v7846 = vsel %vm7746, %v7607, 0.0
      %v7847 = vsel %vm7747, %v7610, 0.0
      %v7848 = vsel %vm7748, %v7613, 0.0
      %v7849 = vsel %vm7749, %v7616, 0.0
      %v7850 = vsel %vm7750, %v7619, 0.0
      %v7851 = vsel %vm7751, %v7622, 0.0
      %v7852 = vsel %vm7752, %v7625, 0.0
      %v7853 = vsel %vm7753, %v7628, 0.0
      %v7854 = vsel %vm7754, %v7631, 0.0
      %v7855 = vsel %vm7755, %v7634, 0.0
      %v7856 = vsel %vm7756, %v7637, 0.0
      %v7857 = vsel %vm7757, %v7640, 0.0
      %v7858 = vsel %vm7758, %v7643, 0.0
      %v7859 = vsel %vm7759, %v7646, 0.0
      %v7860 = vsel %vm7760, %v7649, 0.0
      %v7861 = vsel %vm7761, %v7652, 0.0
      %v7862 = vsel %vm7762, %v7655, 0.0
      %v7863 = vsel %vm7763, %v7658, 0.0
      %v7864 = vsel %vm7764, %v7661, 0.0
      %v7865 = vmax.f32 %v7765, %v7766
      %v7866 = vmax.f32 %v7865, %v7767
      %v7867 = vmax.f32 %v7866, %v7768
      %v7868 = vmax.f32 %v7867, %v7769
      %v7869 = vmax.f32 %v7868, %v7770
      %v7870 = vmax.f32 %v7869, %v7771
      %v7871 = vmax.f32 %v7870, %v7772
      %v7872 = vmax.f32 %v7871, %v7773
      %v7873 = vmax.f32 %v7872, %v7774
      %v7874 = vmax.f32 %v7873, %v7775
      %v7875 = vmax.f32 %v7874, %v7776
      %v7876 = vmax.f32 %v7875, %v7777
      %v7877 = vmax.f32 %v7876, %v7778
      %v7878 = vmax.f32 %v7877, %v7779
      %v7879 = vmax.f32 %v7878, %v7780
      %v7880 = vmax.f32 %v7879, %v7781
      %v7881 = vmax.f32 %v7880, %v7782
      %v7882 = vmax.f32 %v7881, %v7783
      %v7883 = vmax.f32 %v7882, %v7784
      %v7884 = vmax.f32 %v7883, %v7785
      %v7885 = vmax.f32 %v7884, %v7786
      %v7886 = vmax.f32 %v7885, %v7787
      %v7887 = vmax.f32 %v7886, %v7788
      %v7888 = vmax.f32 %v7887, %v7789
      %v7889 = vrot.slane %v7888, 4
      %v7890 = vmax.f32 %v7888, %v7889
      %v7891 = vrot.slane %v7890, 2
      %v7892 = vmax.f32 %v7890, %v7891
      %v7893 = vrot.slane %v7892, 1
      %v7894 = vmax.f32 %v7892, %v7893
      %v7895 = vmax.f32 %v7790, %v7791
      %v7896 = vmax.f32 %v7895, %v7792
      %v7897 = vmax.f32 %v7896, %v7793
      %v7898 = vmax.f32 %v7897, %v7794
      %v7899 = vmax.f32 %v7898, %v7795
      %v7900 = vmax.f32 %v7899, %v7796
      %v7901 = vmax.f32 %v7900, %v7797
      %v7902 = vmax.f32 %v7901, %v7798
      %v7903 = vmax.f32 %v7902, %v7799
      %v7904 = vmax.f32 %v7903, %v7800
      %v7905 = vmax.f32 %v7904, %v7801
      %v7906 = vmax.f32 %v7905, %v7802
      %v7907 = vmax.f32 %v7906, %v7803
      %v7908 = vmax.f32 %v7907, %v7804
      %v7909 = vmax.f32 %v7908, %v7805
      %v7910 = vmax.f32 %v7909, %v7806
      %v7911 = vmax.f32 %v7910, %v7807
      %v7912 = vmax.f32 %v7911, %v7808
      %v7913 = vmax.f32 %v7912, %v7809
      %v7914 = vmax.f32 %v7913, %v7810
      %v7915 = vmax.f32 %v7914, %v7811
      %v7916 = vmax.f32 %v7915, %v7812
      %v7917 = vmax.f32 %v7916, %v7813
      %v7918 = vmax.f32 %v7917, %v7814
      %v7919 = vrot.slane %v7918, 4
      %v7920 = vmax.f32 %v7918, %v7919
      %v7921 = vrot.slane %v7920, 2
      %v7922 = vmax.f32 %v7920, %v7921
      %v7923 = vrot.slane %v7922, 1
      %v7924 = vmax.f32 %v7922, %v7923
      %v7925 = vmax.f32 %v7815, %v7816
      %v7926 = vmax.f32 %v7925, %v7817
      %v7927 = vmax.f32 %v7926, %v7818
      %v7928 = vmax.f32 %v7927, %v7819
      %v7929 = vmax.f32 %v7928, %v7820
      %v7930 = vmax.f32 %v7929, %v7821
      %v7931 = vmax.f32 %v7930, %v7822
      %v7932 = vmax.f32 %v7931, %v7823
      %v7933 = vmax.f32 %v7932, %v7824
      %v7934 = vmax.f32 %v7933, %v7825
      %v7935 = vmax.f32 %v7934, %v7826
      %v7936 = vmax.f32 %v7935, %v7827
      %v7937 = vmax.f32 %v7936, %v7828
      %v7938 = vmax.f32 %v7937, %v7829
      %v7939 = vmax.f32 %v7938, %v7830
      %v7940 = vmax.f32 %v7939, %v7831
      %v7941 = vmax.f32 %v7940, %v7832
      %v7942 = vmax.f32 %v7941, %v7833
      %v7943 = vmax.f32 %v7942, %v7834
      %v7944 = vmax.f32 %v7943, %v7835
      %v7945 = vmax.f32 %v7944, %v7836
      %v7946 = vmax.f32 %v7945, %v7837
      %v7947 = vmax.f32 %v7946, %v7838
      %v7948 = vmax.f32 %v7947, %v7839
      %v7949 = vrot.slane %v7948, 4
      %v7950 = vmax.f32 %v7948, %v7949
      %v7951 = vrot.slane %v7950, 2
      %v7952 = vmax.f32 %v7950, %v7951
      %v7953 = vrot.slane %v7952, 1
      %v7954 = vmax.f32 %v7952, %v7953
      %v7955 = vmax.f32 %v7840, %v7841
      %v7956 = vmax.f32 %v7955, %v7842
      %v7957 = vmax.f32 %v7956, %v7843
      %v7958 = vmax.f32 %v7957, %v7844
      %v7959 = vmax.f32 %v7958, %v7845
      %v7960 = vmax.f32 %v7959, %v7846
      %v7961 = vmax.f32 %v7960, %v7847
      %v7962 = vmax.f32 %v7961, %v7848
      %v7963 = vmax.f32 %v7962, %v7849
      %v7964 = vmax.f32 %v7963, %v7850
      %v7965 = vmax.f32 %v7964, %v7851
      %v7966 = vmax.f32 %v7965, %v7852
      %v7967 = vmax.f32 %v7966, %v7853
      %v7968 = vmax.f32 %v7967, %v7854
      %v7969 = vmax.f32 %v7968, %v7855
      %v7970 = vmax.f32 %v7969, %v7856
      %v7971 = vmax.f32 %v7970, %v7857
      %v7972 = vmax.f32 %v7971, %v7858
      %v7973 = vmax.f32 %v7972, %v7859
      %v7974 = vmax.f32 %v7973, %v7860
      %v7975 = vmax.f32 %v7974, %v7861
      %v7976 = vmax.f32 %v7975, %v7862
      %v7977 = vmax.f32 %v7976, %v7863
      %v7978 = vmax.f32 %v7977, %v7864
      %v7979 = vrot.slane %v7978, 4
      %v7980 = vmax.f32 %v7978, %v7979
      %v7981 = vrot.slane %v7980, 2
      %v7982 = vmax.f32 %v7980, %v7981
      %v7983 = vrot.slane %v7982, 1
      %v7984 = vmax.f32 %v7982, %v7983
      %vm7985 = vcmp.le.s32.totalorder %v7665, 196
      %vm7986 = vcmp.le.s32.totalorder %v7666, 196
      %vm7987 = vcmp.le.s32.totalorder %v7667, 196
      %vm7988 = vcmp.le.s32.totalorder %v7668, 196
      %vm7989 = vcmp.le.s32.totalorder %v7669, 196
      %vm7990 = vcmp.le.s32.totalorder %v7670, 196
      %vm7991 = vcmp.le.s32.totalorder %v7671, 196
      %vm7992 = vcmp.le.s32.totalorder %v7672, 196
      %vm7993 = vcmp.le.s32.totalorder %v7673, 196
      %vm7994 = vcmp.le.s32.totalorder %v7674, 196
      %vm7995 = vcmp.le.s32.totalorder %v7675, 196
      %vm7996 = vcmp.le.s32.totalorder %v7676, 196
      %vm7997 = vcmp.le.s32.totalorder %v7677, 196
      %vm7998 = vcmp.le.s32.totalorder %v7678, 196
      %vm7999 = vcmp.le.s32.totalorder %v7679, 196
      %vm8000 = vcmp.le.s32.totalorder %v7680, 196
      %vm8001 = vcmp.le.s32.totalorder %v7681, 196
      %vm8002 = vcmp.le.s32.totalorder %v7682, 196
      %vm8003 = vcmp.le.s32.totalorder %v7683, 196
      %vm8004 = vcmp.le.s32.totalorder %v7684, 196
      %vm8005 = vcmp.le.s32.totalorder %v7685, 196
      %vm8006 = vcmp.le.s32.totalorder %v7686, 196
      %vm8007 = vcmp.le.s32.totalorder %v7687, 196
      %vm8008 = vcmp.le.s32.totalorder %v7688, 196
      %vm8009 = vcmp.le.s32.totalorder %v7689, 196
      %v8010 = vsel %vm7985, 1, 0
      %v8011 = vsel %vm7986, 1, 0
      %v8012 = vsel %vm7987, 1, 0
      %v8013 = vsel %vm7988, 1, 0
      %v8014 = vsel %vm7989, 1, 0
      %v8015 = vsel %vm7990, 1, 0
      %v8016 = vsel %vm7991, 1, 0
      %v8017 = vsel %vm7992, 1, 0
      %v8018 = vsel %vm7993, 1, 0
      %v8019 = vsel %vm7994, 1, 0
      %v8020 = vsel %vm7995, 1, 0
      %v8021 = vsel %vm7996, 1, 0
      %v8022 = vsel %vm7997, 1, 0
      %v8023 = vsel %vm7998, 1, 0
      %v8024 = vsel %vm7999, 1, 0
      %v8025 = vsel %vm8000, 1, 0
      %v8026 = vsel %vm8001, 1, 0
      %v8027 = vsel %vm8002, 1, 0
      %v8028 = vsel %vm8003, 1, 0
      %v8029 = vsel %vm8004, 1, 0
      %v8030 = vsel %vm8005, 1, 0
      %v8031 = vsel %vm8006, 1, 0
      %v8032 = vsel %vm8007, 1, 0
      %v8033 = vsel %vm8008, 1, 0
      %v8034 = vsel %vm8009, 1, 0
      %vm8035 = vcmp.eq.s32.totalorder %v8010, 1
      %vm8036 = vcmp.eq.s32.totalorder %v8011, 1
      %vm8037 = vcmp.eq.s32.totalorder %v8012, 1
      %vm8038 = vcmp.eq.s32.totalorder %v8013, 1
      %vm8039 = vcmp.eq.s32.totalorder %v8014, 1
      %vm8040 = vcmp.eq.s32.totalorder %v8015, 1
      %vm8041 = vcmp.eq.s32.totalorder %v8016, 1
      %vm8042 = vcmp.eq.s32.totalorder %v8017, 1
      %vm8043 = vcmp.eq.s32.totalorder %v8018, 1
      %vm8044 = vcmp.eq.s32.totalorder %v8019, 1
      %vm8045 = vcmp.eq.s32.totalorder %v8020, 1
      %vm8046 = vcmp.eq.s32.totalorder %v8021, 1
      %vm8047 = vcmp.eq.s32.totalorder %v8022, 1
      %vm8048 = vcmp.eq.s32.totalorder %v8023, 1
      %vm8049 = vcmp.eq.s32.totalorder %v8024, 1
      %vm8050 = vcmp.eq.s32.totalorder %v8025, 1
      %vm8051 = vcmp.eq.s32.totalorder %v8026, 1
      %vm8052 = vcmp.eq.s32.totalorder %v8027, 1
      %vm8053 = vcmp.eq.s32.totalorder %v8028, 1
      %vm8054 = vcmp.eq.s32.totalorder %v8029, 1
      %vm8055 = vcmp.eq.s32.totalorder %v8030, 1
      %vm8056 = vcmp.eq.s32.totalorder %v8031, 1
      %vm8057 = vcmp.eq.s32.totalorder %v8032, 1
      %vm8058 = vcmp.eq.s32.totalorder %v8033, 1
      %vm8059 = vcmp.eq.s32.totalorder %v8034, 1
      %v8060 = vsel %vm8035, %v7365, 0.0
      %v8061 = vsel %vm8036, %v7368, 0.0
      %v8062 = vsel %vm8037, %v7371, 0.0
      %v8063 = vsel %vm8038, %v7374, 0.0
      %v8064 = vsel %vm8039, %v7377, 0.0
      %v8065 = vsel %vm8040, %v7380, 0.0
      %v8066 = vsel %vm8041, %v7383, 0.0
      %v8067 = vsel %vm8042, %v7386, 0.0
      %v8068 = vsel %vm8043, %v7389, 0.0
      %v8069 = vsel %vm8044, %v7392, 0.0
      %v8070 = vsel %vm8045, %v7395, 0.0
      %v8071 = vsel %vm8046, %v7398, 0.0
      %v8072 = vsel %vm8047, %v7401, 0.0
      %v8073 = vsel %vm8048, %v7404, 0.0
      %v8074 = vsel %vm8049, %v7407, 0.0
      %v8075 = vsel %vm8050, %v7410, 0.0
      %v8076 = vsel %vm8051, %v7413, 0.0
      %v8077 = vsel %vm8052, %v7416, 0.0
      %v8078 = vsel %vm8053, %v7419, 0.0
      %v8079 = vsel %vm8054, %v7422, 0.0
      %v8080 = vsel %vm8055, %v7425, 0.0
      %v8081 = vsel %vm8056, %v7428, 0.0
      %v8082 = vsel %vm8057, %v7431, 0.0
      %v8083 = vsel %vm8058, %v7434, 0.0
      %v8084 = vsel %vm8059, %v7437, 0.0
      %v8085 = vsel %vm8035, %v7440, 0.0
      %v8086 = vsel %vm8036, %v7443, 0.0
      %v8087 = vsel %vm8037, %v7446, 0.0
      %v8088 = vsel %vm8038, %v7449, 0.0
      %v8089 = vsel %vm8039, %v7452, 0.0
      %v8090 = vsel %vm8040, %v7455, 0.0
      %v8091 = vsel %vm8041, %v7458, 0.0
      %v8092 = vsel %vm8042, %v7461, 0.0
      %v8093 = vsel %vm8043, %v7464, 0.0
      %v8094 = vsel %vm8044, %v7467, 0.0
      %v8095 = vsel %vm8045, %v7470, 0.0
      %v8096 = vsel %vm8046, %v7473, 0.0
      %v8097 = vsel %vm8047, %v7476, 0.0
      %v8098 = vsel %vm8048, %v7479, 0.0
      %v8099 = vsel %vm8049, %v7482, 0.0
      %v8100 = vsel %vm8050, %v7485, 0.0
      %v8101 = vsel %vm8051, %v7488, 0.0
      %v8102 = vsel %vm8052, %v7491, 0.0
      %v8103 = vsel %vm8053, %v7494, 0.0
      %v8104 = vsel %vm8054, %v7497, 0.0
      %v8105 = vsel %vm8055, %v7500, 0.0
      %v8106 = vsel %vm8056, %v7503, 0.0
      %v8107 = vsel %vm8057, %v7506, 0.0
      %v8108 = vsel %vm8058, %v7509, 0.0
      %v8109 = vsel %vm8059, %v7512, 0.0
      %v8110 = vsel %vm8035, %v7515, 0.0
      %v8111 = vsel %vm8036, %v7518, 0.0
      %v8112 = vsel %vm8037, %v7521, 0.0
      %v8113 = vsel %vm8038, %v7524, 0.0
      %v8114 = vsel %vm8039, %v7527, 0.0
      %v8115 = vsel %vm8040, %v7530, 0.0
      %v8116 = vsel %vm8041, %v7533, 0.0
      %v8117 = vsel %vm8042, %v7536, 0.0
      %v8118 = vsel %vm8043, %v7539, 0.0
      %v8119 = vsel %vm8044, %v7542, 0.0
      %v8120 = vsel %vm8045, %v7545, 0.0
      %v8121 = vsel %vm8046, %v7548, 0.0
      %v8122 = vsel %vm8047, %v7551, 0.0
      %v8123 = vsel %vm8048, %v7554, 0.0
      %v8124 = vsel %vm8049, %v7557, 0.0
      %v8125 = vsel %vm8050, %v7560, 0.0
      %v8126 = vsel %vm8051, %v7563, 0.0
      %v8127 = vsel %vm8052, %v7566, 0.0
      %v8128 = vsel %vm8053, %v7569, 0.0
      %v8129 = vsel %vm8054, %v7572, 0.0
      %v8130 = vsel %vm8055, %v7575, 0.0
      %v8131 = vsel %vm8056, %v7578, 0.0
      %v8132 = vsel %vm8057, %v7581, 0.0
      %v8133 = vsel %vm8058, %v7584, 0.0
      %v8134 = vsel %vm8059, %v7587, 0.0
      %v8135 = vsel %vm8035, %v7590, 0.0
      %v8136 = vsel %vm8036, %v7593, 0.0
      %v8137 = vsel %vm8037, %v7596, 0.0
      %v8138 = vsel %vm8038, %v7599, 0.0
      %v8139 = vsel %vm8039, %v7602, 0.0
      %v8140 = vsel %vm8040, %v7605, 0.0
      %v8141 = vsel %vm8041, %v7608, 0.0
      %v8142 = vsel %vm8042, %v7611, 0.0
      %v8143 = vsel %vm8043, %v7614, 0.0
      %v8144 = vsel %vm8044, %v7617, 0.0
      %v8145 = vsel %vm8045, %v7620, 0.0
      %v8146 = vsel %vm8046, %v7623, 0.0
      %v8147 = vsel %vm8047, %v7626, 0.0
      %v8148 = vsel %vm8048, %v7629, 0.0
      %v8149 = vsel %vm8049, %v7632, 0.0
      %v8150 = vsel %vm8050, %v7635, 0.0
      %v8151 = vsel %vm8051, %v7638, 0.0
      %v8152 = vsel %vm8052, %v7641, 0.0
      %v8153 = vsel %vm8053, %v7644, 0.0
      %v8154 = vsel %vm8054, %v7647, 0.0
      %v8155 = vsel %vm8055, %v7650, 0.0
      %v8156 = vsel %vm8056, %v7653, 0.0
      %v8157 = vsel %vm8057, %v7656, 0.0
      %v8158 = vsel %vm8058, %v7659, 0.0
      %v8159 = vsel %vm8059, %v7662, 0.0
      %v8160 = vmax.f32 %v8060, %v8061
      %v8161 = vmax.f32 %v8160, %v8062
      %v8162 = vmax.f32 %v8161, %v8063
      %v8163 = vmax.f32 %v8162, %v8064
      %v8164 = vmax.f32 %v8163, %v8065
      %v8165 = vmax.f32 %v8164, %v8066
      %v8166 = vmax.f32 %v8165, %v8067
      %v8167 = vmax.f32 %v8166, %v8068
      %v8168 = vmax.f32 %v8167, %v8069
      %v8169 = vmax.f32 %v8168, %v8070
      %v8170 = vmax.f32 %v8169, %v8071
      %v8171 = vmax.f32 %v8170, %v8072
      %v8172 = vmax.f32 %v8171, %v8073
      %v8173 = vmax.f32 %v8172, %v8074
      %v8174 = vmax.f32 %v8173, %v8075
      %v8175 = vmax.f32 %v8174, %v8076
      %v8176 = vmax.f32 %v8175, %v8077
      %v8177 = vmax.f32 %v8176, %v8078
      %v8178 = vmax.f32 %v8177, %v8079
      %v8179 = vmax.f32 %v8178, %v8080
      %v8180 = vmax.f32 %v8179, %v8081
      %v8181 = vmax.f32 %v8180, %v8082
      %v8182 = vmax.f32 %v8181, %v8083
      %v8183 = vmax.f32 %v8182, %v8084
      %v8184 = vrot.slane %v8183, 4
      %v8185 = vmax.f32 %v8183, %v8184
      %v8186 = vrot.slane %v8185, 2
      %v8187 = vmax.f32 %v8185, %v8186
      %v8188 = vrot.slane %v8187, 1
      %v8189 = vmax.f32 %v8187, %v8188
      %v8190 = vmax.f32 %v8085, %v8086
      %v8191 = vmax.f32 %v8190, %v8087
      %v8192 = vmax.f32 %v8191, %v8088
      %v8193 = vmax.f32 %v8192, %v8089
      %v8194 = vmax.f32 %v8193, %v8090
      %v8195 = vmax.f32 %v8194, %v8091
      %v8196 = vmax.f32 %v8195, %v8092
      %v8197 = vmax.f32 %v8196, %v8093
      %v8198 = vmax.f32 %v8197, %v8094
      %v8199 = vmax.f32 %v8198, %v8095
      %v8200 = vmax.f32 %v8199, %v8096
      %v8201 = vmax.f32 %v8200, %v8097
      %v8202 = vmax.f32 %v8201, %v8098
      %v8203 = vmax.f32 %v8202, %v8099
      %v8204 = vmax.f32 %v8203, %v8100
      %v8205 = vmax.f32 %v8204, %v8101
      %v8206 = vmax.f32 %v8205, %v8102
      %v8207 = vmax.f32 %v8206, %v8103
      %v8208 = vmax.f32 %v8207, %v8104
      %v8209 = vmax.f32 %v8208, %v8105
      %v8210 = vmax.f32 %v8209, %v8106
      %v8211 = vmax.f32 %v8210, %v8107
      %v8212 = vmax.f32 %v8211, %v8108
      %v8213 = vmax.f32 %v8212, %v8109
      %v8214 = vrot.slane %v8213, 4
      %v8215 = vmax.f32 %v8213, %v8214
      %v8216 = vrot.slane %v8215, 2
      %v8217 = vmax.f32 %v8215, %v8216
      %v8218 = vrot.slane %v8217, 1
      %v8219 = vmax.f32 %v8217, %v8218
      %v8220 = vmax.f32 %v8110, %v8111
      %v8221 = vmax.f32 %v8220, %v8112
      %v8222 = vmax.f32 %v8221, %v8113
      %v8223 = vmax.f32 %v8222, %v8114
      %v8224 = vmax.f32 %v8223, %v8115
      %v8225 = vmax.f32 %v8224, %v8116
      %v8226 = vmax.f32 %v8225, %v8117
      %v8227 = vmax.f32 %v8226, %v8118
      %v8228 = vmax.f32 %v8227, %v8119
      %v8229 = vmax.f32 %v8228, %v8120
      %v8230 = vmax.f32 %v8229, %v8121
      %v8231 = vmax.f32 %v8230, %v8122
      %v8232 = vmax.f32 %v8231, %v8123
      %v8233 = vmax.f32 %v8232, %v8124
      %v8234 = vmax.f32 %v8233, %v8125
      %v8235 = vmax.f32 %v8234, %v8126
      %v8236 = vmax.f32 %v8235, %v8127
      %v8237 = vmax.f32 %v8236, %v8128
      %v8238 = vmax.f32 %v8237, %v8129
      %v8239 = vmax.f32 %v8238, %v8130
      %v8240 = vmax.f32 %v8239, %v8131
      %v8241 = vmax.f32 %v8240, %v8132
      %v8242 = vmax.f32 %v8241, %v8133
      %v8243 = vmax.f32 %v8242, %v8134
      %v8244 = vrot.slane %v8243, 4
      %v8245 = vmax.f32 %v8243, %v8244
      %v8246 = vrot.slane %v8245, 2
      %v8247 = vmax.f32 %v8245, %v8246
      %v8248 = vrot.slane %v8247, 1
      %v8249 = vmax.f32 %v8247, %v8248
      %v8250 = vmax.f32 %v8135, %v8136
      %v8251 = vmax.f32 %v8250, %v8137
      %v8252 = vmax.f32 %v8251, %v8138
      %v8253 = vmax.f32 %v8252, %v8139
      %v8254 = vmax.f32 %v8253, %v8140
      %v8255 = vmax.f32 %v8254, %v8141
      %v8256 = vmax.f32 %v8255, %v8142
      %v8257 = vmax.f32 %v8256, %v8143
      %v8258 = vmax.f32 %v8257, %v8144
      %v8259 = vmax.f32 %v8258, %v8145
      %v8260 = vmax.f32 %v8259, %v8146
      %v8261 = vmax.f32 %v8260, %v8147
      %v8262 = vmax.f32 %v8261, %v8148
      %v8263 = vmax.f32 %v8262, %v8149
      %v8264 = vmax.f32 %v8263, %v8150
      %v8265 = vmax.f32 %v8264, %v8151
      %v8266 = vmax.f32 %v8265, %v8152
      %v8267 = vmax.f32 %v8266, %v8153
      %v8268 = vmax.f32 %v8267, %v8154
      %v8269 = vmax.f32 %v8268, %v8155
      %v8270 = vmax.f32 %v8269, %v8156
      %v8271 = vmax.f32 %v8270, %v8157
      %v8272 = vmax.f32 %v8271, %v8158
      %v8273 = vmax.f32 %v8272, %v8159
      %v8274 = vrot.slane %v8273, 4
      %v8275 = vmax.f32 %v8273, %v8274
      %v8276 = vrot.slane %v8275, 2
      %v8277 = vmax.f32 %v8275, %v8276
      %v8278 = vrot.slane %v8277, 1
      %v8279 = vmax.f32 %v8277, %v8278
      %vm8280 = vcmp.le.s32.totalorder %v7665, 195
      %vm8281 = vcmp.le.s32.totalorder %v7666, 195
      %vm8282 = vcmp.le.s32.totalorder %v7667, 195
      %vm8283 = vcmp.le.s32.totalorder %v7668, 195
      %vm8284 = vcmp.le.s32.totalorder %v7669, 195
      %vm8285 = vcmp.le.s32.totalorder %v7670, 195
      %vm8286 = vcmp.le.s32.totalorder %v7671, 195
      %vm8287 = vcmp.le.s32.totalorder %v7672, 195
      %vm8288 = vcmp.le.s32.totalorder %v7673, 195
      %vm8289 = vcmp.le.s32.totalorder %v7674, 195
      %vm8290 = vcmp.le.s32.totalorder %v7675, 195
      %vm8291 = vcmp.le.s32.totalorder %v7676, 195
      %vm8292 = vcmp.le.s32.totalorder %v7677, 195
      %vm8293 = vcmp.le.s32.totalorder %v7678, 195
      %vm8294 = vcmp.le.s32.totalorder %v7679, 195
      %vm8295 = vcmp.le.s32.totalorder %v7680, 195
      %vm8296 = vcmp.le.s32.totalorder %v7681, 195
      %vm8297 = vcmp.le.s32.totalorder %v7682, 195
      %vm8298 = vcmp.le.s32.totalorder %v7683, 195
      %vm8299 = vcmp.le.s32.totalorder %v7684, 195
      %vm8300 = vcmp.le.s32.totalorder %v7685, 195
      %vm8301 = vcmp.le.s32.totalorder %v7686, 195
      %vm8302 = vcmp.le.s32.totalorder %v7687, 195
      %vm8303 = vcmp.le.s32.totalorder %v7688, 195
      %vm8304 = vcmp.le.s32.totalorder %v7689, 195
      %v8305 = vsel %vm8280, 1, 0
      %v8306 = vsel %vm8281, 1, 0
      %v8307 = vsel %vm8282, 1, 0
      %v8308 = vsel %vm8283, 1, 0
      %v8309 = vsel %vm8284, 1, 0
      %v8310 = vsel %vm8285, 1, 0
      %v8311 = vsel %vm8286, 1, 0
      %v8312 = vsel %vm8287, 1, 0
      %v8313 = vsel %vm8288, 1, 0
      %v8314 = vsel %vm8289, 1, 0
      %v8315 = vsel %vm8290, 1, 0
      %v8316 = vsel %vm8291, 1, 0
      %v8317 = vsel %vm8292, 1, 0
      %v8318 = vsel %vm8293, 1, 0
      %v8319 = vsel %vm8294, 1, 0
      %v8320 = vsel %vm8295, 1, 0
      %v8321 = vsel %vm8296, 1, 0
      %v8322 = vsel %vm8297, 1, 0
      %v8323 = vsel %vm8298, 1, 0
      %v8324 = vsel %vm8299, 1, 0
      %v8325 = vsel %vm8300, 1, 0
      %v8326 = vsel %vm8301, 1, 0
      %v8327 = vsel %vm8302, 1, 0
      %v8328 = vsel %vm8303, 1, 0
      %v8329 = vsel %vm8304, 1, 0
      %vm8330 = vcmp.eq.s32.totalorder %v8305, 1
      %vm8331 = vcmp.eq.s32.totalorder %v8306, 1
      %vm8332 = vcmp.eq.s32.totalorder %v8307, 1
      %vm8333 = vcmp.eq.s32.totalorder %v8308, 1
      %vm8334 = vcmp.eq.s32.totalorder %v8309, 1
      %vm8335 = vcmp.eq.s32.totalorder %v8310, 1
      %vm8336 = vcmp.eq.s32.totalorder %v8311, 1
      %vm8337 = vcmp.eq.s32.totalorder %v8312, 1
      %vm8338 = vcmp.eq.s32.totalorder %v8313, 1
      %vm8339 = vcmp.eq.s32.totalorder %v8314, 1
      %vm8340 = vcmp.eq.s32.totalorder %v8315, 1
      %vm8341 = vcmp.eq.s32.totalorder %v8316, 1
      %vm8342 = vcmp.eq.s32.totalorder %v8317, 1
      %vm8343 = vcmp.eq.s32.totalorder %v8318, 1
      %vm8344 = vcmp.eq.s32.totalorder %v8319, 1
      %vm8345 = vcmp.eq.s32.totalorder %v8320, 1
      %vm8346 = vcmp.eq.s32.totalorder %v8321, 1
      %vm8347 = vcmp.eq.s32.totalorder %v8322, 1
      %vm8348 = vcmp.eq.s32.totalorder %v8323, 1
      %vm8349 = vcmp.eq.s32.totalorder %v8324, 1
      %vm8350 = vcmp.eq.s32.totalorder %v8325, 1
      %vm8351 = vcmp.eq.s32.totalorder %v8326, 1
      %vm8352 = vcmp.eq.s32.totalorder %v8327, 1
      %vm8353 = vcmp.eq.s32.totalorder %v8328, 1
      %vm8354 = vcmp.eq.s32.totalorder %v8329, 1
      %v8355 = vsel %vm8330, %v7366, 0.0
      %v8356 = vsel %vm8331, %v7369, 0.0
      %v8357 = vsel %vm8332, %v7372, 0.0
      %v8358 = vsel %vm8333, %v7375, 0.0
      %v8359 = vsel %vm8334, %v7378, 0.0
      %v8360 = vsel %vm8335, %v7381, 0.0
      %v8361 = vsel %vm8336, %v7384, 0.0
      %v8362 = vsel %vm8337, %v7387, 0.0
      %v8363 = vsel %vm8338, %v7390, 0.0
      %v8364 = vsel %vm8339, %v7393, 0.0
      %v8365 = vsel %vm8340, %v7396, 0.0
      %v8366 = vsel %vm8341, %v7399, 0.0
      %v8367 = vsel %vm8342, %v7402, 0.0
      %v8368 = vsel %vm8343, %v7405, 0.0
      %v8369 = vsel %vm8344, %v7408, 0.0
      %v8370 = vsel %vm8345, %v7411, 0.0
      %v8371 = vsel %vm8346, %v7414, 0.0
      %v8372 = vsel %vm8347, %v7417, 0.0
      %v8373 = vsel %vm8348, %v7420, 0.0
      %v8374 = vsel %vm8349, %v7423, 0.0
      %v8375 = vsel %vm8350, %v7426, 0.0
      %v8376 = vsel %vm8351, %v7429, 0.0
      %v8377 = vsel %vm8352, %v7432, 0.0
      %v8378 = vsel %vm8353, %v7435, 0.0
      %v8379 = vsel %vm8354, %v7438, 0.0
      %v8380 = vsel %vm8330, %v7441, 0.0
      %v8381 = vsel %vm8331, %v7444, 0.0
      %v8382 = vsel %vm8332, %v7447, 0.0
      %v8383 = vsel %vm8333, %v7450, 0.0
      %v8384 = vsel %vm8334, %v7453, 0.0
      %v8385 = vsel %vm8335, %v7456, 0.0
      %v8386 = vsel %vm8336, %v7459, 0.0
      %v8387 = vsel %vm8337, %v7462, 0.0
      %v8388 = vsel %vm8338, %v7465, 0.0
      %v8389 = vsel %vm8339, %v7468, 0.0
      %v8390 = vsel %vm8340, %v7471, 0.0
      %v8391 = vsel %vm8341, %v7474, 0.0
      %v8392 = vsel %vm8342, %v7477, 0.0
      %v8393 = vsel %vm8343, %v7480, 0.0
      %v8394 = vsel %vm8344, %v7483, 0.0
      %v8395 = vsel %vm8345, %v7486, 0.0
      %v8396 = vsel %vm8346, %v7489, 0.0
      %v8397 = vsel %vm8347, %v7492, 0.0
      %v8398 = vsel %vm8348, %v7495, 0.0
      %v8399 = vsel %vm8349, %v7498, 0.0
      %v8400 = vsel %vm8350, %v7501, 0.0
      %v8401 = vsel %vm8351, %v7504, 0.0
      %v8402 = vsel %vm8352, %v7507, 0.0
      %v8403 = vsel %vm8353, %v7510, 0.0
      %v8404 = vsel %vm8354, %v7513, 0.0
      %v8405 = vsel %vm8330, %v7516, 0.0
      %v8406 = vsel %vm8331, %v7519, 0.0
      %v8407 = vsel %vm8332, %v7522, 0.0
      %v8408 = vsel %vm8333, %v7525, 0.0
      %v8409 = vsel %vm8334, %v7528, 0.0
      %v8410 = vsel %vm8335, %v7531, 0.0
      %v8411 = vsel %vm8336, %v7534, 0.0
      %v8412 = vsel %vm8337, %v7537, 0.0
      %v8413 = vsel %vm8338, %v7540, 0.0
      %v8414 = vsel %vm8339, %v7543, 0.0
      %v8415 = vsel %vm8340, %v7546, 0.0
      %v8416 = vsel %vm8341, %v7549, 0.0
      %v8417 = vsel %vm8342, %v7552, 0.0
      %v8418 = vsel %vm8343, %v7555, 0.0
      %v8419 = vsel %vm8344, %v7558, 0.0
      %v8420 = vsel %vm8345, %v7561, 0.0
      %v8421 = vsel %vm8346, %v7564, 0.0
      %v8422 = vsel %vm8347, %v7567, 0.0
      %v8423 = vsel %vm8348, %v7570, 0.0
      %v8424 = vsel %vm8349, %v7573, 0.0
      %v8425 = vsel %vm8350, %v7576, 0.0
      %v8426 = vsel %vm8351, %v7579, 0.0
      %v8427 = vsel %vm8352, %v7582, 0.0
      %v8428 = vsel %vm8353, %v7585, 0.0
      %v8429 = vsel %vm8354, %v7588, 0.0
      %v8430 = vsel %vm8330, %v7591, 0.0
      %v8431 = vsel %vm8331, %v7594, 0.0
      %v8432 = vsel %vm8332, %v7597, 0.0
      %v8433 = vsel %vm8333, %v7600, 0.0
      %v8434 = vsel %vm8334, %v7603, 0.0
      %v8435 = vsel %vm8335, %v7606, 0.0
      %v8436 = vsel %vm8336, %v7609, 0.0
      %v8437 = vsel %vm8337, %v7612, 0.0
      %v8438 = vsel %vm8338, %v7615, 0.0
      %v8439 = vsel %vm8339, %v7618, 0.0
      %v8440 = vsel %vm8340, %v7621, 0.0
      %v8441 = vsel %vm8341, %v7624, 0.0
      %v8442 = vsel %vm8342, %v7627, 0.0
      %v8443 = vsel %vm8343, %v7630, 0.0
      %v8444 = vsel %vm8344, %v7633, 0.0
      %v8445 = vsel %vm8345, %v7636, 0.0
      %v8446 = vsel %vm8346, %v7639, 0.0
      %v8447 = vsel %vm8347, %v7642, 0.0
      %v8448 = vsel %vm8348, %v7645, 0.0
      %v8449 = vsel %vm8349, %v7648, 0.0
      %v8450 = vsel %vm8350, %v7651, 0.0
      %v8451 = vsel %vm8351, %v7654, 0.0
      %v8452 = vsel %vm8352, %v7657, 0.0
      %v8453 = vsel %vm8353, %v7660, 0.0
      %v8454 = vsel %vm8354, %v7663, 0.0
      %v8455 = vmax.f32 %v8355, %v8356
      %v8456 = vmax.f32 %v8455, %v8357
      %v8457 = vmax.f32 %v8456, %v8358
      %v8458 = vmax.f32 %v8457, %v8359
      %v8459 = vmax.f32 %v8458, %v8360
      %v8460 = vmax.f32 %v8459, %v8361
      %v8461 = vmax.f32 %v8460, %v8362
      %v8462 = vmax.f32 %v8461, %v8363
      %v8463 = vmax.f32 %v8462, %v8364
      %v8464 = vmax.f32 %v8463, %v8365
      %v8465 = vmax.f32 %v8464, %v8366
      %v8466 = vmax.f32 %v8465, %v8367
      %v8467 = vmax.f32 %v8466, %v8368
      %v8468 = vmax.f32 %v8467, %v8369
      %v8469 = vmax.f32 %v8468, %v8370
      %v8470 = vmax.f32 %v8469, %v8371
      %v8471 = vmax.f32 %v8470, %v8372
      %v8472 = vmax.f32 %v8471, %v8373
      %v8473 = vmax.f32 %v8472, %v8374
      %v8474 = vmax.f32 %v8473, %v8375
      %v8475 = vmax.f32 %v8474, %v8376
      %v8476 = vmax.f32 %v8475, %v8377
      %v8477 = vmax.f32 %v8476, %v8378
      %v8478 = vmax.f32 %v8477, %v8379
      %v8479 = vrot.slane %v8478, 4
      %v8480 = vmax.f32 %v8478, %v8479
      %v8481 = vrot.slane %v8480, 2
      %v8482 = vmax.f32 %v8480, %v8481
      %v8483 = vrot.slane %v8482, 1
      %v8484 = vmax.f32 %v8482, %v8483
      %v8485 = vmax.f32 %v8380, %v8381
      %v8486 = vmax.f32 %v8485, %v8382
      %v8487 = vmax.f32 %v8486, %v8383
      %v8488 = vmax.f32 %v8487, %v8384
      %v8489 = vmax.f32 %v8488, %v8385
      %v8490 = vmax.f32 %v8489, %v8386
      %v8491 = vmax.f32 %v8490, %v8387
      %v8492 = vmax.f32 %v8491, %v8388
      %v8493 = vmax.f32 %v8492, %v8389
      %v8494 = vmax.f32 %v8493, %v8390
      %v8495 = vmax.f32 %v8494, %v8391
      %v8496 = vmax.f32 %v8495, %v8392
      %v8497 = vmax.f32 %v8496, %v8393
      %v8498 = vmax.f32 %v8497, %v8394
      %v8499 = vmax.f32 %v8498, %v8395
      %v8500 = vmax.f32 %v8499, %v8396
      %v8501 = vmax.f32 %v8500, %v8397
      %v8502 = vmax.f32 %v8501, %v8398
      %v8503 = vmax.f32 %v8502, %v8399
      %v8504 = vmax.f32 %v8503, %v8400
      %v8505 = vmax.f32 %v8504, %v8401
      %v8506 = vmax.f32 %v8505, %v8402
      %v8507 = vmax.f32 %v8506, %v8403
      %v8508 = vmax.f32 %v8507, %v8404
      %v8509 = vrot.slane %v8508, 4
      %v8510 = vmax.f32 %v8508, %v8509
      %v8511 = vrot.slane %v8510, 2
      %v8512 = vmax.f32 %v8510, %v8511
      %v8513 = vrot.slane %v8512, 1
      %v8514 = vmax.f32 %v8512, %v8513
      %v8515 = vmax.f32 %v8405, %v8406
      %v8516 = vmax.f32 %v8515, %v8407
      %v8517 = vmax.f32 %v8516, %v8408
      %v8518 = vmax.f32 %v8517, %v8409
      %v8519 = vmax.f32 %v8518, %v8410
      %v8520 = vmax.f32 %v8519, %v8411
      %v8521 = vmax.f32 %v8520, %v8412
      %v8522 = vmax.f32 %v8521, %v8413
      %v8523 = vmax.f32 %v8522, %v8414
      %v8524 = vmax.f32 %v8523, %v8415
      %v8525 = vmax.f32 %v8524, %v8416
      %v8526 = vmax.f32 %v8525, %v8417
      %v8527 = vmax.f32 %v8526, %v8418
      %v8528 = vmax.f32 %v8527, %v8419
      %v8529 = vmax.f32 %v8528, %v8420
      %v8530 = vmax.f32 %v8529, %v8421
      %v8531 = vmax.f32 %v8530, %v8422
      %v8532 = vmax.f32 %v8531, %v8423
      %v8533 = vmax.f32 %v8532, %v8424
      %v8534 = vmax.f32 %v8533, %v8425
      %v8535 = vmax.f32 %v8534, %v8426
      %v8536 = vmax.f32 %v8535, %v8427
      %v8537 = vmax.f32 %v8536, %v8428
      %v8538 = vmax.f32 %v8537, %v8429
      %v8539 = vrot.slane %v8538, 4
      %v8540 = vmax.f32 %v8538, %v8539
      %v8541 = vrot.slane %v8540, 2
      %v8542 = vmax.f32 %v8540, %v8541
      %v8543 = vrot.slane %v8542, 1
      %v8544 = vmax.f32 %v8542, %v8543
      %v8545 = vmax.f32 %v8430, %v8431
      %v8546 = vmax.f32 %v8545, %v8432
      %v8547 = vmax.f32 %v8546, %v8433
      %v8548 = vmax.f32 %v8547, %v8434
      %v8549 = vmax.f32 %v8548, %v8435
      %v8550 = vmax.f32 %v8549, %v8436
      %v8551 = vmax.f32 %v8550, %v8437
      %v8552 = vmax.f32 %v8551, %v8438
      %v8553 = vmax.f32 %v8552, %v8439
      %v8554 = vmax.f32 %v8553, %v8440
      %v8555 = vmax.f32 %v8554, %v8441
      %v8556 = vmax.f32 %v8555, %v8442
      %v8557 = vmax.f32 %v8556, %v8443
      %v8558 = vmax.f32 %v8557, %v8444
      %v8559 = vmax.f32 %v8558, %v8445
      %v8560 = vmax.f32 %v8559, %v8446
      %v8561 = vmax.f32 %v8560, %v8447
      %v8562 = vmax.f32 %v8561, %v8448
      %v8563 = vmax.f32 %v8562, %v8449
      %v8564 = vmax.f32 %v8563, %v8450
      %v8565 = vmax.f32 %v8564, %v8451
      %v8566 = vmax.f32 %v8565, %v8452
      %v8567 = vmax.f32 %v8566, %v8453
      %v8568 = vmax.f32 %v8567, %v8454
      %v8569 = vrot.slane %v8568, 4
      %v8570 = vmax.f32 %v8568, %v8569
      %v8571 = vrot.slane %v8570, 2
      %v8572 = vmax.f32 %v8570, %v8571
      %v8573 = vrot.slane %v8572, 1
      %v8574 = vmax.f32 %v8572, %v8573
      %vm8579 = vcmask 1041409
      %v8580 = vsel %vm8579, %v7924, %v7894
      %vm8581 = vcmask 1042434
      %v8582 = vsel %vm8581, %v7954, %v8580
      %vm8583 = vcmask 1043459
      %v8584 = vsel %vm8583, %v7984, %v8582
      %v8589 = vsel %vm8579, %v8219, %v8189
      %v8590 = vsel %vm8581, %v8249, %v8589
      %v8591 = vsel %vm8583, %v8279, %v8590
      %v8596 = vsel %vm8579, %v8514, %v8484
      %v8597 = vsel %vm8581, %v8544, %v8596
      %v8598 = vsel %vm8583, %v8574, %v8597
      %v8600 = vrot.slane %v8591, 4
      %vm8601 = vcmask 1043456
      %v8602 = vsel %vm8601, %v8584, %v8600
      %8604 = vst [vmem:[%s170] sm:$0xff] %v8602
      %8605 = vst [vmem:[%s170 + $0x8] sm:$0xf] %v8598
      %p8606 = scmp.lt.s32.totalorder %s14, 1
      %s8607 = scalar_select %p8606, %s14, 1
      %s8608 = smul.addr %s8607, 3
      %s8609 = smul.addr %s8608, 4
      %s8610 = scalar_lea.vmem %s3, %s8609
      // Predicated region
      $region33: #{hst_mhsa_forward.5} parent=31 // pred_check
        %p8611 = pneg %p100
      $region34: #{hst_mhsa_forward.5} parent=31 // pred_check_branch
        %8613 = sbr.rel (%p8611) target = $region36
      $region35: #{hst_mhsa_forward.5} parent=31 // pred_region
        _
      $region36: #{hst_mhsa_forward.5} parent=31 // pred_fallthru
        _
    $region32: #{hst_mhsa_forward.5} parent=5 // pred_fallthru
      _
    %p8614 = scmp.le.s32.totalorder 2, %s9
    // Predicated region
    $region37: #{hst_mhsa_forward.5} parent=5 // pred_check
      %p8615 = pneg %p8614
    $region38: #{hst_mhsa_forward.5} parent=5 // pred_check_branch
      %8617 = sbr.rel (%p8615) target = $region40
    $region39: #{hst_mhsa_forward.5} parent=5 // pred_region
      %s8618 = ssub.s32 %s9, 2
      // Predicated region
      $region41: #{hst_mhsa_forward.5} parent=39 // pred_check
        %p8619 = pneg %p106
      $region42: #{hst_mhsa_forward.5} parent=39 // pred_check_branch
        %8621 = sbr.rel (%p8619) target = $region44
      $region43: #{hst_mhsa_forward.5} parent=39 // pred_region
        %p8622 = scmp.lt.s32.totalorder %s15, 1
        %s8623 = scalar_select %p8622, %s15, 1
        %s8624 = smul.addr %s8623, 3
        %s8625 = smul.addr %s8624, 4
        %s8626 = scalar_lea.vmem %s3, %s8625
      $region44: #{hst_mhsa_forward.5} parent=39 // pred_fallthru
        _
    $region40: #{hst_mhsa_forward.5} parent=5 // pred_fallthru
      _
  $region6: #{hst_mhsa_forward.5} parent=0 // loop_footer
    %s13 = sadd.s32 1, %s9
  $region7: #{hst_mhsa_forward.5} parent=0 // loop_footer_branch
    %8 = sbr.rel target = $region3
  $region8: #{hst_mhsa_forward.5} parent=0 // loop_exit
    _

</llo_original>
